<compile_context>
chip_gen: v5e
topology: v5e:2x2
jax: 0.10.0
libtpu: 0.0.40
codegen_flags: <defaults>
</compile_context>

<pallas_src>
import functools

import numpy as np
import jax
import jax.numpy as jnp
from jax import lax
from jax.experimental import pallas as pl
from jax.experimental.pallas import tpu as pltpu

BN_EPS = 1e-5


def _vmem_spec():
    # whole-array block resident in VMEM (all operands here are tiny)
    return pl.BlockSpec(memory_space=pltpu.MemorySpace.VMEM)


# ----------------------------- fused Pallas kernel -----------------------------

def _fused_relation_kernel(N, H, W, C1, F, Ho1, Wo1, Ho2, Wo2, Hp2, Wp2,
                           x_ref, m1_ref, m2_ref,
                           w1_ref, b1_ref, g1_ref, bt1_ref,
                           w2_ref, b2_ref, g2_ref, bt2_ref,
                           fc1w_ref, fc1b_ref, fc2w_ref, fc2b_ref,
                           o_ref,
                           y1_ref, p1_ref, y2_ref, p2_ref):
    """Whole RelationLayer forward on a VMEM-resident (h, w, n)-row activation grid.

    x_ref   : (RF + pad, C1)  input rows ordered (h, w, n), zero-padded tail
    m1/m2   : (RF, 1)         1.0 on rows that are valid conv1 / conv2 outputs
    w1      : (9*C1, F)       conv1 weight, row = (dy*3+dx)*C1 + cin
    w2      : (9*F,  F)       conv2 weight, same layout
    fc1w    : (Hp2*Wp2*F, 8)  fc1 weight with rows reordered to [spatial][channel]
    o_ref   : (N, 1)          the only HBM output
    y1/p1/y2/p2 : VMEM scratch full-grid activations (+ padded tail rows)
    """
    RF = N * H * W

    # Zero-init scratch so padded-tail rows read by shifted taps are finite.
    y1_ref[...] = jnp.zeros_like(y1_ref)
    p1_ref[...] = jnp.zeros_like(p1_ref)
    y2_ref[...] = jnp.zeros_like(y2_ref)
    p2_ref[...] = jnp.zeros_like(p2_ref)

    m1 = m1_ref[...] > 0.5          # (RF, 1) bool, valid conv1 output rows
    m2 = m2_ref[...] > 0.5          # (RF, 1) bool, valid conv2 output rows

    # ---------------- block 1: Conv2d(2F->F, k3, valid) -------------------------
    acc1 = jnp.zeros((RF, F), jnp.float32)
    for t in range(9):
        dy, dx = t // 3, t % 3
        shift = (dy * W + dx) * N                     # uniform row shift for this tap
        xa = x_ref[pl.ds(shift, RF), :]               # (RF, C1) contiguous slice
        wt = w1_ref[pl.ds(t * C1, C1), :]             # (C1, F)
        acc1 = acc1 + jnp.dot(xa, wt, preferred_element_type=jnp.float32)
    acc1 = acc1 + b1_ref[...]

    # BatchNorm2d (train mode): batch mean / biased batch var over valid rows only.
    r1 = float(N * Ho1 * Wo1)
    mean1 = jnp.sum(jnp.where(m1, acc1, 0.0), axis=0, keepdims=True) * (1.0 / r1)
    cent1 = acc1 - mean1
    var1 = jnp.sum(jnp.where(m1, cent1 * cent1, 0.0), axis=0, keepdims=True) * (1.0 / r1)
    y1 = jnp.maximum(cent1 * lax.rsqrt(var1 + BN_EPS) * g1_ref[...] + bt1_ref[...], 0.0)
    y1_ref[pl.ds(0, RF), :] = y1

    # MaxPool2d(2): valid results live at even (h, w) positions of the full grid.
    p1 = jnp.maximum(
        jnp.maximum(y1_ref[pl.ds(0, RF), :], y1_ref[pl.ds(N, RF), :]),
        jnp.maximum(y1_ref[pl.ds(W * N, RF), :], y1_ref[pl.ds((W + 1) * N, RF), :]))
    p1_ref[pl.ds(0, RF), :] = p1

    # ---------------- block 2: Conv2d(F->F, k3, valid) on the stride-2 grid -----
    acc2 = jnp.zeros((RF, F), jnp.float32)
    for t in range(9):
        dy, dx = t // 3, t % 3
        shift = (2 * dy * W + 2 * dx) * N             # pooled grid has spatial stride 2
        pa = p1_ref[pl.ds(shift, RF), :]              # (RF, F)
        wt = w2_ref[pl.ds(t * F, F), :]               # (F, F)
        acc2 = acc2 + jnp.dot(pa, wt, preferred_element_type=jnp.float32)
    acc2 = acc2 + b2_ref[...]

    r2 = float(N * Ho2 * Wo2)
    mean2 = jnp.sum(jnp.where(m2, acc2, 0.0), axis=0, keepdims=True) * (1.0 / r2)
    cent2 = acc2 - mean2
    var2 = jnp.sum(jnp.where(m2, cent2 * cent2, 0.0), axis=0, keepdims=True) * (1.0 / r2)
    y2 = jnp.maximum(cent2 * lax.rsqrt(var2 + BN_EPS) * g2_ref[...] + bt2_ref[...], 0.0)
    y2_ref[pl.ds(0, RF), :] = y2

    # MaxPool2d(2) on the stride-2 grid: valid results at (h, w) multiples of 4.
    p2 = jnp.maximum(
        jnp.maximum(y2_ref[pl.ds(0, RF), :], y2_ref[pl.ds(2 * N, RF), :]),
        jnp.maximum(y2_ref[pl.ds(2 * W * N, RF), :], y2_ref[pl.ds((2 * W + 2) * N, RF), :]))
    p2_ref[pl.ds(0, RF), :] = p2

    # ---------------- FC head: Linear(F*Hp2*Wp2 -> 8) + ReLU + Linear(8 -> 1) ---
    nh = fc1w_ref.shape[1]
    h1 = jnp.zeros((N, nh), jnp.float32)
    for s in range(Hp2 * Wp2):
        hp, wp = s // Wp2, s % Wp2
        off = (4 * hp * W + 4 * wp) * N               # N consecutive rows = all samples
        feat_s = p2_ref[pl.ds(off, N), :]             # (N, F)
        w_s = fc1w_ref[pl.ds(s * F, F), :]            # (F, 8) rows ordered by channel
        h1 = h1 + jnp.dot(feat_s, w_s, preferred_element_type=jnp.float32)
    h1 = jnp.maximum(h1 + fc1b_ref[...], 0.0)
    o_ref[...] = jnp.dot(h1, fc2w_ref[...], preferred_element_type=jnp.float32) + fc2b_ref[...]


# ----------------------------- wrapper -----------------------------

def relation_layer_forward(x_nchw, params):
    N, C1, H, W = x_nchw.shape
    F = params["conv1_w"].shape[0]
    Ho1, Wo1 = H - 2, W - 2
    Hp1, Wp1 = Ho1 // 2, Wo1 // 2
    Ho2, Wo2 = Hp1 - 2, Wp1 - 2
    Hp2, Wp2 = Ho2 // 2, Wo2 // 2
    S = Hp2 * Wp2
    RF = N * H * W
    PAD_ROWS = (4 * W + 4) * N        # largest tap shift (conv2 on the stride-2 grid)

    # Rows ordered (h, w, n): every conv/pool tap becomes a contiguous row slice and
    # the sample index (fastest axis) is never crossed by a shift.
    x_rows = jnp.transpose(x_nchw, (2, 3, 0, 1)).reshape(RF, C1)
    x_rows = jnp.pad(x_rows, ((0, PAD_ROWS), (0, 0)))

    # Validity masks for the full (h, w, n) grid (compile-time constants).
    r = np.arange(RF)
    h = r // (W * N)
    w = (r // N) % W
    m1 = ((h < Ho1) & (w < Wo1)).astype(np.float32).reshape(RF, 1)
    m2 = ((h % 2 == 0) & (w % 2 == 0) & (h < 2 * Ho2) & (w < 2 * Wo2)
          ).astype(np.float32).reshape(RF, 1)

    # Conv weights: PyTorch (Cout, Cin, kh, kw) -> (9*Cin, Cout), row = (dy,dx,cin).
    w1 = jnp.transpose(params["conv1_w"], (2, 3, 1, 0)).reshape(9 * C1, F)
    w2 = jnp.transpose(params["conv2_w"], (2, 3, 1, 0)).reshape(9 * F, F)
    # fc1 weight: reorder rows from PyTorch [channel][spatial] to [spatial][channel].
    nh = params["fc1_b"].shape[0]
    fc1w = jnp.transpose(params["fc1_w"].reshape(F, S, nh), (1, 0, 2)).reshape(S * F, nh)

    kernel = functools.partial(_fused_relation_kernel,
                               N, H, W, C1, F, Ho1, Wo1, Ho2, Wo2, Hp2, Wp2)

    out = pl.pallas_call(
        kernel,
        out_shape=jax.ShapeDtypeStruct((N, 1), jnp.float32),
        in_specs=[_vmem_spec()] * 15,
        out_specs=_vmem_spec(),
        scratch_shapes=[
            pltpu.VMEM((RF + PAD_ROWS, F), jnp.float32),   # y1: conv1+BN+ReLU
            pltpu.VMEM((RF + PAD_ROWS, F), jnp.float32),   # p1: pool1
            pltpu.VMEM((RF + PAD_ROWS, F), jnp.float32),   # y2: conv2+BN+ReLU
            pltpu.VMEM((RF + PAD_ROWS, F), jnp.float32),   # p2: pool2
        ],
    )(x_rows, jnp.asarray(m1), jnp.asarray(m2),
      w1, params["conv1_b"].reshape(1, F),
      params["bn1_g"].reshape(1, F), params["bn1_b"].reshape(1, F),
      w2, params["conv2_b"].reshape(1, F),
      params["bn2_g"].reshape(1, F), params["bn2_b"].reshape(1, F),
      fc1w, params["fc1_b"].reshape(1, nh),
      params["fc2_w"], params["fc2_b"].reshape(1, 1))
    return out


# ----------------------------- pure-JAX reference (for verification) -----------------------------

def _reference_forward(x, params):
    def conv(x, w, b):
        y = lax.conv_general_dilated(x, w, (1, 1), "VALID",
                                     dimension_numbers=("NCHW", "OIHW", "NCHW"),
                                     precision=lax.Precision.HIGHEST)
        return y + b.reshape(1, -1, 1, 1)

    def bn(y, g, bt):
        mean = jnp.mean(y, axis=(0, 2, 3), keepdims=True)
        var = jnp.mean((y - mean) ** 2, axis=(0, 2, 3), keepdims=True)
        return (y - mean) * lax.rsqrt(var + BN_EPS) * g.reshape(1, -1, 1, 1) + bt.reshape(1, -1, 1, 1)

    def pool(y):
        return lax.reduce_window(y, -jnp.inf, lax.max, (1, 1, 2, 2), (1, 1, 2, 2), "VALID")

    y = pool(jax.nn.relu(bn(conv(x, params["conv1_w"], params["conv1_b"]),
                            params["bn1_g"], params["bn1_b"])))
    y = pool(jax.nn.relu(bn(conv(y, params["conv2_w"], params["conv2_b"]),
                            params["bn2_g"], params["bn2_b"])))
    feat = y.reshape(x.shape[0], -1)
    h = jax.nn.relu(jnp.dot(feat, params["fc1_w"], precision=lax.Precision.HIGHEST)
                    + params["fc1_b"])
    return jnp.dot(h, params["fc2_w"], precision=lax.Precision.HIGHEST) + params["fc2_b"]


# ----------------------------- demo / smoke test -----------------------------

if __name__ == "__main__":
    FEAT_DIM = 8                 # RelationLayer(feat_dim=8, feat_height=2, feat_width=2)
    N, HIN, WIN = 2, 14, 14      # 14 -> conv 12 -> pool 6 -> conv 4 -> pool 2
    FEAT_H = FEAT_W = 2

    key = jax.random.PRNGKey(0)
    ks = jax.random.split(key, 13)
    f32 = jnp.float32
    params = {
        # conv weights kept in PyTorch layout (Cout, Cin, kh, kw)
        "conv1_w": 0.1 * jax.random.normal(ks[0], (FEAT_DIM, 2 * FEAT_DIM, 3, 3), f32),
        "conv1_b": 0.1 * jax.random.normal(ks[1], (FEAT_DIM,), f32),
        "bn1_g": 1.0 + 0.1 * jax.random.normal(ks[2], (FEAT_DIM,), f32),
        "bn1_b": 0.1 * jax.random.normal(ks[3], (FEAT_DIM,), f32),
        "conv2_w": 0.1 * jax.random.normal(ks[4], (FEAT_DIM, FEAT_DIM, 3, 3), f32),
        "conv2_b": 0.1 * jax.random.normal(ks[5], (FEAT_DIM,), f32),
        "bn2_g": 1.0 + 0.1 * jax.random.normal(ks[6], (FEAT_DIM,), f32),
        "bn2_b": 0.1 * jax.random.normal(ks[7], (FEAT_DIM,), f32),
        # fc weights stored as (in, out) == transpose of PyTorch nn.Linear layout
        "fc1_w": 0.1 * jax.random.normal(ks[8], (FEAT_DIM * FEAT_H * FEAT_W, 8), f32),
        "fc1_b": 0.1 * jax.random.normal(ks[9], (8,), f32),
        "fc2_w": 0.1 * jax.random.normal(ks[10], (8, 1), f32),
        "fc2_b": 0.1 * jax.random.normal(ks[11], (1,), f32),
    }
    x = jax.random.normal(ks[12], (N, 2 * FEAT_DIM, HIN, WIN), f32)  # NCHW, like PyTorch

    out = jax.jit(relation_layer_forward)(x, params)
    out = jax.block_until_ready(out)
    assert out.shape == (N, 1) and bool(jnp.all(jnp.isfinite(out)))

    ref = jax.block_until_ready(jax.jit(_reference_forward)(x, params))
    assert bool(jnp.allclose(out, ref, atol=2e-3, rtol=2e-3)), (out, ref)

    print("KERNEL_OK")
</pallas_src>

<mosaic_0001>
module attributes {stable_mosaic.version = 11 : i64} {
  func.func @_fused_relation_kernel(%arg0: memref<512x16xf32, #tpu.memory_space<vmem>>, %arg1: memref<392x1xf32, #tpu.memory_space<vmem>>, %arg2: memref<392x1xf32, #tpu.memory_space<vmem>>, %arg3: memref<144x8xf32, #tpu.memory_space<vmem>>, %arg4: memref<1x8xf32, #tpu.memory_space<vmem>>, %arg5: memref<1x8xf32, #tpu.memory_space<vmem>>, %arg6: memref<1x8xf32, #tpu.memory_space<vmem>>, %arg7: memref<72x8xf32, #tpu.memory_space<vmem>>, %arg8: memref<1x8xf32, #tpu.memory_space<vmem>>, %arg9: memref<1x8xf32, #tpu.memory_space<vmem>>, %arg10: memref<1x8xf32, #tpu.memory_space<vmem>>, %arg11: memref<32x8xf32, #tpu.memory_space<vmem>>, %arg12: memref<1x8xf32, #tpu.memory_space<vmem>>, %arg13: memref<8x1xf32, #tpu.memory_space<vmem>>, %arg14: memref<1x1xf32, #tpu.memory_space<vmem>>, %arg15: memref<2x1xf32, #tpu.memory_space<vmem>>, %arg16: memref<512x8xf32, #tpu.memory_space<vmem>>, %arg17: memref<512x8xf32, #tpu.memory_space<vmem>>, %arg18: memref<512x8xf32, #tpu.memory_space<vmem>>, %arg19: memref<512x8xf32, #tpu.memory_space<vmem>>) attributes {dimension_semantics = [], scalar_prefetch = 0 : i64, scratch_operands = 4 : i64, tpu.core_type = #tpu.core_type<tc>} {
    %cst = arith.constant 0.000000e+00 : f32
    %0 = vector.broadcast %cst : f32 to vector<512x8xf32>
    %c0 = arith.constant 0 : index
    %c0_0 = arith.constant 0 : index
    %1 = vector.load %arg16[%c0, %c0_0] : memref<512x8xf32, #tpu.memory_space<vmem>>, vector<512x8xf32>
    tpu.vector_store %arg16[%c0, %c0_0], %0 {strides = array<i32>} : memref<512x8xf32, #tpu.memory_space<vmem>>, vector<512x8xf32>,
    %cst_1 = arith.constant 0.000000e+00 : f32
    %2 = vector.broadcast %cst_1 : f32 to vector<512x8xf32>
    %c0_2 = arith.constant 0 : index
    %c0_3 = arith.constant 0 : index
    %3 = vector.load %arg17[%c0_2, %c0_3] : memref<512x8xf32, #tpu.memory_space<vmem>>, vector<512x8xf32>
    tpu.vector_store %arg17[%c0_2, %c0_3], %2 {strides = array<i32>} : memref<512x8xf32, #tpu.memory_space<vmem>>, vector<512x8xf32>,
    %cst_4 = arith.constant 0.000000e+00 : f32
    %4 = vector.broadcast %cst_4 : f32 to vector<512x8xf32>
    %c0_5 = arith.constant 0 : index
    %c0_6 = arith.constant 0 : index
    %5 = vector.load %arg18[%c0_5, %c0_6] : memref<512x8xf32, #tpu.memory_space<vmem>>, vector<512x8xf32>
    tpu.vector_store %arg18[%c0_5, %c0_6], %4 {strides = array<i32>} : memref<512x8xf32, #tpu.memory_space<vmem>>, vector<512x8xf32>,
    %cst_7 = arith.constant 0.000000e+00 : f32
    %6 = vector.broadcast %cst_7 : f32 to vector<512x8xf32>
    %c0_8 = arith.constant 0 : index
    %c0_9 = arith.constant 0 : index
    %7 = vector.load %arg19[%c0_8, %c0_9] : memref<512x8xf32, #tpu.memory_space<vmem>>, vector<512x8xf32>
    tpu.vector_store %arg19[%c0_8, %c0_9], %6 {strides = array<i32>} : memref<512x8xf32, #tpu.memory_space<vmem>>, vector<512x8xf32>,
    %c0_10 = arith.constant 0 : index
    %c0_11 = arith.constant 0 : index
    %8 = vector.load %arg1[%c0_10, %c0_11] : memref<392x1xf32, #tpu.memory_space<vmem>>, vector<392x1xf32>
    %cst_12 = arith.constant 5.000000e-01 : f32
    %9 = vector.broadcast %cst_12 : f32 to vector<392x1xf32>
    %10 = arith.cmpf ogt, %8, %9 : vector<392x1xf32>
    %c0_13 = arith.constant 0 : index
    %c0_14 = arith.constant 0 : index
    %11 = vector.load %arg2[%c0_13, %c0_14] : memref<392x1xf32, #tpu.memory_space<vmem>>, vector<392x1xf32>
    %cst_15 = arith.constant 5.000000e-01 : f32
    %12 = vector.broadcast %cst_15 : f32 to vector<392x1xf32>
    %13 = arith.cmpf ogt, %11, %12 : vector<392x1xf32>
    %cst_16 = arith.constant 0.000000e+00 : f32
    %14 = vector.broadcast %cst_16 : f32 to vector<392x8xf32>
    %c0_17 = arith.constant 0 : index
    %c0_18 = arith.constant 0 : index
    %15 = vector.load %arg0[%c0_17, %c0_18] : memref<512x16xf32, #tpu.memory_space<vmem>>, vector<392x16xf32>
    %c0_19 = arith.constant 0 : index
    %c0_20 = arith.constant 0 : index
    %16 = vector.load %arg3[%c0_19, %c0_20] : memref<144x8xf32, #tpu.memory_space<vmem>>, vector<16x8xf32>
    %cst_21 = arith.constant dense<0.000000e+00> : vector<392x8xf32>
    %17 = tpu.matmul %15, %16, %cst_21 {dimension_numbers = #tpu.dot_dimension_numbers<[1], [0], [0], [1], [0, 0, 1, 1], [], []>} : vector<392x16xf32>, vector<16x8xf32>, vector<392x8xf32> -> vector<392x8xf32>
    %18 = arith.addf %14, %17 : vector<392x8xf32>
    %c2 = arith.constant 2 : index
    %c0_22 = arith.constant 0 : index
    %19 = vector.load %arg0[%c2, %c0_22] : memref<512x16xf32, #tpu.memory_space<vmem>>, vector<392x16xf32>
    %c16 = arith.constant 16 : index
    %c0_23 = arith.constant 0 : index
    %20 = vector.load %arg3[%c16, %c0_23] : memref<144x8xf32, #tpu.memory_space<vmem>>, vector<16x8xf32>
    %cst_24 = arith.constant dense<0.000000e+00> : vector<392x8xf32>
    %21 = tpu.matmul %19, %20, %cst_24 {dimension_numbers = #tpu.dot_dimension_numbers<[1], [0], [0], [1], [0, 0, 1, 1], [], []>} : vector<392x16xf32>, vector<16x8xf32>, vector<392x8xf32> -> vector<392x8xf32>
    %22 = arith.addf %18, %21 : vector<392x8xf32>
    %c4 = arith.constant 4 : index
    %c0_25 = arith.constant 0 : index
    %23 = vector.load %arg0[%c4, %c0_25] : memref<512x16xf32, #tpu.memory_space<vmem>>, vector<392x16xf32>
    %c32 = arith.constant 32 : index
    %c0_26 = arith.constant 0 : index
    %24 = vector.load %arg3[%c32, %c0_26] : memref<144x8xf32, #tpu.memory_space<vmem>>, vector<16x8xf32>
    %cst_27 = arith.constant dense<0.000000e+00> : vector<392x8xf32>
    %25 = tpu.matmul %23, %24, %cst_27 {dimension_numbers = #tpu.dot_dimension_numbers<[1], [0], [0], [1], [0, 0, 1, 1], [], []>} : vector<392x16xf32>, vector<16x8xf32>, vector<392x8xf32> -> vector<392x8xf32>
    %26 = arith.addf %22, %25 : vector<392x8xf32>
    %c28 = arith.constant 28 : index
    %c0_28 = arith.constant 0 : index
    %27 = vector.load %arg0[%c28, %c0_28] : memref<512x16xf32, #tpu.memory_space<vmem>>, vector<392x16xf32>
    %c48 = arith.constant 48 : index
    %c0_29 = arith.constant 0 : index
    %28 = vector.load %arg3[%c48, %c0_29] : memref<144x8xf32, #tpu.memory_space<vmem>>, vector<16x8xf32>
    %cst_30 = arith.constant dense<0.000000e+00> : vector<392x8xf32>
    %29 = tpu.matmul %27, %28, %cst_30 {dimension_numbers = #tpu.dot_dimension_numbers<[1], [0], [0], [1], [0, 0, 1, 1], [], []>} : vector<392x16xf32>, vector<16x8xf32>, vector<392x8xf32> -> vector<392x8xf32>
    %30 = arith.addf %26, %29 : vector<392x8xf32>
    %c30 = arith.constant 30 : index
    %c0_31 = arith.constant 0 : index
    %31 = vector.load %arg0[%c30, %c0_31] : memref<512x16xf32, #tpu.memory_space<vmem>>, vector<392x16xf32>
    %c64 = arith.constant 64 : index
    %c0_32 = arith.constant 0 : index
    %32 = vector.load %arg3[%c64, %c0_32] : memref<144x8xf32, #tpu.memory_space<vmem>>, vector<16x8xf32>
    %cst_33 = arith.constant dense<0.000000e+00> : vector<392x8xf32>
    %33 = tpu.matmul %31, %32, %cst_33 {dimension_numbers = #tpu.dot_dimension_numbers<[1], [0], [0], [1], [0, 0, 1, 1], [], []>} : vector<392x16xf32>, vector<16x8xf32>, vector<392x8xf32> -> vector<392x8xf32>
    %34 = arith.addf %30, %33 : vector<392x8xf32>
    %c32_34 = arith.constant 32 : index
    %c0_35 = arith.constant 0 : index
    %35 = vector.load %arg0[%c32_34, %c0_35] : memref<512x16xf32, #tpu.memory_space<vmem>>, vector<392x16xf32>
    %c80 = arith.constant 80 : index
    %c0_36 = arith.constant 0 : index
    %36 = vector.load %arg3[%c80, %c0_36] : memref<144x8xf32, #tpu.memory_space<vmem>>, vector<16x8xf32>
    %cst_37 = arith.constant dense<0.000000e+00> : vector<392x8xf32>
    %37 = tpu.matmul %35, %36, %cst_37 {dimension_numbers = #tpu.dot_dimension_numbers<[1], [0], [0], [1], [0, 0, 1, 1], [], []>} : vector<392x16xf32>, vector<16x8xf32>, vector<392x8xf32> -> vector<392x8xf32>
    %38 = arith.addf %34, %37 : vector<392x8xf32>
    %c56 = arith.constant 56 : index
    %c0_38 = arith.constant 0 : index
    %39 = vector.load %arg0[%c56, %c0_38] : memref<512x16xf32, #tpu.memory_space<vmem>>, vector<392x16xf32>
    %c96 = arith.constant 96 : index
    %c0_39 = arith.constant 0 : index
    %40 = vector.load %arg3[%c96, %c0_39] : memref<144x8xf32, #tpu.memory_space<vmem>>, vector<16x8xf32>
    %cst_40 = arith.constant dense<0.000000e+00> : vector<392x8xf32>
    %41 = tpu.matmul %39, %40, %cst_40 {dimension_numbers = #tpu.dot_dimension_numbers<[1], [0], [0], [1], [0, 0, 1, 1], [], []>} : vector<392x16xf32>, vector<16x8xf32>, vector<392x8xf32> -> vector<392x8xf32>
    %42 = arith.addf %38, %41 : vector<392x8xf32>
    %c58 = arith.constant 58 : index
    %c0_41 = arith.constant 0 : index
    %43 = vector.load %arg0[%c58, %c0_41] : memref<512x16xf32, #tpu.memory_space<vmem>>, vector<392x16xf32>
    %c112 = arith.constant 112 : index
    %c0_42 = arith.constant 0 : index
    %44 = vector.load %arg3[%c112, %c0_42] : memref<144x8xf32, #tpu.memory_space<vmem>>, vector<16x8xf32>
    %cst_43 = arith.constant dense<0.000000e+00> : vector<392x8xf32>
    %45 = tpu.matmul %43, %44, %cst_43 {dimension_numbers = #tpu.dot_dimension_numbers<[1], [0], [0], [1], [0, 0, 1, 1], [], []>} : vector<392x16xf32>, vector<16x8xf32>, vector<392x8xf32> -> vector<392x8xf32>
    %46 = arith.addf %42, %45 : vector<392x8xf32>
    %c60 = arith.constant 60 : index
    %c0_44 = arith.constant 0 : index
    %47 = vector.load %arg0[%c60, %c0_44] : memref<512x16xf32, #tpu.memory_space<vmem>>, vector<392x16xf32>
    %c128 = arith.constant 128 : index
    %c0_45 = arith.constant 0 : index
    %48 = vector.load %arg3[%c128, %c0_45] : memref<144x8xf32, #tpu.memory_space<vmem>>, vector<16x8xf32>
    %cst_46 = arith.constant dense<0.000000e+00> : vector<392x8xf32>
    %49 = tpu.matmul %47, %48, %cst_46 {dimension_numbers = #tpu.dot_dimension_numbers<[1], [0], [0], [1], [0, 0, 1, 1], [], []>} : vector<392x16xf32>, vector<16x8xf32>, vector<392x8xf32> -> vector<392x8xf32>
    %50 = arith.addf %46, %49 : vector<392x8xf32>
    %c0_47 = arith.constant 0 : index
    %c0_48 = arith.constant 0 : index
    %51 = vector.load %arg4[%c0_47, %c0_48] : memref<1x8xf32, #tpu.memory_space<vmem>>, vector<1x8xf32>
    %52 = vector.broadcast %51 : vector<1x8xf32> to vector<392x8xf32>
    %53 = arith.addf %50, %52 : vector<392x8xf32>
    %cst_49 = arith.constant 0.000000e+00 : f32
    %54 = vector.shape_cast %10 : vector<392x1xi1> to vector<392x1xi1>
    %55 = vector.broadcast %54 : vector<392x1xi1> to vector<392x8xi1>
    %56 = vector.broadcast %cst_49 : f32 to vector<392x8xf32>
    %57 = arith.select %55, %53, %56 : vector<392x8xi1>, vector<392x8xf32>
    %cst_50 = arith.constant dense<0.000000e+00> : vector<8xf32>
    %58 = vector.multi_reduction <add>, %57, %cst_50 [0] : vector<392x8xf32> to vector<8xf32>
    %59 = vector.shape_cast %58 : vector<8xf32> to vector<1x8xf32>
    %cst_51 = arith.constant 0.00347222225 : f32
    %60 = vector.broadcast %cst_51 : f32 to vector<1x8xf32>
    %61 = arith.mulf %59, %60 : vector<1x8xf32>
    %62 = vector.broadcast %61 : vector<1x8xf32> to vector<392x8xf32>
    %63 = arith.subf %53, %62 : vector<392x8xf32>
    %64 = arith.mulf %63, %63 : vector<392x8xf32>
    %cst_52 = arith.constant 0.000000e+00 : f32
    %65 = vector.shape_cast %10 : vector<392x1xi1> to vector<392x1xi1>
    %66 = vector.broadcast %65 : vector<392x1xi1> to vector<392x8xi1>
    %67 = vector.broadcast %cst_52 : f32 to vector<392x8xf32>
    %68 = arith.select %66, %64, %67 : vector<392x8xi1>, vector<392x8xf32>
    %cst_53 = arith.constant dense<0.000000e+00> : vector<8xf32>
    %69 = vector.multi_reduction <add>, %68, %cst_53 [0] : vector<392x8xf32> to vector<8xf32>
    %70 = vector.shape_cast %69 : vector<8xf32> to vector<1x8xf32>
    %cst_54 = arith.constant 0.00347222225 : f32
    %71 = vector.broadcast %cst_54 : f32 to vector<1x8xf32>
    %72 = arith.mulf %70, %71 : vector<1x8xf32>
    %cst_55 = arith.constant 9.99999974E-6 : f32
    %73 = vector.broadcast %cst_55 : f32 to vector<1x8xf32>
    %74 = arith.addf %72, %73 : vector<1x8xf32>
    %75 = math.rsqrt %74 : vector<1x8xf32>
    %76 = vector.broadcast %75 : vector<1x8xf32> to vector<392x8xf32>
    %77 = arith.mulf %63, %76 : vector<392x8xf32>
    %c0_56 = arith.constant 0 : index
    %c0_57 = arith.constant 0 : index
    %78 = vector.load %arg5[%c0_56, %c0_57] : memref<1x8xf32, #tpu.memory_space<vmem>>, vector<1x8xf32>
    %79 = vector.broadcast %78 : vector<1x8xf32> to vector<392x8xf32>
    %80 = arith.mulf %77, %79 : vector<392x8xf32>
    %c0_58 = arith.constant 0 : index
    %c0_59 = arith.constant 0 : index
    %81 = vector.load %arg6[%c0_58, %c0_59] : memref<1x8xf32, #tpu.memory_space<vmem>>, vector<1x8xf32>
    %82 = vector.broadcast %81 : vector<1x8xf32> to vector<392x8xf32>
    %83 = arith.addf %80, %82 : vector<392x8xf32>
    %cst_60 = arith.constant 0.000000e+00 : f32
    %84 = vector.broadcast %cst_60 : f32 to vector<392x8xf32>
    %85 = arith.maximumf %83, %84 : vector<392x8xf32>
    %c0_61 = arith.constant 0 : index
    %c0_62 = arith.constant 0 : index
    %86 = vector.load %arg16[%c0_61, %c0_62] : memref<512x8xf32, #tpu.memory_space<vmem>>, vector<392x8xf32>
    tpu.vector_store %arg16[%c0_61, %c0_62], %85 {strides = array<i32>} : memref<512x8xf32, #tpu.memory_space<vmem>>, vector<392x8xf32>,
    %c0_63 = arith.constant 0 : index
    %c0_64 = arith.constant 0 : index
    %87 = vector.load %arg16[%c0_63, %c0_64] : memref<512x8xf32, #tpu.memory_space<vmem>>, vector<392x8xf32>
    %c2_65 = arith.constant 2 : index
    %c0_66 = arith.constant 0 : index
    %88 = vector.load %arg16[%c2_65, %c0_66] : memref<512x8xf32, #tpu.memory_space<vmem>>, vector<392x8xf32>
    %89 = arith.maximumf %87, %88 : vector<392x8xf32>
    %c28_67 = arith.constant 28 : index
    %c0_68 = arith.constant 0 : index
    %90 = vector.load %arg16[%c28_67, %c0_68] : memref<512x8xf32, #tpu.memory_space<vmem>>, vector<392x8xf32>
    %c30_69 = arith.constant 30 : index
    %c0_70 = arith.constant 0 : index
    %91 = vector.load %arg16[%c30_69, %c0_70] : memref<512x8xf32, #tpu.memory_space<vmem>>, vector<392x8xf32>
    %92 = arith.maximumf %90, %91 : vector<392x8xf32>
    %93 = arith.maximumf %89, %92 : vector<392x8xf32>
    %c0_71 = arith.constant 0 : index
    %c0_72 = arith.constant 0 : index
    %94 = vector.load %arg17[%c0_71, %c0_72] : memref<512x8xf32, #tpu.memory_space<vmem>>, vector<392x8xf32>
    tpu.vector_store %arg17[%c0_71, %c0_72], %93 {strides = array<i32>} : memref<512x8xf32, #tpu.memory_space<vmem>>, vector<392x8xf32>,
    %cst_73 = arith.constant 0.000000e+00 : f32
    %95 = vector.broadcast %cst_73 : f32 to vector<392x8xf32>
    %c0_74 = arith.constant 0 : index
    %c0_75 = arith.constant 0 : index
    %96 = vector.load %arg17[%c0_74, %c0_75] : memref<512x8xf32, #tpu.memory_space<vmem>>, vector<392x8xf32>
    %c0_76 = arith.constant 0 : index
    %c0_77 = arith.constant 0 : index
    %97 = vector.load %arg7[%c0_76, %c0_77] : memref<72x8xf32, #tpu.memory_space<vmem>>, vector<8x8xf32>
    %cst_78 = arith.constant dense<0.000000e+00> : vector<392x8xf32>
    %98 = tpu.matmul %96, %97, %cst_78 {dimension_numbers = #tpu.dot_dimension_numbers<[1], [0], [0], [1], [0, 0, 1, 1], [], []>} : vector<392x8xf32>, vector<8x8xf32>, vector<392x8xf32> -> vector<392x8xf32>
    %99 = arith.addf %95, %98 : vector<392x8xf32>
    %c4_79 = arith.constant 4 : index
    %c0_80 = arith.constant 0 : index
    %100 = vector.load %arg17[%c4_79, %c0_80] : memref<512x8xf32, #tpu.memory_space<vmem>>, vector<392x8xf32>
    %c8 = arith.constant 8 : index
    %c0_81 = arith.constant 0 : index
    %101 = vector.load %arg7[%c8, %c0_81] : memref<72x8xf32, #tpu.memory_space<vmem>>, vector<8x8xf32>
    %cst_82 = arith.constant dense<0.000000e+00> : vector<392x8xf32>
    %102 = tpu.matmul %100, %101, %cst_82 {dimension_numbers = #tpu.dot_dimension_numbers<[1], [0], [0], [1], [0, 0, 1, 1], [], []>} : vector<392x8xf32>, vector<8x8xf32>, vector<392x8xf32> -> vector<392x8xf32>
    %103 = arith.addf %99, %102 : vector<392x8xf32>
    %c8_83 = arith.constant 8 : index
    %c0_84 = arith.constant 0 : index
    %104 = vector.load %arg17[%c8_83, %c0_84] : memref<512x8xf32, #tpu.memory_space<vmem>>, vector<392x8xf32>
    %c16_85 = arith.constant 16 : index
    %c0_86 = arith.constant 0 : index
    %105 = vector.load %arg7[%c16_85, %c0_86] : memref<72x8xf32, #tpu.memory_space<vmem>>, vector<8x8xf32>
    %cst_87 = arith.constant dense<0.000000e+00> : vector<392x8xf32>
    %106 = tpu.matmul %104, %105, %cst_87 {dimension_numbers = #tpu.dot_dimension_numbers<[1], [0], [0], [1], [0, 0, 1, 1], [], []>} : vector<392x8xf32>, vector<8x8xf32>, vector<392x8xf32> -> vector<392x8xf32>
    %107 = arith.addf %103, %106 : vector<392x8xf32>
    %c56_88 = arith.constant 56 : index
    %c0_89 = arith.constant 0 : index
    %108 = vector.load %arg17[%c56_88, %c0_89] : memref<512x8xf32, #tpu.memory_space<vmem>>, vector<392x8xf32>
    %c24 = arith.constant 24 : index
    %c0_90 = arith.constant 0 : index
    %109 = vector.load %arg7[%c24, %c0_90] : memref<72x8xf32, #tpu.memory_space<vmem>>, vector<8x8xf32>
    %cst_91 = arith.constant dense<0.000000e+00> : vector<392x8xf32>
    %110 = tpu.matmul %108, %109, %cst_91 {dimension_numbers = #tpu.dot_dimension_numbers<[1], [0], [0], [1], [0, 0, 1, 1], [], []>} : vector<392x8xf32>, vector<8x8xf32>, vector<392x8xf32> -> vector<392x8xf32>
    %111 = arith.addf %107, %110 : vector<392x8xf32>
    %c60_92 = arith.constant 60 : index
    %c0_93 = arith.constant 0 : index
    %112 = vector.load %arg17[%c60_92, %c0_93] : memref<512x8xf32, #tpu.memory_space<vmem>>, vector<392x8xf32>
    %c32_94 = arith.constant 32 : index
    %c0_95 = arith.constant 0 : index
    %113 = vector.load %arg7[%c32_94, %c0_95] : memref<72x8xf32, #tpu.memory_space<vmem>>, vector<8x8xf32>
    %cst_96 = arith.constant dense<0.000000e+00> : vector<392x8xf32>
    %114 = tpu.matmul %112, %113, %cst_96 {dimension_numbers = #tpu.dot_dimension_numbers<[1], [0], [0], [1], [0, 0, 1, 1], [], []>} : vector<392x8xf32>, vector<8x8xf32>, vector<392x8xf32> -> vector<392x8xf32>
    %115 = arith.addf %111, %114 : vector<392x8xf32>
    %c64_97 = arith.constant 64 : index
    %c0_98 = arith.constant 0 : index
    %116 = vector.load %arg17[%c64_97, %c0_98] : memref<512x8xf32, #tpu.memory_space<vmem>>, vector<392x8xf32>
    %c40 = arith.constant 40 : index
    %c0_99 = arith.constant 0 : index
    %117 = vector.load %arg7[%c40, %c0_99] : memref<72x8xf32, #tpu.memory_space<vmem>>, vector<8x8xf32>
    %cst_100 = arith.constant dense<0.000000e+00> : vector<392x8xf32>
    %118 = tpu.matmul %116, %117, %cst_100 {dimension_numbers = #tpu.dot_dimension_numbers<[1], [0], [0], [1], [0, 0, 1, 1], [], []>} : vector<392x8xf32>, vector<8x8xf32>, vector<392x8xf32> -> vector<392x8xf32>
    %119 = arith.addf %115, %118 : vector<392x8xf32>
    %c112_101 = arith.constant 112 : index
    %c0_102 = arith.constant 0 : index
    %120 = vector.load %arg17[%c112_101, %c0_102] : memref<512x8xf32, #tpu.memory_space<vmem>>, vector<392x8xf32>
    %c48_103 = arith.constant 48 : index
    %c0_104 = arith.constant 0 : index
    %121 = vector.load %arg7[%c48_103, %c0_104] : memref<72x8xf32, #tpu.memory_space<vmem>>, vector<8x8xf32>
    %cst_105 = arith.constant dense<0.000000e+00> : vector<392x8xf32>
    %122 = tpu.matmul %120, %121, %cst_105 {dimension_numbers = #tpu.dot_dimension_numbers<[1], [0], [0], [1], [0, 0, 1, 1], [], []>} : vector<392x8xf32>, vector<8x8xf32>, vector<392x8xf32> -> vector<392x8xf32>
    %123 = arith.addf %119, %122 : vector<392x8xf32>
    %c116 = arith.constant 116 : index
    %c0_106 = arith.constant 0 : index
    %124 = vector.load %arg17[%c116, %c0_106] : memref<512x8xf32, #tpu.memory_space<vmem>>, vector<392x8xf32>
    %c56_107 = arith.constant 56 : index
    %c0_108 = arith.constant 0 : index
    %125 = vector.load %arg7[%c56_107, %c0_108] : memref<72x8xf32, #tpu.memory_space<vmem>>, vector<8x8xf32>
    %cst_109 = arith.constant dense<0.000000e+00> : vector<392x8xf32>
    %126 = tpu.matmul %124, %125, %cst_109 {dimension_numbers = #tpu.dot_dimension_numbers<[1], [0], [0], [1], [0, 0, 1, 1], [], []>} : vector<392x8xf32>, vector<8x8xf32>, vector<392x8xf32> -> vector<392x8xf32>
    %127 = arith.addf %123, %126 : vector<392x8xf32>
    %c120 = arith.constant 120 : index
    %c0_110 = arith.constant 0 : index
    %128 = vector.load %arg17[%c120, %c0_110] : memref<512x8xf32, #tpu.memory_space<vmem>>, vector<392x8xf32>
    %c64_111 = arith.constant 64 : index
    %c0_112 = arith.constant 0 : index
    %129 = vector.load %arg7[%c64_111, %c0_112] : memref<72x8xf32, #tpu.memory_space<vmem>>, vector<8x8xf32>
    %cst_113 = arith.constant dense<0.000000e+00> : vector<392x8xf32>
    %130 = tpu.matmul %128, %129, %cst_113 {dimension_numbers = #tpu.dot_dimension_numbers<[1], [0], [0], [1], [0, 0, 1, 1], [], []>} : vector<392x8xf32>, vector<8x8xf32>, vector<392x8xf32> -> vector<392x8xf32>
    %131 = arith.addf %127, %130 : vector<392x8xf32>
    %c0_114 = arith.constant 0 : index
    %c0_115 = arith.constant 0 : index
    %132 = vector.load %arg8[%c0_114, %c0_115] : memref<1x8xf32, #tpu.memory_space<vmem>>, vector<1x8xf32>
    %133 = vector.broadcast %132 : vector<1x8xf32> to vector<392x8xf32>
    %134 = arith.addf %131, %133 : vector<392x8xf32>
    %cst_116 = arith.constant 0.000000e+00 : f32
    %135 = vector.shape_cast %13 : vector<392x1xi1> to vector<392x1xi1>
    %136 = vector.broadcast %135 : vector<392x1xi1> to vector<392x8xi1>
    %137 = vector.broadcast %cst_116 : f32 to vector<392x8xf32>
    %138 = arith.select %136, %134, %137 : vector<392x8xi1>, vector<392x8xf32>
    %cst_117 = arith.constant dense<0.000000e+00> : vector<8xf32>
    %139 = vector.multi_reduction <add>, %138, %cst_117 [0] : vector<392x8xf32> to vector<8xf32>
    %140 = vector.shape_cast %139 : vector<8xf32> to vector<1x8xf32>
    %cst_118 = arith.constant 3.125000e-02 : f32
    %141 = vector.broadcast %cst_118 : f32 to vector<1x8xf32>
    %142 = arith.mulf %140, %141 : vector<1x8xf32>
    %143 = vector.broadcast %142 : vector<1x8xf32> to vector<392x8xf32>
    %144 = arith.subf %134, %143 : vector<392x8xf32>
    %145 = arith.mulf %144, %144 : vector<392x8xf32>
    %cst_119 = arith.constant 0.000000e+00 : f32
    %146 = vector.shape_cast %13 : vector<392x1xi1> to vector<392x1xi1>
    %147 = vector.broadcast %146 : vector<392x1xi1> to vector<392x8xi1>
    %148 = vector.broadcast %cst_119 : f32 to vector<392x8xf32>
    %149 = arith.select %147, %145, %148 : vector<392x8xi1>, vector<392x8xf32>
    %cst_120 = arith.constant dense<0.000000e+00> : vector<8xf32>
    %150 = vector.multi_reduction <add>, %149, %cst_120 [0] : vector<392x8xf32> to vector<8xf32>
    %151 = vector.shape_cast %150 : vector<8xf32> to vector<1x8xf32>
    %cst_121 = arith.constant 3.125000e-02 : f32
    %152 = vector.broadcast %cst_121 : f32 to vector<1x8xf32>
    %153 = arith.mulf %151, %152 : vector<1x8xf32>
    %cst_122 = arith.constant 9.99999974E-6 : f32
    %154 = vector.broadcast %cst_122 : f32 to vector<1x8xf32>
    %155 = arith.addf %153, %154 : vector<1x8xf32>
    %156 = math.rsqrt %155 : vector<1x8xf32>
    %157 = vector.broadcast %156 : vector<1x8xf32> to vector<392x8xf32>
    %158 = arith.mulf %144, %157 : vector<392x8xf32>
    %c0_123 = arith.constant 0 : index
    %c0_124 = arith.constant 0 : index
    %159 = vector.load %arg9[%c0_123, %c0_124] : memref<1x8xf32, #tpu.memory_space<vmem>>, vector<1x8xf32>
    %160 = vector.broadcast %159 : vector<1x8xf32> to vector<392x8xf32>
    %161 = arith.mulf %158, %160 : vector<392x8xf32>
    %c0_125 = arith.constant 0 : index
    %c0_126 = arith.constant 0 : index
    %162 = vector.load %arg10[%c0_125, %c0_126] : memref<1x8xf32, #tpu.memory_space<vmem>>, vector<1x8xf32>
    %163 = vector.broadcast %162 : vector<1x8xf32> to vector<392x8xf32>
    %164 = arith.addf %161, %163 : vector<392x8xf32>
    %cst_127 = arith.constant 0.000000e+00 : f32
    %165 = vector.broadcast %cst_127 : f32 to vector<392x8xf32>
    %166 = arith.maximumf %164, %165 : vector<392x8xf32>
    %c0_128 = arith.constant 0 : index
    %c0_129 = arith.constant 0 : index
    %167 = vector.load %arg18[%c0_128, %c0_129] : memref<512x8xf32, #tpu.memory_space<vmem>>, vector<392x8xf32>
    tpu.vector_store %arg18[%c0_128, %c0_129], %166 {strides = array<i32>} : memref<512x8xf32, #tpu.memory_space<vmem>>, vector<392x8xf32>,
    %c0_130 = arith.constant 0 : index
    %c0_131 = arith.constant 0 : index
    %168 = vector.load %arg18[%c0_130, %c0_131] : memref<512x8xf32, #tpu.memory_space<vmem>>, vector<392x8xf32>
    %c4_132 = arith.constant 4 : index
    %c0_133 = arith.constant 0 : index
    %169 = vector.load %arg18[%c4_132, %c0_133] : memref<512x8xf32, #tpu.memory_space<vmem>>, vector<392x8xf32>
    %170 = arith.maximumf %168, %169 : vector<392x8xf32>
    %c56_134 = arith.constant 56 : index
    %c0_135 = arith.constant 0 : index
    %171 = vector.load %arg18[%c56_134, %c0_135] : memref<512x8xf32, #tpu.memory_space<vmem>>, vector<392x8xf32>
    %c60_136 = arith.constant 60 : index
    %c0_137 = arith.constant 0 : index
    %172 = vector.load %arg18[%c60_136, %c0_137] : memref<512x8xf32, #tpu.memory_space<vmem>>, vector<392x8xf32>
    %173 = arith.maximumf %171, %172 : vector<392x8xf32>
    %174 = arith.maximumf %170, %173 : vector<392x8xf32>
    %c0_138 = arith.constant 0 : index
    %c0_139 = arith.constant 0 : index
    %175 = vector.load %arg19[%c0_138, %c0_139] : memref<512x8xf32, #tpu.memory_space<vmem>>, vector<392x8xf32>
    tpu.vector_store %arg19[%c0_138, %c0_139], %174 {strides = array<i32>} : memref<512x8xf32, #tpu.memory_space<vmem>>, vector<392x8xf32>,
    %cst_140 = arith.constant 0.000000e+00 : f32
    %176 = vector.broadcast %cst_140 : f32 to vector<2x8xf32>
    %c0_141 = arith.constant 0 : index
    %c0_142 = arith.constant 0 : index
    %177 = vector.load %arg19[%c0_141, %c0_142] : memref<512x8xf32, #tpu.memory_space<vmem>>, vector<2x8xf32>
    %c0_143 = arith.constant 0 : index
    %c0_144 = arith.constant 0 : index
    %178 = vector.load %arg11[%c0_143, %c0_144] : memref<32x8xf32, #tpu.memory_space<vmem>>, vector<8x8xf32>
    %cst_145 = arith.constant dense<0.000000e+00> : vector<2x8xf32>
    %179 = tpu.matmul %177, %178, %cst_145 {dimension_numbers = #tpu.dot_dimension_numbers<[1], [0], [0], [1], [0, 0, 1, 1], [], []>} : vector<2x8xf32>, vector<8x8xf32>, vector<2x8xf32> -> vector<2x8xf32>
    %180 = arith.addf %176, %179 : vector<2x8xf32>
    %c8_146 = arith.constant 8 : index
    %c0_147 = arith.constant 0 : index
    %181 = vector.load %arg19[%c8_146, %c0_147] : memref<512x8xf32, #tpu.memory_space<vmem>>, vector<2x8xf32>
    %c8_148 = arith.constant 8 : index
    %c0_149 = arith.constant 0 : index
    %182 = vector.load %arg11[%c8_148, %c0_149] : memref<32x8xf32, #tpu.memory_space<vmem>>, vector<8x8xf32>
    %cst_150 = arith.constant dense<0.000000e+00> : vector<2x8xf32>
    %183 = tpu.matmul %181, %182, %cst_150 {dimension_numbers = #tpu.dot_dimension_numbers<[1], [0], [0], [1], [0, 0, 1, 1], [], []>} : vector<2x8xf32>, vector<8x8xf32>, vector<2x8xf32> -> vector<2x8xf32>
    %184 = arith.addf %180, %183 : vector<2x8xf32>
    %c112_151 = arith.constant 112 : index
    %c0_152 = arith.constant 0 : index
    %185 = vector.load %arg19[%c112_151, %c0_152] : memref<512x8xf32, #tpu.memory_space<vmem>>, vector<2x8xf32>
    %c16_153 = arith.constant 16 : index
    %c0_154 = arith.constant 0 : index
    %186 = vector.load %arg11[%c16_153, %c0_154] : memref<32x8xf32, #tpu.memory_space<vmem>>, vector<8x8xf32>
    %cst_155 = arith.constant dense<0.000000e+00> : vector<2x8xf32>
    %187 = tpu.matmul %185, %186, %cst_155 {dimension_numbers = #tpu.dot_dimension_numbers<[1], [0], [0], [1], [0, 0, 1, 1], [], []>} : vector<2x8xf32>, vector<8x8xf32>, vector<2x8xf32> -> vector<2x8xf32>
    %188 = arith.addf %184, %187 : vector<2x8xf32>
    %c120_156 = arith.constant 120 : index
    %c0_157 = arith.constant 0 : index
    %189 = vector.load %arg19[%c120_156, %c0_157] : memref<512x8xf32, #tpu.memory_space<vmem>>, vector<2x8xf32>
    %c24_158 = arith.constant 24 : index
    %c0_159 = arith.constant 0 : index
    %190 = vector.load %arg11[%c24_158, %c0_159] : memref<32x8xf32, #tpu.memory_space<vmem>>, vector<8x8xf32>
    %cst_160 = arith.constant dense<0.000000e+00> : vector<2x8xf32>
    %191 = tpu.matmul %189, %190, %cst_160 {dimension_numbers = #tpu.dot_dimension_numbers<[1], [0], [0], [1], [0, 0, 1, 1], [], []>} : vector<2x8xf32>, vector<8x8xf32>, vector<2x8xf32> -> vector<2x8xf32>
    %192 = arith.addf %188, %191 : vector<2x8xf32>
    %c0_161 = arith.constant 0 : index
    %c0_162 = arith.constant 0 : index
    %193 = vector.load %arg12[%c0_161, %c0_162] : memref<1x8xf32, #tpu.memory_space<vmem>>, vector<1x8xf32>
    %194 = vector.broadcast %193 : vector<1x8xf32> to vector<2x8xf32>
    %195 = arith.addf %192, %194 : vector<2x8xf32>
    %cst_163 = arith.constant 0.000000e+00 : f32
    %196 = vector.broadcast %cst_163 : f32 to vector<2x8xf32>
    %197 = arith.maximumf %195, %196 : vector<2x8xf32>
    %c0_164 = arith.constant 0 : index
    %c0_165 = arith.constant 0 : index
    %198 = vector.load %arg13[%c0_164, %c0_165] : memref<8x1xf32, #tpu.memory_space<vmem>>, vector<8x1xf32>
    %cst_166 = arith.constant dense<0.000000e+00> : vector<2x1xf32>
    %199 = tpu.matmul %197, %198, %cst_166 {dimension_numbers = #tpu.dot_dimension_numbers<[1], [0], [0], [1], [0, 0, 1, 1], [], []>} : vector<2x8xf32>, vector<8x1xf32>, vector<2x1xf32> -> vector<2x1xf32>
    %c0_167 = arith.constant 0 : index
    %c0_168 = arith.constant 0 : index
    %200 = vector.load %arg14[%c0_167, %c0_168] : memref<1x1xf32, #tpu.memory_space<vmem>>, vector<1x1xf32>
    %201 = vector.broadcast %200 : vector<1x1xf32> to vector<2x1xf32>
    %202 = arith.addf %199, %201 : vector<2x1xf32>
    %c0_169 = arith.constant 0 : index
    %c0_170 = arith.constant 0 : index
    %203 = vector.load %arg15[%c0_169, %c0_170] : memref<2x1xf32, #tpu.memory_space<vmem>>, vector<2x1xf32>
    tpu.vector_store %arg15[%c0_169, %c0_170], %202 {strides = array<i32>} : memref<2x1xf32, #tpu.memory_space<vmem>>, vector<2x1xf32>,
    return
  }
}

</mosaic_0001>

<llo_original>
// kernel: relation_layer_forward.1
$region0: #{relation_layer_forward.1}
  #allocation0 [shape = 'u32[]', space=smem, size = 0x4, offset = 0x4, fixed_abs, tag = 'smem constant byte address 0x4 - core index']
  #allocation1 [shape = 'u32[72,128]{1,0:T(1,128)}', space=vmem, size = 0x9000, scoped, tag = 'internal scratch']
  #allocation2 [shape = 'f32[512,8]{1,0:T(8,128)}', space=vmem, size = 0x40000, scoped, tag = 'scratch operand']
  #allocation3 [shape = 'f32[512,8]{1,0:T(8,128)}', space=vmem, size = 0x40000, scoped, tag = 'scratch operand']
  #allocation4 [shape = 'f32[512,8]{1,0:T(8,128)}', space=vmem, size = 0x40000, scoped, tag = 'scratch operand']
  #allocation5 [shape = 'f32[512,8]{1,0:T(8,128)}', space=vmem, size = 0x40000, scoped, tag = 'scratch operand']
  #allocation6 [shape = 'f32[1,1]{1,0:T(1,128)S(1)}', space=vmem, size = 0x200, scoped, tag = 'scoped memory for relation_layer_forward.1']
  %s0 = inlined_call_operand.vmem [shape: f32[512,16], index: 0, kind: input, shape index: {}]
  %s1 = inlined_call_operand.vmem [shape: f32[392,1], index: 1, kind: input, shape index: {}]
  %s2 = inlined_call_operand.vmem [shape: f32[392,1], index: 2, kind: input, shape index: {}]
  %s3 = inlined_call_operand.vmem [shape: f32[144,8], index: 3, kind: input, shape index: {}]
  %s4 = inlined_call_operand.vmem [shape: f32[1,8], index: 4, kind: input, shape index: {}]
  %s5 = inlined_call_operand.vmem [shape: f32[1,8], index: 5, kind: input, shape index: {}]
  %s6 = inlined_call_operand.vmem [shape: f32[1,8], index: 6, kind: input, shape index: {}]
  %s7 = inlined_call_operand.vmem [shape: f32[72,8], index: 7, kind: input, shape index: {}]
  %s8 = inlined_call_operand.vmem [shape: f32[1,8], index: 8, kind: input, shape index: {}]
  %s9 = inlined_call_operand.vmem [shape: f32[1,8], index: 9, kind: input, shape index: {}]
  %s10 = inlined_call_operand.vmem [shape: f32[1,8], index: 10, kind: input, shape index: {}]
  %s11 = inlined_call_operand.vmem [shape: f32[32,8], index: 11, kind: input, shape index: {}]
  %s12 = inlined_call_operand.vmem [shape: f32[1,8], index: 12, kind: input, shape index: {}]
  %s13 = inlined_call_operand.vmem [shape: f32[8,1], index: 13, kind: input, shape index: {}]
  %s14 = inlined_call_operand.<no memory space> [shape: f32[1,1], index: 14, kind: input, shape index: {}]
  %s15 = inlined_call_operand.vmem [shape: f32[2,1], index: 15, kind: output, shape index: {}]
  %s16 = sld [smem:[#allocation0]]
  $region70: #{relation_layer_forward.1} parent=0
    _
  %s18 = ssub.s32 1, %s16
  %s19 = scalar_select 0, %s18, %s16
  %v20 = vstv %s14
  %21 = vst [vmem:[#allocation6] sm:$0x1] %v20
  // Predicated region
  $region2: #{relation_layer_forward.1} parent=0 // pred_check
    _
  $region3: #{relation_layer_forward.1} parent=0 // pred_check_branch
    %23 = sbr.rel (0) target = $region5
  $region4: #{relation_layer_forward.1} parent=0 // pred_region
    _
  $region5: #{relation_layer_forward.1} parent=0 // pred_fallthru
    _
  // Predicated region
  $region6: #{relation_layer_forward.1} parent=0 // pred_check
    _
  $region7: #{relation_layer_forward.1} parent=0 // pred_check_branch
    %25 = sbr.rel (0) target = $region9
  $region8: #{relation_layer_forward.1} parent=0 // pred_region
    _
  $region9: #{relation_layer_forward.1} parent=0 // pred_fallthru
    _
  // Predicated region
  $region10: #{relation_layer_forward.1} parent=0 // pred_check
    _
  $region11: #{relation_layer_forward.1} parent=0 // pred_check_branch
    %27 = sbr.rel (0) target = $region13
  $region12: #{relation_layer_forward.1} parent=0 // pred_region
    _
  $region13: #{relation_layer_forward.1} parent=0 // pred_fallthru
    _
  // Predicated region
  $region14: #{relation_layer_forward.1} parent=0 // pred_check
    _
  $region15: #{relation_layer_forward.1} parent=0 // pred_check_branch
    %29 = sbr.rel (0) target = $region17
  $region16: #{relation_layer_forward.1} parent=0 // pred_region
    _
  $region17: #{relation_layer_forward.1} parent=0 // pred_fallthru
    _
  // Predicated region
  $region18: #{relation_layer_forward.1} parent=0 // pred_check
    _
  $region19: #{relation_layer_forward.1} parent=0 // pred_check_branch
    %31 = sbr.rel (0) target = $region21
  $region20: #{relation_layer_forward.1} parent=0 // pred_region
    _
  $region21: #{relation_layer_forward.1} parent=0 // pred_fallthru
    _
  // Predicated region
  $region22: #{relation_layer_forward.1} parent=0 // pred_check
    _
  $region23: #{relation_layer_forward.1} parent=0 // pred_check_branch
    %33 = sbr.rel (0) target = $region25
  $region24: #{relation_layer_forward.1} parent=0 // pred_region
    _
  $region25: #{relation_layer_forward.1} parent=0 // pred_fallthru
    _
  // Predicated region
  $region26: #{relation_layer_forward.1} parent=0 // pred_check
    _
  $region27: #{relation_layer_forward.1} parent=0 // pred_check_branch
    %35 = sbr.rel (0) target = $region29
  $region28: #{relation_layer_forward.1} parent=0 // pred_region
    _
  $region29: #{relation_layer_forward.1} parent=0 // pred_fallthru
    _
  // Predicated region
  $region30: #{relation_layer_forward.1} parent=0 // pred_check
    _
  $region31: #{relation_layer_forward.1} parent=0 // pred_check_branch
    %37 = sbr.rel (0) target = $region33
  $region32: #{relation_layer_forward.1} parent=0 // pred_region
    _
  $region33: #{relation_layer_forward.1} parent=0 // pred_fallthru
    _
  // Predicated region
  $region34: #{relation_layer_forward.1} parent=0 // pred_check
    _
  $region35: #{relation_layer_forward.1} parent=0 // pred_check_branch
    %39 = sbr.rel (0) target = $region37
  $region36: #{relation_layer_forward.1} parent=0 // pred_region
    _
  $region37: #{relation_layer_forward.1} parent=0 // pred_fallthru
    _
  // Predicated region
  $region38: #{relation_layer_forward.1} parent=0 // pred_check
    _
  $region39: #{relation_layer_forward.1} parent=0 // pred_check_branch
    %41 = sbr.rel (0) target = $region41
  $region40: #{relation_layer_forward.1} parent=0 // pred_region
    _
  $region41: #{relation_layer_forward.1} parent=0 // pred_fallthru
    _
  // Predicated region
  $region42: #{relation_layer_forward.1} parent=0 // pred_check
    _
  $region43: #{relation_layer_forward.1} parent=0 // pred_check_branch
    %43 = sbr.rel (0) target = $region45
  $region44: #{relation_layer_forward.1} parent=0 // pred_region
    _
  $region45: #{relation_layer_forward.1} parent=0 // pred_fallthru
    _
  // Predicated region
  $region46: #{relation_layer_forward.1} parent=0 // pred_check
    _
  $region47: #{relation_layer_forward.1} parent=0 // pred_check_branch
    %45 = sbr.rel (0) target = $region49
  $region48: #{relation_layer_forward.1} parent=0 // pred_region
    _
  $region49: #{relation_layer_forward.1} parent=0 // pred_fallthru
    _
  // Predicated region
  $region50: #{relation_layer_forward.1} parent=0 // pred_check
    _
  $region51: #{relation_layer_forward.1} parent=0 // pred_check_branch
    %47 = sbr.rel (0) target = $region53
  $region52: #{relation_layer_forward.1} parent=0 // pred_region
    _
  $region53: #{relation_layer_forward.1} parent=0 // pred_fallthru
    _
  // Predicated region
  $region54: #{relation_layer_forward.1} parent=0 // pred_check
    _
  $region55: #{relation_layer_forward.1} parent=0 // pred_check_branch
    %49 = sbr.rel (0) target = $region57
  $region56: #{relation_layer_forward.1} parent=0 // pred_region
    _
  $region57: #{relation_layer_forward.1} parent=0 // pred_fallthru
    _
  // Predicated region
  $region58: #{relation_layer_forward.1} parent=0 // pred_check
    _
  $region59: #{relation_layer_forward.1} parent=0 // pred_check_branch
    %51 = sbr.rel (0) target = $region61
  $region60: #{relation_layer_forward.1} parent=0 // pred_region
    _
  $region61: #{relation_layer_forward.1} parent=0 // pred_fallthru
    _
  %vm52 = vcmask 64512
  %53 = vst.msk [vmem:[#allocation2] sm:$0xff] %vm52, 0.0
  %54 = vst.msk [vmem:[#allocation2 + $0x8] sm:$0xff] %vm52, 0.0
  %55 = vst.msk [vmem:[#allocation2 + $0x10] sm:$0xff] %vm52, 0.0
  %56 = vst.msk [vmem:[#allocation2 + $0x18] sm:$0xff] %vm52, 0.0
  %57 = vst.msk [vmem:[#allocation2 + $0x20] sm:$0xff] %vm52, 0.0
  %58 = vst.msk [vmem:[#allocation2 + $0x28] sm:$0xff] %vm52, 0.0
  %59 = vst.msk [vmem:[#allocation2 + $0x30] sm:$0xff] %vm52, 0.0
  %60 = vst.msk [vmem:[#allocation2 + $0x38] sm:$0xff] %vm52, 0.0
  %61 = vst.msk [vmem:[#allocation2 + $0x40] sm:$0xff] %vm52, 0.0
  %62 = vst.msk [vmem:[#allocation2 + $0x48] sm:$0xff] %vm52, 0.0
  %63 = vst.msk [vmem:[#allocation2 + $0x50] sm:$0xff] %vm52, 0.0
  %64 = vst.msk [vmem:[#allocation2 + $0x58] sm:$0xff] %vm52, 0.0
  %65 = vst.msk [vmem:[#allocation2 + $0x60] sm:$0xff] %vm52, 0.0
  %66 = vst.msk [vmem:[#allocation2 + $0x68] sm:$0xff] %vm52, 0.0
  %67 = vst.msk [vmem:[#allocation2 + $0x70] sm:$0xff] %vm52, 0.0
  %68 = vst.msk [vmem:[#allocation2 + $0x78] sm:$0xff] %vm52, 0.0
  %69 = vst.msk [vmem:[#allocation2 + $0x80] sm:$0xff] %vm52, 0.0
  %70 = vst.msk [vmem:[#allocation2 + $0x88] sm:$0xff] %vm52, 0.0
  %71 = vst.msk [vmem:[#allocation2 + $0x90] sm:$0xff] %vm52, 0.0
  %72 = vst.msk [vmem:[#allocation2 + $0x98] sm:$0xff] %vm52, 0.0
  %73 = vst.msk [vmem:[#allocation2 + $0xa0] sm:$0xff] %vm52, 0.0
  %74 = vst.msk [vmem:[#allocation2 + $0xa8] sm:$0xff] %vm52, 0.0
  %75 = vst.msk [vmem:[#allocation2 + $0xb0] sm:$0xff] %vm52, 0.0
  %76 = vst.msk [vmem:[#allocation2 + $0xb8] sm:$0xff] %vm52, 0.0
  %77 = vst.msk [vmem:[#allocation2 + $0xc0] sm:$0xff] %vm52, 0.0
  %78 = vst.msk [vmem:[#allocation2 + $0xc8] sm:$0xff] %vm52, 0.0
  %79 = vst.msk [vmem:[#allocation2 + $0xd0] sm:$0xff] %vm52, 0.0
  %80 = vst.msk [vmem:[#allocation2 + $0xd8] sm:$0xff] %vm52, 0.0
  %81 = vst.msk [vmem:[#allocation2 + $0xe0] sm:$0xff] %vm52, 0.0
  %82 = vst.msk [vmem:[#allocation2 + $0xe8] sm:$0xff] %vm52, 0.0
  %83 = vst.msk [vmem:[#allocation2 + $0xf0] sm:$0xff] %vm52, 0.0
  %84 = vst.msk [vmem:[#allocation2 + $0xf8] sm:$0xff] %vm52, 0.0
  %85 = vst.msk [vmem:[#allocation2 + $0x100] sm:$0xff] %vm52, 0.0
  %86 = vst.msk [vmem:[#allocation2 + $0x108] sm:$0xff] %vm52, 0.0
  %87 = vst.msk [vmem:[#allocation2 + $0x110] sm:$0xff] %vm52, 0.0
  %88 = vst.msk [vmem:[#allocation2 + $0x118] sm:$0xff] %vm52, 0.0
  %89 = vst.msk [vmem:[#allocation2 + $0x120] sm:$0xff] %vm52, 0.0
  %90 = vst.msk [vmem:[#allocation2 + $0x128] sm:$0xff] %vm52, 0.0
  %91 = vst.msk [vmem:[#allocation2 + $0x130] sm:$0xff] %vm52, 0.0
  %92 = vst.msk [vmem:[#allocation2 + $0x138] sm:$0xff] %vm52, 0.0
  %93 = vst.msk [vmem:[#allocation2 + $0x140] sm:$0xff] %vm52, 0.0
  %94 = vst.msk [vmem:[#allocation2 + $0x148] sm:$0xff] %vm52, 0.0
  %95 = vst.msk [vmem:[#allocation2 + $0x150] sm:$0xff] %vm52, 0.0
  %96 = vst.msk [vmem:[#allocation2 + $0x158] sm:$0xff] %vm52, 0.0
  %97 = vst.msk [vmem:[#allocation2 + $0x160] sm:$0xff] %vm52, 0.0
  %98 = vst.msk [vmem:[#allocation2 + $0x168] sm:$0xff] %vm52, 0.0
  %99 = vst.msk [vmem:[#allocation2 + $0x170] sm:$0xff] %vm52, 0.0
  %100 = vst.msk [vmem:[#allocation2 + $0x178] sm:$0xff] %vm52, 0.0
  %101 = vst.msk [vmem:[#allocation2 + $0x180] sm:$0xff] %vm52, 0.0
  %102 = vst.msk [vmem:[#allocation2 + $0x188] sm:$0xff] %vm52, 0.0
  %103 = vst.msk [vmem:[#allocation2 + $0x190] sm:$0xff] %vm52, 0.0
  %104 = vst.msk [vmem:[#allocation2 + $0x198] sm:$0xff] %vm52, 0.0
  %105 = vst.msk [vmem:[#allocation2 + $0x1a0] sm:$0xff] %vm52, 0.0
  %106 = vst.msk [vmem:[#allocation2 + $0x1a8] sm:$0xff] %vm52, 0.0
  %107 = vst.msk [vmem:[#allocation2 + $0x1b0] sm:$0xff] %vm52, 0.0
  %108 = vst.msk [vmem:[#allocation2 + $0x1b8] sm:$0xff] %vm52, 0.0
  %109 = vst.msk [vmem:[#allocation2 + $0x1c0] sm:$0xff] %vm52, 0.0
  %110 = vst.msk [vmem:[#allocation2 + $0x1c8] sm:$0xff] %vm52, 0.0
  %111 = vst.msk [vmem:[#allocation2 + $0x1d0] sm:$0xff] %vm52, 0.0
  %112 = vst.msk [vmem:[#allocation2 + $0x1d8] sm:$0xff] %vm52, 0.0
  %113 = vst.msk [vmem:[#allocation2 + $0x1e0] sm:$0xff] %vm52, 0.0
  %114 = vst.msk [vmem:[#allocation2 + $0x1e8] sm:$0xff] %vm52, 0.0
  %115 = vst.msk [vmem:[#allocation2 + $0x1f0] sm:$0xff] %vm52, 0.0
  %116 = vst.msk [vmem:[#allocation2 + $0x1f8] sm:$0xff] %vm52, 0.0
  %117 = vst.msk [vmem:[#allocation3] sm:$0xff] %vm52, 0.0
  %118 = vst.msk [vmem:[#allocation3 + $0x8] sm:$0xff] %vm52, 0.0
  %119 = vst.msk [vmem:[#allocation3 + $0x10] sm:$0xff] %vm52, 0.0
  %120 = vst.msk [vmem:[#allocation3 + $0x18] sm:$0xff] %vm52, 0.0
  %121 = vst.msk [vmem:[#allocation3 + $0x20] sm:$0xff] %vm52, 0.0
  %122 = vst.msk [vmem:[#allocation3 + $0x28] sm:$0xff] %vm52, 0.0
  %123 = vst.msk [vmem:[#allocation3 + $0x30] sm:$0xff] %vm52, 0.0
  %124 = vst.msk [vmem:[#allocation3 + $0x38] sm:$0xff] %vm52, 0.0
  %125 = vst.msk [vmem:[#allocation3 + $0x40] sm:$0xff] %vm52, 0.0
  %126 = vst.msk [vmem:[#allocation3 + $0x48] sm:$0xff] %vm52, 0.0
  %127 = vst.msk [vmem:[#allocation3 + $0x50] sm:$0xff] %vm52, 0.0
  %128 = vst.msk [vmem:[#allocation3 + $0x58] sm:$0xff] %vm52, 0.0
  %129 = vst.msk [vmem:[#allocation3 + $0x60] sm:$0xff] %vm52, 0.0
  %130 = vst.msk [vmem:[#allocation3 + $0x68] sm:$0xff] %vm52, 0.0
  %131 = vst.msk [vmem:[#allocation3 + $0x70] sm:$0xff] %vm52, 0.0
  %132 = vst.msk [vmem:[#allocation3 + $0x78] sm:$0xff] %vm52, 0.0
  %133 = vst.msk [vmem:[#allocation3 + $0x80] sm:$0xff] %vm52, 0.0
  %134 = vst.msk [vmem:[#allocation3 + $0x88] sm:$0xff] %vm52, 0.0
  %135 = vst.msk [vmem:[#allocation3 + $0x90] sm:$0xff] %vm52, 0.0
  %136 = vst.msk [vmem:[#allocation3 + $0x98] sm:$0xff] %vm52, 0.0
  %137 = vst.msk [vmem:[#allocation3 + $0xa0] sm:$0xff] %vm52, 0.0
  %138 = vst.msk [vmem:[#allocation3 + $0xa8] sm:$0xff] %vm52, 0.0
  %139 = vst.msk [vmem:[#allocation3 + $0xb0] sm:$0xff] %vm52, 0.0
  %140 = vst.msk [vmem:[#allocation3 + $0xb8] sm:$0xff] %vm52, 0.0
  %141 = vst.msk [vmem:[#allocation3 + $0xc0] sm:$0xff] %vm52, 0.0
  %142 = vst.msk [vmem:[#allocation3 + $0xc8] sm:$0xff] %vm52, 0.0
  %143 = vst.msk [vmem:[#allocation3 + $0xd0] sm:$0xff] %vm52, 0.0
  %144 = vst.msk [vmem:[#allocation3 + $0xd8] sm:$0xff] %vm52, 0.0
  %145 = vst.msk [vmem:[#allocation3 + $0xe0] sm:$0xff] %vm52, 0.0
  %146 = vst.msk [vmem:[#allocation3 + $0xe8] sm:$0xff] %vm52, 0.0
  %147 = vst.msk [vmem:[#allocation3 + $0xf0] sm:$0xff] %vm52, 0.0
  %148 = vst.msk [vmem:[#allocation3 + $0xf8] sm:$0xff] %vm52, 0.0
  %149 = vst.msk [vmem:[#allocation3 + $0x100] sm:$0xff] %vm52, 0.0
  %150 = vst.msk [vmem:[#allocation3 + $0x108] sm:$0xff] %vm52, 0.0
  %151 = vst.msk [vmem:[#allocation3 + $0x110] sm:$0xff] %vm52, 0.0
  %152 = vst.msk [vmem:[#allocation3 + $0x118] sm:$0xff] %vm52, 0.0
  %153 = vst.msk [vmem:[#allocation3 + $0x120] sm:$0xff] %vm52, 0.0
  %154 = vst.msk [vmem:[#allocation3 + $0x128] sm:$0xff] %vm52, 0.0
  %155 = vst.msk [vmem:[#allocation3 + $0x130] sm:$0xff] %vm52, 0.0
  %156 = vst.msk [vmem:[#allocation3 + $0x138] sm:$0xff] %vm52, 0.0
  %157 = vst.msk [vmem:[#allocation3 + $0x140] sm:$0xff] %vm52, 0.0
  %158 = vst.msk [vmem:[#allocation3 + $0x148] sm:$0xff] %vm52, 0.0
  %159 = vst.msk [vmem:[#allocation3 + $0x150] sm:$0xff] %vm52, 0.0
  %160 = vst.msk [vmem:[#allocation3 + $0x158] sm:$0xff] %vm52, 0.0
  %161 = vst.msk [vmem:[#allocation3 + $0x160] sm:$0xff] %vm52, 0.0
  %162 = vst.msk [vmem:[#allocation3 + $0x168] sm:$0xff] %vm52, 0.0
  %163 = vst.msk [vmem:[#allocation3 + $0x170] sm:$0xff] %vm52, 0.0
  %164 = vst.msk [vmem:[#allocation3 + $0x178] sm:$0xff] %vm52, 0.0
  %165 = vst.msk [vmem:[#allocation3 + $0x180] sm:$0xff] %vm52, 0.0
  %166 = vst.msk [vmem:[#allocation3 + $0x188] sm:$0xff] %vm52, 0.0
  %167 = vst.msk [vmem:[#allocation3 + $0x190] sm:$0xff] %vm52, 0.0
  %168 = vst.msk [vmem:[#allocation3 + $0x198] sm:$0xff] %vm52, 0.0
  %169 = vst.msk [vmem:[#allocation3 + $0x1a0] sm:$0xff] %vm52, 0.0
  %170 = vst.msk [vmem:[#allocation3 + $0x1a8] sm:$0xff] %vm52, 0.0
  %171 = vst.msk [vmem:[#allocation3 + $0x1b0] sm:$0xff] %vm52, 0.0
  %172 = vst.msk [vmem:[#allocation3 + $0x1b8] sm:$0xff] %vm52, 0.0
  %173 = vst.msk [vmem:[#allocation3 + $0x1c0] sm:$0xff] %vm52, 0.0
  %174 = vst.msk [vmem:[#allocation3 + $0x1c8] sm:$0xff] %vm52, 0.0
  %175 = vst.msk [vmem:[#allocation3 + $0x1d0] sm:$0xff] %vm52, 0.0
  %176 = vst.msk [vmem:[#allocation3 + $0x1d8] sm:$0xff] %vm52, 0.0
  %177 = vst.msk [vmem:[#allocation3 + $0x1e0] sm:$0xff] %vm52, 0.0
  %178 = vst.msk [vmem:[#allocation3 + $0x1e8] sm:$0xff] %vm52, 0.0
  %179 = vst.msk [vmem:[#allocation3 + $0x1f0] sm:$0xff] %vm52, 0.0
  %180 = vst.msk [vmem:[#allocation3 + $0x1f8] sm:$0xff] %vm52, 0.0
  %181 = vst.msk [vmem:[#allocation4] sm:$0xff] %vm52, 0.0
  %182 = vst.msk [vmem:[#allocation4 + $0x8] sm:$0xff] %vm52, 0.0
  %183 = vst.msk [vmem:[#allocation4 + $0x10] sm:$0xff] %vm52, 0.0
  %184 = vst.msk [vmem:[#allocation4 + $0x18] sm:$0xff] %vm52, 0.0
  %185 = vst.msk [vmem:[#allocation4 + $0x20] sm:$0xff] %vm52, 0.0
  %186 = vst.msk [vmem:[#allocation4 + $0x28] sm:$0xff] %vm52, 0.0
  %187 = vst.msk [vmem:[#allocation4 + $0x30] sm:$0xff] %vm52, 0.0
  %188 = vst.msk [vmem:[#allocation4 + $0x38] sm:$0xff] %vm52, 0.0
  %189 = vst.msk [vmem:[#allocation4 + $0x40] sm:$0xff] %vm52, 0.0
  %190 = vst.msk [vmem:[#allocation4 + $0x48] sm:$0xff] %vm52, 0.0
  %191 = vst.msk [vmem:[#allocation4 + $0x50] sm:$0xff] %vm52, 0.0
  %192 = vst.msk [vmem:[#allocation4 + $0x58] sm:$0xff] %vm52, 0.0
  %193 = vst.msk [vmem:[#allocation4 + $0x60] sm:$0xff] %vm52, 0.0
  %194 = vst.msk [vmem:[#allocation4 + $0x68] sm:$0xff] %vm52, 0.0
  %195 = vst.msk [vmem:[#allocation4 + $0x70] sm:$0xff] %vm52, 0.0
  %196 = vst.msk [vmem:[#allocation4 + $0x78] sm:$0xff] %vm52, 0.0
  %197 = vst.msk [vmem:[#allocation4 + $0x80] sm:$0xff] %vm52, 0.0
  %198 = vst.msk [vmem:[#allocation4 + $0x88] sm:$0xff] %vm52, 0.0
  %199 = vst.msk [vmem:[#allocation4 + $0x90] sm:$0xff] %vm52, 0.0
  %200 = vst.msk [vmem:[#allocation4 + $0x98] sm:$0xff] %vm52, 0.0
  %201 = vst.msk [vmem:[#allocation4 + $0xa0] sm:$0xff] %vm52, 0.0
  %202 = vst.msk [vmem:[#allocation4 + $0xa8] sm:$0xff] %vm52, 0.0
  %203 = vst.msk [vmem:[#allocation4 + $0xb0] sm:$0xff] %vm52, 0.0
  %204 = vst.msk [vmem:[#allocation4 + $0xb8] sm:$0xff] %vm52, 0.0
  %205 = vst.msk [vmem:[#allocation4 + $0xc0] sm:$0xff] %vm52, 0.0
  %206 = vst.msk [vmem:[#allocation4 + $0xc8] sm:$0xff] %vm52, 0.0
  %207 = vst.msk [vmem:[#allocation4 + $0xd0] sm:$0xff] %vm52, 0.0
  %208 = vst.msk [vmem:[#allocation4 + $0xd8] sm:$0xff] %vm52, 0.0
  %209 = vst.msk [vmem:[#allocation4 + $0xe0] sm:$0xff] %vm52, 0.0
  %210 = vst.msk [vmem:[#allocation4 + $0xe8] sm:$0xff] %vm52, 0.0
  %211 = vst.msk [vmem:[#allocation4 + $0xf0] sm:$0xff] %vm52, 0.0
  %212 = vst.msk [vmem:[#allocation4 + $0xf8] sm:$0xff] %vm52, 0.0
  %213 = vst.msk [vmem:[#allocation4 + $0x100] sm:$0xff] %vm52, 0.0
  %214 = vst.msk [vmem:[#allocation4 + $0x108] sm:$0xff] %vm52, 0.0
  %215 = vst.msk [vmem:[#allocation4 + $0x110] sm:$0xff] %vm52, 0.0
  %216 = vst.msk [vmem:[#allocation4 + $0x118] sm:$0xff] %vm52, 0.0
  %217 = vst.msk [vmem:[#allocation4 + $0x120] sm:$0xff] %vm52, 0.0
  %218 = vst.msk [vmem:[#allocation4 + $0x128] sm:$0xff] %vm52, 0.0
  %219 = vst.msk [vmem:[#allocation4 + $0x130] sm:$0xff] %vm52, 0.0
  %220 = vst.msk [vmem:[#allocation4 + $0x138] sm:$0xff] %vm52, 0.0
  %221 = vst.msk [vmem:[#allocation4 + $0x140] sm:$0xff] %vm52, 0.0
  %222 = vst.msk [vmem:[#allocation4 + $0x148] sm:$0xff] %vm52, 0.0
  %223 = vst.msk [vmem:[#allocation4 + $0x150] sm:$0xff] %vm52, 0.0
  %224 = vst.msk [vmem:[#allocation4 + $0x158] sm:$0xff] %vm52, 0.0
  %225 = vst.msk [vmem:[#allocation4 + $0x160] sm:$0xff] %vm52, 0.0
  %226 = vst.msk [vmem:[#allocation4 + $0x168] sm:$0xff] %vm52, 0.0
  %227 = vst.msk [vmem:[#allocation4 + $0x170] sm:$0xff] %vm52, 0.0
  %228 = vst.msk [vmem:[#allocation4 + $0x178] sm:$0xff] %vm52, 0.0
  %229 = vst.msk [vmem:[#allocation4 + $0x180] sm:$0xff] %vm52, 0.0
  %230 = vst.msk [vmem:[#allocation4 + $0x188] sm:$0xff] %vm52, 0.0
  %231 = vst.msk [vmem:[#allocation4 + $0x190] sm:$0xff] %vm52, 0.0
  %232 = vst.msk [vmem:[#allocation4 + $0x198] sm:$0xff] %vm52, 0.0
  %233 = vst.msk [vmem:[#allocation4 + $0x1a0] sm:$0xff] %vm52, 0.0
  %234 = vst.msk [vmem:[#allocation4 + $0x1a8] sm:$0xff] %vm52, 0.0
  %235 = vst.msk [vmem:[#allocation4 + $0x1b0] sm:$0xff] %vm52, 0.0
  %236 = vst.msk [vmem:[#allocation4 + $0x1b8] sm:$0xff] %vm52, 0.0
  %237 = vst.msk [vmem:[#allocation4 + $0x1c0] sm:$0xff] %vm52, 0.0
  %238 = vst.msk [vmem:[#allocation4 + $0x1c8] sm:$0xff] %vm52, 0.0
  %239 = vst.msk [vmem:[#allocation4 + $0x1d0] sm:$0xff] %vm52, 0.0
  %240 = vst.msk [vmem:[#allocation4 + $0x1d8] sm:$0xff] %vm52, 0.0
  %241 = vst.msk [vmem:[#allocation4 + $0x1e0] sm:$0xff] %vm52, 0.0
  %242 = vst.msk [vmem:[#allocation4 + $0x1e8] sm:$0xff] %vm52, 0.0
  %243 = vst.msk [vmem:[#allocation4 + $0x1f0] sm:$0xff] %vm52, 0.0
  %244 = vst.msk [vmem:[#allocation4 + $0x1f8] sm:$0xff] %vm52, 0.0
  %245 = vst.msk [vmem:[#allocation5] sm:$0xff] %vm52, 0.0
  %246 = vst.msk [vmem:[#allocation5 + $0x8] sm:$0xff] %vm52, 0.0
  %247 = vst.msk [vmem:[#allocation5 + $0x10] sm:$0xff] %vm52, 0.0
  %248 = vst.msk [vmem:[#allocation5 + $0x18] sm:$0xff] %vm52, 0.0
  %249 = vst.msk [vmem:[#allocation5 + $0x20] sm:$0xff] %vm52, 0.0
  %250 = vst.msk [vmem:[#allocation5 + $0x28] sm:$0xff] %vm52, 0.0
  %251 = vst.msk [vmem:[#allocation5 + $0x30] sm:$0xff] %vm52, 0.0
  %252 = vst.msk [vmem:[#allocation5 + $0x38] sm:$0xff] %vm52, 0.0
  %253 = vst.msk [vmem:[#allocation5 + $0x40] sm:$0xff] %vm52, 0.0
  %254 = vst.msk [vmem:[#allocation5 + $0x48] sm:$0xff] %vm52, 0.0
  %255 = vst.msk [vmem:[#allocation5 + $0x50] sm:$0xff] %vm52, 0.0
  %256 = vst.msk [vmem:[#allocation5 + $0x58] sm:$0xff] %vm52, 0.0
  %257 = vst.msk [vmem:[#allocation5 + $0x60] sm:$0xff] %vm52, 0.0
  %258 = vst.msk [vmem:[#allocation5 + $0x68] sm:$0xff] %vm52, 0.0
  %259 = vst.msk [vmem:[#allocation5 + $0x70] sm:$0xff] %vm52, 0.0
  %260 = vst.msk [vmem:[#allocation5 + $0x78] sm:$0xff] %vm52, 0.0
  %261 = vst.msk [vmem:[#allocation5 + $0x80] sm:$0xff] %vm52, 0.0
  %262 = vst.msk [vmem:[#allocation5 + $0x88] sm:$0xff] %vm52, 0.0
  %263 = vst.msk [vmem:[#allocation5 + $0x90] sm:$0xff] %vm52, 0.0
  %264 = vst.msk [vmem:[#allocation5 + $0x98] sm:$0xff] %vm52, 0.0
  %265 = vst.msk [vmem:[#allocation5 + $0xa0] sm:$0xff] %vm52, 0.0
  %266 = vst.msk [vmem:[#allocation5 + $0xa8] sm:$0xff] %vm52, 0.0
  %267 = vst.msk [vmem:[#allocation5 + $0xb0] sm:$0xff] %vm52, 0.0
  %268 = vst.msk [vmem:[#allocation5 + $0xb8] sm:$0xff] %vm52, 0.0
  %269 = vst.msk [vmem:[#allocation5 + $0xc0] sm:$0xff] %vm52, 0.0
  %270 = vst.msk [vmem:[#allocation5 + $0xc8] sm:$0xff] %vm52, 0.0
  %271 = vst.msk [vmem:[#allocation5 + $0xd0] sm:$0xff] %vm52, 0.0
  %272 = vst.msk [vmem:[#allocation5 + $0xd8] sm:$0xff] %vm52, 0.0
  %273 = vst.msk [vmem:[#allocation5 + $0xe0] sm:$0xff] %vm52, 0.0
  %274 = vst.msk [vmem:[#allocation5 + $0xe8] sm:$0xff] %vm52, 0.0
  %275 = vst.msk [vmem:[#allocation5 + $0xf0] sm:$0xff] %vm52, 0.0
  %276 = vst.msk [vmem:[#allocation5 + $0xf8] sm:$0xff] %vm52, 0.0
  %277 = vst.msk [vmem:[#allocation5 + $0x100] sm:$0xff] %vm52, 0.0
  %278 = vst.msk [vmem:[#allocation5 + $0x108] sm:$0xff] %vm52, 0.0
  %279 = vst.msk [vmem:[#allocation5 + $0x110] sm:$0xff] %vm52, 0.0
  %280 = vst.msk [vmem:[#allocation5 + $0x118] sm:$0xff] %vm52, 0.0
  %281 = vst.msk [vmem:[#allocation5 + $0x120] sm:$0xff] %vm52, 0.0
  %282 = vst.msk [vmem:[#allocation5 + $0x128] sm:$0xff] %vm52, 0.0
  %283 = vst.msk [vmem:[#allocation5 + $0x130] sm:$0xff] %vm52, 0.0
  %284 = vst.msk [vmem:[#allocation5 + $0x138] sm:$0xff] %vm52, 0.0
  %285 = vst.msk [vmem:[#allocation5 + $0x140] sm:$0xff] %vm52, 0.0
  %286 = vst.msk [vmem:[#allocation5 + $0x148] sm:$0xff] %vm52, 0.0
  %287 = vst.msk [vmem:[#allocation5 + $0x150] sm:$0xff] %vm52, 0.0
  %288 = vst.msk [vmem:[#allocation5 + $0x158] sm:$0xff] %vm52, 0.0
  %289 = vst.msk [vmem:[#allocation5 + $0x160] sm:$0xff] %vm52, 0.0
  %290 = vst.msk [vmem:[#allocation5 + $0x168] sm:$0xff] %vm52, 0.0
  %291 = vst.msk [vmem:[#allocation5 + $0x170] sm:$0xff] %vm52, 0.0
  %292 = vst.msk [vmem:[#allocation5 + $0x178] sm:$0xff] %vm52, 0.0
  %293 = vst.msk [vmem:[#allocation5 + $0x180] sm:$0xff] %vm52, 0.0
  %294 = vst.msk [vmem:[#allocation5 + $0x188] sm:$0xff] %vm52, 0.0
  %295 = vst.msk [vmem:[#allocation5 + $0x190] sm:$0xff] %vm52, 0.0
  %296 = vst.msk [vmem:[#allocation5 + $0x198] sm:$0xff] %vm52, 0.0
  %297 = vst.msk [vmem:[#allocation5 + $0x1a0] sm:$0xff] %vm52, 0.0
  %298 = vst.msk [vmem:[#allocation5 + $0x1a8] sm:$0xff] %vm52, 0.0
  %299 = vst.msk [vmem:[#allocation5 + $0x1b0] sm:$0xff] %vm52, 0.0
  %300 = vst.msk [vmem:[#allocation5 + $0x1b8] sm:$0xff] %vm52, 0.0
  %301 = vst.msk [vmem:[#allocation5 + $0x1c0] sm:$0xff] %vm52, 0.0
  %302 = vst.msk [vmem:[#allocation5 + $0x1c8] sm:$0xff] %vm52, 0.0
  %303 = vst.msk [vmem:[#allocation5 + $0x1d0] sm:$0xff] %vm52, 0.0
  %304 = vst.msk [vmem:[#allocation5 + $0x1d8] sm:$0xff] %vm52, 0.0
  %305 = vst.msk [vmem:[#allocation5 + $0x1e0] sm:$0xff] %vm52, 0.0
  %306 = vst.msk [vmem:[#allocation5 + $0x1e8] sm:$0xff] %vm52, 0.0
  %307 = vst.msk [vmem:[#allocation5 + $0x1f0] sm:$0xff] %vm52, 0.0
  %308 = vst.msk [vmem:[#allocation5 + $0x1f8] sm:$0xff] %vm52, 0.0
  %v309 = vld [vmem:[%s1] sm:$0xff]
  %v310 = vld [vmem:[%s1 + $0x8] sm:$0xff]
  %v311 = vld [vmem:[%s1 + $0x10] sm:$0xff]
  %v312 = vld [vmem:[%s1 + $0x18] sm:$0xff]
  %v313 = vld [vmem:[%s1 + $0x20] sm:$0xff]
  %v314 = vld [vmem:[%s1 + $0x28] sm:$0xff]
  %v315 = vld [vmem:[%s1 + $0x30] sm:$0xff]
  %v316 = vld [vmem:[%s1 + $0x38] sm:$0xff]
  %v317 = vld [vmem:[%s1 + $0x40] sm:$0xff]
  %v318 = vld [vmem:[%s1 + $0x48] sm:$0xff]
  %v319 = vld [vmem:[%s1 + $0x50] sm:$0xff]
  %v320 = vld [vmem:[%s1 + $0x58] sm:$0xff]
  %v321 = vld [vmem:[%s1 + $0x60] sm:$0xff]
  %v322 = vld [vmem:[%s1 + $0x68] sm:$0xff]
  %v323 = vld [vmem:[%s1 + $0x70] sm:$0xff]
  %v324 = vld [vmem:[%s1 + $0x78] sm:$0xff]
  %v325 = vld [vmem:[%s1 + $0x80] sm:$0xff]
  %v326 = vld [vmem:[%s1 + $0x88] sm:$0xff]
  %v327 = vld [vmem:[%s1 + $0x90] sm:$0xff]
  %v328 = vld [vmem:[%s1 + $0x98] sm:$0xff]
  %v329 = vld [vmem:[%s1 + $0xa0] sm:$0xff]
  %v330 = vld [vmem:[%s1 + $0xa8] sm:$0xff]
  %v331 = vld [vmem:[%s1 + $0xb0] sm:$0xff]
  %v332 = vld [vmem:[%s1 + $0xb8] sm:$0xff]
  %v333 = vld [vmem:[%s1 + $0xc0] sm:$0xff]
  %v334 = vld [vmem:[%s1 + $0xc8] sm:$0xff]
  %v335 = vld [vmem:[%s1 + $0xd0] sm:$0xff]
  %v336 = vld [vmem:[%s1 + $0xd8] sm:$0xff]
  %v337 = vld [vmem:[%s1 + $0xe0] sm:$0xff]
  %v338 = vld [vmem:[%s1 + $0xe8] sm:$0xff]
  %v339 = vld [vmem:[%s1 + $0xf0] sm:$0xff]
  %v340 = vld [vmem:[%s1 + $0xf8] sm:$0xff]
  %v341 = vld [vmem:[%s1 + $0x100] sm:$0xff]
  %v342 = vld [vmem:[%s1 + $0x108] sm:$0xff]
  %v343 = vld [vmem:[%s1 + $0x110] sm:$0xff]
  %v344 = vld [vmem:[%s1 + $0x118] sm:$0xff]
  %v345 = vld [vmem:[%s1 + $0x120] sm:$0xff]
  %v346 = vld [vmem:[%s1 + $0x128] sm:$0xff]
  %v347 = vld [vmem:[%s1 + $0x130] sm:$0xff]
  %v348 = vld [vmem:[%s1 + $0x138] sm:$0xff]
  %v349 = vld [vmem:[%s1 + $0x140] sm:$0xff]
  %v350 = vld [vmem:[%s1 + $0x148] sm:$0xff]
  %v351 = vld [vmem:[%s1 + $0x150] sm:$0xff]
  %v352 = vld [vmem:[%s1 + $0x158] sm:$0xff]
  %v353 = vld [vmem:[%s1 + $0x160] sm:$0xff]
  %v354 = vld [vmem:[%s1 + $0x168] sm:$0xff]
  %v355 = vld [vmem:[%s1 + $0x170] sm:$0xff]
  %v356 = vld [vmem:[%s1 + $0x178] sm:$0xff]
  %v357 = vld [vmem:[%s1 + $0x180] sm:$0xff]
  %vm358 = vcmp.gt.f32.partialorder %v309, 0.5
  %vm359 = vcmp.gt.f32.partialorder %v310, 0.5
  %vm360 = vcmp.gt.f32.partialorder %v311, 0.5
  %vm361 = vcmp.gt.f32.partialorder %v312, 0.5
  %vm362 = vcmp.gt.f32.partialorder %v313, 0.5
  %vm363 = vcmp.gt.f32.partialorder %v314, 0.5
  %vm364 = vcmp.gt.f32.partialorder %v315, 0.5
  %vm365 = vcmp.gt.f32.partialorder %v316, 0.5
  %vm366 = vcmp.gt.f32.partialorder %v317, 0.5
  %vm367 = vcmp.gt.f32.partialorder %v318, 0.5
  %vm368 = vcmp.gt.f32.partialorder %v319, 0.5
  %vm369 = vcmp.gt.f32.partialorder %v320, 0.5
  %vm370 = vcmp.gt.f32.partialorder %v321, 0.5
  %vm371 = vcmp.gt.f32.partialorder %v322, 0.5
  %vm372 = vcmp.gt.f32.partialorder %v323, 0.5
  %vm373 = vcmp.gt.f32.partialorder %v324, 0.5
  %vm374 = vcmp.gt.f32.partialorder %v325, 0.5
  %vm375 = vcmp.gt.f32.partialorder %v326, 0.5
  %vm376 = vcmp.gt.f32.partialorder %v327, 0.5
  %vm377 = vcmp.gt.f32.partialorder %v328, 0.5
  %vm378 = vcmp.gt.f32.partialorder %v329, 0.5
  %vm379 = vcmp.gt.f32.partialorder %v330, 0.5
  %vm380 = vcmp.gt.f32.partialorder %v331, 0.5
  %vm381 = vcmp.gt.f32.partialorder %v332, 0.5
  %vm382 = vcmp.gt.f32.partialorder %v333, 0.5
  %vm383 = vcmp.gt.f32.partialorder %v334, 0.5
  %vm384 = vcmp.gt.f32.partialorder %v335, 0.5
  %vm385 = vcmp.gt.f32.partialorder %v336, 0.5
  %vm386 = vcmp.gt.f32.partialorder %v337, 0.5
  %vm387 = vcmp.gt.f32.partialorder %v338, 0.5
  %vm388 = vcmp.gt.f32.partialorder %v339, 0.5
  %vm389 = vcmp.gt.f32.partialorder %v340, 0.5
  %vm390 = vcmp.gt.f32.partialorder %v341, 0.5
  %vm391 = vcmp.gt.f32.partialorder %v342, 0.5
  %vm392 = vcmp.gt.f32.partialorder %v343, 0.5
  %vm393 = vcmp.gt.f32.partialorder %v344, 0.5
  %vm394 = vcmp.gt.f32.partialorder %v345, 0.5
  %vm395 = vcmp.gt.f32.partialorder %v346, 0.5
  %vm396 = vcmp.gt.f32.partialorder %v347, 0.5
  %vm397 = vcmp.gt.f32.partialorder %v348, 0.5
  %vm398 = vcmp.gt.f32.partialorder %v349, 0.5
  %vm399 = vcmp.gt.f32.partialorder %v350, 0.5
  %vm400 = vcmp.gt.f32.partialorder %v351, 0.5
  %vm401 = vcmp.gt.f32.partialorder %v352, 0.5
  %vm402 = vcmp.gt.f32.partialorder %v353, 0.5
  %vm403 = vcmp.gt.f32.partialorder %v354, 0.5
  %vm404 = vcmp.gt.f32.partialorder %v355, 0.5
  %vm405 = vcmp.gt.f32.partialorder %v356, 0.5
  %vm406 = vcmp.gt.f32.partialorder %v357, 0.5
  %v407 = vld [vmem:[%s2] sm:$0xff]
  %v408 = vld [vmem:[%s2 + $0x8] sm:$0xff]
  %v409 = vld [vmem:[%s2 + $0x10] sm:$0xff]
  %v410 = vld [vmem:[%s2 + $0x18] sm:$0xff]
  %v411 = vld [vmem:[%s2 + $0x20] sm:$0xff]
  %v412 = vld [vmem:[%s2 + $0x28] sm:$0xff]
  %v413 = vld [vmem:[%s2 + $0x30] sm:$0xff]
  %v414 = vld [vmem:[%s2 + $0x38] sm:$0xff]
  %v415 = vld [vmem:[%s2 + $0x40] sm:$0xff]
  %v416 = vld [vmem:[%s2 + $0x48] sm:$0xff]
  %v417 = vld [vmem:[%s2 + $0x50] sm:$0xff]
  %v418 = vld [vmem:[%s2 + $0x58] sm:$0xff]
  %v419 = vld [vmem:[%s2 + $0x60] sm:$0xff]
  %v420 = vld [vmem:[%s2 + $0x68] sm:$0xff]
  %v421 = vld [vmem:[%s2 + $0x70] sm:$0xff]
  %v422 = vld [vmem:[%s2 + $0x78] sm:$0xff]
  %v423 = vld [vmem:[%s2 + $0x80] sm:$0xff]
  %v424 = vld [vmem:[%s2 + $0x88] sm:$0xff]
  %v425 = vld [vmem:[%s2 + $0x90] sm:$0xff]
  %v426 = vld [vmem:[%s2 + $0x98] sm:$0xff]
  %v427 = vld [vmem:[%s2 + $0xa0] sm:$0xff]
  %v428 = vld [vmem:[%s2 + $0xa8] sm:$0xff]
  %v429 = vld [vmem:[%s2 + $0xb0] sm:$0xff]
  %v430 = vld [vmem:[%s2 + $0xb8] sm:$0xff]
  %v431 = vld [vmem:[%s2 + $0xc0] sm:$0xff]
  %v432 = vld [vmem:[%s2 + $0xc8] sm:$0xff]
  %v433 = vld [vmem:[%s2 + $0xd0] sm:$0xff]
  %v434 = vld [vmem:[%s2 + $0xd8] sm:$0xff]
  %v435 = vld [vmem:[%s2 + $0xe0] sm:$0xff]
  %v436 = vld [vmem:[%s2 + $0xe8] sm:$0xff]
  %v437 = vld [vmem:[%s2 + $0xf0] sm:$0xff]
  %v438 = vld [vmem:[%s2 + $0xf8] sm:$0xff]
  %v439 = vld [vmem:[%s2 + $0x100] sm:$0xff]
  %v440 = vld [vmem:[%s2 + $0x108] sm:$0xff]
  %v441 = vld [vmem:[%s2 + $0x110] sm:$0xff]
  %v442 = vld [vmem:[%s2 + $0x118] sm:$0xff]
  %v443 = vld [vmem:[%s2 + $0x120] sm:$0xff]
  %v444 = vld [vmem:[%s2 + $0x128] sm:$0xff]
  %v445 = vld [vmem:[%s2 + $0x130] sm:$0xff]
  %v446 = vld [vmem:[%s2 + $0x138] sm:$0xff]
  %v447 = vld [vmem:[%s2 + $0x140] sm:$0xff]
  %v448 = vld [vmem:[%s2 + $0x148] sm:$0xff]
  %v449 = vld [vmem:[%s2 + $0x150] sm:$0xff]
  %v450 = vld [vmem:[%s2 + $0x158] sm:$0xff]
  %v451 = vld [vmem:[%s2 + $0x160] sm:$0xff]
  %v452 = vld [vmem:[%s2 + $0x168] sm:$0xff]
  %v453 = vld [vmem:[%s2 + $0x170] sm:$0xff]
  %v454 = vld [vmem:[%s2 + $0x178] sm:$0xff]
  %v455 = vld [vmem:[%s2 + $0x180] sm:$0xff]
  %vm456 = vcmp.gt.f32.partialorder %v407, 0.5
  %vm457 = vcmp.gt.f32.partialorder %v408, 0.5
  %vm458 = vcmp.gt.f32.partialorder %v409, 0.5
  %vm459 = vcmp.gt.f32.partialorder %v410, 0.5
  %vm460 = vcmp.gt.f32.partialorder %v411, 0.5
  %vm461 = vcmp.gt.f32.partialorder %v412, 0.5
  %vm462 = vcmp.gt.f32.partialorder %v413, 0.5
  %vm463 = vcmp.gt.f32.partialorder %v414, 0.5
  %vm464 = vcmp.gt.f32.partialorder %v415, 0.5
  %vm465 = vcmp.gt.f32.partialorder %v416, 0.5
  %vm466 = vcmp.gt.f32.partialorder %v417, 0.5
  %vm467 = vcmp.gt.f32.partialorder %v418, 0.5
  %vm468 = vcmp.gt.f32.partialorder %v419, 0.5
  %vm469 = vcmp.gt.f32.partialorder %v420, 0.5
  %vm470 = vcmp.gt.f32.partialorder %v421, 0.5
  %vm471 = vcmp.gt.f32.partialorder %v422, 0.5
  %vm472 = vcmp.gt.f32.partialorder %v423, 0.5
  %vm473 = vcmp.gt.f32.partialorder %v424, 0.5
  %vm474 = vcmp.gt.f32.partialorder %v425, 0.5
  %vm475 = vcmp.gt.f32.partialorder %v426, 0.5
  %vm476 = vcmp.gt.f32.partialorder %v427, 0.5
  %vm477 = vcmp.gt.f32.partialorder %v428, 0.5
  %vm478 = vcmp.gt.f32.partialorder %v429, 0.5
  %vm479 = vcmp.gt.f32.partialorder %v430, 0.5
  %vm480 = vcmp.gt.f32.partialorder %v431, 0.5
  %vm481 = vcmp.gt.f32.partialorder %v432, 0.5
  %vm482 = vcmp.gt.f32.partialorder %v433, 0.5
  %vm483 = vcmp.gt.f32.partialorder %v434, 0.5
  %vm484 = vcmp.gt.f32.partialorder %v435, 0.5
  %vm485 = vcmp.gt.f32.partialorder %v436, 0.5
  %vm486 = vcmp.gt.f32.partialorder %v437, 0.5
  %vm487 = vcmp.gt.f32.partialorder %v438, 0.5
  %vm488 = vcmp.gt.f32.partialorder %v439, 0.5
  %vm489 = vcmp.gt.f32.partialorder %v440, 0.5
  %vm490 = vcmp.gt.f32.partialorder %v441, 0.5
  %vm491 = vcmp.gt.f32.partialorder %v442, 0.5
  %vm492 = vcmp.gt.f32.partialorder %v443, 0.5
  %vm493 = vcmp.gt.f32.partialorder %v444, 0.5
  %vm494 = vcmp.gt.f32.partialorder %v445, 0.5
  %vm495 = vcmp.gt.f32.partialorder %v446, 0.5
  %vm496 = vcmp.gt.f32.partialorder %v447, 0.5
  %vm497 = vcmp.gt.f32.partialorder %v448, 0.5
  %vm498 = vcmp.gt.f32.partialorder %v449, 0.5
  %vm499 = vcmp.gt.f32.partialorder %v450, 0.5
  %vm500 = vcmp.gt.f32.partialorder %v451, 0.5
  %vm501 = vcmp.gt.f32.partialorder %v452, 0.5
  %vm502 = vcmp.gt.f32.partialorder %v453, 0.5
  %vm503 = vcmp.gt.f32.partialorder %v454, 0.5
  %vm504 = vcmp.gt.f32.partialorder %v455, 0.5
  %v505 = vld [vmem:[%s0] sm:$0xff]
  %v506 = vld [vmem:[%s0 + $0x8] sm:$0xff]
  %v507 = vld [vmem:[%s0 + $0x10] sm:$0xff]
  %v508 = vld [vmem:[%s0 + $0x18] sm:$0xff]
  %v509 = vld [vmem:[%s0 + $0x20] sm:$0xff]
  %v510 = vld [vmem:[%s0 + $0x28] sm:$0xff]
  %v511 = vld [vmem:[%s0 + $0x30] sm:$0xff]
  %v512 = vld [vmem:[%s0 + $0x38] sm:$0xff]
  %v513 = vld [vmem:[%s0 + $0x40] sm:$0xff]
  %v514 = vld [vmem:[%s0 + $0x48] sm:$0xff]
  %v515 = vld [vmem:[%s0 + $0x50] sm:$0xff]
  %v516 = vld [vmem:[%s0 + $0x58] sm:$0xff]
  %v517 = vld [vmem:[%s0 + $0x60] sm:$0xff]
  %v518 = vld [vmem:[%s0 + $0x68] sm:$0xff]
  %v519 = vld [vmem:[%s0 + $0x70] sm:$0xff]
  %v520 = vld [vmem:[%s0 + $0x78] sm:$0xff]
  %v521 = vld [vmem:[%s0 + $0x80] sm:$0xff]
  %v522 = vld [vmem:[%s0 + $0x88] sm:$0xff]
  %v523 = vld [vmem:[%s0 + $0x90] sm:$0xff]
  %v524 = vld [vmem:[%s0 + $0x98] sm:$0xff]
  %v525 = vld [vmem:[%s0 + $0xa0] sm:$0xff]
  %v526 = vld [vmem:[%s0 + $0xa8] sm:$0xff]
  %v527 = vld [vmem:[%s0 + $0xb0] sm:$0xff]
  %v528 = vld [vmem:[%s0 + $0xb8] sm:$0xff]
  %v529 = vld [vmem:[%s0 + $0xc0] sm:$0xff]
  %v530 = vld [vmem:[%s0 + $0xc8] sm:$0xff]
  %v531 = vld [vmem:[%s0 + $0xd0] sm:$0xff]
  %v532 = vld [vmem:[%s0 + $0xd8] sm:$0xff]
  %v533 = vld [vmem:[%s0 + $0xe0] sm:$0xff]
  %v534 = vld [vmem:[%s0 + $0xe8] sm:$0xff]
  %v535 = vld [vmem:[%s0 + $0xf0] sm:$0xff]
  %v536 = vld [vmem:[%s0 + $0xf8] sm:$0xff]
  %v537 = vld [vmem:[%s0 + $0x100] sm:$0xff]
  %v538 = vld [vmem:[%s0 + $0x108] sm:$0xff]
  %v539 = vld [vmem:[%s0 + $0x110] sm:$0xff]
  %v540 = vld [vmem:[%s0 + $0x118] sm:$0xff]
  %v541 = vld [vmem:[%s0 + $0x120] sm:$0xff]
  %v542 = vld [vmem:[%s0 + $0x128] sm:$0xff]
  %v543 = vld [vmem:[%s0 + $0x130] sm:$0xff]
  %v544 = vld [vmem:[%s0 + $0x138] sm:$0xff]
  %v545 = vld [vmem:[%s0 + $0x140] sm:$0xff]
  %v546 = vld [vmem:[%s0 + $0x148] sm:$0xff]
  %v547 = vld [vmem:[%s0 + $0x150] sm:$0xff]
  %v548 = vld [vmem:[%s0 + $0x158] sm:$0xff]
  %v549 = vld [vmem:[%s0 + $0x160] sm:$0xff]
  %v550 = vld [vmem:[%s0 + $0x168] sm:$0xff]
  %v551 = vld [vmem:[%s0 + $0x170] sm:$0xff]
  %v552 = vld [vmem:[%s0 + $0x178] sm:$0xff]
  %v553 = vld [vmem:[%s0 + $0x180] sm:$0xff]
  %v554 = vld [vmem:[%s3] sm:$0xff]
  %v555 = vld [vmem:[%s3 + $0x8] sm:$0xff]
  %v556 = vld [vmem:[%s0 + $0x2] sm:$0xff]
  %v557 = vld [vmem:[%s0 + $0xa] sm:$0xff]
  %v558 = vld [vmem:[%s0 + $0x12] sm:$0xff]
  %v559 = vld [vmem:[%s0 + $0x1a] sm:$0xff]
  %v560 = vld [vmem:[%s0 + $0x22] sm:$0xff]
  %v561 = vld [vmem:[%s0 + $0x2a] sm:$0xff]
  %v562 = vld [vmem:[%s0 + $0x32] sm:$0xff]
  %v563 = vld [vmem:[%s0 + $0x3a] sm:$0xff]
  %v564 = vld [vmem:[%s0 + $0x42] sm:$0xff]
  %v565 = vld [vmem:[%s0 + $0x4a] sm:$0xff]
  %v566 = vld [vmem:[%s0 + $0x52] sm:$0xff]
  %v567 = vld [vmem:[%s0 + $0x5a] sm:$0xff]
  %v568 = vld [vmem:[%s0 + $0x62] sm:$0xff]
  %v569 = vld [vmem:[%s0 + $0x6a] sm:$0xff]
  %v570 = vld [vmem:[%s0 + $0x72] sm:$0xff]
  %v571 = vld [vmem:[%s0 + $0x7a] sm:$0xff]
  %v572 = vld [vmem:[%s0 + $0x82] sm:$0xff]
  %v573 = vld [vmem:[%s0 + $0x8a] sm:$0xff]
  %v574 = vld [vmem:[%s0 + $0x92] sm:$0xff]
  %v575 = vld [vmem:[%s0 + $0x9a] sm:$0xff]
  %v576 = vld [vmem:[%s0 + $0xa2] sm:$0xff]
  %v577 = vld [vmem:[%s0 + $0xaa] sm:$0xff]
  %v578 = vld [vmem:[%s0 + $0xb2] sm:$0xff]
  %v579 = vld [vmem:[%s0 + $0xba] sm:$0xff]
  %v580 = vld [vmem:[%s0 + $0xc2] sm:$0xff]
  %v581 = vld [vmem:[%s0 + $0xca] sm:$0xff]
  %v582 = vld [vmem:[%s0 + $0xd2] sm:$0xff]
  %v583 = vld [vmem:[%s0 + $0xda] sm:$0xff]
  %v584 = vld [vmem:[%s0 + $0xe2] sm:$0xff]
  %v585 = vld [vmem:[%s0 + $0xea] sm:$0xff]
  %v586 = vld [vmem:[%s0 + $0xf2] sm:$0xff]
  %v587 = vld [vmem:[%s0 + $0xfa] sm:$0xff]
  %v588 = vld [vmem:[%s0 + $0x102] sm:$0xff]
  %v589 = vld [vmem:[%s0 + $0x10a] sm:$0xff]
  %v590 = vld [vmem:[%s0 + $0x112] sm:$0xff]
  %v591 = vld [vmem:[%s0 + $0x11a] sm:$0xff]
  %v592 = vld [vmem:[%s0 + $0x122] sm:$0xff]
  %v593 = vld [vmem:[%s0 + $0x12a] sm:$0xff]
  %v594 = vld [vmem:[%s0 + $0x132] sm:$0xff]
  %v595 = vld [vmem:[%s0 + $0x13a] sm:$0xff]
  %v596 = vld [vmem:[%s0 + $0x142] sm:$0xff]
  %v597 = vld [vmem:[%s0 + $0x14a] sm:$0xff]
  %v598 = vld [vmem:[%s0 + $0x152] sm:$0xff]
  %v599 = vld [vmem:[%s0 + $0x15a] sm:$0xff]
  %v600 = vld [vmem:[%s0 + $0x162] sm:$0xff]
  %v601 = vld [vmem:[%s0 + $0x16a] sm:$0xff]
  %v602 = vld [vmem:[%s0 + $0x172] sm:$0xff]
  %v603 = vld [vmem:[%s0 + $0x17a] sm:$0xff]
  %v604 = vld [vmem:[%s0 + $0x182] sm:$0xff]
  %v605 = vld [vmem:[%s3 + $0x10] sm:$0xff]
  %v606 = vld [vmem:[%s3 + $0x18] sm:$0xff]
  %vm607 = vcmask 130048
  %v609 = vsel %vm607, %v556, 0
  %v612 = vsel %vm607, %v557, 0
  %v615 = vsel %vm607, %v558, 0
  %v618 = vsel %vm607, %v559, 0
  %v621 = vsel %vm607, %v560, 0
  %v624 = vsel %vm607, %v561, 0
  %v627 = vsel %vm607, %v562, 0
  %v630 = vsel %vm607, %v563, 0
  %v633 = vsel %vm607, %v564, 0
  %v636 = vsel %vm607, %v565, 0
  %v639 = vsel %vm607, %v566, 0
  %v642 = vsel %vm607, %v567, 0
  %v645 = vsel %vm607, %v568, 0
  %v648 = vsel %vm607, %v569, 0
  %v651 = vsel %vm607, %v570, 0
  %v654 = vsel %vm607, %v571, 0
  %v657 = vsel %vm607, %v572, 0
  %v660 = vsel %vm607, %v573, 0
  %v663 = vsel %vm607, %v574, 0
  %v666 = vsel %vm607, %v575, 0
  %v669 = vsel %vm607, %v576, 0
  %v672 = vsel %vm607, %v577, 0
  %v675 = vsel %vm607, %v578, 0
  %v678 = vsel %vm607, %v579, 0
  %v681 = vsel %vm607, %v580, 0
  %v684 = vsel %vm607, %v581, 0
  %v687 = vsel %vm607, %v582, 0
  %v690 = vsel %vm607, %v583, 0
  %v693 = vsel %vm607, %v584, 0
  %v696 = vsel %vm607, %v585, 0
  %v699 = vsel %vm607, %v586, 0
  %v702 = vsel %vm607, %v587, 0
  %v705 = vsel %vm607, %v588, 0
  %v708 = vsel %vm607, %v589, 0
  %v711 = vsel %vm607, %v590, 0
  %v714 = vsel %vm607, %v591, 0
  %v717 = vsel %vm607, %v592, 0
  %v720 = vsel %vm607, %v593, 0
  %v723 = vsel %vm607, %v594, 0
  %v726 = vsel %vm607, %v595, 0
  %v729 = vsel %vm607, %v596, 0
  %v732 = vsel %vm607, %v597, 0
  %v735 = vsel %vm607, %v598, 0
  %v738 = vsel %vm607, %v599, 0
  %v741 = vsel %vm607, %v600, 0
  %v744 = vsel %vm607, %v601, 0
  %v747 = vsel %vm607, %v602, 0
  %v750 = vsel %vm607, %v603, 0
  %v753 = vsel %vm607, %v604, 0
  %755 = vmatpush.msra.mxu0 0.0
  %756 = vmatpush.msra.mxu0 0.0
  %757 = vmatpush.msra.mxu0 0.0
  %758 = vmatpush.msra.mxu0 0.0
  %759 = vmatpush.msra.mxu0 0.0
  %760 = vmatpush.msra.mxu0 0.0
  %761 = vmatpush.msra.mxu0 0.0
  %762 = vmatpush.msra.mxu0 0.0
  %763 = vmatpush.msra.mxu0 0.0
  %764 = vmatpush.msra.mxu0 0.0
  %765 = vmatpush.msra.mxu0 0.0
  %766 = vmatpush.msra.mxu0 0.0
  %767 = vmatpush.msra.mxu0 0.0
  %768 = vmatpush.msra.mxu0 0.0
  %769 = vmatpush.msra.mxu0 %v606
  %770 = vmatpush.msra.mxu0 %v605
  %771 = vmatmul.f32.gmra.mxu0 %v609
  %v772 = vpop.f32.mrf.mxu0
  %v773 = vadd.f32 0.0, %v772
  %774 = vmatmul.f32.gmra.mxu0 %v612
  %v775 = vpop.f32.mrf.mxu0
  %v776 = vadd.f32 0.0, %v775
  %777 = vmatmul.f32.gmra.mxu0 %v615
  %v778 = vpop.f32.mrf.mxu0
  %v779 = vadd.f32 0.0, %v778
  %780 = vmatmul.f32.gmra.mxu0 %v618
  %v781 = vpop.f32.mrf.mxu0
  %v782 = vadd.f32 0.0, %v781
  %783 = vmatmul.f32.gmra.mxu0 %v621
  %v784 = vpop.f32.mrf.mxu0
  %v785 = vadd.f32 0.0, %v784
  %786 = vmatmul.f32.gmra.mxu0 %v624
  %v787 = vpop.f32.mrf.mxu0
  %v788 = vadd.f32 0.0, %v787
  %789 = vmatmul.f32.gmra.mxu0 %v627
  %v790 = vpop.f32.mrf.mxu0
  %v791 = vadd.f32 0.0, %v790
  %792 = vmatmul.f32.gmra.mxu0 %v630
  %v793 = vpop.f32.mrf.mxu0
  %v794 = vadd.f32 0.0, %v793
  %795 = vmatmul.f32.gmra.mxu0 %v633
  %v796 = vpop.f32.mrf.mxu0
  %v797 = vadd.f32 0.0, %v796
  %798 = vmatmul.f32.gmra.mxu0 %v636
  %v799 = vpop.f32.mrf.mxu0
  %v800 = vadd.f32 0.0, %v799
  %801 = vmatmul.f32.gmra.mxu0 %v639
  %v802 = vpop.f32.mrf.mxu0
  %v803 = vadd.f32 0.0, %v802
  %804 = vmatmul.f32.gmra.mxu0 %v642
  %v805 = vpop.f32.mrf.mxu0
  %v806 = vadd.f32 0.0, %v805
  %807 = vmatmul.f32.gmra.mxu0 %v645
  %v808 = vpop.f32.mrf.mxu0
  %v809 = vadd.f32 0.0, %v808
  %810 = vmatmul.f32.gmra.mxu0 %v648
  %v811 = vpop.f32.mrf.mxu0
  %v812 = vadd.f32 0.0, %v811
  %813 = vmatmul.f32.gmra.mxu0 %v651
  %v814 = vpop.f32.mrf.mxu0
  %v815 = vadd.f32 0.0, %v814
  %816 = vmatmul.f32.gmra.mxu0 %v654
  %v817 = vpop.f32.mrf.mxu0
  %v818 = vadd.f32 0.0, %v817
  %819 = vmatmul.f32.gmra.mxu0 %v657
  %v820 = vpop.f32.mrf.mxu0
  %v821 = vadd.f32 0.0, %v820
  %822 = vmatmul.f32.gmra.mxu0 %v660
  %v823 = vpop.f32.mrf.mxu0
  %v824 = vadd.f32 0.0, %v823
  %825 = vmatmul.f32.gmra.mxu0 %v663
  %v826 = vpop.f32.mrf.mxu0
  %v827 = vadd.f32 0.0, %v826
  %828 = vmatmul.f32.gmra.mxu0 %v666
  %v829 = vpop.f32.mrf.mxu0
  %v830 = vadd.f32 0.0, %v829
  %831 = vmatmul.f32.gmra.mxu0 %v669
  %v832 = vpop.f32.mrf.mxu0
  %v833 = vadd.f32 0.0, %v832
  %834 = vmatmul.f32.gmra.mxu0 %v672
  %v835 = vpop.f32.mrf.mxu0
  %v836 = vadd.f32 0.0, %v835
  %837 = vmatmul.f32.gmra.mxu0 %v675
  %v838 = vpop.f32.mrf.mxu0
  %v839 = vadd.f32 0.0, %v838
  %840 = vmatmul.f32.gmra.mxu0 %v678
  %v841 = vpop.f32.mrf.mxu0
  %v842 = vadd.f32 0.0, %v841
  %843 = vmatmul.f32.gmra.mxu0 %v681
  %v844 = vpop.f32.mrf.mxu0
  %v845 = vadd.f32 0.0, %v844
  %846 = vmatmul.f32.gmra.mxu0 %v684
  %v847 = vpop.f32.mrf.mxu0
  %v848 = vadd.f32 0.0, %v847
  %849 = vmatmul.f32.gmra.mxu0 %v687
  %v850 = vpop.f32.mrf.mxu0
  %v851 = vadd.f32 0.0, %v850
  %852 = vmatmul.f32.gmra.mxu0 %v690
  %v853 = vpop.f32.mrf.mxu0
  %v854 = vadd.f32 0.0, %v853
  %855 = vmatmul.f32.gmra.mxu0 %v693
  %v856 = vpop.f32.mrf.mxu0
  %v857 = vadd.f32 0.0, %v856
  %858 = vmatmul.f32.gmra.mxu0 %v696
  %v859 = vpop.f32.mrf.mxu0
  %v860 = vadd.f32 0.0, %v859
  %861 = vmatmul.f32.gmra.mxu0 %v699
  %v862 = vpop.f32.mrf.mxu0
  %v863 = vadd.f32 0.0, %v862
  %864 = vmatmul.f32.gmra.mxu0 %v702
  %v865 = vpop.f32.mrf.mxu0
  %v866 = vadd.f32 0.0, %v865
  %867 = vmatmul.f32.gmra.mxu0 %v705
  %v868 = vpop.f32.mrf.mxu0
  %v869 = vadd.f32 0.0, %v868
  %870 = vmatmul.f32.gmra.mxu0 %v708
  %v871 = vpop.f32.mrf.mxu0
  %v872 = vadd.f32 0.0, %v871
  %873 = vmatmul.f32.gmra.mxu0 %v711
  %v874 = vpop.f32.mrf.mxu0
  %v875 = vadd.f32 0.0, %v874
  %876 = vmatmul.f32.gmra.mxu0 %v714
  %v877 = vpop.f32.mrf.mxu0
  %v878 = vadd.f32 0.0, %v877
  %879 = vmatmul.f32.gmra.mxu0 %v717
  %v880 = vpop.f32.mrf.mxu0
  %v881 = vadd.f32 0.0, %v880
  %882 = vmatmul.f32.gmra.mxu0 %v720
  %v883 = vpop.f32.mrf.mxu0
  %v884 = vadd.f32 0.0, %v883
  %885 = vmatmul.f32.gmra.mxu0 %v723
  %v886 = vpop.f32.mrf.mxu0
  %v887 = vadd.f32 0.0, %v886
  %888 = vmatmul.f32.gmra.mxu0 %v726
  %v889 = vpop.f32.mrf.mxu0
  %v890 = vadd.f32 0.0, %v889
  %891 = vmatmul.f32.gmra.mxu0 %v729
  %v892 = vpop.f32.mrf.mxu0
  %v893 = vadd.f32 0.0, %v892
  %894 = vmatmul.f32.gmra.mxu0 %v732
  %v895 = vpop.f32.mrf.mxu0
  %v896 = vadd.f32 0.0, %v895
  %897 = vmatmul.f32.gmra.mxu0 %v735
  %v898 = vpop.f32.mrf.mxu0
  %v899 = vadd.f32 0.0, %v898
  %900 = vmatmul.f32.gmra.mxu0 %v738
  %v901 = vpop.f32.mrf.mxu0
  %v902 = vadd.f32 0.0, %v901
  %903 = vmatmul.f32.gmra.mxu0 %v741
  %v904 = vpop.f32.mrf.mxu0
  %v905 = vadd.f32 0.0, %v904
  %906 = vmatmul.f32.gmra.mxu0 %v744
  %v907 = vpop.f32.mrf.mxu0
  %v908 = vadd.f32 0.0, %v907
  %909 = vmatmul.f32.gmra.mxu0 %v747
  %v910 = vpop.f32.mrf.mxu0
  %v911 = vadd.f32 0.0, %v910
  %912 = vmatmul.f32.gmra.mxu0 %v750
  %v913 = vpop.f32.mrf.mxu0
  %v914 = vadd.f32 0.0, %v913
  %915 = vmatmul.f32.gmra.mxu0 %v753
  %v916 = vpop.f32.mrf.mxu0
  %v917 = vadd.f32 0.0, %v916
  %918 = vdwg.mxu0
  %v920 = vsel %vm607, %v505, 0
  %v923 = vsel %vm607, %v506, 0
  %v926 = vsel %vm607, %v507, 0
  %v929 = vsel %vm607, %v508, 0
  %v932 = vsel %vm607, %v509, 0
  %v935 = vsel %vm607, %v510, 0
  %v938 = vsel %vm607, %v511, 0
  %v941 = vsel %vm607, %v512, 0
  %v944 = vsel %vm607, %v513, 0
  %v947 = vsel %vm607, %v514, 0
  %v950 = vsel %vm607, %v515, 0
  %v953 = vsel %vm607, %v516, 0
  %v956 = vsel %vm607, %v517, 0
  %v959 = vsel %vm607, %v518, 0
  %v962 = vsel %vm607, %v519, 0
  %v965 = vsel %vm607, %v520, 0
  %v968 = vsel %vm607, %v521, 0
  %v971 = vsel %vm607, %v522, 0
  %v974 = vsel %vm607, %v523, 0
  %v977 = vsel %vm607, %v524, 0
  %v980 = vsel %vm607, %v525, 0
  %v983 = vsel %vm607, %v526, 0
  %v986 = vsel %vm607, %v527, 0
  %v989 = vsel %vm607, %v528, 0
  %v992 = vsel %vm607, %v529, 0
  %v995 = vsel %vm607, %v530, 0
  %v998 = vsel %vm607, %v531, 0
  %v1001 = vsel %vm607, %v532, 0
  %v1004 = vsel %vm607, %v533, 0
  %v1007 = vsel %vm607, %v534, 0
  %v1010 = vsel %vm607, %v535, 0
  %v1013 = vsel %vm607, %v536, 0
  %v1016 = vsel %vm607, %v537, 0
  %v1019 = vsel %vm607, %v538, 0
  %v1022 = vsel %vm607, %v539, 0
  %v1025 = vsel %vm607, %v540, 0
  %v1028 = vsel %vm607, %v541, 0
  %v1031 = vsel %vm607, %v542, 0
  %v1034 = vsel %vm607, %v543, 0
  %v1037 = vsel %vm607, %v544, 0
  %v1040 = vsel %vm607, %v545, 0
  %v1043 = vsel %vm607, %v546, 0
  %v1046 = vsel %vm607, %v547, 0
  %v1049 = vsel %vm607, %v548, 0
  %v1052 = vsel %vm607, %v549, 0
  %v1055 = vsel %vm607, %v550, 0
  %v1058 = vsel %vm607, %v551, 0
  %v1061 = vsel %vm607, %v552, 0
  %v1064 = vsel %vm607, %v553, 0
  %1066 = vmatpush.msra.mxu0 0.0
  %1067 = vmatpush.msra.mxu0 0.0
  %1068 = vmatpush.msra.mxu0 0.0
  %1069 = vmatpush.msra.mxu0 0.0
  %1070 = vmatpush.msra.mxu0 0.0
  %1071 = vmatpush.msra.mxu0 0.0
  %1072 = vmatpush.msra.mxu0 0.0
  %1073 = vmatpush.msra.mxu0 0.0
  %1074 = vmatpush.msra.mxu0 0.0
  %1075 = vmatpush.msra.mxu0 0.0
  %1076 = vmatpush.msra.mxu0 0.0
  %1077 = vmatpush.msra.mxu0 0.0
  %1078 = vmatpush.msra.mxu0 0.0
  %1079 = vmatpush.msra.mxu0 0.0
  %1080 = vmatpush.msra.mxu0 %v555
  %1081 = vmatpush.msra.mxu0 %v554
  %1082 = vmatmul.f32.gmra.mxu0 %v920
  %v1083 = vpop.f32.mrf.mxu0
  %v1084 = vadd.f32 %v773, %v1083
  %1085 = vmatmul.f32.gmra.mxu0 %v923
  %v1086 = vpop.f32.mrf.mxu0
  %v1087 = vadd.f32 %v776, %v1086
  %1088 = vmatmul.f32.gmra.mxu0 %v926
  %v1089 = vpop.f32.mrf.mxu0
  %v1090 = vadd.f32 %v779, %v1089
  %1091 = vmatmul.f32.gmra.mxu0 %v929
  %v1092 = vpop.f32.mrf.mxu0
  %v1093 = vadd.f32 %v782, %v1092
  %1094 = vmatmul.f32.gmra.mxu0 %v932
  %v1095 = vpop.f32.mrf.mxu0
  %v1096 = vadd.f32 %v785, %v1095
  %1097 = vmatmul.f32.gmra.mxu0 %v935
  %v1098 = vpop.f32.mrf.mxu0
  %v1099 = vadd.f32 %v788, %v1098
  %1100 = vmatmul.f32.gmra.mxu0 %v938
  %v1101 = vpop.f32.mrf.mxu0
  %v1102 = vadd.f32 %v791, %v1101
  %1103 = vmatmul.f32.gmra.mxu0 %v941
  %v1104 = vpop.f32.mrf.mxu0
  %v1105 = vadd.f32 %v794, %v1104
  %1106 = vmatmul.f32.gmra.mxu0 %v944
  %v1107 = vpop.f32.mrf.mxu0
  %v1108 = vadd.f32 %v797, %v1107
  %1109 = vmatmul.f32.gmra.mxu0 %v947
  %v1110 = vpop.f32.mrf.mxu0
  %v1111 = vadd.f32 %v800, %v1110
  %1112 = vmatmul.f32.gmra.mxu0 %v950
  %v1113 = vpop.f32.mrf.mxu0
  %v1114 = vadd.f32 %v803, %v1113
  %1115 = vmatmul.f32.gmra.mxu0 %v953
  %v1116 = vpop.f32.mrf.mxu0
  %v1117 = vadd.f32 %v806, %v1116
  %1118 = vmatmul.f32.gmra.mxu0 %v956
  %v1119 = vpop.f32.mrf.mxu0
  %v1120 = vadd.f32 %v809, %v1119
  %1121 = vmatmul.f32.gmra.mxu0 %v959
  %v1122 = vpop.f32.mrf.mxu0
  %v1123 = vadd.f32 %v812, %v1122
  %1124 = vmatmul.f32.gmra.mxu0 %v962
  %v1125 = vpop.f32.mrf.mxu0
  %v1126 = vadd.f32 %v815, %v1125
  %1127 = vmatmul.f32.gmra.mxu0 %v965
  %v1128 = vpop.f32.mrf.mxu0
  %v1129 = vadd.f32 %v818, %v1128
  %1130 = vmatmul.f32.gmra.mxu0 %v968
  %v1131 = vpop.f32.mrf.mxu0
  %v1132 = vadd.f32 %v821, %v1131
  %1133 = vmatmul.f32.gmra.mxu0 %v971
  %v1134 = vpop.f32.mrf.mxu0
  %v1135 = vadd.f32 %v824, %v1134
  %1136 = vmatmul.f32.gmra.mxu0 %v974
  %v1137 = vpop.f32.mrf.mxu0
  %v1138 = vadd.f32 %v827, %v1137
  %1139 = vmatmul.f32.gmra.mxu0 %v977
  %v1140 = vpop.f32.mrf.mxu0
  %v1141 = vadd.f32 %v830, %v1140
  %1142 = vmatmul.f32.gmra.mxu0 %v980
  %v1143 = vpop.f32.mrf.mxu0
  %v1144 = vadd.f32 %v833, %v1143
  %1145 = vmatmul.f32.gmra.mxu0 %v983
  %v1146 = vpop.f32.mrf.mxu0
  %v1147 = vadd.f32 %v836, %v1146
  %1148 = vmatmul.f32.gmra.mxu0 %v986
  %v1149 = vpop.f32.mrf.mxu0
  %v1150 = vadd.f32 %v839, %v1149
  %1151 = vmatmul.f32.gmra.mxu0 %v989
  %v1152 = vpop.f32.mrf.mxu0
  %v1153 = vadd.f32 %v842, %v1152
  %1154 = vmatmul.f32.gmra.mxu0 %v992
  %v1155 = vpop.f32.mrf.mxu0
  %v1156 = vadd.f32 %v845, %v1155
  %1157 = vmatmul.f32.gmra.mxu0 %v995
  %v1158 = vpop.f32.mrf.mxu0
  %v1159 = vadd.f32 %v848, %v1158
  %1160 = vmatmul.f32.gmra.mxu0 %v998
  %v1161 = vpop.f32.mrf.mxu0
  %v1162 = vadd.f32 %v851, %v1161
  %1163 = vmatmul.f32.gmra.mxu0 %v1001
  %v1164 = vpop.f32.mrf.mxu0
  %v1165 = vadd.f32 %v854, %v1164
  %1166 = vmatmul.f32.gmra.mxu0 %v1004
  %v1167 = vpop.f32.mrf.mxu0
  %v1168 = vadd.f32 %v857, %v1167
  %1169 = vmatmul.f32.gmra.mxu0 %v1007
  %v1170 = vpop.f32.mrf.mxu0
  %v1171 = vadd.f32 %v860, %v1170
  %1172 = vmatmul.f32.gmra.mxu0 %v1010
  %v1173 = vpop.f32.mrf.mxu0
  %v1174 = vadd.f32 %v863, %v1173
  %1175 = vmatmul.f32.gmra.mxu0 %v1013
  %v1176 = vpop.f32.mrf.mxu0
  %v1177 = vadd.f32 %v866, %v1176
  %1178 = vmatmul.f32.gmra.mxu0 %v1016
  %v1179 = vpop.f32.mrf.mxu0
  %v1180 = vadd.f32 %v869, %v1179
  %1181 = vmatmul.f32.gmra.mxu0 %v1019
  %v1182 = vpop.f32.mrf.mxu0
  %v1183 = vadd.f32 %v872, %v1182
  %1184 = vmatmul.f32.gmra.mxu0 %v1022
  %v1185 = vpop.f32.mrf.mxu0
  %v1186 = vadd.f32 %v875, %v1185
  %1187 = vmatmul.f32.gmra.mxu0 %v1025
  %v1188 = vpop.f32.mrf.mxu0
  %v1189 = vadd.f32 %v878, %v1188
  %1190 = vmatmul.f32.gmra.mxu0 %v1028
  %v1191 = vpop.f32.mrf.mxu0
  %v1192 = vadd.f32 %v881, %v1191
  %1193 = vmatmul.f32.gmra.mxu0 %v1031
  %v1194 = vpop.f32.mrf.mxu0
  %v1195 = vadd.f32 %v884, %v1194
  %1196 = vmatmul.f32.gmra.mxu0 %v1034
  %v1197 = vpop.f32.mrf.mxu0
  %v1198 = vadd.f32 %v887, %v1197
  %1199 = vmatmul.f32.gmra.mxu0 %v1037
  %v1200 = vpop.f32.mrf.mxu0
  %v1201 = vadd.f32 %v890, %v1200
  %1202 = vmatmul.f32.gmra.mxu0 %v1040
  %v1203 = vpop.f32.mrf.mxu0
  %v1204 = vadd.f32 %v893, %v1203
  %1205 = vmatmul.f32.gmra.mxu0 %v1043
  %v1206 = vpop.f32.mrf.mxu0
  %v1207 = vadd.f32 %v896, %v1206
  %1208 = vmatmul.f32.gmra.mxu0 %v1046
  %v1209 = vpop.f32.mrf.mxu0
  %v1210 = vadd.f32 %v899, %v1209
  %1211 = vmatmul.f32.gmra.mxu0 %v1049
  %v1212 = vpop.f32.mrf.mxu0
  %v1213 = vadd.f32 %v902, %v1212
  %1214 = vmatmul.f32.gmra.mxu0 %v1052
  %v1215 = vpop.f32.mrf.mxu0
  %v1216 = vadd.f32 %v905, %v1215
  %1217 = vmatmul.f32.gmra.mxu0 %v1055
  %v1218 = vpop.f32.mrf.mxu0
  %v1219 = vadd.f32 %v908, %v1218
  %1220 = vmatmul.f32.gmra.mxu0 %v1058
  %v1221 = vpop.f32.mrf.mxu0
  %v1222 = vadd.f32 %v911, %v1221
  %1223 = vmatmul.f32.gmra.mxu0 %v1061
  %v1224 = vpop.f32.mrf.mxu0
  %v1225 = vadd.f32 %v914, %v1224
  %1226 = vmatmul.f32.gmra.mxu0 %v1064
  %v1227 = vpop.f32.mrf.mxu0
  %v1228 = vadd.f32 %v917, %v1227
  %1229 = vdwg.mxu0
  %v1230 = vld [vmem:[%s0 + $0x4] sm:$0xff]
  %v1231 = vld [vmem:[%s0 + $0xc] sm:$0xff]
  %v1232 = vld [vmem:[%s0 + $0x14] sm:$0xff]
  %v1233 = vld [vmem:[%s0 + $0x1c] sm:$0xff]
  %v1234 = vld [vmem:[%s0 + $0x24] sm:$0xff]
  %v1235 = vld [vmem:[%s0 + $0x2c] sm:$0xff]
  %v1236 = vld [vmem:[%s0 + $0x34] sm:$0xff]
  %v1237 = vld [vmem:[%s0 + $0x3c] sm:$0xff]
  %v1238 = vld [vmem:[%s0 + $0x44] sm:$0xff]
  %v1239 = vld [vmem:[%s0 + $0x4c] sm:$0xff]
  %v1240 = vld [vmem:[%s0 + $0x54] sm:$0xff]
  %v1241 = vld [vmem:[%s0 + $0x5c] sm:$0xff]
  %v1242 = vld [vmem:[%s0 + $0x64] sm:$0xff]
  %v1243 = vld [vmem:[%s0 + $0x6c] sm:$0xff]
  %v1244 = vld [vmem:[%s0 + $0x74] sm:$0xff]
  %v1245 = vld [vmem:[%s0 + $0x7c] sm:$0xff]
  %v1246 = vld [vmem:[%s0 + $0x84] sm:$0xff]
  %v1247 = vld [vmem:[%s0 + $0x8c] sm:$0xff]
  %v1248 = vld [vmem:[%s0 + $0x94] sm:$0xff]
  %v1249 = vld [vmem:[%s0 + $0x9c] sm:$0xff]
  %v1250 = vld [vmem:[%s0 + $0xa4] sm:$0xff]
  %v1251 = vld [vmem:[%s0 + $0xac] sm:$0xff]
  %v1252 = vld [vmem:[%s0 + $0xb4] sm:$0xff]
  %v1253 = vld [vmem:[%s0 + $0xbc] sm:$0xff]
  %v1254 = vld [vmem:[%s0 + $0xc4] sm:$0xff]
  %v1255 = vld [vmem:[%s0 + $0xcc] sm:$0xff]
  %v1256 = vld [vmem:[%s0 + $0xd4] sm:$0xff]
  %v1257 = vld [vmem:[%s0 + $0xdc] sm:$0xff]
  %v1258 = vld [vmem:[%s0 + $0xe4] sm:$0xff]
  %v1259 = vld [vmem:[%s0 + $0xec] sm:$0xff]
  %v1260 = vld [vmem:[%s0 + $0xf4] sm:$0xff]
  %v1261 = vld [vmem:[%s0 + $0xfc] sm:$0xff]
  %v1262 = vld [vmem:[%s0 + $0x104] sm:$0xff]
  %v1263 = vld [vmem:[%s0 + $0x10c] sm:$0xff]
  %v1264 = vld [vmem:[%s0 + $0x114] sm:$0xff]
  %v1265 = vld [vmem:[%s0 + $0x11c] sm:$0xff]
  %v1266 = vld [vmem:[%s0 + $0x124] sm:$0xff]
  %v1267 = vld [vmem:[%s0 + $0x12c] sm:$0xff]
  %v1268 = vld [vmem:[%s0 + $0x134] sm:$0xff]
  %v1269 = vld [vmem:[%s0 + $0x13c] sm:$0xff]
  %v1270 = vld [vmem:[%s0 + $0x144] sm:$0xff]
  %v1271 = vld [vmem:[%s0 + $0x14c] sm:$0xff]
  %v1272 = vld [vmem:[%s0 + $0x154] sm:$0xff]
  %v1273 = vld [vmem:[%s0 + $0x15c] sm:$0xff]
  %v1274 = vld [vmem:[%s0 + $0x164] sm:$0xff]
  %v1275 = vld [vmem:[%s0 + $0x16c] sm:$0xff]
  %v1276 = vld [vmem:[%s0 + $0x174] sm:$0xff]
  %v1277 = vld [vmem:[%s0 + $0x17c] sm:$0xff]
  %v1278 = vld [vmem:[%s0 + $0x184] sm:$0xff]
  %v1279 = vld [vmem:[%s3 + $0x20] sm:$0xff]
  %v1280 = vld [vmem:[%s3 + $0x28] sm:$0xff]
  %v1282 = vsel %vm607, %v1230, 0
  %v1285 = vsel %vm607, %v1231, 0
  %v1288 = vsel %vm607, %v1232, 0
  %v1291 = vsel %vm607, %v1233, 0
  %v1294 = vsel %vm607, %v1234, 0
  %v1297 = vsel %vm607, %v1235, 0
  %v1300 = vsel %vm607, %v1236, 0
  %v1303 = vsel %vm607, %v1237, 0
  %v1306 = vsel %vm607, %v1238, 0
  %v1309 = vsel %vm607, %v1239, 0
  %v1312 = vsel %vm607, %v1240, 0
  %v1315 = vsel %vm607, %v1241, 0
  %v1318 = vsel %vm607, %v1242, 0
  %v1321 = vsel %vm607, %v1243, 0
  %v1324 = vsel %vm607, %v1244, 0
  %v1327 = vsel %vm607, %v1245, 0
  %v1330 = vsel %vm607, %v1246, 0
  %v1333 = vsel %vm607, %v1247, 0
  %v1336 = vsel %vm607, %v1248, 0
  %v1339 = vsel %vm607, %v1249, 0
  %v1342 = vsel %vm607, %v1250, 0
  %v1345 = vsel %vm607, %v1251, 0
  %v1348 = vsel %vm607, %v1252, 0
  %v1351 = vsel %vm607, %v1253, 0
  %v1354 = vsel %vm607, %v1254, 0
  %v1357 = vsel %vm607, %v1255, 0
  %v1360 = vsel %vm607, %v1256, 0
  %v1363 = vsel %vm607, %v1257, 0
  %v1366 = vsel %vm607, %v1258, 0
  %v1369 = vsel %vm607, %v1259, 0
  %v1372 = vsel %vm607, %v1260, 0
  %v1375 = vsel %vm607, %v1261, 0
  %v1378 = vsel %vm607, %v1262, 0
  %v1381 = vsel %vm607, %v1263, 0
  %v1384 = vsel %vm607, %v1264, 0
  %v1387 = vsel %vm607, %v1265, 0
  %v1390 = vsel %vm607, %v1266, 0
  %v1393 = vsel %vm607, %v1267, 0
  %v1396 = vsel %vm607, %v1268, 0
  %v1399 = vsel %vm607, %v1269, 0
  %v1402 = vsel %vm607, %v1270, 0
  %v1405 = vsel %vm607, %v1271, 0
  %v1408 = vsel %vm607, %v1272, 0
  %v1411 = vsel %vm607, %v1273, 0
  %v1414 = vsel %vm607, %v1274, 0
  %v1417 = vsel %vm607, %v1275, 0
  %v1420 = vsel %vm607, %v1276, 0
  %v1423 = vsel %vm607, %v1277, 0
  %v1426 = vsel %vm607, %v1278, 0
  %1428 = vmatpush.msra.mxu0 0.0
  %1429 = vmatpush.msra.mxu0 0.0
  %1430 = vmatpush.msra.mxu0 0.0
  %1431 = vmatpush.msra.mxu0 0.0
  %1432 = vmatpush.msra.mxu0 0.0
  %1433 = vmatpush.msra.mxu0 0.0
  %1434 = vmatpush.msra.mxu0 0.0
  %1435 = vmatpush.msra.mxu0 0.0
  %1436 = vmatpush.msra.mxu0 0.0
  %1437 = vmatpush.msra.mxu0 0.0
  %1438 = vmatpush.msra.mxu0 0.0
  %1439 = vmatpush.msra.mxu0 0.0
  %1440 = vmatpush.msra.mxu0 0.0
  %1441 = vmatpush.msra.mxu0 0.0
  %1442 = vmatpush.msra.mxu0 %v1280
  %1443 = vmatpush.msra.mxu0 %v1279
  %1444 = vmatmul.f32.gmra.mxu0 %v1282
  %v1445 = vpop.f32.mrf.mxu0
  %v1446 = vadd.f32 0.0, %v1445
  %1447 = vmatmul.f32.gmra.mxu0 %v1285
  %v1448 = vpop.f32.mrf.mxu0
  %v1449 = vadd.f32 0.0, %v1448
  %1450 = vmatmul.f32.gmra.mxu0 %v1288
  %v1451 = vpop.f32.mrf.mxu0
  %v1452 = vadd.f32 0.0, %v1451
  %1453 = vmatmul.f32.gmra.mxu0 %v1291
  %v1454 = vpop.f32.mrf.mxu0
  %v1455 = vadd.f32 0.0, %v1454
  %1456 = vmatmul.f32.gmra.mxu0 %v1294
  %v1457 = vpop.f32.mrf.mxu0
  %v1458 = vadd.f32 0.0, %v1457
  %1459 = vmatmul.f32.gmra.mxu0 %v1297
  %v1460 = vpop.f32.mrf.mxu0
  %v1461 = vadd.f32 0.0, %v1460
  %1462 = vmatmul.f32.gmra.mxu0 %v1300
  %v1463 = vpop.f32.mrf.mxu0
  %v1464 = vadd.f32 0.0, %v1463
  %1465 = vmatmul.f32.gmra.mxu0 %v1303
  %v1466 = vpop.f32.mrf.mxu0
  %v1467 = vadd.f32 0.0, %v1466
  %1468 = vmatmul.f32.gmra.mxu0 %v1306
  %v1469 = vpop.f32.mrf.mxu0
  %v1470 = vadd.f32 0.0, %v1469
  %1471 = vmatmul.f32.gmra.mxu0 %v1309
  %v1472 = vpop.f32.mrf.mxu0
  %v1473 = vadd.f32 0.0, %v1472
  %1474 = vmatmul.f32.gmra.mxu0 %v1312
  %v1475 = vpop.f32.mrf.mxu0
  %v1476 = vadd.f32 0.0, %v1475
  %1477 = vmatmul.f32.gmra.mxu0 %v1315
  %v1478 = vpop.f32.mrf.mxu0
  %v1479 = vadd.f32 0.0, %v1478
  %1480 = vmatmul.f32.gmra.mxu0 %v1318
  %v1481 = vpop.f32.mrf.mxu0
  %v1482 = vadd.f32 0.0, %v1481
  %1483 = vmatmul.f32.gmra.mxu0 %v1321
  %v1484 = vpop.f32.mrf.mxu0
  %v1485 = vadd.f32 0.0, %v1484
  %1486 = vmatmul.f32.gmra.mxu0 %v1324
  %v1487 = vpop.f32.mrf.mxu0
  %v1488 = vadd.f32 0.0, %v1487
  %1489 = vmatmul.f32.gmra.mxu0 %v1327
  %v1490 = vpop.f32.mrf.mxu0
  %v1491 = vadd.f32 0.0, %v1490
  %1492 = vmatmul.f32.gmra.mxu0 %v1330
  %v1493 = vpop.f32.mrf.mxu0
  %v1494 = vadd.f32 0.0, %v1493
  %1495 = vmatmul.f32.gmra.mxu0 %v1333
  %v1496 = vpop.f32.mrf.mxu0
  %v1497 = vadd.f32 0.0, %v1496
  %1498 = vmatmul.f32.gmra.mxu0 %v1336
  %v1499 = vpop.f32.mrf.mxu0
  %v1500 = vadd.f32 0.0, %v1499
  %1501 = vmatmul.f32.gmra.mxu0 %v1339
  %v1502 = vpop.f32.mrf.mxu0
  %v1503 = vadd.f32 0.0, %v1502
  %1504 = vmatmul.f32.gmra.mxu0 %v1342
  %v1505 = vpop.f32.mrf.mxu0
  %v1506 = vadd.f32 0.0, %v1505
  %1507 = vmatmul.f32.gmra.mxu0 %v1345
  %v1508 = vpop.f32.mrf.mxu0
  %v1509 = vadd.f32 0.0, %v1508
  %1510 = vmatmul.f32.gmra.mxu0 %v1348
  %v1511 = vpop.f32.mrf.mxu0
  %v1512 = vadd.f32 0.0, %v1511
  %1513 = vmatmul.f32.gmra.mxu0 %v1351
  %v1514 = vpop.f32.mrf.mxu0
  %v1515 = vadd.f32 0.0, %v1514
  %1516 = vmatmul.f32.gmra.mxu0 %v1354
  %v1517 = vpop.f32.mrf.mxu0
  %v1518 = vadd.f32 0.0, %v1517
  %1519 = vmatmul.f32.gmra.mxu0 %v1357
  %v1520 = vpop.f32.mrf.mxu0
  %v1521 = vadd.f32 0.0, %v1520
  %1522 = vmatmul.f32.gmra.mxu0 %v1360
  %v1523 = vpop.f32.mrf.mxu0
  %v1524 = vadd.f32 0.0, %v1523
  %1525 = vmatmul.f32.gmra.mxu0 %v1363
  %v1526 = vpop.f32.mrf.mxu0
  %v1527 = vadd.f32 0.0, %v1526
  %1528 = vmatmul.f32.gmra.mxu0 %v1366
  %v1529 = vpop.f32.mrf.mxu0
  %v1530 = vadd.f32 0.0, %v1529
  %1531 = vmatmul.f32.gmra.mxu0 %v1369
  %v1532 = vpop.f32.mrf.mxu0
  %v1533 = vadd.f32 0.0, %v1532
  %1534 = vmatmul.f32.gmra.mxu0 %v1372
  %v1535 = vpop.f32.mrf.mxu0
  %v1536 = vadd.f32 0.0, %v1535
  %1537 = vmatmul.f32.gmra.mxu0 %v1375
  %v1538 = vpop.f32.mrf.mxu0
  %v1539 = vadd.f32 0.0, %v1538
  %1540 = vmatmul.f32.gmra.mxu0 %v1378
  %v1541 = vpop.f32.mrf.mxu0
  %v1542 = vadd.f32 0.0, %v1541
  %1543 = vmatmul.f32.gmra.mxu0 %v1381
  %v1544 = vpop.f32.mrf.mxu0
  %v1545 = vadd.f32 0.0, %v1544
  %1546 = vmatmul.f32.gmra.mxu0 %v1384
  %v1547 = vpop.f32.mrf.mxu0
  %v1548 = vadd.f32 0.0, %v1547
  %1549 = vmatmul.f32.gmra.mxu0 %v1387
  %v1550 = vpop.f32.mrf.mxu0
  %v1551 = vadd.f32 0.0, %v1550
  %1552 = vmatmul.f32.gmra.mxu0 %v1390
  %v1553 = vpop.f32.mrf.mxu0
  %v1554 = vadd.f32 0.0, %v1553
  %1555 = vmatmul.f32.gmra.mxu0 %v1393
  %v1556 = vpop.f32.mrf.mxu0
  %v1557 = vadd.f32 0.0, %v1556
  %1558 = vmatmul.f32.gmra.mxu0 %v1396
  %v1559 = vpop.f32.mrf.mxu0
  %v1560 = vadd.f32 0.0, %v1559
  %1561 = vmatmul.f32.gmra.mxu0 %v1399
  %v1562 = vpop.f32.mrf.mxu0
  %v1563 = vadd.f32 0.0, %v1562
  %1564 = vmatmul.f32.gmra.mxu0 %v1402
  %v1565 = vpop.f32.mrf.mxu0
  %v1566 = vadd.f32 0.0, %v1565
  %1567 = vmatmul.f32.gmra.mxu0 %v1405
  %v1568 = vpop.f32.mrf.mxu0
  %v1569 = vadd.f32 0.0, %v1568
  %1570 = vmatmul.f32.gmra.mxu0 %v1408
  %v1571 = vpop.f32.mrf.mxu0
  %v1572 = vadd.f32 0.0, %v1571
  %1573 = vmatmul.f32.gmra.mxu0 %v1411
  %v1574 = vpop.f32.mrf.mxu0
  %v1575 = vadd.f32 0.0, %v1574
  %1576 = vmatmul.f32.gmra.mxu0 %v1414
  %v1577 = vpop.f32.mrf.mxu0
  %v1578 = vadd.f32 0.0, %v1577
  %1579 = vmatmul.f32.gmra.mxu0 %v1417
  %v1580 = vpop.f32.mrf.mxu0
  %v1581 = vadd.f32 0.0, %v1580
  %1582 = vmatmul.f32.gmra.mxu0 %v1420
  %v1583 = vpop.f32.mrf.mxu0
  %v1584 = vadd.f32 0.0, %v1583
  %1585 = vmatmul.f32.gmra.mxu0 %v1423
  %v1586 = vpop.f32.mrf.mxu0
  %v1587 = vadd.f32 0.0, %v1586
  %1588 = vmatmul.f32.gmra.mxu0 %v1426
  %v1589 = vpop.f32.mrf.mxu0
  %v1590 = vadd.f32 0.0, %v1589
  %1591 = vdwg.mxu0
  %v1592 = vadd.f32 %v1084, %v1446
  %v1593 = vadd.f32 %v1087, %v1449
  %v1594 = vadd.f32 %v1090, %v1452
  %v1595 = vadd.f32 %v1093, %v1455
  %v1596 = vadd.f32 %v1096, %v1458
  %v1597 = vadd.f32 %v1099, %v1461
  %v1598 = vadd.f32 %v1102, %v1464
  %v1599 = vadd.f32 %v1105, %v1467
  %v1600 = vadd.f32 %v1108, %v1470
  %v1601 = vadd.f32 %v1111, %v1473
  %v1602 = vadd.f32 %v1114, %v1476
  %v1603 = vadd.f32 %v1117, %v1479
  %v1604 = vadd.f32 %v1120, %v1482
  %v1605 = vadd.f32 %v1123, %v1485
  %v1606 = vadd.f32 %v1126, %v1488
  %v1607 = vadd.f32 %v1129, %v1491
  %v1608 = vadd.f32 %v1132, %v1494
  %v1609 = vadd.f32 %v1135, %v1497
  %v1610 = vadd.f32 %v1138, %v1500
  %v1611 = vadd.f32 %v1141, %v1503
  %v1612 = vadd.f32 %v1144, %v1506
  %v1613 = vadd.f32 %v1147, %v1509
  %v1614 = vadd.f32 %v1150, %v1512
  %v1615 = vadd.f32 %v1153, %v1515
  %v1616 = vadd.f32 %v1156, %v1518
  %v1617 = vadd.f32 %v1159, %v1521
  %v1618 = vadd.f32 %v1162, %v1524
  %v1619 = vadd.f32 %v1165, %v1527
  %v1620 = vadd.f32 %v1168, %v1530
  %v1621 = vadd.f32 %v1171, %v1533
  %v1622 = vadd.f32 %v1174, %v1536
  %v1623 = vadd.f32 %v1177, %v1539
  %v1624 = vadd.f32 %v1180, %v1542
  %v1625 = vadd.f32 %v1183, %v1545
  %v1626 = vadd.f32 %v1186, %v1548
  %v1627 = vadd.f32 %v1189, %v1551
  %v1628 = vadd.f32 %v1192, %v1554
  %v1629 = vadd.f32 %v1195, %v1557
  %v1630 = vadd.f32 %v1198, %v1560
  %v1631 = vadd.f32 %v1201, %v1563
  %v1632 = vadd.f32 %v1204, %v1566
  %v1633 = vadd.f32 %v1207, %v1569
  %v1634 = vadd.f32 %v1210, %v1572
  %v1635 = vadd.f32 %v1213, %v1575
  %v1636 = vadd.f32 %v1216, %v1578
  %v1637 = vadd.f32 %v1219, %v1581
  %v1638 = vadd.f32 %v1222, %v1584
  %v1639 = vadd.f32 %v1225, %v1587
  %v1640 = vadd.f32 %v1228, %v1590
  %v1641 = vld [vmem:[%s0 + $0x1c] sm:$0xff]
  %v1642 = vld [vmem:[%s0 + $0x24] sm:$0xff]
  %v1643 = vld [vmem:[%s0 + $0x2c] sm:$0xff]
  %v1644 = vld [vmem:[%s0 + $0x34] sm:$0xff]
  %v1645 = vld [vmem:[%s0 + $0x3c] sm:$0xff]
  %v1646 = vld [vmem:[%s0 + $0x44] sm:$0xff]
  %v1647 = vld [vmem:[%s0 + $0x4c] sm:$0xff]
  %v1648 = vld [vmem:[%s0 + $0x54] sm:$0xff]
  %v1649 = vld [vmem:[%s0 + $0x5c] sm:$0xff]
  %v1650 = vld [vmem:[%s0 + $0x64] sm:$0xff]
  %v1651 = vld [vmem:[%s0 + $0x6c] sm:$0xff]
  %v1652 = vld [vmem:[%s0 + $0x74] sm:$0xff]
  %v1653 = vld [vmem:[%s0 + $0x7c] sm:$0xff]
  %v1654 = vld [vmem:[%s0 + $0x84] sm:$0xff]
  %v1655 = vld [vmem:[%s0 + $0x8c] sm:$0xff]
  %v1656 = vld [vmem:[%s0 + $0x94] sm:$0xff]
  %v1657 = vld [vmem:[%s0 + $0x9c] sm:$0xff]
  %v1658 = vld [vmem:[%s0 + $0xa4] sm:$0xff]
  %v1659 = vld [vmem:[%s0 + $0xac] sm:$0xff]
  %v1660 = vld [vmem:[%s0 + $0xb4] sm:$0xff]
  %v1661 = vld [vmem:[%s0 + $0xbc] sm:$0xff]
  %v1662 = vld [vmem:[%s0 + $0xc4] sm:$0xff]
  %v1663 = vld [vmem:[%s0 + $0xcc] sm:$0xff]
  %v1664 = vld [vmem:[%s0 + $0xd4] sm:$0xff]
  %v1665 = vld [vmem:[%s0 + $0xdc] sm:$0xff]
  %v1666 = vld [vmem:[%s0 + $0xe4] sm:$0xff]
  %v1667 = vld [vmem:[%s0 + $0xec] sm:$0xff]
  %v1668 = vld [vmem:[%s0 + $0xf4] sm:$0xff]
  %v1669 = vld [vmem:[%s0 + $0xfc] sm:$0xff]
  %v1670 = vld [vmem:[%s0 + $0x104] sm:$0xff]
  %v1671 = vld [vmem:[%s0 + $0x10c] sm:$0xff]
  %v1672 = vld [vmem:[%s0 + $0x114] sm:$0xff]
  %v1673 = vld [vmem:[%s0 + $0x11c] sm:$0xff]
  %v1674 = vld [vmem:[%s0 + $0x124] sm:$0xff]
  %v1675 = vld [vmem:[%s0 + $0x12c] sm:$0xff]
  %v1676 = vld [vmem:[%s0 + $0x134] sm:$0xff]
  %v1677 = vld [vmem:[%s0 + $0x13c] sm:$0xff]
  %v1678 = vld [vmem:[%s0 + $0x144] sm:$0xff]
  %v1679 = vld [vmem:[%s0 + $0x14c] sm:$0xff]
  %v1680 = vld [vmem:[%s0 + $0x154] sm:$0xff]
  %v1681 = vld [vmem:[%s0 + $0x15c] sm:$0xff]
  %v1682 = vld [vmem:[%s0 + $0x164] sm:$0xff]
  %v1683 = vld [vmem:[%s0 + $0x16c] sm:$0xff]
  %v1684 = vld [vmem:[%s0 + $0x174] sm:$0xff]
  %v1685 = vld [vmem:[%s0 + $0x17c] sm:$0xff]
  %v1686 = vld [vmem:[%s0 + $0x184] sm:$0xff]
  %v1687 = vld [vmem:[%s0 + $0x18c] sm:$0xff]
  %v1688 = vld [vmem:[%s0 + $0x194] sm:$0xff]
  %v1689 = vld [vmem:[%s0 + $0x19c] sm:$0xff]
  %v1690 = vld [vmem:[%s3 + $0x30] sm:$0xff]
  %v1691 = vld [vmem:[%s3 + $0x38] sm:$0xff]
  %v1693 = vsel %vm607, %v1641, 0
  %v1696 = vsel %vm607, %v1642, 0
  %v1699 = vsel %vm607, %v1643, 0
  %v1702 = vsel %vm607, %v1644, 0
  %v1705 = vsel %vm607, %v1645, 0
  %v1708 = vsel %vm607, %v1646, 0
  %v1711 = vsel %vm607, %v1647, 0
  %v1714 = vsel %vm607, %v1648, 0
  %v1717 = vsel %vm607, %v1649, 0
  %v1720 = vsel %vm607, %v1650, 0
  %v1723 = vsel %vm607, %v1651, 0
  %v1726 = vsel %vm607, %v1652, 0
  %v1729 = vsel %vm607, %v1653, 0
  %v1732 = vsel %vm607, %v1654, 0
  %v1735 = vsel %vm607, %v1655, 0
  %v1738 = vsel %vm607, %v1656, 0
  %v1741 = vsel %vm607, %v1657, 0
  %v1744 = vsel %vm607, %v1658, 0
  %v1747 = vsel %vm607, %v1659, 0
  %v1750 = vsel %vm607, %v1660, 0
  %v1753 = vsel %vm607, %v1661, 0
  %v1756 = vsel %vm607, %v1662, 0
  %v1759 = vsel %vm607, %v1663, 0
  %v1762 = vsel %vm607, %v1664, 0
  %v1765 = vsel %vm607, %v1665, 0
  %v1768 = vsel %vm607, %v1666, 0
  %v1771 = vsel %vm607, %v1667, 0
  %v1774 = vsel %vm607, %v1668, 0
  %v1777 = vsel %vm607, %v1669, 0
  %v1780 = vsel %vm607, %v1670, 0
  %v1783 = vsel %vm607, %v1671, 0
  %v1786 = vsel %vm607, %v1672, 0
  %v1789 = vsel %vm607, %v1673, 0
  %v1792 = vsel %vm607, %v1674, 0
  %v1795 = vsel %vm607, %v1675, 0
  %v1798 = vsel %vm607, %v1676, 0
  %v1801 = vsel %vm607, %v1677, 0
  %v1804 = vsel %vm607, %v1678, 0
  %v1807 = vsel %vm607, %v1679, 0
  %v1810 = vsel %vm607, %v1680, 0
  %v1813 = vsel %vm607, %v1681, 0
  %v1816 = vsel %vm607, %v1682, 0
  %v1819 = vsel %vm607, %v1683, 0
  %v1822 = vsel %vm607, %v1684, 0
  %v1825 = vsel %vm607, %v1685, 0
  %v1828 = vsel %vm607, %v1686, 0
  %v1831 = vsel %vm607, %v1687, 0
  %v1834 = vsel %vm607, %v1688, 0
  %v1837 = vsel %vm607, %v1689, 0
  %1839 = vmatpush.msra.mxu0 0.0
  %1840 = vmatpush.msra.mxu0 0.0
  %1841 = vmatpush.msra.mxu0 0.0
  %1842 = vmatpush.msra.mxu0 0.0
  %1843 = vmatpush.msra.mxu0 0.0
  %1844 = vmatpush.msra.mxu0 0.0
  %1845 = vmatpush.msra.mxu0 0.0
  %1846 = vmatpush.msra.mxu0 0.0
  %1847 = vmatpush.msra.mxu0 0.0
  %1848 = vmatpush.msra.mxu0 0.0
  %1849 = vmatpush.msra.mxu0 0.0
  %1850 = vmatpush.msra.mxu0 0.0
  %1851 = vmatpush.msra.mxu0 0.0
  %1852 = vmatpush.msra.mxu0 0.0
  %1853 = vmatpush.msra.mxu0 %v1691
  %1854 = vmatpush.msra.mxu0 %v1690
  %1855 = vmatmul.f32.gmra.mxu0 %v1693
  %v1856 = vpop.f32.mrf.mxu0
  %v1857 = vadd.f32 0.0, %v1856
  %1858 = vmatmul.f32.gmra.mxu0 %v1696
  %v1859 = vpop.f32.mrf.mxu0
  %v1860 = vadd.f32 0.0, %v1859
  %1861 = vmatmul.f32.gmra.mxu0 %v1699
  %v1862 = vpop.f32.mrf.mxu0
  %v1863 = vadd.f32 0.0, %v1862
  %1864 = vmatmul.f32.gmra.mxu0 %v1702
  %v1865 = vpop.f32.mrf.mxu0
  %v1866 = vadd.f32 0.0, %v1865
  %1867 = vmatmul.f32.gmra.mxu0 %v1705
  %v1868 = vpop.f32.mrf.mxu0
  %v1869 = vadd.f32 0.0, %v1868
  %1870 = vmatmul.f32.gmra.mxu0 %v1708
  %v1871 = vpop.f32.mrf.mxu0
  %v1872 = vadd.f32 0.0, %v1871
  %1873 = vmatmul.f32.gmra.mxu0 %v1711
  %v1874 = vpop.f32.mrf.mxu0
  %v1875 = vadd.f32 0.0, %v1874
  %1876 = vmatmul.f32.gmra.mxu0 %v1714
  %v1877 = vpop.f32.mrf.mxu0
  %v1878 = vadd.f32 0.0, %v1877
  %1879 = vmatmul.f32.gmra.mxu0 %v1717
  %v1880 = vpop.f32.mrf.mxu0
  %v1881 = vadd.f32 0.0, %v1880
  %1882 = vmatmul.f32.gmra.mxu0 %v1720
  %v1883 = vpop.f32.mrf.mxu0
  %v1884 = vadd.f32 0.0, %v1883
  %1885 = vmatmul.f32.gmra.mxu0 %v1723
  %v1886 = vpop.f32.mrf.mxu0
  %v1887 = vadd.f32 0.0, %v1886
  %1888 = vmatmul.f32.gmra.mxu0 %v1726
  %v1889 = vpop.f32.mrf.mxu0
  %v1890 = vadd.f32 0.0, %v1889
  %1891 = vmatmul.f32.gmra.mxu0 %v1729
  %v1892 = vpop.f32.mrf.mxu0
  %v1893 = vadd.f32 0.0, %v1892
  %1894 = vmatmul.f32.gmra.mxu0 %v1732
  %v1895 = vpop.f32.mrf.mxu0
  %v1896 = vadd.f32 0.0, %v1895
  %1897 = vmatmul.f32.gmra.mxu0 %v1735
  %v1898 = vpop.f32.mrf.mxu0
  %v1899 = vadd.f32 0.0, %v1898
  %1900 = vmatmul.f32.gmra.mxu0 %v1738
  %v1901 = vpop.f32.mrf.mxu0
  %v1902 = vadd.f32 0.0, %v1901
  %1903 = vmatmul.f32.gmra.mxu0 %v1741
  %v1904 = vpop.f32.mrf.mxu0
  %v1905 = vadd.f32 0.0, %v1904
  %1906 = vmatmul.f32.gmra.mxu0 %v1744
  %v1907 = vpop.f32.mrf.mxu0
  %v1908 = vadd.f32 0.0, %v1907
  %1909 = vmatmul.f32.gmra.mxu0 %v1747
  %v1910 = vpop.f32.mrf.mxu0
  %v1911 = vadd.f32 0.0, %v1910
  %1912 = vmatmul.f32.gmra.mxu0 %v1750
  %v1913 = vpop.f32.mrf.mxu0
  %v1914 = vadd.f32 0.0, %v1913
  %1915 = vmatmul.f32.gmra.mxu0 %v1753
  %v1916 = vpop.f32.mrf.mxu0
  %v1917 = vadd.f32 0.0, %v1916
  %1918 = vmatmul.f32.gmra.mxu0 %v1756
  %v1919 = vpop.f32.mrf.mxu0
  %v1920 = vadd.f32 0.0, %v1919
  %1921 = vmatmul.f32.gmra.mxu0 %v1759
  %v1922 = vpop.f32.mrf.mxu0
  %v1923 = vadd.f32 0.0, %v1922
  %1924 = vmatmul.f32.gmra.mxu0 %v1762
  %v1925 = vpop.f32.mrf.mxu0
  %v1926 = vadd.f32 0.0, %v1925
  %1927 = vmatmul.f32.gmra.mxu0 %v1765
  %v1928 = vpop.f32.mrf.mxu0
  %v1929 = vadd.f32 0.0, %v1928
  %1930 = vmatmul.f32.gmra.mxu0 %v1768
  %v1931 = vpop.f32.mrf.mxu0
  %v1932 = vadd.f32 0.0, %v1931
  %1933 = vmatmul.f32.gmra.mxu0 %v1771
  %v1934 = vpop.f32.mrf.mxu0
  %v1935 = vadd.f32 0.0, %v1934
  %1936 = vmatmul.f32.gmra.mxu0 %v1774
  %v1937 = vpop.f32.mrf.mxu0
  %v1938 = vadd.f32 0.0, %v1937
  %1939 = vmatmul.f32.gmra.mxu0 %v1777
  %v1940 = vpop.f32.mrf.mxu0
  %v1941 = vadd.f32 0.0, %v1940
  %1942 = vmatmul.f32.gmra.mxu0 %v1780
  %v1943 = vpop.f32.mrf.mxu0
  %v1944 = vadd.f32 0.0, %v1943
  %1945 = vmatmul.f32.gmra.mxu0 %v1783
  %v1946 = vpop.f32.mrf.mxu0
  %v1947 = vadd.f32 0.0, %v1946
  %1948 = vmatmul.f32.gmra.mxu0 %v1786
  %v1949 = vpop.f32.mrf.mxu0
  %v1950 = vadd.f32 0.0, %v1949
  %1951 = vmatmul.f32.gmra.mxu0 %v1789
  %v1952 = vpop.f32.mrf.mxu0
  %v1953 = vadd.f32 0.0, %v1952
  %1954 = vmatmul.f32.gmra.mxu0 %v1792
  %v1955 = vpop.f32.mrf.mxu0
  %v1956 = vadd.f32 0.0, %v1955
  %1957 = vmatmul.f32.gmra.mxu0 %v1795
  %v1958 = vpop.f32.mrf.mxu0
  %v1959 = vadd.f32 0.0, %v1958
  %1960 = vmatmul.f32.gmra.mxu0 %v1798
  %v1961 = vpop.f32.mrf.mxu0
  %v1962 = vadd.f32 0.0, %v1961
  %1963 = vmatmul.f32.gmra.mxu0 %v1801
  %v1964 = vpop.f32.mrf.mxu0
  %v1965 = vadd.f32 0.0, %v1964
  %1966 = vmatmul.f32.gmra.mxu0 %v1804
  %v1967 = vpop.f32.mrf.mxu0
  %v1968 = vadd.f32 0.0, %v1967
  %1969 = vmatmul.f32.gmra.mxu0 %v1807
  %v1970 = vpop.f32.mrf.mxu0
  %v1971 = vadd.f32 0.0, %v1970
  %1972 = vmatmul.f32.gmra.mxu0 %v1810
  %v1973 = vpop.f32.mrf.mxu0
  %v1974 = vadd.f32 0.0, %v1973
  %1975 = vmatmul.f32.gmra.mxu0 %v1813
  %v1976 = vpop.f32.mrf.mxu0
  %v1977 = vadd.f32 0.0, %v1976
  %1978 = vmatmul.f32.gmra.mxu0 %v1816
  %v1979 = vpop.f32.mrf.mxu0
  %v1980 = vadd.f32 0.0, %v1979
  %1981 = vmatmul.f32.gmra.mxu0 %v1819
  %v1982 = vpop.f32.mrf.mxu0
  %v1983 = vadd.f32 0.0, %v1982
  %1984 = vmatmul.f32.gmra.mxu0 %v1822
  %v1985 = vpop.f32.mrf.mxu0
  %v1986 = vadd.f32 0.0, %v1985
  %1987 = vmatmul.f32.gmra.mxu0 %v1825
  %v1988 = vpop.f32.mrf.mxu0
  %v1989 = vadd.f32 0.0, %v1988
  %1990 = vmatmul.f32.gmra.mxu0 %v1828
  %v1991 = vpop.f32.mrf.mxu0
  %v1992 = vadd.f32 0.0, %v1991
  %1993 = vmatmul.f32.gmra.mxu0 %v1831
  %v1994 = vpop.f32.mrf.mxu0
  %v1995 = vadd.f32 0.0, %v1994
  %1996 = vmatmul.f32.gmra.mxu0 %v1834
  %v1997 = vpop.f32.mrf.mxu0
  %v1998 = vadd.f32 0.0, %v1997
  %1999 = vmatmul.f32.gmra.mxu0 %v1837
  %v2000 = vpop.f32.mrf.mxu0
  %v2001 = vadd.f32 0.0, %v2000
  %2002 = vdwg.mxu0
  %v2003 = vadd.f32 %v1592, %v1857
  %v2004 = vadd.f32 %v1593, %v1860
  %v2005 = vadd.f32 %v1594, %v1863
  %v2006 = vadd.f32 %v1595, %v1866
  %v2007 = vadd.f32 %v1596, %v1869
  %v2008 = vadd.f32 %v1597, %v1872
  %v2009 = vadd.f32 %v1598, %v1875
  %v2010 = vadd.f32 %v1599, %v1878
  %v2011 = vadd.f32 %v1600, %v1881
  %v2012 = vadd.f32 %v1601, %v1884
  %v2013 = vadd.f32 %v1602, %v1887
  %v2014 = vadd.f32 %v1603, %v1890
  %v2015 = vadd.f32 %v1604, %v1893
  %v2016 = vadd.f32 %v1605, %v1896
  %v2017 = vadd.f32 %v1606, %v1899
  %v2018 = vadd.f32 %v1607, %v1902
  %v2019 = vadd.f32 %v1608, %v1905
  %v2020 = vadd.f32 %v1609, %v1908
  %v2021 = vadd.f32 %v1610, %v1911
  %v2022 = vadd.f32 %v1611, %v1914
  %v2023 = vadd.f32 %v1612, %v1917
  %v2024 = vadd.f32 %v1613, %v1920
  %v2025 = vadd.f32 %v1614, %v1923
  %v2026 = vadd.f32 %v1615, %v1926
  %v2027 = vadd.f32 %v1616, %v1929
  %v2028 = vadd.f32 %v1617, %v1932
  %v2029 = vadd.f32 %v1618, %v1935
  %v2030 = vadd.f32 %v1619, %v1938
  %v2031 = vadd.f32 %v1620, %v1941
  %v2032 = vadd.f32 %v1621, %v1944
  %v2033 = vadd.f32 %v1622, %v1947
  %v2034 = vadd.f32 %v1623, %v1950
  %v2035 = vadd.f32 %v1624, %v1953
  %v2036 = vadd.f32 %v1625, %v1956
  %v2037 = vadd.f32 %v1626, %v1959
  %v2038 = vadd.f32 %v1627, %v1962
  %v2039 = vadd.f32 %v1628, %v1965
  %v2040 = vadd.f32 %v1629, %v1968
  %v2041 = vadd.f32 %v1630, %v1971
  %v2042 = vadd.f32 %v1631, %v1974
  %v2043 = vadd.f32 %v1632, %v1977
  %v2044 = vadd.f32 %v1633, %v1980
  %v2045 = vadd.f32 %v1634, %v1983
  %v2046 = vadd.f32 %v1635, %v1986
  %v2047 = vadd.f32 %v1636, %v1989
  %v2048 = vadd.f32 %v1637, %v1992
  %v2049 = vadd.f32 %v1638, %v1995
  %v2050 = vadd.f32 %v1639, %v1998
  %v2051 = vadd.f32 %v1640, %v2001
  %v2052 = vld [vmem:[%s0 + $0x1e] sm:$0xff]
  %v2053 = vld [vmem:[%s0 + $0x26] sm:$0xff]
  %v2054 = vld [vmem:[%s0 + $0x2e] sm:$0xff]
  %v2055 = vld [vmem:[%s0 + $0x36] sm:$0xff]
  %v2056 = vld [vmem:[%s0 + $0x3e] sm:$0xff]
  %v2057 = vld [vmem:[%s0 + $0x46] sm:$0xff]
  %v2058 = vld [vmem:[%s0 + $0x4e] sm:$0xff]
  %v2059 = vld [vmem:[%s0 + $0x56] sm:$0xff]
  %v2060 = vld [vmem:[%s0 + $0x5e] sm:$0xff]
  %v2061 = vld [vmem:[%s0 + $0x66] sm:$0xff]
  %v2062 = vld [vmem:[%s0 + $0x6e] sm:$0xff]
  %v2063 = vld [vmem:[%s0 + $0x76] sm:$0xff]
  %v2064 = vld [vmem:[%s0 + $0x7e] sm:$0xff]
  %v2065 = vld [vmem:[%s0 + $0x86] sm:$0xff]
  %v2066 = vld [vmem:[%s0 + $0x8e] sm:$0xff]
  %v2067 = vld [vmem:[%s0 + $0x96] sm:$0xff]
  %v2068 = vld [vmem:[%s0 + $0x9e] sm:$0xff]
  %v2069 = vld [vmem:[%s0 + $0xa6] sm:$0xff]
  %v2070 = vld [vmem:[%s0 + $0xae] sm:$0xff]
  %v2071 = vld [vmem:[%s0 + $0xb6] sm:$0xff]
  %v2072 = vld [vmem:[%s0 + $0xbe] sm:$0xff]
  %v2073 = vld [vmem:[%s0 + $0xc6] sm:$0xff]
  %v2074 = vld [vmem:[%s0 + $0xce] sm:$0xff]
  %v2075 = vld [vmem:[%s0 + $0xd6] sm:$0xff]
  %v2076 = vld [vmem:[%s0 + $0xde] sm:$0xff]
  %v2077 = vld [vmem:[%s0 + $0xe6] sm:$0xff]
  %v2078 = vld [vmem:[%s0 + $0xee] sm:$0xff]
  %v2079 = vld [vmem:[%s0 + $0xf6] sm:$0xff]
  %v2080 = vld [vmem:[%s0 + $0xfe] sm:$0xff]
  %v2081 = vld [vmem:[%s0 + $0x106] sm:$0xff]
  %v2082 = vld [vmem:[%s0 + $0x10e] sm:$0xff]
  %v2083 = vld [vmem:[%s0 + $0x116] sm:$0xff]
  %v2084 = vld [vmem:[%s0 + $0x11e] sm:$0xff]
  %v2085 = vld [vmem:[%s0 + $0x126] sm:$0xff]
  %v2086 = vld [vmem:[%s0 + $0x12e] sm:$0xff]
  %v2087 = vld [vmem:[%s0 + $0x136] sm:$0xff]
  %v2088 = vld [vmem:[%s0 + $0x13e] sm:$0xff]
  %v2089 = vld [vmem:[%s0 + $0x146] sm:$0xff]
  %v2090 = vld [vmem:[%s0 + $0x14e] sm:$0xff]
  %v2091 = vld [vmem:[%s0 + $0x156] sm:$0xff]
  %v2092 = vld [vmem:[%s0 + $0x15e] sm:$0xff]
  %v2093 = vld [vmem:[%s0 + $0x166] sm:$0xff]
  %v2094 = vld [vmem:[%s0 + $0x16e] sm:$0xff]
  %v2095 = vld [vmem:[%s0 + $0x176] sm:$0xff]
  %v2096 = vld [vmem:[%s0 + $0x17e] sm:$0xff]
  %v2097 = vld [vmem:[%s0 + $0x186] sm:$0xff]
  %v2098 = vld [vmem:[%s0 + $0x18e] sm:$0xff]
  %v2099 = vld [vmem:[%s0 + $0x196] sm:$0xff]
  %v2100 = vld [vmem:[%s0 + $0x19e] sm:$0xff]
  %v2101 = vld [vmem:[%s3 + $0x40] sm:$0xff]
  %v2102 = vld [vmem:[%s3 + $0x48] sm:$0xff]
  %v2104 = vsel %vm607, %v2052, 0
  %v2107 = vsel %vm607, %v2053, 0
  %v2110 = vsel %vm607, %v2054, 0
  %v2113 = vsel %vm607, %v2055, 0
  %v2116 = vsel %vm607, %v2056, 0
  %v2119 = vsel %vm607, %v2057, 0
  %v2122 = vsel %vm607, %v2058, 0
  %v2125 = vsel %vm607, %v2059, 0
  %v2128 = vsel %vm607, %v2060, 0
  %v2131 = vsel %vm607, %v2061, 0
  %v2134 = vsel %vm607, %v2062, 0
  %v2137 = vsel %vm607, %v2063, 0
  %v2140 = vsel %vm607, %v2064, 0
  %v2143 = vsel %vm607, %v2065, 0
  %v2146 = vsel %vm607, %v2066, 0
  %v2149 = vsel %vm607, %v2067, 0
  %v2152 = vsel %vm607, %v2068, 0
  %v2155 = vsel %vm607, %v2069, 0
  %v2158 = vsel %vm607, %v2070, 0
  %v2161 = vsel %vm607, %v2071, 0
  %v2164 = vsel %vm607, %v2072, 0
  %v2167 = vsel %vm607, %v2073, 0
  %v2170 = vsel %vm607, %v2074, 0
  %v2173 = vsel %vm607, %v2075, 0
  %v2176 = vsel %vm607, %v2076, 0
  %v2179 = vsel %vm607, %v2077, 0
  %v2182 = vsel %vm607, %v2078, 0
  %v2185 = vsel %vm607, %v2079, 0
  %v2188 = vsel %vm607, %v2080, 0
  %v2191 = vsel %vm607, %v2081, 0
  %v2194 = vsel %vm607, %v2082, 0
  %v2197 = vsel %vm607, %v2083, 0
  %v2200 = vsel %vm607, %v2084, 0
  %v2203 = vsel %vm607, %v2085, 0
  %v2206 = vsel %vm607, %v2086, 0
  %v2209 = vsel %vm607, %v2087, 0
  %v2212 = vsel %vm607, %v2088, 0
  %v2215 = vsel %vm607, %v2089, 0
  %v2218 = vsel %vm607, %v2090, 0
  %v2221 = vsel %vm607, %v2091, 0
  %v2224 = vsel %vm607, %v2092, 0
  %v2227 = vsel %vm607, %v2093, 0
  %v2230 = vsel %vm607, %v2094, 0
  %v2233 = vsel %vm607, %v2095, 0
  %v2236 = vsel %vm607, %v2096, 0
  %v2239 = vsel %vm607, %v2097, 0
  %v2242 = vsel %vm607, %v2098, 0
  %v2245 = vsel %vm607, %v2099, 0
  %v2248 = vsel %vm607, %v2100, 0
  %2250 = vmatpush.msra.mxu0 0.0
  %2251 = vmatpush.msra.mxu0 0.0
  %2252 = vmatpush.msra.mxu0 0.0
  %2253 = vmatpush.msra.mxu0 0.0
  %2254 = vmatpush.msra.mxu0 0.0
  %2255 = vmatpush.msra.mxu0 0.0
  %2256 = vmatpush.msra.mxu0 0.0
  %2257 = vmatpush.msra.mxu0 0.0
  %2258 = vmatpush.msra.mxu0 0.0
  %2259 = vmatpush.msra.mxu0 0.0
  %2260 = vmatpush.msra.mxu0 0.0
  %2261 = vmatpush.msra.mxu0 0.0
  %2262 = vmatpush.msra.mxu0 0.0
  %2263 = vmatpush.msra.mxu0 0.0
  %2264 = vmatpush.msra.mxu0 %v2102
  %2265 = vmatpush.msra.mxu0 %v2101
  %2266 = vmatmul.f32.gmra.mxu0 %v2104
  %v2267 = vpop.f32.mrf.mxu0
  %v2268 = vadd.f32 0.0, %v2267
  %2269 = vmatmul.f32.gmra.mxu0 %v2107
  %v2270 = vpop.f32.mrf.mxu0
  %v2271 = vadd.f32 0.0, %v2270
  %2272 = vmatmul.f32.gmra.mxu0 %v2110
  %v2273 = vpop.f32.mrf.mxu0
  %v2274 = vadd.f32 0.0, %v2273
  %2275 = vmatmul.f32.gmra.mxu0 %v2113
  %v2276 = vpop.f32.mrf.mxu0
  %v2277 = vadd.f32 0.0, %v2276
  %2278 = vmatmul.f32.gmra.mxu0 %v2116
  %v2279 = vpop.f32.mrf.mxu0
  %v2280 = vadd.f32 0.0, %v2279
  %2281 = vmatmul.f32.gmra.mxu0 %v2119
  %v2282 = vpop.f32.mrf.mxu0
  %v2283 = vadd.f32 0.0, %v2282
  %2284 = vmatmul.f32.gmra.mxu0 %v2122
  %v2285 = vpop.f32.mrf.mxu0
  %v2286 = vadd.f32 0.0, %v2285
  %2287 = vmatmul.f32.gmra.mxu0 %v2125
  %v2288 = vpop.f32.mrf.mxu0
  %v2289 = vadd.f32 0.0, %v2288
  %2290 = vmatmul.f32.gmra.mxu0 %v2128
  %v2291 = vpop.f32.mrf.mxu0
  %v2292 = vadd.f32 0.0, %v2291
  %2293 = vmatmul.f32.gmra.mxu0 %v2131
  %v2294 = vpop.f32.mrf.mxu0
  %v2295 = vadd.f32 0.0, %v2294
  %2296 = vmatmul.f32.gmra.mxu0 %v2134
  %v2297 = vpop.f32.mrf.mxu0
  %v2298 = vadd.f32 0.0, %v2297
  %2299 = vmatmul.f32.gmra.mxu0 %v2137
  %v2300 = vpop.f32.mrf.mxu0
  %v2301 = vadd.f32 0.0, %v2300
  %2302 = vmatmul.f32.gmra.mxu0 %v2140
  %v2303 = vpop.f32.mrf.mxu0
  %v2304 = vadd.f32 0.0, %v2303
  %2305 = vmatmul.f32.gmra.mxu0 %v2143
  %v2306 = vpop.f32.mrf.mxu0
  %v2307 = vadd.f32 0.0, %v2306
  %2308 = vmatmul.f32.gmra.mxu0 %v2146
  %v2309 = vpop.f32.mrf.mxu0
  %v2310 = vadd.f32 0.0, %v2309
  %2311 = vmatmul.f32.gmra.mxu0 %v2149
  %v2312 = vpop.f32.mrf.mxu0
  %v2313 = vadd.f32 0.0, %v2312
  %2314 = vmatmul.f32.gmra.mxu0 %v2152
  %v2315 = vpop.f32.mrf.mxu0
  %v2316 = vadd.f32 0.0, %v2315
  %2317 = vmatmul.f32.gmra.mxu0 %v2155
  %v2318 = vpop.f32.mrf.mxu0
  %v2319 = vadd.f32 0.0, %v2318
  %2320 = vmatmul.f32.gmra.mxu0 %v2158
  %v2321 = vpop.f32.mrf.mxu0
  %v2322 = vadd.f32 0.0, %v2321
  %2323 = vmatmul.f32.gmra.mxu0 %v2161
  %v2324 = vpop.f32.mrf.mxu0
  %v2325 = vadd.f32 0.0, %v2324
  %2326 = vmatmul.f32.gmra.mxu0 %v2164
  %v2327 = vpop.f32.mrf.mxu0
  %v2328 = vadd.f32 0.0, %v2327
  %2329 = vmatmul.f32.gmra.mxu0 %v2167
  %v2330 = vpop.f32.mrf.mxu0
  %v2331 = vadd.f32 0.0, %v2330
  %2332 = vmatmul.f32.gmra.mxu0 %v2170
  %v2333 = vpop.f32.mrf.mxu0
  %v2334 = vadd.f32 0.0, %v2333
  %2335 = vmatmul.f32.gmra.mxu0 %v2173
  %v2336 = vpop.f32.mrf.mxu0
  %v2337 = vadd.f32 0.0, %v2336
  %2338 = vmatmul.f32.gmra.mxu0 %v2176
  %v2339 = vpop.f32.mrf.mxu0
  %v2340 = vadd.f32 0.0, %v2339
  %2341 = vmatmul.f32.gmra.mxu0 %v2179
  %v2342 = vpop.f32.mrf.mxu0
  %v2343 = vadd.f32 0.0, %v2342
  %2344 = vmatmul.f32.gmra.mxu0 %v2182
  %v2345 = vpop.f32.mrf.mxu0
  %v2346 = vadd.f32 0.0, %v2345
  %2347 = vmatmul.f32.gmra.mxu0 %v2185
  %v2348 = vpop.f32.mrf.mxu0
  %v2349 = vadd.f32 0.0, %v2348
  %2350 = vmatmul.f32.gmra.mxu0 %v2188
  %v2351 = vpop.f32.mrf.mxu0
  %v2352 = vadd.f32 0.0, %v2351
  %2353 = vmatmul.f32.gmra.mxu0 %v2191
  %v2354 = vpop.f32.mrf.mxu0
  %v2355 = vadd.f32 0.0, %v2354
  %2356 = vmatmul.f32.gmra.mxu0 %v2194
  %v2357 = vpop.f32.mrf.mxu0
  %v2358 = vadd.f32 0.0, %v2357
  %2359 = vmatmul.f32.gmra.mxu0 %v2197
  %v2360 = vpop.f32.mrf.mxu0
  %v2361 = vadd.f32 0.0, %v2360
  %2362 = vmatmul.f32.gmra.mxu0 %v2200
  %v2363 = vpop.f32.mrf.mxu0
  %v2364 = vadd.f32 0.0, %v2363
  %2365 = vmatmul.f32.gmra.mxu0 %v2203
  %v2366 = vpop.f32.mrf.mxu0
  %v2367 = vadd.f32 0.0, %v2366
  %2368 = vmatmul.f32.gmra.mxu0 %v2206
  %v2369 = vpop.f32.mrf.mxu0
  %v2370 = vadd.f32 0.0, %v2369
  %2371 = vmatmul.f32.gmra.mxu0 %v2209
  %v2372 = vpop.f32.mrf.mxu0
  %v2373 = vadd.f32 0.0, %v2372
  %2374 = vmatmul.f32.gmra.mxu0 %v2212
  %v2375 = vpop.f32.mrf.mxu0
  %v2376 = vadd.f32 0.0, %v2375
  %2377 = vmatmul.f32.gmra.mxu0 %v2215
  %v2378 = vpop.f32.mrf.mxu0
  %v2379 = vadd.f32 0.0, %v2378
  %2380 = vmatmul.f32.gmra.mxu0 %v2218
  %v2381 = vpop.f32.mrf.mxu0
  %v2382 = vadd.f32 0.0, %v2381
  %2383 = vmatmul.f32.gmra.mxu0 %v2221
  %v2384 = vpop.f32.mrf.mxu0
  %v2385 = vadd.f32 0.0, %v2384
  %2386 = vmatmul.f32.gmra.mxu0 %v2224
  %v2387 = vpop.f32.mrf.mxu0
  %v2388 = vadd.f32 0.0, %v2387
  %2389 = vmatmul.f32.gmra.mxu0 %v2227
  %v2390 = vpop.f32.mrf.mxu0
  %v2391 = vadd.f32 0.0, %v2390
  %2392 = vmatmul.f32.gmra.mxu0 %v2230
  %v2393 = vpop.f32.mrf.mxu0
  %v2394 = vadd.f32 0.0, %v2393
  %2395 = vmatmul.f32.gmra.mxu0 %v2233
  %v2396 = vpop.f32.mrf.mxu0
  %v2397 = vadd.f32 0.0, %v2396
  %2398 = vmatmul.f32.gmra.mxu0 %v2236
  %v2399 = vpop.f32.mrf.mxu0
  %v2400 = vadd.f32 0.0, %v2399
  %2401 = vmatmul.f32.gmra.mxu0 %v2239
  %v2402 = vpop.f32.mrf.mxu0
  %v2403 = vadd.f32 0.0, %v2402
  %2404 = vmatmul.f32.gmra.mxu0 %v2242
  %v2405 = vpop.f32.mrf.mxu0
  %v2406 = vadd.f32 0.0, %v2405
  %2407 = vmatmul.f32.gmra.mxu0 %v2245
  %v2408 = vpop.f32.mrf.mxu0
  %v2409 = vadd.f32 0.0, %v2408
  %2410 = vmatmul.f32.gmra.mxu0 %v2248
  %v2411 = vpop.f32.mrf.mxu0
  %v2412 = vadd.f32 0.0, %v2411
  %2413 = vdwg.mxu0
  %v2414 = vadd.f32 %v2003, %v2268
  %v2415 = vadd.f32 %v2004, %v2271
  %v2416 = vadd.f32 %v2005, %v2274
  %v2417 = vadd.f32 %v2006, %v2277
  %v2418 = vadd.f32 %v2007, %v2280
  %v2419 = vadd.f32 %v2008, %v2283
  %v2420 = vadd.f32 %v2009, %v2286
  %v2421 = vadd.f32 %v2010, %v2289
  %v2422 = vadd.f32 %v2011, %v2292
  %v2423 = vadd.f32 %v2012, %v2295
  %v2424 = vadd.f32 %v2013, %v2298
  %v2425 = vadd.f32 %v2014, %v2301
  %v2426 = vadd.f32 %v2015, %v2304
  %v2427 = vadd.f32 %v2016, %v2307
  %v2428 = vadd.f32 %v2017, %v2310
  %v2429 = vadd.f32 %v2018, %v2313
  %v2430 = vadd.f32 %v2019, %v2316
  %v2431 = vadd.f32 %v2020, %v2319
  %v2432 = vadd.f32 %v2021, %v2322
  %v2433 = vadd.f32 %v2022, %v2325
  %v2434 = vadd.f32 %v2023, %v2328
  %v2435 = vadd.f32 %v2024, %v2331
  %v2436 = vadd.f32 %v2025, %v2334
  %v2437 = vadd.f32 %v2026, %v2337
  %v2438 = vadd.f32 %v2027, %v2340
  %v2439 = vadd.f32 %v2028, %v2343
  %v2440 = vadd.f32 %v2029, %v2346
  %v2441 = vadd.f32 %v2030, %v2349
  %v2442 = vadd.f32 %v2031, %v2352
  %v2443 = vadd.f32 %v2032, %v2355
  %v2444 = vadd.f32 %v2033, %v2358
  %v2445 = vadd.f32 %v2034, %v2361
  %v2446 = vadd.f32 %v2035, %v2364
  %v2447 = vadd.f32 %v2036, %v2367
  %v2448 = vadd.f32 %v2037, %v2370
  %v2449 = vadd.f32 %v2038, %v2373
  %v2450 = vadd.f32 %v2039, %v2376
  %v2451 = vadd.f32 %v2040, %v2379
  %v2452 = vadd.f32 %v2041, %v2382
  %v2453 = vadd.f32 %v2042, %v2385
  %v2454 = vadd.f32 %v2043, %v2388
  %v2455 = vadd.f32 %v2044, %v2391
  %v2456 = vadd.f32 %v2045, %v2394
  %v2457 = vadd.f32 %v2046, %v2397
  %v2458 = vadd.f32 %v2047, %v2400
  %v2459 = vadd.f32 %v2048, %v2403
  %v2460 = vadd.f32 %v2049, %v2406
  %v2461 = vadd.f32 %v2050, %v2409
  %v2462 = vadd.f32 %v2051, %v2412
  %v2463 = vld [vmem:[%s0 + $0x20] sm:$0xff]
  %v2464 = vld [vmem:[%s0 + $0x28] sm:$0xff]
  %v2465 = vld [vmem:[%s0 + $0x30] sm:$0xff]
  %v2466 = vld [vmem:[%s0 + $0x38] sm:$0xff]
  %v2467 = vld [vmem:[%s0 + $0x40] sm:$0xff]
  %v2468 = vld [vmem:[%s0 + $0x48] sm:$0xff]
  %v2469 = vld [vmem:[%s0 + $0x50] sm:$0xff]
  %v2470 = vld [vmem:[%s0 + $0x58] sm:$0xff]
  %v2471 = vld [vmem:[%s0 + $0x60] sm:$0xff]
  %v2472 = vld [vmem:[%s0 + $0x68] sm:$0xff]
  %v2473 = vld [vmem:[%s0 + $0x70] sm:$0xff]
  %v2474 = vld [vmem:[%s0 + $0x78] sm:$0xff]
  %v2475 = vld [vmem:[%s0 + $0x80] sm:$0xff]
  %v2476 = vld [vmem:[%s0 + $0x88] sm:$0xff]
  %v2477 = vld [vmem:[%s0 + $0x90] sm:$0xff]
  %v2478 = vld [vmem:[%s0 + $0x98] sm:$0xff]
  %v2479 = vld [vmem:[%s0 + $0xa0] sm:$0xff]
  %v2480 = vld [vmem:[%s0 + $0xa8] sm:$0xff]
  %v2481 = vld [vmem:[%s0 + $0xb0] sm:$0xff]
  %v2482 = vld [vmem:[%s0 + $0xb8] sm:$0xff]
  %v2483 = vld [vmem:[%s0 + $0xc0] sm:$0xff]
  %v2484 = vld [vmem:[%s0 + $0xc8] sm:$0xff]
  %v2485 = vld [vmem:[%s0 + $0xd0] sm:$0xff]
  %v2486 = vld [vmem:[%s0 + $0xd8] sm:$0xff]
  %v2487 = vld [vmem:[%s0 + $0xe0] sm:$0xff]
  %v2488 = vld [vmem:[%s0 + $0xe8] sm:$0xff]
  %v2489 = vld [vmem:[%s0 + $0xf0] sm:$0xff]
  %v2490 = vld [vmem:[%s0 + $0xf8] sm:$0xff]
  %v2491 = vld [vmem:[%s0 + $0x100] sm:$0xff]
  %v2492 = vld [vmem:[%s0 + $0x108] sm:$0xff]
  %v2493 = vld [vmem:[%s0 + $0x110] sm:$0xff]
  %v2494 = vld [vmem:[%s0 + $0x118] sm:$0xff]
  %v2495 = vld [vmem:[%s0 + $0x120] sm:$0xff]
  %v2496 = vld [vmem:[%s0 + $0x128] sm:$0xff]
  %v2497 = vld [vmem:[%s0 + $0x130] sm:$0xff]
  %v2498 = vld [vmem:[%s0 + $0x138] sm:$0xff]
  %v2499 = vld [vmem:[%s0 + $0x140] sm:$0xff]
  %v2500 = vld [vmem:[%s0 + $0x148] sm:$0xff]
  %v2501 = vld [vmem:[%s0 + $0x150] sm:$0xff]
  %v2502 = vld [vmem:[%s0 + $0x158] sm:$0xff]
  %v2503 = vld [vmem:[%s0 + $0x160] sm:$0xff]
  %v2504 = vld [vmem:[%s0 + $0x168] sm:$0xff]
  %v2505 = vld [vmem:[%s0 + $0x170] sm:$0xff]
  %v2506 = vld [vmem:[%s0 + $0x178] sm:$0xff]
  %v2507 = vld [vmem:[%s0 + $0x180] sm:$0xff]
  %v2508 = vld [vmem:[%s0 + $0x188] sm:$0xff]
  %v2509 = vld [vmem:[%s0 + $0x190] sm:$0xff]
  %v2510 = vld [vmem:[%s0 + $0x198] sm:$0xff]
  %v2511 = vld [vmem:[%s0 + $0x1a0] sm:$0xff]
  %v2512 = vld [vmem:[%s3 + $0x50] sm:$0xff]
  %v2513 = vld [vmem:[%s3 + $0x58] sm:$0xff]
  %v2515 = vsel %vm607, %v2463, 0
  %v2518 = vsel %vm607, %v2464, 0
  %v2521 = vsel %vm607, %v2465, 0
  %v2524 = vsel %vm607, %v2466, 0
  %v2527 = vsel %vm607, %v2467, 0
  %v2530 = vsel %vm607, %v2468, 0
  %v2533 = vsel %vm607, %v2469, 0
  %v2536 = vsel %vm607, %v2470, 0
  %v2539 = vsel %vm607, %v2471, 0
  %v2542 = vsel %vm607, %v2472, 0
  %v2545 = vsel %vm607, %v2473, 0
  %v2548 = vsel %vm607, %v2474, 0
  %v2551 = vsel %vm607, %v2475, 0
  %v2554 = vsel %vm607, %v2476, 0
  %v2557 = vsel %vm607, %v2477, 0
  %v2560 = vsel %vm607, %v2478, 0
  %v2563 = vsel %vm607, %v2479, 0
  %v2566 = vsel %vm607, %v2480, 0
  %v2569 = vsel %vm607, %v2481, 0
  %v2572 = vsel %vm607, %v2482, 0
  %v2575 = vsel %vm607, %v2483, 0
  %v2578 = vsel %vm607, %v2484, 0
  %v2581 = vsel %vm607, %v2485, 0
  %v2584 = vsel %vm607, %v2486, 0
  %v2587 = vsel %vm607, %v2487, 0
  %v2590 = vsel %vm607, %v2488, 0
  %v2593 = vsel %vm607, %v2489, 0
  %v2596 = vsel %vm607, %v2490, 0
  %v2599 = vsel %vm607, %v2491, 0
  %v2602 = vsel %vm607, %v2492, 0
  %v2605 = vsel %vm607, %v2493, 0
  %v2608 = vsel %vm607, %v2494, 0
  %v2611 = vsel %vm607, %v2495, 0
  %v2614 = vsel %vm607, %v2496, 0
  %v2617 = vsel %vm607, %v2497, 0
  %v2620 = vsel %vm607, %v2498, 0
  %v2623 = vsel %vm607, %v2499, 0
  %v2626 = vsel %vm607, %v2500, 0
  %v2629 = vsel %vm607, %v2501, 0
  %v2632 = vsel %vm607, %v2502, 0
  %v2635 = vsel %vm607, %v2503, 0
  %v2638 = vsel %vm607, %v2504, 0
  %v2641 = vsel %vm607, %v2505, 0
  %v2644 = vsel %vm607, %v2506, 0
  %v2647 = vsel %vm607, %v2507, 0
  %v2650 = vsel %vm607, %v2508, 0
  %v2653 = vsel %vm607, %v2509, 0
  %v2656 = vsel %vm607, %v2510, 0
  %v2659 = vsel %vm607, %v2511, 0
  %2661 = vmatpush.msra.mxu0 0.0
  %2662 = vmatpush.msra.mxu0 0.0
  %2663 = vmatpush.msra.mxu0 0.0
  %2664 = vmatpush.msra.mxu0 0.0
  %2665 = vmatpush.msra.mxu0 0.0
  %2666 = vmatpush.msra.mxu0 0.0
  %2667 = vmatpush.msra.mxu0 0.0
  %2668 = vmatpush.msra.mxu0 0.0
  %2669 = vmatpush.msra.mxu0 0.0
  %2670 = vmatpush.msra.mxu0 0.0
  %2671 = vmatpush.msra.mxu0 0.0
  %2672 = vmatpush.msra.mxu0 0.0
  %2673 = vmatpush.msra.mxu0 0.0
  %2674 = vmatpush.msra.mxu0 0.0
  %2675 = vmatpush.msra.mxu0 %v2513
  %2676 = vmatpush.msra.mxu0 %v2512
  %2677 = vmatmul.f32.gmra.mxu0 %v2515
  %v2678 = vpop.f32.mrf.mxu0
  %v2679 = vadd.f32 0.0, %v2678
  %2680 = vmatmul.f32.gmra.mxu0 %v2518
  %v2681 = vpop.f32.mrf.mxu0
  %v2682 = vadd.f32 0.0, %v2681
  %2683 = vmatmul.f32.gmra.mxu0 %v2521
  %v2684 = vpop.f32.mrf.mxu0
  %v2685 = vadd.f32 0.0, %v2684
  %2686 = vmatmul.f32.gmra.mxu0 %v2524
  %v2687 = vpop.f32.mrf.mxu0
  %v2688 = vadd.f32 0.0, %v2687
  %2689 = vmatmul.f32.gmra.mxu0 %v2527
  %v2690 = vpop.f32.mrf.mxu0
  %v2691 = vadd.f32 0.0, %v2690
  %2692 = vmatmul.f32.gmra.mxu0 %v2530
  %v2693 = vpop.f32.mrf.mxu0
  %v2694 = vadd.f32 0.0, %v2693
  %2695 = vmatmul.f32.gmra.mxu0 %v2533
  %v2696 = vpop.f32.mrf.mxu0
  %v2697 = vadd.f32 0.0, %v2696
  %2698 = vmatmul.f32.gmra.mxu0 %v2536
  %v2699 = vpop.f32.mrf.mxu0
  %v2700 = vadd.f32 0.0, %v2699
  %2701 = vmatmul.f32.gmra.mxu0 %v2539
  %v2702 = vpop.f32.mrf.mxu0
  %v2703 = vadd.f32 0.0, %v2702
  %2704 = vmatmul.f32.gmra.mxu0 %v2542
  %v2705 = vpop.f32.mrf.mxu0
  %v2706 = vadd.f32 0.0, %v2705
  %2707 = vmatmul.f32.gmra.mxu0 %v2545
  %v2708 = vpop.f32.mrf.mxu0
  %v2709 = vadd.f32 0.0, %v2708
  %2710 = vmatmul.f32.gmra.mxu0 %v2548
  %v2711 = vpop.f32.mrf.mxu0
  %v2712 = vadd.f32 0.0, %v2711
  %2713 = vmatmul.f32.gmra.mxu0 %v2551
  %v2714 = vpop.f32.mrf.mxu0
  %v2715 = vadd.f32 0.0, %v2714
  %2716 = vmatmul.f32.gmra.mxu0 %v2554
  %v2717 = vpop.f32.mrf.mxu0
  %v2718 = vadd.f32 0.0, %v2717
  %2719 = vmatmul.f32.gmra.mxu0 %v2557
  %v2720 = vpop.f32.mrf.mxu0
  %v2721 = vadd.f32 0.0, %v2720
  %2722 = vmatmul.f32.gmra.mxu0 %v2560
  %v2723 = vpop.f32.mrf.mxu0
  %v2724 = vadd.f32 0.0, %v2723
  %2725 = vmatmul.f32.gmra.mxu0 %v2563
  %v2726 = vpop.f32.mrf.mxu0
  %v2727 = vadd.f32 0.0, %v2726
  %2728 = vmatmul.f32.gmra.mxu0 %v2566
  %v2729 = vpop.f32.mrf.mxu0
  %v2730 = vadd.f32 0.0, %v2729
  %2731 = vmatmul.f32.gmra.mxu0 %v2569
  %v2732 = vpop.f32.mrf.mxu0
  %v2733 = vadd.f32 0.0, %v2732
  %2734 = vmatmul.f32.gmra.mxu0 %v2572
  %v2735 = vpop.f32.mrf.mxu0
  %v2736 = vadd.f32 0.0, %v2735
  %2737 = vmatmul.f32.gmra.mxu0 %v2575
  %v2738 = vpop.f32.mrf.mxu0
  %v2739 = vadd.f32 0.0, %v2738
  %2740 = vmatmul.f32.gmra.mxu0 %v2578
  %v2741 = vpop.f32.mrf.mxu0
  %v2742 = vadd.f32 0.0, %v2741
  %2743 = vmatmul.f32.gmra.mxu0 %v2581
  %v2744 = vpop.f32.mrf.mxu0
  %v2745 = vadd.f32 0.0, %v2744
  %2746 = vmatmul.f32.gmra.mxu0 %v2584
  %v2747 = vpop.f32.mrf.mxu0
  %v2748 = vadd.f32 0.0, %v2747
  %2749 = vmatmul.f32.gmra.mxu0 %v2587
  %v2750 = vpop.f32.mrf.mxu0
  %v2751 = vadd.f32 0.0, %v2750
  %2752 = vmatmul.f32.gmra.mxu0 %v2590
  %v2753 = vpop.f32.mrf.mxu0
  %v2754 = vadd.f32 0.0, %v2753
  %2755 = vmatmul.f32.gmra.mxu0 %v2593
  %v2756 = vpop.f32.mrf.mxu0
  %v2757 = vadd.f32 0.0, %v2756
  %2758 = vmatmul.f32.gmra.mxu0 %v2596
  %v2759 = vpop.f32.mrf.mxu0
  %v2760 = vadd.f32 0.0, %v2759
  %2761 = vmatmul.f32.gmra.mxu0 %v2599
  %v2762 = vpop.f32.mrf.mxu0
  %v2763 = vadd.f32 0.0, %v2762
  %2764 = vmatmul.f32.gmra.mxu0 %v2602
  %v2765 = vpop.f32.mrf.mxu0
  %v2766 = vadd.f32 0.0, %v2765
  %2767 = vmatmul.f32.gmra.mxu0 %v2605
  %v2768 = vpop.f32.mrf.mxu0
  %v2769 = vadd.f32 0.0, %v2768
  %2770 = vmatmul.f32.gmra.mxu0 %v2608
  %v2771 = vpop.f32.mrf.mxu0
  %v2772 = vadd.f32 0.0, %v2771
  %2773 = vmatmul.f32.gmra.mxu0 %v2611
  %v2774 = vpop.f32.mrf.mxu0
  %v2775 = vadd.f32 0.0, %v2774
  %2776 = vmatmul.f32.gmra.mxu0 %v2614
  %v2777 = vpop.f32.mrf.mxu0
  %v2778 = vadd.f32 0.0, %v2777
  %2779 = vmatmul.f32.gmra.mxu0 %v2617
  %v2780 = vpop.f32.mrf.mxu0
  %v2781 = vadd.f32 0.0, %v2780
  %2782 = vmatmul.f32.gmra.mxu0 %v2620
  %v2783 = vpop.f32.mrf.mxu0
  %v2784 = vadd.f32 0.0, %v2783
  %2785 = vmatmul.f32.gmra.mxu0 %v2623
  %v2786 = vpop.f32.mrf.mxu0
  %v2787 = vadd.f32 0.0, %v2786
  %2788 = vmatmul.f32.gmra.mxu0 %v2626
  %v2789 = vpop.f32.mrf.mxu0
  %v2790 = vadd.f32 0.0, %v2789
  %2791 = vmatmul.f32.gmra.mxu0 %v2629
  %v2792 = vpop.f32.mrf.mxu0
  %v2793 = vadd.f32 0.0, %v2792
  %2794 = vmatmul.f32.gmra.mxu0 %v2632
  %v2795 = vpop.f32.mrf.mxu0
  %v2796 = vadd.f32 0.0, %v2795
  %2797 = vmatmul.f32.gmra.mxu0 %v2635
  %v2798 = vpop.f32.mrf.mxu0
  %v2799 = vadd.f32 0.0, %v2798
  %2800 = vmatmul.f32.gmra.mxu0 %v2638
  %v2801 = vpop.f32.mrf.mxu0
  %v2802 = vadd.f32 0.0, %v2801
  %2803 = vmatmul.f32.gmra.mxu0 %v2641
  %v2804 = vpop.f32.mrf.mxu0
  %v2805 = vadd.f32 0.0, %v2804
  %2806 = vmatmul.f32.gmra.mxu0 %v2644
  %v2807 = vpop.f32.mrf.mxu0
  %v2808 = vadd.f32 0.0, %v2807
  %2809 = vmatmul.f32.gmra.mxu0 %v2647
  %v2810 = vpop.f32.mrf.mxu0
  %v2811 = vadd.f32 0.0, %v2810
  %2812 = vmatmul.f32.gmra.mxu0 %v2650
  %v2813 = vpop.f32.mrf.mxu0
  %v2814 = vadd.f32 0.0, %v2813
  %2815 = vmatmul.f32.gmra.mxu0 %v2653
  %v2816 = vpop.f32.mrf.mxu0
  %v2817 = vadd.f32 0.0, %v2816
  %2818 = vmatmul.f32.gmra.mxu0 %v2656
  %v2819 = vpop.f32.mrf.mxu0
  %v2820 = vadd.f32 0.0, %v2819
  %2821 = vmatmul.f32.gmra.mxu0 %v2659
  %v2822 = vpop.f32.mrf.mxu0
  %v2823 = vadd.f32 0.0, %v2822
  %2824 = vdwg.mxu0
  %v2825 = vadd.f32 %v2414, %v2679
  %v2826 = vadd.f32 %v2415, %v2682
  %v2827 = vadd.f32 %v2416, %v2685
  %v2828 = vadd.f32 %v2417, %v2688
  %v2829 = vadd.f32 %v2418, %v2691
  %v2830 = vadd.f32 %v2419, %v2694
  %v2831 = vadd.f32 %v2420, %v2697
  %v2832 = vadd.f32 %v2421, %v2700
  %v2833 = vadd.f32 %v2422, %v2703
  %v2834 = vadd.f32 %v2423, %v2706
  %v2835 = vadd.f32 %v2424, %v2709
  %v2836 = vadd.f32 %v2425, %v2712
  %v2837 = vadd.f32 %v2426, %v2715
  %v2838 = vadd.f32 %v2427, %v2718
  %v2839 = vadd.f32 %v2428, %v2721
  %v2840 = vadd.f32 %v2429, %v2724
  %v2841 = vadd.f32 %v2430, %v2727
  %v2842 = vadd.f32 %v2431, %v2730
  %v2843 = vadd.f32 %v2432, %v2733
  %v2844 = vadd.f32 %v2433, %v2736
  %v2845 = vadd.f32 %v2434, %v2739
  %v2846 = vadd.f32 %v2435, %v2742
  %v2847 = vadd.f32 %v2436, %v2745
  %v2848 = vadd.f32 %v2437, %v2748
  %v2849 = vadd.f32 %v2438, %v2751
  %v2850 = vadd.f32 %v2439, %v2754
  %v2851 = vadd.f32 %v2440, %v2757
  %v2852 = vadd.f32 %v2441, %v2760
  %v2853 = vadd.f32 %v2442, %v2763
  %v2854 = vadd.f32 %v2443, %v2766
  %v2855 = vadd.f32 %v2444, %v2769
  %v2856 = vadd.f32 %v2445, %v2772
  %v2857 = vadd.f32 %v2446, %v2775
  %v2858 = vadd.f32 %v2447, %v2778
  %v2859 = vadd.f32 %v2448, %v2781
  %v2860 = vadd.f32 %v2449, %v2784
  %v2861 = vadd.f32 %v2450, %v2787
  %v2862 = vadd.f32 %v2451, %v2790
  %v2863 = vadd.f32 %v2452, %v2793
  %v2864 = vadd.f32 %v2453, %v2796
  %v2865 = vadd.f32 %v2454, %v2799
  %v2866 = vadd.f32 %v2455, %v2802
  %v2867 = vadd.f32 %v2456, %v2805
  %v2868 = vadd.f32 %v2457, %v2808
  %v2869 = vadd.f32 %v2458, %v2811
  %v2870 = vadd.f32 %v2459, %v2814
  %v2871 = vadd.f32 %v2460, %v2817
  %v2872 = vadd.f32 %v2461, %v2820
  %v2873 = vadd.f32 %v2462, %v2823
  %v2874 = vld [vmem:[%s0 + $0x38] sm:$0xff]
  %v2875 = vld [vmem:[%s0 + $0x40] sm:$0xff]
  %v2876 = vld [vmem:[%s0 + $0x48] sm:$0xff]
  %v2877 = vld [vmem:[%s0 + $0x50] sm:$0xff]
  %v2878 = vld [vmem:[%s0 + $0x58] sm:$0xff]
  %v2879 = vld [vmem:[%s0 + $0x60] sm:$0xff]
  %v2880 = vld [vmem:[%s0 + $0x68] sm:$0xff]
  %v2881 = vld [vmem:[%s0 + $0x70] sm:$0xff]
  %v2882 = vld [vmem:[%s0 + $0x78] sm:$0xff]
  %v2883 = vld [vmem:[%s0 + $0x80] sm:$0xff]
  %v2884 = vld [vmem:[%s0 + $0x88] sm:$0xff]
  %v2885 = vld [vmem:[%s0 + $0x90] sm:$0xff]
  %v2886 = vld [vmem:[%s0 + $0x98] sm:$0xff]
  %v2887 = vld [vmem:[%s0 + $0xa0] sm:$0xff]
  %v2888 = vld [vmem:[%s0 + $0xa8] sm:$0xff]
  %v2889 = vld [vmem:[%s0 + $0xb0] sm:$0xff]
  %v2890 = vld [vmem:[%s0 + $0xb8] sm:$0xff]
  %v2891 = vld [vmem:[%s0 + $0xc0] sm:$0xff]
  %v2892 = vld [vmem:[%s0 + $0xc8] sm:$0xff]
  %v2893 = vld [vmem:[%s0 + $0xd0] sm:$0xff]
  %v2894 = vld [vmem:[%s0 + $0xd8] sm:$0xff]
  %v2895 = vld [vmem:[%s0 + $0xe0] sm:$0xff]
  %v2896 = vld [vmem:[%s0 + $0xe8] sm:$0xff]
  %v2897 = vld [vmem:[%s0 + $0xf0] sm:$0xff]
  %v2898 = vld [vmem:[%s0 + $0xf8] sm:$0xff]
  %v2899 = vld [vmem:[%s0 + $0x100] sm:$0xff]
  %v2900 = vld [vmem:[%s0 + $0x108] sm:$0xff]
  %v2901 = vld [vmem:[%s0 + $0x110] sm:$0xff]
  %v2902 = vld [vmem:[%s0 + $0x118] sm:$0xff]
  %v2903 = vld [vmem:[%s0 + $0x120] sm:$0xff]
  %v2904 = vld [vmem:[%s0 + $0x128] sm:$0xff]
  %v2905 = vld [vmem:[%s0 + $0x130] sm:$0xff]
  %v2906 = vld [vmem:[%s0 + $0x138] sm:$0xff]
  %v2907 = vld [vmem:[%s0 + $0x140] sm:$0xff]
  %v2908 = vld [vmem:[%s0 + $0x148] sm:$0xff]
  %v2909 = vld [vmem:[%s0 + $0x150] sm:$0xff]
  %v2910 = vld [vmem:[%s0 + $0x158] sm:$0xff]
  %v2911 = vld [vmem:[%s0 + $0x160] sm:$0xff]
  %v2912 = vld [vmem:[%s0 + $0x168] sm:$0xff]
  %v2913 = vld [vmem:[%s0 + $0x170] sm:$0xff]
  %v2914 = vld [vmem:[%s0 + $0x178] sm:$0xff]
  %v2915 = vld [vmem:[%s0 + $0x180] sm:$0xff]
  %v2916 = vld [vmem:[%s0 + $0x188] sm:$0xff]
  %v2917 = vld [vmem:[%s0 + $0x190] sm:$0xff]
  %v2918 = vld [vmem:[%s0 + $0x198] sm:$0xff]
  %v2919 = vld [vmem:[%s0 + $0x1a0] sm:$0xff]
  %v2920 = vld [vmem:[%s0 + $0x1a8] sm:$0xff]
  %v2921 = vld [vmem:[%s0 + $0x1b0] sm:$0xff]
  %v2922 = vld [vmem:[%s0 + $0x1b8] sm:$0xff]
  %v2923 = vld [vmem:[%s3 + $0x60] sm:$0xff]
  %v2924 = vld [vmem:[%s3 + $0x68] sm:$0xff]
  %v2926 = vsel %vm607, %v2874, 0
  %v2929 = vsel %vm607, %v2875, 0
  %v2932 = vsel %vm607, %v2876, 0
  %v2935 = vsel %vm607, %v2877, 0
  %v2938 = vsel %vm607, %v2878, 0
  %v2941 = vsel %vm607, %v2879, 0
  %v2944 = vsel %vm607, %v2880, 0
  %v2947 = vsel %vm607, %v2881, 0
  %v2950 = vsel %vm607, %v2882, 0
  %v2953 = vsel %vm607, %v2883, 0
  %v2956 = vsel %vm607, %v2884, 0
  %v2959 = vsel %vm607, %v2885, 0
  %v2962 = vsel %vm607, %v2886, 0
  %v2965 = vsel %vm607, %v2887, 0
  %v2968 = vsel %vm607, %v2888, 0
  %v2971 = vsel %vm607, %v2889, 0
  %v2974 = vsel %vm607, %v2890, 0
  %v2977 = vsel %vm607, %v2891, 0
  %v2980 = vsel %vm607, %v2892, 0
  %v2983 = vsel %vm607, %v2893, 0
  %v2986 = vsel %vm607, %v2894, 0
  %v2989 = vsel %vm607, %v2895, 0
  %v2992 = vsel %vm607, %v2896, 0
  %v2995 = vsel %vm607, %v2897, 0
  %v2998 = vsel %vm607, %v2898, 0
  %v3001 = vsel %vm607, %v2899, 0
  %v3004 = vsel %vm607, %v2900, 0
  %v3007 = vsel %vm607, %v2901, 0
  %v3010 = vsel %vm607, %v2902, 0
  %v3013 = vsel %vm607, %v2903, 0
  %v3016 = vsel %vm607, %v2904, 0
  %v3019 = vsel %vm607, %v2905, 0
  %v3022 = vsel %vm607, %v2906, 0
  %v3025 = vsel %vm607, %v2907, 0
  %v3028 = vsel %vm607, %v2908, 0
  %v3031 = vsel %vm607, %v2909, 0
  %v3034 = vsel %vm607, %v2910, 0
  %v3037 = vsel %vm607, %v2911, 0
  %v3040 = vsel %vm607, %v2912, 0
  %v3043 = vsel %vm607, %v2913, 0
  %v3046 = vsel %vm607, %v2914, 0
  %v3049 = vsel %vm607, %v2915, 0
  %v3052 = vsel %vm607, %v2916, 0
  %v3055 = vsel %vm607, %v2917, 0
  %v3058 = vsel %vm607, %v2918, 0
  %v3061 = vsel %vm607, %v2919, 0
  %v3064 = vsel %vm607, %v2920, 0
  %v3067 = vsel %vm607, %v2921, 0
  %v3070 = vsel %vm607, %v2922, 0
  %3072 = vmatpush.msra.mxu0 0.0
  %3073 = vmatpush.msra.mxu0 0.0
  %3074 = vmatpush.msra.mxu0 0.0
  %3075 = vmatpush.msra.mxu0 0.0
  %3076 = vmatpush.msra.mxu0 0.0
  %3077 = vmatpush.msra.mxu0 0.0
  %3078 = vmatpush.msra.mxu0 0.0
  %3079 = vmatpush.msra.mxu0 0.0
  %3080 = vmatpush.msra.mxu0 0.0
  %3081 = vmatpush.msra.mxu0 0.0
  %3082 = vmatpush.msra.mxu0 0.0
  %3083 = vmatpush.msra.mxu0 0.0
  %3084 = vmatpush.msra.mxu0 0.0
  %3085 = vmatpush.msra.mxu0 0.0
  %3086 = vmatpush.msra.mxu0 %v2924
  %3087 = vmatpush.msra.mxu0 %v2923
  %3088 = vmatmul.f32.gmra.mxu0 %v2926
  %v3089 = vpop.f32.mrf.mxu0
  %v3090 = vadd.f32 0.0, %v3089
  %3091 = vmatmul.f32.gmra.mxu0 %v2929
  %v3092 = vpop.f32.mrf.mxu0
  %v3093 = vadd.f32 0.0, %v3092
  %3094 = vmatmul.f32.gmra.mxu0 %v2932
  %v3095 = vpop.f32.mrf.mxu0
  %v3096 = vadd.f32 0.0, %v3095
  %3097 = vmatmul.f32.gmra.mxu0 %v2935
  %v3098 = vpop.f32.mrf.mxu0
  %v3099 = vadd.f32 0.0, %v3098
  %3100 = vmatmul.f32.gmra.mxu0 %v2938
  %v3101 = vpop.f32.mrf.mxu0
  %v3102 = vadd.f32 0.0, %v3101
  %3103 = vmatmul.f32.gmra.mxu0 %v2941
  %v3104 = vpop.f32.mrf.mxu0
  %v3105 = vadd.f32 0.0, %v3104
  %3106 = vmatmul.f32.gmra.mxu0 %v2944
  %v3107 = vpop.f32.mrf.mxu0
  %v3108 = vadd.f32 0.0, %v3107
  %3109 = vmatmul.f32.gmra.mxu0 %v2947
  %v3110 = vpop.f32.mrf.mxu0
  %v3111 = vadd.f32 0.0, %v3110
  %3112 = vmatmul.f32.gmra.mxu0 %v2950
  %v3113 = vpop.f32.mrf.mxu0
  %v3114 = vadd.f32 0.0, %v3113
  %3115 = vmatmul.f32.gmra.mxu0 %v2953
  %v3116 = vpop.f32.mrf.mxu0
  %v3117 = vadd.f32 0.0, %v3116
  %3118 = vmatmul.f32.gmra.mxu0 %v2956
  %v3119 = vpop.f32.mrf.mxu0
  %v3120 = vadd.f32 0.0, %v3119
  %3121 = vmatmul.f32.gmra.mxu0 %v2959
  %v3122 = vpop.f32.mrf.mxu0
  %v3123 = vadd.f32 0.0, %v3122
  %3124 = vmatmul.f32.gmra.mxu0 %v2962
  %v3125 = vpop.f32.mrf.mxu0
  %v3126 = vadd.f32 0.0, %v3125
  %3127 = vmatmul.f32.gmra.mxu0 %v2965
  %v3128 = vpop.f32.mrf.mxu0
  %v3129 = vadd.f32 0.0, %v3128
  %3130 = vmatmul.f32.gmra.mxu0 %v2968
  %v3131 = vpop.f32.mrf.mxu0
  %v3132 = vadd.f32 0.0, %v3131
  %3133 = vmatmul.f32.gmra.mxu0 %v2971
  %v3134 = vpop.f32.mrf.mxu0
  %v3135 = vadd.f32 0.0, %v3134
  %3136 = vmatmul.f32.gmra.mxu0 %v2974
  %v3137 = vpop.f32.mrf.mxu0
  %v3138 = vadd.f32 0.0, %v3137
  %3139 = vmatmul.f32.gmra.mxu0 %v2977
  %v3140 = vpop.f32.mrf.mxu0
  %v3141 = vadd.f32 0.0, %v3140
  %3142 = vmatmul.f32.gmra.mxu0 %v2980
  %v3143 = vpop.f32.mrf.mxu0
  %v3144 = vadd.f32 0.0, %v3143
  %3145 = vmatmul.f32.gmra.mxu0 %v2983
  %v3146 = vpop.f32.mrf.mxu0
  %v3147 = vadd.f32 0.0, %v3146
  %3148 = vmatmul.f32.gmra.mxu0 %v2986
  %v3149 = vpop.f32.mrf.mxu0
  %v3150 = vadd.f32 0.0, %v3149
  %3151 = vmatmul.f32.gmra.mxu0 %v2989
  %v3152 = vpop.f32.mrf.mxu0
  %v3153 = vadd.f32 0.0, %v3152
  %3154 = vmatmul.f32.gmra.mxu0 %v2992
  %v3155 = vpop.f32.mrf.mxu0
  %v3156 = vadd.f32 0.0, %v3155
  %3157 = vmatmul.f32.gmra.mxu0 %v2995
  %v3158 = vpop.f32.mrf.mxu0
  %v3159 = vadd.f32 0.0, %v3158
  %3160 = vmatmul.f32.gmra.mxu0 %v2998
  %v3161 = vpop.f32.mrf.mxu0
  %v3162 = vadd.f32 0.0, %v3161
  %3163 = vmatmul.f32.gmra.mxu0 %v3001
  %v3164 = vpop.f32.mrf.mxu0
  %v3165 = vadd.f32 0.0, %v3164
  %3166 = vmatmul.f32.gmra.mxu0 %v3004
  %v3167 = vpop.f32.mrf.mxu0
  %v3168 = vadd.f32 0.0, %v3167
  %3169 = vmatmul.f32.gmra.mxu0 %v3007
  %v3170 = vpop.f32.mrf.mxu0
  %v3171 = vadd.f32 0.0, %v3170
  %3172 = vmatmul.f32.gmra.mxu0 %v3010
  %v3173 = vpop.f32.mrf.mxu0
  %v3174 = vadd.f32 0.0, %v3173
  %3175 = vmatmul.f32.gmra.mxu0 %v3013
  %v3176 = vpop.f32.mrf.mxu0
  %v3177 = vadd.f32 0.0, %v3176
  %3178 = vmatmul.f32.gmra.mxu0 %v3016
  %v3179 = vpop.f32.mrf.mxu0
  %v3180 = vadd.f32 0.0, %v3179
  %3181 = vmatmul.f32.gmra.mxu0 %v3019
  %v3182 = vpop.f32.mrf.mxu0
  %v3183 = vadd.f32 0.0, %v3182
  %3184 = vmatmul.f32.gmra.mxu0 %v3022
  %v3185 = vpop.f32.mrf.mxu0
  %v3186 = vadd.f32 0.0, %v3185
  %3187 = vmatmul.f32.gmra.mxu0 %v3025
  %v3188 = vpop.f32.mrf.mxu0
  %v3189 = vadd.f32 0.0, %v3188
  %3190 = vmatmul.f32.gmra.mxu0 %v3028
  %v3191 = vpop.f32.mrf.mxu0
  %v3192 = vadd.f32 0.0, %v3191
  %3193 = vmatmul.f32.gmra.mxu0 %v3031
  %v3194 = vpop.f32.mrf.mxu0
  %v3195 = vadd.f32 0.0, %v3194
  %3196 = vmatmul.f32.gmra.mxu0 %v3034
  %v3197 = vpop.f32.mrf.mxu0
  %v3198 = vadd.f32 0.0, %v3197
  %3199 = vmatmul.f32.gmra.mxu0 %v3037
  %v3200 = vpop.f32.mrf.mxu0
  %v3201 = vadd.f32 0.0, %v3200
  %3202 = vmatmul.f32.gmra.mxu0 %v3040
  %v3203 = vpop.f32.mrf.mxu0
  %v3204 = vadd.f32 0.0, %v3203
  %3205 = vmatmul.f32.gmra.mxu0 %v3043
  %v3206 = vpop.f32.mrf.mxu0
  %v3207 = vadd.f32 0.0, %v3206
  %3208 = vmatmul.f32.gmra.mxu0 %v3046
  %v3209 = vpop.f32.mrf.mxu0
  %v3210 = vadd.f32 0.0, %v3209
  %3211 = vmatmul.f32.gmra.mxu0 %v3049
  %v3212 = vpop.f32.mrf.mxu0
  %v3213 = vadd.f32 0.0, %v3212
  %3214 = vmatmul.f32.gmra.mxu0 %v3052
  %v3215 = vpop.f32.mrf.mxu0
  %v3216 = vadd.f32 0.0, %v3215
  %3217 = vmatmul.f32.gmra.mxu0 %v3055
  %v3218 = vpop.f32.mrf.mxu0
  %v3219 = vadd.f32 0.0, %v3218
  %3220 = vmatmul.f32.gmra.mxu0 %v3058
  %v3221 = vpop.f32.mrf.mxu0
  %v3222 = vadd.f32 0.0, %v3221
  %3223 = vmatmul.f32.gmra.mxu0 %v3061
  %v3224 = vpop.f32.mrf.mxu0
  %v3225 = vadd.f32 0.0, %v3224
  %3226 = vmatmul.f32.gmra.mxu0 %v3064
  %v3227 = vpop.f32.mrf.mxu0
  %v3228 = vadd.f32 0.0, %v3227
  %3229 = vmatmul.f32.gmra.mxu0 %v3067
  %v3230 = vpop.f32.mrf.mxu0
  %v3231 = vadd.f32 0.0, %v3230
  %3232 = vmatmul.f32.gmra.mxu0 %v3070
  %v3233 = vpop.f32.mrf.mxu0
  %v3234 = vadd.f32 0.0, %v3233
  %3235 = vdwg.mxu0
  %v3236 = vadd.f32 %v2825, %v3090
  %v3237 = vadd.f32 %v2826, %v3093
  %v3238 = vadd.f32 %v2827, %v3096
  %v3239 = vadd.f32 %v2828, %v3099
  %v3240 = vadd.f32 %v2829, %v3102
  %v3241 = vadd.f32 %v2830, %v3105
  %v3242 = vadd.f32 %v2831, %v3108
  %v3243 = vadd.f32 %v2832, %v3111
  %v3244 = vadd.f32 %v2833, %v3114
  %v3245 = vadd.f32 %v2834, %v3117
  %v3246 = vadd.f32 %v2835, %v3120
  %v3247 = vadd.f32 %v2836, %v3123
  %v3248 = vadd.f32 %v2837, %v3126
  %v3249 = vadd.f32 %v2838, %v3129
  %v3250 = vadd.f32 %v2839, %v3132
  %v3251 = vadd.f32 %v2840, %v3135
  %v3252 = vadd.f32 %v2841, %v3138
  %v3253 = vadd.f32 %v2842, %v3141
  %v3254 = vadd.f32 %v2843, %v3144
  %v3255 = vadd.f32 %v2844, %v3147
  %v3256 = vadd.f32 %v2845, %v3150
  %v3257 = vadd.f32 %v2846, %v3153
  %v3258 = vadd.f32 %v2847, %v3156
  %v3259 = vadd.f32 %v2848, %v3159
  %v3260 = vadd.f32 %v2849, %v3162
  %v3261 = vadd.f32 %v2850, %v3165
  %v3262 = vadd.f32 %v2851, %v3168
  %v3263 = vadd.f32 %v2852, %v3171
  %v3264 = vadd.f32 %v2853, %v3174
  %v3265 = vadd.f32 %v2854, %v3177
  %v3266 = vadd.f32 %v2855, %v3180
  %v3267 = vadd.f32 %v2856, %v3183
  %v3268 = vadd.f32 %v2857, %v3186
  %v3269 = vadd.f32 %v2858, %v3189
  %v3270 = vadd.f32 %v2859, %v3192
  %v3271 = vadd.f32 %v2860, %v3195
  %v3272 = vadd.f32 %v2861, %v3198
  %v3273 = vadd.f32 %v2862, %v3201
  %v3274 = vadd.f32 %v2863, %v3204
  %v3275 = vadd.f32 %v2864, %v3207
  %v3276 = vadd.f32 %v2865, %v3210
  %v3277 = vadd.f32 %v2866, %v3213
  %v3278 = vadd.f32 %v2867, %v3216
  %v3279 = vadd.f32 %v2868, %v3219
  %v3280 = vadd.f32 %v2869, %v3222
  %v3281 = vadd.f32 %v2870, %v3225
  %v3282 = vadd.f32 %v2871, %v3228
  %v3283 = vadd.f32 %v2872, %v3231
  %v3284 = vadd.f32 %v2873, %v3234
  %v3285 = vld [vmem:[%s0 + $0x3a] sm:$0xff]
  %v3286 = vld [vmem:[%s0 + $0x42] sm:$0xff]
  %v3287 = vld [vmem:[%s0 + $0x4a] sm:$0xff]
  %v3288 = vld [vmem:[%s0 + $0x52] sm:$0xff]
  %v3289 = vld [vmem:[%s0 + $0x5a] sm:$0xff]
  %v3290 = vld [vmem:[%s0 + $0x62] sm:$0xff]
  %v3291 = vld [vmem:[%s0 + $0x6a] sm:$0xff]
  %v3292 = vld [vmem:[%s0 + $0x72] sm:$0xff]
  %v3293 = vld [vmem:[%s0 + $0x7a] sm:$0xff]
  %v3294 = vld [vmem:[%s0 + $0x82] sm:$0xff]
  %v3295 = vld [vmem:[%s0 + $0x8a] sm:$0xff]
  %v3296 = vld [vmem:[%s0 + $0x92] sm:$0xff]
  %v3297 = vld [vmem:[%s0 + $0x9a] sm:$0xff]
  %v3298 = vld [vmem:[%s0 + $0xa2] sm:$0xff]
  %v3299 = vld [vmem:[%s0 + $0xaa] sm:$0xff]
  %v3300 = vld [vmem:[%s0 + $0xb2] sm:$0xff]
  %v3301 = vld [vmem:[%s0 + $0xba] sm:$0xff]
  %v3302 = vld [vmem:[%s0 + $0xc2] sm:$0xff]
  %v3303 = vld [vmem:[%s0 + $0xca] sm:$0xff]
  %v3304 = vld [vmem:[%s0 + $0xd2] sm:$0xff]
  %v3305 = vld [vmem:[%s0 + $0xda] sm:$0xff]
  %v3306 = vld [vmem:[%s0 + $0xe2] sm:$0xff]
  %v3307 = vld [vmem:[%s0 + $0xea] sm:$0xff]
  %v3308 = vld [vmem:[%s0 + $0xf2] sm:$0xff]
  %v3309 = vld [vmem:[%s0 + $0xfa] sm:$0xff]
  %v3310 = vld [vmem:[%s0 + $0x102] sm:$0xff]
  %v3311 = vld [vmem:[%s0 + $0x10a] sm:$0xff]
  %v3312 = vld [vmem:[%s0 + $0x112] sm:$0xff]
  %v3313 = vld [vmem:[%s0 + $0x11a] sm:$0xff]
  %v3314 = vld [vmem:[%s0 + $0x122] sm:$0xff]
  %v3315 = vld [vmem:[%s0 + $0x12a] sm:$0xff]
  %v3316 = vld [vmem:[%s0 + $0x132] sm:$0xff]
  %v3317 = vld [vmem:[%s0 + $0x13a] sm:$0xff]
  %v3318 = vld [vmem:[%s0 + $0x142] sm:$0xff]
  %v3319 = vld [vmem:[%s0 + $0x14a] sm:$0xff]
  %v3320 = vld [vmem:[%s0 + $0x152] sm:$0xff]
  %v3321 = vld [vmem:[%s0 + $0x15a] sm:$0xff]
  %v3322 = vld [vmem:[%s0 + $0x162] sm:$0xff]
  %v3323 = vld [vmem:[%s0 + $0x16a] sm:$0xff]
  %v3324 = vld [vmem:[%s0 + $0x172] sm:$0xff]
  %v3325 = vld [vmem:[%s0 + $0x17a] sm:$0xff]
  %v3326 = vld [vmem:[%s0 + $0x182] sm:$0xff]
  %v3327 = vld [vmem:[%s0 + $0x18a] sm:$0xff]
  %v3328 = vld [vmem:[%s0 + $0x192] sm:$0xff]
  %v3329 = vld [vmem:[%s0 + $0x19a] sm:$0xff]
  %v3330 = vld [vmem:[%s0 + $0x1a2] sm:$0xff]
  %v3331 = vld [vmem:[%s0 + $0x1aa] sm:$0xff]
  %v3332 = vld [vmem:[%s0 + $0x1b2] sm:$0xff]
  %v3333 = vld [vmem:[%s0 + $0x1ba] sm:$0xff]
  %v3334 = vld [vmem:[%s3 + $0x70] sm:$0xff]
  %v3335 = vld [vmem:[%s3 + $0x78] sm:$0xff]
  %v3337 = vsel %vm607, %v3285, 0
  %v3340 = vsel %vm607, %v3286, 0
  %v3343 = vsel %vm607, %v3287, 0
  %v3346 = vsel %vm607, %v3288, 0
  %v3349 = vsel %vm607, %v3289, 0
  %v3352 = vsel %vm607, %v3290, 0
  %v3355 = vsel %vm607, %v3291, 0
  %v3358 = vsel %vm607, %v3292, 0
  %v3361 = vsel %vm607, %v3293, 0
  %v3364 = vsel %vm607, %v3294, 0
  %v3367 = vsel %vm607, %v3295, 0
  %v3370 = vsel %vm607, %v3296, 0
  %v3373 = vsel %vm607, %v3297, 0
  %v3376 = vsel %vm607, %v3298, 0
  %v3379 = vsel %vm607, %v3299, 0
  %v3382 = vsel %vm607, %v3300, 0
  %v3385 = vsel %vm607, %v3301, 0
  %v3388 = vsel %vm607, %v3302, 0
  %v3391 = vsel %vm607, %v3303, 0
  %v3394 = vsel %vm607, %v3304, 0
  %v3397 = vsel %vm607, %v3305, 0
  %v3400 = vsel %vm607, %v3306, 0
  %v3403 = vsel %vm607, %v3307, 0
  %v3406 = vsel %vm607, %v3308, 0
  %v3409 = vsel %vm607, %v3309, 0
  %v3412 = vsel %vm607, %v3310, 0
  %v3415 = vsel %vm607, %v3311, 0
  %v3418 = vsel %vm607, %v3312, 0
  %v3421 = vsel %vm607, %v3313, 0
  %v3424 = vsel %vm607, %v3314, 0
  %v3427 = vsel %vm607, %v3315, 0
  %v3430 = vsel %vm607, %v3316, 0
  %v3433 = vsel %vm607, %v3317, 0
  %v3436 = vsel %vm607, %v3318, 0
  %v3439 = vsel %vm607, %v3319, 0
  %v3442 = vsel %vm607, %v3320, 0
  %v3445 = vsel %vm607, %v3321, 0
  %v3448 = vsel %vm607, %v3322, 0
  %v3451 = vsel %vm607, %v3323, 0
  %v3454 = vsel %vm607, %v3324, 0
  %v3457 = vsel %vm607, %v3325, 0
  %v3460 = vsel %vm607, %v3326, 0
  %v3463 = vsel %vm607, %v3327, 0
  %v3466 = vsel %vm607, %v3328, 0
  %v3469 = vsel %vm607, %v3329, 0
  %v3472 = vsel %vm607, %v3330, 0
  %v3475 = vsel %vm607, %v3331, 0
  %v3478 = vsel %vm607, %v3332, 0
  %v3481 = vsel %vm607, %v3333, 0
  %3483 = vmatpush.msra.mxu0 0.0
  %3484 = vmatpush.msra.mxu0 0.0
  %3485 = vmatpush.msra.mxu0 0.0
  %3486 = vmatpush.msra.mxu0 0.0
  %3487 = vmatpush.msra.mxu0 0.0
  %3488 = vmatpush.msra.mxu0 0.0
  %3489 = vmatpush.msra.mxu0 0.0
  %3490 = vmatpush.msra.mxu0 0.0
  %3491 = vmatpush.msra.mxu0 0.0
  %3492 = vmatpush.msra.mxu0 0.0
  %3493 = vmatpush.msra.mxu0 0.0
  %3494 = vmatpush.msra.mxu0 0.0
  %3495 = vmatpush.msra.mxu0 0.0
  %3496 = vmatpush.msra.mxu0 0.0
  %3497 = vmatpush.msra.mxu0 %v3335
  %3498 = vmatpush.msra.mxu0 %v3334
  %3499 = vmatmul.f32.gmra.mxu0 %v3337
  %v3500 = vpop.f32.mrf.mxu0
  %v3501 = vadd.f32 0.0, %v3500
  %3502 = vmatmul.f32.gmra.mxu0 %v3340
  %v3503 = vpop.f32.mrf.mxu0
  %v3504 = vadd.f32 0.0, %v3503
  %3505 = vmatmul.f32.gmra.mxu0 %v3343
  %v3506 = vpop.f32.mrf.mxu0
  %v3507 = vadd.f32 0.0, %v3506
  %3508 = vmatmul.f32.gmra.mxu0 %v3346
  %v3509 = vpop.f32.mrf.mxu0
  %v3510 = vadd.f32 0.0, %v3509
  %3511 = vmatmul.f32.gmra.mxu0 %v3349
  %v3512 = vpop.f32.mrf.mxu0
  %v3513 = vadd.f32 0.0, %v3512
  %3514 = vmatmul.f32.gmra.mxu0 %v3352
  %v3515 = vpop.f32.mrf.mxu0
  %v3516 = vadd.f32 0.0, %v3515
  %3517 = vmatmul.f32.gmra.mxu0 %v3355
  %v3518 = vpop.f32.mrf.mxu0
  %v3519 = vadd.f32 0.0, %v3518
  %3520 = vmatmul.f32.gmra.mxu0 %v3358
  %v3521 = vpop.f32.mrf.mxu0
  %v3522 = vadd.f32 0.0, %v3521
  %3523 = vmatmul.f32.gmra.mxu0 %v3361
  %v3524 = vpop.f32.mrf.mxu0
  %v3525 = vadd.f32 0.0, %v3524
  %3526 = vmatmul.f32.gmra.mxu0 %v3364
  %v3527 = vpop.f32.mrf.mxu0
  %v3528 = vadd.f32 0.0, %v3527
  %3529 = vmatmul.f32.gmra.mxu0 %v3367
  %v3530 = vpop.f32.mrf.mxu0
  %v3531 = vadd.f32 0.0, %v3530
  %3532 = vmatmul.f32.gmra.mxu0 %v3370
  %v3533 = vpop.f32.mrf.mxu0
  %v3534 = vadd.f32 0.0, %v3533
  %3535 = vmatmul.f32.gmra.mxu0 %v3373
  %v3536 = vpop.f32.mrf.mxu0
  %v3537 = vadd.f32 0.0, %v3536
  %3538 = vmatmul.f32.gmra.mxu0 %v3376
  %v3539 = vpop.f32.mrf.mxu0
  %v3540 = vadd.f32 0.0, %v3539
  %3541 = vmatmul.f32.gmra.mxu0 %v3379
  %v3542 = vpop.f32.mrf.mxu0
  %v3543 = vadd.f32 0.0, %v3542
  %3544 = vmatmul.f32.gmra.mxu0 %v3382
  %v3545 = vpop.f32.mrf.mxu0
  %v3546 = vadd.f32 0.0, %v3545
  %3547 = vmatmul.f32.gmra.mxu0 %v3385
  %v3548 = vpop.f32.mrf.mxu0
  %v3549 = vadd.f32 0.0, %v3548
  %3550 = vmatmul.f32.gmra.mxu0 %v3388
  %v3551 = vpop.f32.mrf.mxu0
  %v3552 = vadd.f32 0.0, %v3551
  %3553 = vmatmul.f32.gmra.mxu0 %v3391
  %v3554 = vpop.f32.mrf.mxu0
  %v3555 = vadd.f32 0.0, %v3554
  %3556 = vmatmul.f32.gmra.mxu0 %v3394
  %v3557 = vpop.f32.mrf.mxu0
  %v3558 = vadd.f32 0.0, %v3557
  %3559 = vmatmul.f32.gmra.mxu0 %v3397
  %v3560 = vpop.f32.mrf.mxu0
  %v3561 = vadd.f32 0.0, %v3560
  %3562 = vmatmul.f32.gmra.mxu0 %v3400
  %v3563 = vpop.f32.mrf.mxu0
  %v3564 = vadd.f32 0.0, %v3563
  %3565 = vmatmul.f32.gmra.mxu0 %v3403
  %v3566 = vpop.f32.mrf.mxu0
  %v3567 = vadd.f32 0.0, %v3566
  %3568 = vmatmul.f32.gmra.mxu0 %v3406
  %v3569 = vpop.f32.mrf.mxu0
  %v3570 = vadd.f32 0.0, %v3569
  %3571 = vmatmul.f32.gmra.mxu0 %v3409
  %v3572 = vpop.f32.mrf.mxu0
  %v3573 = vadd.f32 0.0, %v3572
  %3574 = vmatmul.f32.gmra.mxu0 %v3412
  %v3575 = vpop.f32.mrf.mxu0
  %v3576 = vadd.f32 0.0, %v3575
  %3577 = vmatmul.f32.gmra.mxu0 %v3415
  %v3578 = vpop.f32.mrf.mxu0
  %v3579 = vadd.f32 0.0, %v3578
  %3580 = vmatmul.f32.gmra.mxu0 %v3418
  %v3581 = vpop.f32.mrf.mxu0
  %v3582 = vadd.f32 0.0, %v3581
  %3583 = vmatmul.f32.gmra.mxu0 %v3421
  %v3584 = vpop.f32.mrf.mxu0
  %v3585 = vadd.f32 0.0, %v3584
  %3586 = vmatmul.f32.gmra.mxu0 %v3424
  %v3587 = vpop.f32.mrf.mxu0
  %v3588 = vadd.f32 0.0, %v3587
  %3589 = vmatmul.f32.gmra.mxu0 %v3427
  %v3590 = vpop.f32.mrf.mxu0
  %v3591 = vadd.f32 0.0, %v3590
  %3592 = vmatmul.f32.gmra.mxu0 %v3430
  %v3593 = vpop.f32.mrf.mxu0
  %v3594 = vadd.f32 0.0, %v3593
  %3595 = vmatmul.f32.gmra.mxu0 %v3433
  %v3596 = vpop.f32.mrf.mxu0
  %v3597 = vadd.f32 0.0, %v3596
  %3598 = vmatmul.f32.gmra.mxu0 %v3436
  %v3599 = vpop.f32.mrf.mxu0
  %v3600 = vadd.f32 0.0, %v3599
  %3601 = vmatmul.f32.gmra.mxu0 %v3439
  %v3602 = vpop.f32.mrf.mxu0
  %v3603 = vadd.f32 0.0, %v3602
  %3604 = vmatmul.f32.gmra.mxu0 %v3442
  %v3605 = vpop.f32.mrf.mxu0
  %v3606 = vadd.f32 0.0, %v3605
  %3607 = vmatmul.f32.gmra.mxu0 %v3445
  %v3608 = vpop.f32.mrf.mxu0
  %v3609 = vadd.f32 0.0, %v3608
  %3610 = vmatmul.f32.gmra.mxu0 %v3448
  %v3611 = vpop.f32.mrf.mxu0
  %v3612 = vadd.f32 0.0, %v3611
  %3613 = vmatmul.f32.gmra.mxu0 %v3451
  %v3614 = vpop.f32.mrf.mxu0
  %v3615 = vadd.f32 0.0, %v3614
  %3616 = vmatmul.f32.gmra.mxu0 %v3454
  %v3617 = vpop.f32.mrf.mxu0
  %v3618 = vadd.f32 0.0, %v3617
  %3619 = vmatmul.f32.gmra.mxu0 %v3457
  %v3620 = vpop.f32.mrf.mxu0
  %v3621 = vadd.f32 0.0, %v3620
  %3622 = vmatmul.f32.gmra.mxu0 %v3460
  %v3623 = vpop.f32.mrf.mxu0
  %v3624 = vadd.f32 0.0, %v3623
  %3625 = vmatmul.f32.gmra.mxu0 %v3463
  %v3626 = vpop.f32.mrf.mxu0
  %v3627 = vadd.f32 0.0, %v3626
  %3628 = vmatmul.f32.gmra.mxu0 %v3466
  %v3629 = vpop.f32.mrf.mxu0
  %v3630 = vadd.f32 0.0, %v3629
  %3631 = vmatmul.f32.gmra.mxu0 %v3469
  %v3632 = vpop.f32.mrf.mxu0
  %v3633 = vadd.f32 0.0, %v3632
  %3634 = vmatmul.f32.gmra.mxu0 %v3472
  %v3635 = vpop.f32.mrf.mxu0
  %v3636 = vadd.f32 0.0, %v3635
  %3637 = vmatmul.f32.gmra.mxu0 %v3475
  %v3638 = vpop.f32.mrf.mxu0
  %v3639 = vadd.f32 0.0, %v3638
  %3640 = vmatmul.f32.gmra.mxu0 %v3478
  %v3641 = vpop.f32.mrf.mxu0
  %v3642 = vadd.f32 0.0, %v3641
  %3643 = vmatmul.f32.gmra.mxu0 %v3481
  %v3644 = vpop.f32.mrf.mxu0
  %v3645 = vadd.f32 0.0, %v3644
  %3646 = vdwg.mxu0
  %v3647 = vadd.f32 %v3236, %v3501
  %v3648 = vadd.f32 %v3237, %v3504
  %v3649 = vadd.f32 %v3238, %v3507
  %v3650 = vadd.f32 %v3239, %v3510
  %v3651 = vadd.f32 %v3240, %v3513
  %v3652 = vadd.f32 %v3241, %v3516
  %v3653 = vadd.f32 %v3242, %v3519
  %v3654 = vadd.f32 %v3243, %v3522
  %v3655 = vadd.f32 %v3244, %v3525
  %v3656 = vadd.f32 %v3245, %v3528
  %v3657 = vadd.f32 %v3246, %v3531
  %v3658 = vadd.f32 %v3247, %v3534
  %v3659 = vadd.f32 %v3248, %v3537
  %v3660 = vadd.f32 %v3249, %v3540
  %v3661 = vadd.f32 %v3250, %v3543
  %v3662 = vadd.f32 %v3251, %v3546
  %v3663 = vadd.f32 %v3252, %v3549
  %v3664 = vadd.f32 %v3253, %v3552
  %v3665 = vadd.f32 %v3254, %v3555
  %v3666 = vadd.f32 %v3255, %v3558
  %v3667 = vadd.f32 %v3256, %v3561
  %v3668 = vadd.f32 %v3257, %v3564
  %v3669 = vadd.f32 %v3258, %v3567
  %v3670 = vadd.f32 %v3259, %v3570
  %v3671 = vadd.f32 %v3260, %v3573
  %v3672 = vadd.f32 %v3261, %v3576
  %v3673 = vadd.f32 %v3262, %v3579
  %v3674 = vadd.f32 %v3263, %v3582
  %v3675 = vadd.f32 %v3264, %v3585
  %v3676 = vadd.f32 %v3265, %v3588
  %v3677 = vadd.f32 %v3266, %v3591
  %v3678 = vadd.f32 %v3267, %v3594
  %v3679 = vadd.f32 %v3268, %v3597
  %v3680 = vadd.f32 %v3269, %v3600
  %v3681 = vadd.f32 %v3270, %v3603
  %v3682 = vadd.f32 %v3271, %v3606
  %v3683 = vadd.f32 %v3272, %v3609
  %v3684 = vadd.f32 %v3273, %v3612
  %v3685 = vadd.f32 %v3274, %v3615
  %v3686 = vadd.f32 %v3275, %v3618
  %v3687 = vadd.f32 %v3276, %v3621
  %v3688 = vadd.f32 %v3277, %v3624
  %v3689 = vadd.f32 %v3278, %v3627
  %v3690 = vadd.f32 %v3279, %v3630
  %v3691 = vadd.f32 %v3280, %v3633
  %v3692 = vadd.f32 %v3281, %v3636
  %v3693 = vadd.f32 %v3282, %v3639
  %v3694 = vadd.f32 %v3283, %v3642
  %v3695 = vadd.f32 %v3284, %v3645
  %v3696 = vld [vmem:[%s0 + $0x3c] sm:$0xff]
  %v3697 = vld [vmem:[%s0 + $0x44] sm:$0xff]
  %v3698 = vld [vmem:[%s0 + $0x4c] sm:$0xff]
  %v3699 = vld [vmem:[%s0 + $0x54] sm:$0xff]
  %v3700 = vld [vmem:[%s0 + $0x5c] sm:$0xff]
  %v3701 = vld [vmem:[%s0 + $0x64] sm:$0xff]
  %v3702 = vld [vmem:[%s0 + $0x6c] sm:$0xff]
  %v3703 = vld [vmem:[%s0 + $0x74] sm:$0xff]
  %v3704 = vld [vmem:[%s0 + $0x7c] sm:$0xff]
  %v3705 = vld [vmem:[%s0 + $0x84] sm:$0xff]
  %v3706 = vld [vmem:[%s0 + $0x8c] sm:$0xff]
  %v3707 = vld [vmem:[%s0 + $0x94] sm:$0xff]
  %v3708 = vld [vmem:[%s0 + $0x9c] sm:$0xff]
  %v3709 = vld [vmem:[%s0 + $0xa4] sm:$0xff]
  %v3710 = vld [vmem:[%s0 + $0xac] sm:$0xff]
  %v3711 = vld [vmem:[%s0 + $0xb4] sm:$0xff]
  %v3712 = vld [vmem:[%s0 + $0xbc] sm:$0xff]
  %v3713 = vld [vmem:[%s0 + $0xc4] sm:$0xff]
  %v3714 = vld [vmem:[%s0 + $0xcc] sm:$0xff]
  %v3715 = vld [vmem:[%s0 + $0xd4] sm:$0xff]
  %v3716 = vld [vmem:[%s0 + $0xdc] sm:$0xff]
  %v3717 = vld [vmem:[%s0 + $0xe4] sm:$0xff]
  %v3718 = vld [vmem:[%s0 + $0xec] sm:$0xff]
  %v3719 = vld [vmem:[%s0 + $0xf4] sm:$0xff]
  %v3720 = vld [vmem:[%s0 + $0xfc] sm:$0xff]
  %v3721 = vld [vmem:[%s0 + $0x104] sm:$0xff]
  %v3722 = vld [vmem:[%s0 + $0x10c] sm:$0xff]
  %v3723 = vld [vmem:[%s0 + $0x114] sm:$0xff]
  %v3724 = vld [vmem:[%s0 + $0x11c] sm:$0xff]
  %v3725 = vld [vmem:[%s0 + $0x124] sm:$0xff]
  %v3726 = vld [vmem:[%s0 + $0x12c] sm:$0xff]
  %v3727 = vld [vmem:[%s0 + $0x134] sm:$0xff]
  %v3728 = vld [vmem:[%s0 + $0x13c] sm:$0xff]
  %v3729 = vld [vmem:[%s0 + $0x144] sm:$0xff]
  %v3730 = vld [vmem:[%s0 + $0x14c] sm:$0xff]
  %v3731 = vld [vmem:[%s0 + $0x154] sm:$0xff]
  %v3732 = vld [vmem:[%s0 + $0x15c] sm:$0xff]
  %v3733 = vld [vmem:[%s0 + $0x164] sm:$0xff]
  %v3734 = vld [vmem:[%s0 + $0x16c] sm:$0xff]
  %v3735 = vld [vmem:[%s0 + $0x174] sm:$0xff]
  %v3736 = vld [vmem:[%s0 + $0x17c] sm:$0xff]
  %v3737 = vld [vmem:[%s0 + $0x184] sm:$0xff]
  %v3738 = vld [vmem:[%s0 + $0x18c] sm:$0xff]
  %v3739 = vld [vmem:[%s0 + $0x194] sm:$0xff]
  %v3740 = vld [vmem:[%s0 + $0x19c] sm:$0xff]
  %v3741 = vld [vmem:[%s0 + $0x1a4] sm:$0xff]
  %v3742 = vld [vmem:[%s0 + $0x1ac] sm:$0xff]
  %v3743 = vld [vmem:[%s0 + $0x1b4] sm:$0xff]
  %v3744 = vld [vmem:[%s0 + $0x1bc] sm:$0xff]
  %v3745 = vld [vmem:[%s3 + $0x80] sm:$0xff]
  %v3746 = vld [vmem:[%s3 + $0x88] sm:$0xff]
  %v3748 = vsel %vm607, %v3696, 0
  %v3751 = vsel %vm607, %v3697, 0
  %v3754 = vsel %vm607, %v3698, 0
  %v3757 = vsel %vm607, %v3699, 0
  %v3760 = vsel %vm607, %v3700, 0
  %v3763 = vsel %vm607, %v3701, 0
  %v3766 = vsel %vm607, %v3702, 0
  %v3769 = vsel %vm607, %v3703, 0
  %v3772 = vsel %vm607, %v3704, 0
  %v3775 = vsel %vm607, %v3705, 0
  %v3778 = vsel %vm607, %v3706, 0
  %v3781 = vsel %vm607, %v3707, 0
  %v3784 = vsel %vm607, %v3708, 0
  %v3787 = vsel %vm607, %v3709, 0
  %v3790 = vsel %vm607, %v3710, 0
  %v3793 = vsel %vm607, %v3711, 0
  %v3796 = vsel %vm607, %v3712, 0
  %v3799 = vsel %vm607, %v3713, 0
  %v3802 = vsel %vm607, %v3714, 0
  %v3805 = vsel %vm607, %v3715, 0
  %v3808 = vsel %vm607, %v3716, 0
  %v3811 = vsel %vm607, %v3717, 0
  %v3814 = vsel %vm607, %v3718, 0
  %v3817 = vsel %vm607, %v3719, 0
  %v3820 = vsel %vm607, %v3720, 0
  %v3823 = vsel %vm607, %v3721, 0
  %v3826 = vsel %vm607, %v3722, 0
  %v3829 = vsel %vm607, %v3723, 0
  %v3832 = vsel %vm607, %v3724, 0
  %v3835 = vsel %vm607, %v3725, 0
  %v3838 = vsel %vm607, %v3726, 0
  %v3841 = vsel %vm607, %v3727, 0
  %v3844 = vsel %vm607, %v3728, 0
  %v3847 = vsel %vm607, %v3729, 0
  %v3850 = vsel %vm607, %v3730, 0
  %v3853 = vsel %vm607, %v3731, 0
  %v3856 = vsel %vm607, %v3732, 0
  %v3859 = vsel %vm607, %v3733, 0
  %v3862 = vsel %vm607, %v3734, 0
  %v3865 = vsel %vm607, %v3735, 0
  %v3868 = vsel %vm607, %v3736, 0
  %v3871 = vsel %vm607, %v3737, 0
  %v3874 = vsel %vm607, %v3738, 0
  %v3877 = vsel %vm607, %v3739, 0
  %v3880 = vsel %vm607, %v3740, 0
  %v3883 = vsel %vm607, %v3741, 0
  %v3886 = vsel %vm607, %v3742, 0
  %v3889 = vsel %vm607, %v3743, 0
  %v3892 = vsel %vm607, %v3744, 0
  %3894 = vmatpush.msra.mxu0 0.0
  %3895 = vmatpush.msra.mxu0 0.0
  %3896 = vmatpush.msra.mxu0 0.0
  %3897 = vmatpush.msra.mxu0 0.0
  %3898 = vmatpush.msra.mxu0 0.0
  %3899 = vmatpush.msra.mxu0 0.0
  %3900 = vmatpush.msra.mxu0 0.0
  %3901 = vmatpush.msra.mxu0 0.0
  %3902 = vmatpush.msra.mxu0 0.0
  %3903 = vmatpush.msra.mxu0 0.0
  %3904 = vmatpush.msra.mxu0 0.0
  %3905 = vmatpush.msra.mxu0 0.0
  %3906 = vmatpush.msra.mxu0 0.0
  %3907 = vmatpush.msra.mxu0 0.0
  %3908 = vmatpush.msra.mxu0 %v3746
  %3909 = vmatpush.msra.mxu0 %v3745
  %3910 = vmatmul.f32.gmra.mxu0 %v3748
  %v3911 = vpop.f32.mrf.mxu0
  %v3912 = vadd.f32 0.0, %v3911
  %3913 = vmatmul.f32.gmra.mxu0 %v3751
  %v3914 = vpop.f32.mrf.mxu0
  %v3915 = vadd.f32 0.0, %v3914
  %3916 = vmatmul.f32.gmra.mxu0 %v3754
  %v3917 = vpop.f32.mrf.mxu0
  %v3918 = vadd.f32 0.0, %v3917
  %3919 = vmatmul.f32.gmra.mxu0 %v3757
  %v3920 = vpop.f32.mrf.mxu0
  %v3921 = vadd.f32 0.0, %v3920
  %3922 = vmatmul.f32.gmra.mxu0 %v3760
  %v3923 = vpop.f32.mrf.mxu0
  %v3924 = vadd.f32 0.0, %v3923
  %3925 = vmatmul.f32.gmra.mxu0 %v3763
  %v3926 = vpop.f32.mrf.mxu0
  %v3927 = vadd.f32 0.0, %v3926
  %3928 = vmatmul.f32.gmra.mxu0 %v3766
  %v3929 = vpop.f32.mrf.mxu0
  %v3930 = vadd.f32 0.0, %v3929
  %3931 = vmatmul.f32.gmra.mxu0 %v3769
  %v3932 = vpop.f32.mrf.mxu0
  %v3933 = vadd.f32 0.0, %v3932
  %3934 = vmatmul.f32.gmra.mxu0 %v3772
  %v3935 = vpop.f32.mrf.mxu0
  %v3936 = vadd.f32 0.0, %v3935
  %3937 = vmatmul.f32.gmra.mxu0 %v3775
  %v3938 = vpop.f32.mrf.mxu0
  %v3939 = vadd.f32 0.0, %v3938
  %3940 = vmatmul.f32.gmra.mxu0 %v3778
  %v3941 = vpop.f32.mrf.mxu0
  %v3942 = vadd.f32 0.0, %v3941
  %3943 = vmatmul.f32.gmra.mxu0 %v3781
  %v3944 = vpop.f32.mrf.mxu0
  %v3945 = vadd.f32 0.0, %v3944
  %3946 = vmatmul.f32.gmra.mxu0 %v3784
  %v3947 = vpop.f32.mrf.mxu0
  %v3948 = vadd.f32 0.0, %v3947
  %3949 = vmatmul.f32.gmra.mxu0 %v3787
  %v3950 = vpop.f32.mrf.mxu0
  %v3951 = vadd.f32 0.0, %v3950
  %3952 = vmatmul.f32.gmra.mxu0 %v3790
  %v3953 = vpop.f32.mrf.mxu0
  %v3954 = vadd.f32 0.0, %v3953
  %3955 = vmatmul.f32.gmra.mxu0 %v3793
  %v3956 = vpop.f32.mrf.mxu0
  %v3957 = vadd.f32 0.0, %v3956
  %3958 = vmatmul.f32.gmra.mxu0 %v3796
  %v3959 = vpop.f32.mrf.mxu0
  %v3960 = vadd.f32 0.0, %v3959
  %3961 = vmatmul.f32.gmra.mxu0 %v3799
  %v3962 = vpop.f32.mrf.mxu0
  %v3963 = vadd.f32 0.0, %v3962
  %3964 = vmatmul.f32.gmra.mxu0 %v3802
  %v3965 = vpop.f32.mrf.mxu0
  %v3966 = vadd.f32 0.0, %v3965
  %3967 = vmatmul.f32.gmra.mxu0 %v3805
  %v3968 = vpop.f32.mrf.mxu0
  %v3969 = vadd.f32 0.0, %v3968
  %3970 = vmatmul.f32.gmra.mxu0 %v3808
  %v3971 = vpop.f32.mrf.mxu0
  %v3972 = vadd.f32 0.0, %v3971
  %3973 = vmatmul.f32.gmra.mxu0 %v3811
  %v3974 = vpop.f32.mrf.mxu0
  %v3975 = vadd.f32 0.0, %v3974
  %3976 = vmatmul.f32.gmra.mxu0 %v3814
  %v3977 = vpop.f32.mrf.mxu0
  %v3978 = vadd.f32 0.0, %v3977
  %3979 = vmatmul.f32.gmra.mxu0 %v3817
  %v3980 = vpop.f32.mrf.mxu0
  %v3981 = vadd.f32 0.0, %v3980
  %3982 = vmatmul.f32.gmra.mxu0 %v3820
  %v3983 = vpop.f32.mrf.mxu0
  %v3984 = vadd.f32 0.0, %v3983
  %3985 = vmatmul.f32.gmra.mxu0 %v3823
  %v3986 = vpop.f32.mrf.mxu0
  %v3987 = vadd.f32 0.0, %v3986
  %3988 = vmatmul.f32.gmra.mxu0 %v3826
  %v3989 = vpop.f32.mrf.mxu0
  %v3990 = vadd.f32 0.0, %v3989
  %3991 = vmatmul.f32.gmra.mxu0 %v3829
  %v3992 = vpop.f32.mrf.mxu0
  %v3993 = vadd.f32 0.0, %v3992
  %3994 = vmatmul.f32.gmra.mxu0 %v3832
  %v3995 = vpop.f32.mrf.mxu0
  %v3996 = vadd.f32 0.0, %v3995
  %3997 = vmatmul.f32.gmra.mxu0 %v3835
  %v3998 = vpop.f32.mrf.mxu0
  %v3999 = vadd.f32 0.0, %v3998
  %4000 = vmatmul.f32.gmra.mxu0 %v3838
  %v4001 = vpop.f32.mrf.mxu0
  %v4002 = vadd.f32 0.0, %v4001
  %4003 = vmatmul.f32.gmra.mxu0 %v3841
  %v4004 = vpop.f32.mrf.mxu0
  %v4005 = vadd.f32 0.0, %v4004
  %4006 = vmatmul.f32.gmra.mxu0 %v3844
  %v4007 = vpop.f32.mrf.mxu0
  %v4008 = vadd.f32 0.0, %v4007
  %4009 = vmatmul.f32.gmra.mxu0 %v3847
  %v4010 = vpop.f32.mrf.mxu0
  %v4011 = vadd.f32 0.0, %v4010
  %4012 = vmatmul.f32.gmra.mxu0 %v3850
  %v4013 = vpop.f32.mrf.mxu0
  %v4014 = vadd.f32 0.0, %v4013
  %4015 = vmatmul.f32.gmra.mxu0 %v3853
  %v4016 = vpop.f32.mrf.mxu0
  %v4017 = vadd.f32 0.0, %v4016
  %4018 = vmatmul.f32.gmra.mxu0 %v3856
  %v4019 = vpop.f32.mrf.mxu0
  %v4020 = vadd.f32 0.0, %v4019
  %4021 = vmatmul.f32.gmra.mxu0 %v3859
  %v4022 = vpop.f32.mrf.mxu0
  %v4023 = vadd.f32 0.0, %v4022
  %4024 = vmatmul.f32.gmra.mxu0 %v3862
  %v4025 = vpop.f32.mrf.mxu0
  %v4026 = vadd.f32 0.0, %v4025
  %4027 = vmatmul.f32.gmra.mxu0 %v3865
  %v4028 = vpop.f32.mrf.mxu0
  %v4029 = vadd.f32 0.0, %v4028
  %4030 = vmatmul.f32.gmra.mxu0 %v3868
  %v4031 = vpop.f32.mrf.mxu0
  %v4032 = vadd.f32 0.0, %v4031
  %4033 = vmatmul.f32.gmra.mxu0 %v3871
  %v4034 = vpop.f32.mrf.mxu0
  %v4035 = vadd.f32 0.0, %v4034
  %4036 = vmatmul.f32.gmra.mxu0 %v3874
  %v4037 = vpop.f32.mrf.mxu0
  %v4038 = vadd.f32 0.0, %v4037
  %4039 = vmatmul.f32.gmra.mxu0 %v3877
  %v4040 = vpop.f32.mrf.mxu0
  %v4041 = vadd.f32 0.0, %v4040
  %4042 = vmatmul.f32.gmra.mxu0 %v3880
  %v4043 = vpop.f32.mrf.mxu0
  %v4044 = vadd.f32 0.0, %v4043
  %4045 = vmatmul.f32.gmra.mxu0 %v3883
  %v4046 = vpop.f32.mrf.mxu0
  %v4047 = vadd.f32 0.0, %v4046
  %4048 = vmatmul.f32.gmra.mxu0 %v3886
  %v4049 = vpop.f32.mrf.mxu0
  %v4050 = vadd.f32 0.0, %v4049
  %4051 = vmatmul.f32.gmra.mxu0 %v3889
  %v4052 = vpop.f32.mrf.mxu0
  %v4053 = vadd.f32 0.0, %v4052
  %4054 = vmatmul.f32.gmra.mxu0 %v3892
  %v4055 = vpop.f32.mrf.mxu0
  %v4056 = vadd.f32 0.0, %v4055
  %4057 = vdwg.mxu0
  %v4058 = vadd.f32 %v3647, %v3912
  %v4059 = vadd.f32 %v3648, %v3915
  %v4060 = vadd.f32 %v3649, %v3918
  %v4061 = vadd.f32 %v3650, %v3921
  %v4062 = vadd.f32 %v3651, %v3924
  %v4063 = vadd.f32 %v3652, %v3927
  %v4064 = vadd.f32 %v3653, %v3930
  %v4065 = vadd.f32 %v3654, %v3933
  %v4066 = vadd.f32 %v3655, %v3936
  %v4067 = vadd.f32 %v3656, %v3939
  %v4068 = vadd.f32 %v3657, %v3942
  %v4069 = vadd.f32 %v3658, %v3945
  %v4070 = vadd.f32 %v3659, %v3948
  %v4071 = vadd.f32 %v3660, %v3951
  %v4072 = vadd.f32 %v3661, %v3954
  %v4073 = vadd.f32 %v3662, %v3957
  %v4074 = vadd.f32 %v3663, %v3960
  %v4075 = vadd.f32 %v3664, %v3963
  %v4076 = vadd.f32 %v3665, %v3966
  %v4077 = vadd.f32 %v3666, %v3969
  %v4078 = vadd.f32 %v3667, %v3972
  %v4079 = vadd.f32 %v3668, %v3975
  %v4080 = vadd.f32 %v3669, %v3978
  %v4081 = vadd.f32 %v3670, %v3981
  %v4082 = vadd.f32 %v3671, %v3984
  %v4083 = vadd.f32 %v3672, %v3987
  %v4084 = vadd.f32 %v3673, %v3990
  %v4085 = vadd.f32 %v3674, %v3993
  %v4086 = vadd.f32 %v3675, %v3996
  %v4087 = vadd.f32 %v3676, %v3999
  %v4088 = vadd.f32 %v3677, %v4002
  %v4089 = vadd.f32 %v3678, %v4005
  %v4090 = vadd.f32 %v3679, %v4008
  %v4091 = vadd.f32 %v3680, %v4011
  %v4092 = vadd.f32 %v3681, %v4014
  %v4093 = vadd.f32 %v3682, %v4017
  %v4094 = vadd.f32 %v3683, %v4020
  %v4095 = vadd.f32 %v3684, %v4023
  %v4096 = vadd.f32 %v3685, %v4026
  %v4097 = vadd.f32 %v3686, %v4029
  %v4098 = vadd.f32 %v3687, %v4032
  %v4099 = vadd.f32 %v3688, %v4035
  %v4100 = vadd.f32 %v3689, %v4038
  %v4101 = vadd.f32 %v3690, %v4041
  %v4102 = vadd.f32 %v3691, %v4044
  %v4103 = vadd.f32 %v3692, %v4047
  %v4104 = vadd.f32 %v3693, %v4050
  %v4105 = vadd.f32 %v3694, %v4053
  %v4106 = vadd.f32 %v3695, %v4056
  %v4107 = vld [vmem:[%s4] sm:$0x1]
  %v4109 = vperm.slane %v4107, 0
  %v4111 = vadd.f32 %v4058, %v4109
  %v4112 = vadd.f32 %v4059, %v4109
  %v4113 = vadd.f32 %v4060, %v4109
  %v4114 = vadd.f32 %v4061, %v4109
  %v4115 = vadd.f32 %v4062, %v4109
  %v4116 = vadd.f32 %v4063, %v4109
  %v4117 = vadd.f32 %v4064, %v4109
  %v4118 = vadd.f32 %v4065, %v4109
  %v4119 = vadd.f32 %v4066, %v4109
  %v4120 = vadd.f32 %v4067, %v4109
  %v4121 = vadd.f32 %v4068, %v4109
  %v4122 = vadd.f32 %v4069, %v4109
  %v4123 = vadd.f32 %v4070, %v4109
  %v4124 = vadd.f32 %v4071, %v4109
  %v4125 = vadd.f32 %v4072, %v4109
  %v4126 = vadd.f32 %v4073, %v4109
  %v4127 = vadd.f32 %v4074, %v4109
  %v4128 = vadd.f32 %v4075, %v4109
  %v4129 = vadd.f32 %v4076, %v4109
  %v4130 = vadd.f32 %v4077, %v4109
  %v4131 = vadd.f32 %v4078, %v4109
  %v4132 = vadd.f32 %v4079, %v4109
  %v4133 = vadd.f32 %v4080, %v4109
  %v4134 = vadd.f32 %v4081, %v4109
  %v4135 = vadd.f32 %v4082, %v4109
  %v4136 = vadd.f32 %v4083, %v4109
  %v4137 = vadd.f32 %v4084, %v4109
  %v4138 = vadd.f32 %v4085, %v4109
  %v4139 = vadd.f32 %v4086, %v4109
  %v4140 = vadd.f32 %v4087, %v4109
  %v4141 = vadd.f32 %v4088, %v4109
  %v4142 = vadd.f32 %v4089, %v4109
  %v4143 = vadd.f32 %v4090, %v4109
  %v4144 = vadd.f32 %v4091, %v4109
  %v4145 = vadd.f32 %v4092, %v4109
  %v4146 = vadd.f32 %v4093, %v4109
  %v4147 = vadd.f32 %v4094, %v4109
  %v4148 = vadd.f32 %v4095, %v4109
  %v4149 = vadd.f32 %v4096, %v4109
  %v4150 = vadd.f32 %v4097, %v4109
  %v4151 = vadd.f32 %v4098, %v4109
  %v4152 = vadd.f32 %v4099, %v4109
  %v4153 = vadd.f32 %v4100, %v4109
  %v4154 = vadd.f32 %v4101, %v4109
  %v4155 = vadd.f32 %v4102, %v4109
  %v4156 = vadd.f32 %v4103, %v4109
  %v4157 = vadd.f32 %v4104, %v4109
  %v4158 = vadd.f32 %v4105, %v4109
  %v4159 = vadd.f32 %v4106, %v4109
  %v4160 = vsel %vm358, 1, 0
  %v4161 = vsel %vm359, 1, 0
  %v4162 = vsel %vm360, 1, 0
  %v4163 = vsel %vm361, 1, 0
  %v4164 = vsel %vm362, 1, 0
  %v4165 = vsel %vm363, 1, 0
  %v4166 = vsel %vm364, 1, 0
  %v4167 = vsel %vm365, 1, 0
  %v4168 = vsel %vm366, 1, 0
  %v4169 = vsel %vm367, 1, 0
  %v4170 = vsel %vm368, 1, 0
  %v4171 = vsel %vm369, 1, 0
  %v4172 = vsel %vm370, 1, 0
  %v4173 = vsel %vm371, 1, 0
  %v4174 = vsel %vm372, 1, 0
  %v4175 = vsel %vm373, 1, 0
  %v4176 = vsel %vm374, 1, 0
  %v4177 = vsel %vm375, 1, 0
  %v4178 = vsel %vm376, 1, 0
  %v4179 = vsel %vm377, 1, 0
  %v4180 = vsel %vm378, 1, 0
  %v4181 = vsel %vm379, 1, 0
  %v4182 = vsel %vm380, 1, 0
  %v4183 = vsel %vm381, 1, 0
  %v4184 = vsel %vm382, 1, 0
  %v4185 = vsel %vm383, 1, 0
  %v4186 = vsel %vm384, 1, 0
  %v4187 = vsel %vm385, 1, 0
  %v4188 = vsel %vm386, 1, 0
  %v4189 = vsel %vm387, 1, 0
  %v4190 = vsel %vm388, 1, 0
  %v4191 = vsel %vm389, 1, 0
  %v4192 = vsel %vm390, 1, 0
  %v4193 = vsel %vm391, 1, 0
  %v4194 = vsel %vm392, 1, 0
  %v4195 = vsel %vm393, 1, 0
  %v4196 = vsel %vm394, 1, 0
  %v4197 = vsel %vm395, 1, 0
  %v4198 = vsel %vm396, 1, 0
  %v4199 = vsel %vm397, 1, 0
  %v4200 = vsel %vm398, 1, 0
  %v4201 = vsel %vm399, 1, 0
  %v4202 = vsel %vm400, 1, 0
  %v4203 = vsel %vm401, 1, 0
  %v4204 = vsel %vm402, 1, 0
  %v4205 = vsel %vm403, 1, 0
  %v4206 = vsel %vm404, 1, 0
  %v4207 = vsel %vm405, 1, 0
  %v4208 = vsel %vm406, 1, 0
  %4209 = vset.pattern.permute.xlu0 0
  %4210 = vperm.xlu0 %4209, %v4160
  %v4211 = vpop.permute.xlu0 %4210
  %4212 = vset.pattern.permute.xlu0 0
  %4213 = vperm.xlu0 %4212, %v4161
  %v4214 = vpop.permute.xlu0 %4213
  %4215 = vset.pattern.permute.xlu0 0
  %4216 = vperm.xlu0 %4215, %v4162
  %v4217 = vpop.permute.xlu0 %4216
  %4218 = vset.pattern.permute.xlu0 0
  %4219 = vperm.xlu0 %4218, %v4163
  %v4220 = vpop.permute.xlu0 %4219
  %4221 = vset.pattern.permute.xlu0 0
  %4222 = vperm.xlu0 %4221, %v4164
  %v4223 = vpop.permute.xlu0 %4222
  %4224 = vset.pattern.permute.xlu0 0
  %4225 = vperm.xlu0 %4224, %v4165
  %v4226 = vpop.permute.xlu0 %4225
  %4227 = vset.pattern.permute.xlu0 0
  %4228 = vperm.xlu0 %4227, %v4166
  %v4229 = vpop.permute.xlu0 %4228
  %4230 = vset.pattern.permute.xlu0 0
  %4231 = vperm.xlu0 %4230, %v4167
  %v4232 = vpop.permute.xlu0 %4231
  %4233 = vset.pattern.permute.xlu0 0
  %4234 = vperm.xlu0 %4233, %v4168
  %v4235 = vpop.permute.xlu0 %4234
  %4236 = vset.pattern.permute.xlu0 0
  %4237 = vperm.xlu0 %4236, %v4169
  %v4238 = vpop.permute.xlu0 %4237
  %4239 = vset.pattern.permute.xlu0 0
  %4240 = vperm.xlu0 %4239, %v4170
  %v4241 = vpop.permute.xlu0 %4240
  %4242 = vset.pattern.permute.xlu0 0
  %4243 = vperm.xlu0 %4242, %v4171
  %v4244 = vpop.permute.xlu0 %4243
  %4245 = vset.pattern.permute.xlu0 0
  %4246 = vperm.xlu0 %4245, %v4172
  %v4247 = vpop.permute.xlu0 %4246
  %4248 = vset.pattern.permute.xlu0 0
  %4249 = vperm.xlu0 %4248, %v4173
  %v4250 = vpop.permute.xlu0 %4249
  %4251 = vset.pattern.permute.xlu0 0
  %4252 = vperm.xlu0 %4251, %v4174
  %v4253 = vpop.permute.xlu0 %4252
  %4254 = vset.pattern.permute.xlu0 0
  %4255 = vperm.xlu0 %4254, %v4175
  %v4256 = vpop.permute.xlu0 %4255
  %4257 = vset.pattern.permute.xlu0 0
  %4258 = vperm.xlu0 %4257, %v4176
  %v4259 = vpop.permute.xlu0 %4258
  %4260 = vset.pattern.permute.xlu0 0
  %4261 = vperm.xlu0 %4260, %v4177
  %v4262 = vpop.permute.xlu0 %4261
  %4263 = vset.pattern.permute.xlu0 0
  %4264 = vperm.xlu0 %4263, %v4178
  %v4265 = vpop.permute.xlu0 %4264
  %4266 = vset.pattern.permute.xlu0 0
  %4267 = vperm.xlu0 %4266, %v4179
  %v4268 = vpop.permute.xlu0 %4267
  %4269 = vset.pattern.permute.xlu0 0
  %4270 = vperm.xlu0 %4269, %v4180
  %v4271 = vpop.permute.xlu0 %4270
  %4272 = vset.pattern.permute.xlu0 0
  %4273 = vperm.xlu0 %4272, %v4181
  %v4274 = vpop.permute.xlu0 %4273
  %4275 = vset.pattern.permute.xlu0 0
  %4276 = vperm.xlu0 %4275, %v4182
  %v4277 = vpop.permute.xlu0 %4276
  %4278 = vset.pattern.permute.xlu0 0
  %4279 = vperm.xlu0 %4278, %v4183
  %v4280 = vpop.permute.xlu0 %4279
  %4281 = vset.pattern.permute.xlu0 0
  %4282 = vperm.xlu0 %4281, %v4184
  %v4283 = vpop.permute.xlu0 %4282
  %4284 = vset.pattern.permute.xlu0 0
  %4285 = vperm.xlu0 %4284, %v4185
  %v4286 = vpop.permute.xlu0 %4285
  %4287 = vset.pattern.permute.xlu0 0
  %4288 = vperm.xlu0 %4287, %v4186
  %v4289 = vpop.permute.xlu0 %4288
  %4290 = vset.pattern.permute.xlu0 0
  %4291 = vperm.xlu0 %4290, %v4187
  %v4292 = vpop.permute.xlu0 %4291
  %4293 = vset.pattern.permute.xlu0 0
  %4294 = vperm.xlu0 %4293, %v4188
  %v4295 = vpop.permute.xlu0 %4294
  %4296 = vset.pattern.permute.xlu0 0
  %4297 = vperm.xlu0 %4296, %v4189
  %v4298 = vpop.permute.xlu0 %4297
  %4299 = vset.pattern.permute.xlu0 0
  %4300 = vperm.xlu0 %4299, %v4190
  %v4301 = vpop.permute.xlu0 %4300
  %4302 = vset.pattern.permute.xlu0 0
  %4303 = vperm.xlu0 %4302, %v4191
  %v4304 = vpop.permute.xlu0 %4303
  %4305 = vset.pattern.permute.xlu0 0
  %4306 = vperm.xlu0 %4305, %v4192
  %v4307 = vpop.permute.xlu0 %4306
  %4308 = vset.pattern.permute.xlu0 0
  %4309 = vperm.xlu0 %4308, %v4193
  %v4310 = vpop.permute.xlu0 %4309
  %4311 = vset.pattern.permute.xlu0 0
  %4312 = vperm.xlu0 %4311, %v4194
  %v4313 = vpop.permute.xlu0 %4312
  %4314 = vset.pattern.permute.xlu0 0
  %4315 = vperm.xlu0 %4314, %v4195
  %v4316 = vpop.permute.xlu0 %4315
  %4317 = vset.pattern.permute.xlu0 0
  %4318 = vperm.xlu0 %4317, %v4196
  %v4319 = vpop.permute.xlu0 %4318
  %4320 = vset.pattern.permute.xlu0 0
  %4321 = vperm.xlu0 %4320, %v4197
  %v4322 = vpop.permute.xlu0 %4321
  %4323 = vset.pattern.permute.xlu0 0
  %4324 = vperm.xlu0 %4323, %v4198
  %v4325 = vpop.permute.xlu0 %4324
  %4326 = vset.pattern.permute.xlu0 0
  %4327 = vperm.xlu0 %4326, %v4199
  %v4328 = vpop.permute.xlu0 %4327
  %4329 = vset.pattern.permute.xlu0 0
  %4330 = vperm.xlu0 %4329, %v4200
  %v4331 = vpop.permute.xlu0 %4330
  %4332 = vset.pattern.permute.xlu0 0
  %4333 = vperm.xlu0 %4332, %v4201
  %v4334 = vpop.permute.xlu0 %4333
  %4335 = vset.pattern.permute.xlu0 0
  %4336 = vperm.xlu0 %4335, %v4202
  %v4337 = vpop.permute.xlu0 %4336
  %4338 = vset.pattern.permute.xlu0 0
  %4339 = vperm.xlu0 %4338, %v4203
  %v4340 = vpop.permute.xlu0 %4339
  %4341 = vset.pattern.permute.xlu0 0
  %4342 = vperm.xlu0 %4341, %v4204
  %v4343 = vpop.permute.xlu0 %4342
  %4344 = vset.pattern.permute.xlu0 0
  %4345 = vperm.xlu0 %4344, %v4205
  %v4346 = vpop.permute.xlu0 %4345
  %4347 = vset.pattern.permute.xlu0 0
  %4348 = vperm.xlu0 %4347, %v4206
  %v4349 = vpop.permute.xlu0 %4348
  %4350 = vset.pattern.permute.xlu0 0
  %4351 = vperm.xlu0 %4350, %v4207
  %v4352 = vpop.permute.xlu0 %4351
  %4353 = vset.pattern.permute.xlu0 0
  %4354 = vperm.xlu0 %4353, %v4208
  %v4355 = vpop.permute.xlu0 %4354
  %vm4356 = vcmp.eq.s32.totalorder %v4211, 1
  %vm4357 = vcmp.eq.s32.totalorder %v4214, 1
  %vm4358 = vcmp.eq.s32.totalorder %v4217, 1
  %vm4359 = vcmp.eq.s32.totalorder %v4220, 1
  %vm4360 = vcmp.eq.s32.totalorder %v4223, 1
  %vm4361 = vcmp.eq.s32.totalorder %v4226, 1
  %vm4362 = vcmp.eq.s32.totalorder %v4229, 1
  %vm4363 = vcmp.eq.s32.totalorder %v4232, 1
  %vm4364 = vcmp.eq.s32.totalorder %v4235, 1
  %vm4365 = vcmp.eq.s32.totalorder %v4238, 1
  %vm4366 = vcmp.eq.s32.totalorder %v4241, 1
  %vm4367 = vcmp.eq.s32.totalorder %v4244, 1
  %vm4368 = vcmp.eq.s32.totalorder %v4247, 1
  %vm4369 = vcmp.eq.s32.totalorder %v4250, 1
  %vm4370 = vcmp.eq.s32.totalorder %v4253, 1
  %vm4371 = vcmp.eq.s32.totalorder %v4256, 1
  %vm4372 = vcmp.eq.s32.totalorder %v4259, 1
  %vm4373 = vcmp.eq.s32.totalorder %v4262, 1
  %vm4374 = vcmp.eq.s32.totalorder %v4265, 1
  %vm4375 = vcmp.eq.s32.totalorder %v4268, 1
  %vm4376 = vcmp.eq.s32.totalorder %v4271, 1
  %vm4377 = vcmp.eq.s32.totalorder %v4274, 1
  %vm4378 = vcmp.eq.s32.totalorder %v4277, 1
  %vm4379 = vcmp.eq.s32.totalorder %v4280, 1
  %vm4380 = vcmp.eq.s32.totalorder %v4283, 1
  %vm4381 = vcmp.eq.s32.totalorder %v4286, 1
  %vm4382 = vcmp.eq.s32.totalorder %v4289, 1
  %vm4383 = vcmp.eq.s32.totalorder %v4292, 1
  %vm4384 = vcmp.eq.s32.totalorder %v4295, 1
  %vm4385 = vcmp.eq.s32.totalorder %v4298, 1
  %vm4386 = vcmp.eq.s32.totalorder %v4301, 1
  %vm4387 = vcmp.eq.s32.totalorder %v4304, 1
  %vm4388 = vcmp.eq.s32.totalorder %v4307, 1
  %vm4389 = vcmp.eq.s32.totalorder %v4310, 1
  %vm4390 = vcmp.eq.s32.totalorder %v4313, 1
  %vm4391 = vcmp.eq.s32.totalorder %v4316, 1
  %vm4392 = vcmp.eq.s32.totalorder %v4319, 1
  %vm4393 = vcmp.eq.s32.totalorder %v4322, 1
  %vm4394 = vcmp.eq.s32.totalorder %v4325, 1
  %vm4395 = vcmp.eq.s32.totalorder %v4328, 1
  %vm4396 = vcmp.eq.s32.totalorder %v4331, 1
  %vm4397 = vcmp.eq.s32.totalorder %v4334, 1
  %vm4398 = vcmp.eq.s32.totalorder %v4337, 1
  %vm4399 = vcmp.eq.s32.totalorder %v4340, 1
  %vm4400 = vcmp.eq.s32.totalorder %v4343, 1
  %vm4401 = vcmp.eq.s32.totalorder %v4346, 1
  %vm4402 = vcmp.eq.s32.totalorder %v4349, 1
  %vm4403 = vcmp.eq.s32.totalorder %v4352, 1
  %vm4404 = vcmp.eq.s32.totalorder %v4355, 1
  %v4405 = vsel %vm4356, %v4111, 0.0
  %v4406 = vsel %vm4357, %v4112, 0.0
  %v4407 = vsel %vm4358, %v4113, 0.0
  %v4408 = vsel %vm4359, %v4114, 0.0
  %v4409 = vsel %vm4360, %v4115, 0.0
  %v4410 = vsel %vm4361, %v4116, 0.0
  %v4411 = vsel %vm4362, %v4117, 0.0
  %v4412 = vsel %vm4363, %v4118, 0.0
  %v4413 = vsel %vm4364, %v4119, 0.0
  %v4414 = vsel %vm4365, %v4120, 0.0
  %v4415 = vsel %vm4366, %v4121, 0.0
  %v4416 = vsel %vm4367, %v4122, 0.0
  %v4417 = vsel %vm4368, %v4123, 0.0
  %v4418 = vsel %vm4369, %v4124, 0.0
  %v4419 = vsel %vm4370, %v4125, 0.0
  %v4420 = vsel %vm4371, %v4126, 0.0
  %v4421 = vsel %vm4372, %v4127, 0.0
  %v4422 = vsel %vm4373, %v4128, 0.0
  %v4423 = vsel %vm4374, %v4129, 0.0
  %v4424 = vsel %vm4375, %v4130, 0.0
  %v4425 = vsel %vm4376, %v4131, 0.0
  %v4426 = vsel %vm4377, %v4132, 0.0
  %v4427 = vsel %vm4378, %v4133, 0.0
  %v4428 = vsel %vm4379, %v4134, 0.0
  %v4429 = vsel %vm4380, %v4135, 0.0
  %v4430 = vsel %vm4381, %v4136, 0.0
  %v4431 = vsel %vm4382, %v4137, 0.0
  %v4432 = vsel %vm4383, %v4138, 0.0
  %v4433 = vsel %vm4384, %v4139, 0.0
  %v4434 = vsel %vm4385, %v4140, 0.0
  %v4435 = vsel %vm4386, %v4141, 0.0
  %v4436 = vsel %vm4387, %v4142, 0.0
  %v4437 = vsel %vm4388, %v4143, 0.0
  %v4438 = vsel %vm4389, %v4144, 0.0
  %v4439 = vsel %vm4390, %v4145, 0.0
  %v4440 = vsel %vm4391, %v4146, 0.0
  %v4441 = vsel %vm4392, %v4147, 0.0
  %v4442 = vsel %vm4393, %v4148, 0.0
  %v4443 = vsel %vm4394, %v4149, 0.0
  %v4444 = vsel %vm4395, %v4150, 0.0
  %v4445 = vsel %vm4396, %v4151, 0.0
  %v4446 = vsel %vm4397, %v4152, 0.0
  %v4447 = vsel %vm4398, %v4153, 0.0
  %v4448 = vsel %vm4399, %v4154, 0.0
  %v4449 = vsel %vm4400, %v4155, 0.0
  %v4450 = vsel %vm4401, %v4156, 0.0
  %v4451 = vsel %vm4402, %v4157, 0.0
  %v4452 = vsel %vm4403, %v4158, 0.0
  %v4453 = vsel %vm4404, %v4159, 0.0
  %v4454 = vsel %vm52, %v4405, 0.0
  %v4455 = vsel %vm52, %v4406, 0.0
  %v4456 = vadd.f32 %v4454, %v4455
  %v4457 = vsel %vm52, %v4407, 0.0
  %v4458 = vadd.f32 %v4456, %v4457
  %v4459 = vsel %vm52, %v4408, 0.0
  %v4460 = vadd.f32 %v4458, %v4459
  %v4461 = vsel %vm52, %v4409, 0.0
  %v4462 = vadd.f32 %v4460, %v4461
  %v4463 = vsel %vm52, %v4410, 0.0
  %v4464 = vadd.f32 %v4462, %v4463
  %v4465 = vsel %vm52, %v4411, 0.0
  %v4466 = vadd.f32 %v4464, %v4465
  %v4467 = vsel %vm52, %v4412, 0.0
  %v4468 = vadd.f32 %v4466, %v4467
  %v4469 = vsel %vm52, %v4413, 0.0
  %v4470 = vadd.f32 %v4468, %v4469
  %v4471 = vsel %vm52, %v4414, 0.0
  %v4472 = vadd.f32 %v4470, %v4471
  %v4473 = vsel %vm52, %v4415, 0.0
  %v4474 = vadd.f32 %v4472, %v4473
  %v4475 = vsel %vm52, %v4416, 0.0
  %v4476 = vadd.f32 %v4474, %v4475
  %v4477 = vsel %vm52, %v4417, 0.0
  %v4478 = vadd.f32 %v4476, %v4477
  %v4479 = vsel %vm52, %v4418, 0.0
  %v4480 = vadd.f32 %v4478, %v4479
  %v4481 = vsel %vm52, %v4419, 0.0
  %v4482 = vadd.f32 %v4480, %v4481
  %v4483 = vsel %vm52, %v4420, 0.0
  %v4484 = vadd.f32 %v4482, %v4483
  %v4485 = vsel %vm52, %v4421, 0.0
  %v4486 = vadd.f32 %v4484, %v4485
  %v4487 = vsel %vm52, %v4422, 0.0
  %v4488 = vadd.f32 %v4486, %v4487
  %v4489 = vsel %vm52, %v4423, 0.0
  %v4490 = vadd.f32 %v4488, %v4489
  %v4491 = vsel %vm52, %v4424, 0.0
  %v4492 = vadd.f32 %v4490, %v4491
  %v4493 = vsel %vm52, %v4425, 0.0
  %v4494 = vadd.f32 %v4492, %v4493
  %v4495 = vsel %vm52, %v4426, 0.0
  %v4496 = vadd.f32 %v4494, %v4495
  %v4497 = vsel %vm52, %v4427, 0.0
  %v4498 = vadd.f32 %v4496, %v4497
  %v4499 = vsel %vm52, %v4428, 0.0
  %v4500 = vadd.f32 %v4498, %v4499
  %v4501 = vsel %vm52, %v4429, 0.0
  %v4502 = vadd.f32 %v4500, %v4501
  %v4503 = vsel %vm52, %v4430, 0.0
  %v4504 = vadd.f32 %v4502, %v4503
  %v4505 = vsel %vm52, %v4431, 0.0
  %v4506 = vadd.f32 %v4504, %v4505
  %v4507 = vsel %vm52, %v4432, 0.0
  %v4508 = vadd.f32 %v4506, %v4507
  %v4509 = vsel %vm52, %v4433, 0.0
  %v4510 = vadd.f32 %v4508, %v4509
  %v4511 = vsel %vm52, %v4434, 0.0
  %v4512 = vadd.f32 %v4510, %v4511
  %v4513 = vsel %vm52, %v4435, 0.0
  %v4514 = vadd.f32 %v4512, %v4513
  %v4515 = vsel %vm52, %v4436, 0.0
  %v4516 = vadd.f32 %v4514, %v4515
  %v4517 = vsel %vm52, %v4437, 0.0
  %v4518 = vadd.f32 %v4516, %v4517
  %v4519 = vsel %vm52, %v4438, 0.0
  %v4520 = vadd.f32 %v4518, %v4519
  %v4521 = vsel %vm52, %v4439, 0.0
  %v4522 = vadd.f32 %v4520, %v4521
  %v4523 = vsel %vm52, %v4440, 0.0
  %v4524 = vadd.f32 %v4522, %v4523
  %v4525 = vsel %vm52, %v4441, 0.0
  %v4526 = vadd.f32 %v4524, %v4525
  %v4527 = vsel %vm52, %v4442, 0.0
  %v4528 = vadd.f32 %v4526, %v4527
  %v4529 = vsel %vm52, %v4443, 0.0
  %v4530 = vadd.f32 %v4528, %v4529
  %v4531 = vsel %vm52, %v4444, 0.0
  %v4532 = vadd.f32 %v4530, %v4531
  %v4533 = vsel %vm52, %v4445, 0.0
  %v4534 = vadd.f32 %v4532, %v4533
  %v4535 = vsel %vm52, %v4446, 0.0
  %v4536 = vadd.f32 %v4534, %v4535
  %v4537 = vsel %vm52, %v4447, 0.0
  %v4538 = vadd.f32 %v4536, %v4537
  %v4539 = vsel %vm52, %v4448, 0.0
  %v4540 = vadd.f32 %v4538, %v4539
  %v4541 = vsel %vm52, %v4449, 0.0
  %v4542 = vadd.f32 %v4540, %v4541
  %v4543 = vsel %vm52, %v4450, 0.0
  %v4544 = vadd.f32 %v4542, %v4543
  %v4545 = vsel %vm52, %v4451, 0.0
  %v4546 = vadd.f32 %v4544, %v4545
  %v4547 = vsel %vm52, %v4452, 0.0
  %v4548 = vadd.f32 %v4546, %v4547
  %v4549 = vsel %vm52, %v4453, 0.0
  %v4550 = vadd.f32 %v4548, %v4549
  %v4551 = vrot.slane %v4550, 4
  %v4552 = vadd.f32 %v4550, %v4551
  %v4553 = vrot.slane %v4552, 2
  %v4554 = vadd.f32 %v4552, %v4553
  %v4555 = vrot.slane %v4554, 1
  %v4556 = vadd.f32 %v4554, %v4555
  %v4557 = vmul.f32 %v4556, 0.0034722222
  %v4558 = vsub.f32 %v4111, %v4557
  %v4559 = vsub.f32 %v4112, %v4557
  %v4560 = vsub.f32 %v4113, %v4557
  %v4561 = vsub.f32 %v4114, %v4557
  %v4562 = vsub.f32 %v4115, %v4557
  %v4563 = vsub.f32 %v4116, %v4557
  %v4564 = vsub.f32 %v4117, %v4557
  %v4565 = vsub.f32 %v4118, %v4557
  %v4566 = vsub.f32 %v4119, %v4557
  %v4567 = vsub.f32 %v4120, %v4557
  %v4568 = vsub.f32 %v4121, %v4557
  %v4569 = vsub.f32 %v4122, %v4557
  %v4570 = vsub.f32 %v4123, %v4557
  %v4571 = vsub.f32 %v4124, %v4557
  %v4572 = vsub.f32 %v4125, %v4557
  %v4573 = vsub.f32 %v4126, %v4557
  %v4574 = vsub.f32 %v4127, %v4557
  %v4575 = vsub.f32 %v4128, %v4557
  %v4576 = vsub.f32 %v4129, %v4557
  %v4577 = vsub.f32 %v4130, %v4557
  %v4578 = vsub.f32 %v4131, %v4557
  %v4579 = vsub.f32 %v4132, %v4557
  %v4580 = vsub.f32 %v4133, %v4557
  %v4581 = vsub.f32 %v4134, %v4557
  %v4582 = vsub.f32 %v4135, %v4557
  %v4583 = vsub.f32 %v4136, %v4557
  %v4584 = vsub.f32 %v4137, %v4557
  %v4585 = vsub.f32 %v4138, %v4557
  %v4586 = vsub.f32 %v4139, %v4557
  %v4587 = vsub.f32 %v4140, %v4557
  %v4588 = vsub.f32 %v4141, %v4557
  %v4589 = vsub.f32 %v4142, %v4557
  %v4590 = vsub.f32 %v4143, %v4557
  %v4591 = vsub.f32 %v4144, %v4557
  %v4592 = vsub.f32 %v4145, %v4557
  %v4593 = vsub.f32 %v4146, %v4557
  %v4594 = vsub.f32 %v4147, %v4557
  %v4595 = vsub.f32 %v4148, %v4557
  %v4596 = vsub.f32 %v4149, %v4557
  %v4597 = vsub.f32 %v4150, %v4557
  %v4598 = vsub.f32 %v4151, %v4557
  %v4599 = vsub.f32 %v4152, %v4557
  %v4600 = vsub.f32 %v4153, %v4557
  %v4601 = vsub.f32 %v4154, %v4557
  %v4602 = vsub.f32 %v4155, %v4557
  %v4603 = vsub.f32 %v4156, %v4557
  %v4604 = vsub.f32 %v4157, %v4557
  %v4605 = vsub.f32 %v4158, %v4557
  %v4606 = vsub.f32 %v4159, %v4557
  %v4607 = vmul.f32 %v4558, %v4558
  %v4608 = vmul.f32 %v4559, %v4559
  %v4609 = vmul.f32 %v4560, %v4560
  %v4610 = vmul.f32 %v4561, %v4561
  %v4611 = vmul.f32 %v4562, %v4562
  %v4612 = vmul.f32 %v4563, %v4563
  %v4613 = vmul.f32 %v4564, %v4564
  %v4614 = vmul.f32 %v4565, %v4565
  %v4615 = vmul.f32 %v4566, %v4566
  %v4616 = vmul.f32 %v4567, %v4567
  %v4617 = vmul.f32 %v4568, %v4568
  %v4618 = vmul.f32 %v4569, %v4569
  %v4619 = vmul.f32 %v4570, %v4570
  %v4620 = vmul.f32 %v4571, %v4571
  %v4621 = vmul.f32 %v4572, %v4572
  %v4622 = vmul.f32 %v4573, %v4573
  %v4623 = vmul.f32 %v4574, %v4574
  %v4624 = vmul.f32 %v4575, %v4575
  %v4625 = vmul.f32 %v4576, %v4576
  %v4626 = vmul.f32 %v4577, %v4577
  %v4627 = vmul.f32 %v4578, %v4578
  %v4628 = vmul.f32 %v4579, %v4579
  %v4629 = vmul.f32 %v4580, %v4580
  %v4630 = vmul.f32 %v4581, %v4581
  %v4631 = vmul.f32 %v4582, %v4582
  %v4632 = vmul.f32 %v4583, %v4583
  %v4633 = vmul.f32 %v4584, %v4584
  %v4634 = vmul.f32 %v4585, %v4585
  %v4635 = vmul.f32 %v4586, %v4586
  %v4636 = vmul.f32 %v4587, %v4587
  %v4637 = vmul.f32 %v4588, %v4588
  %v4638 = vmul.f32 %v4589, %v4589
  %v4639 = vmul.f32 %v4590, %v4590
  %v4640 = vmul.f32 %v4591, %v4591
  %v4641 = vmul.f32 %v4592, %v4592
  %v4642 = vmul.f32 %v4593, %v4593
  %v4643 = vmul.f32 %v4594, %v4594
  %v4644 = vmul.f32 %v4595, %v4595
  %v4645 = vmul.f32 %v4596, %v4596
  %v4646 = vmul.f32 %v4597, %v4597
  %v4647 = vmul.f32 %v4598, %v4598
  %v4648 = vmul.f32 %v4599, %v4599
  %v4649 = vmul.f32 %v4600, %v4600
  %v4650 = vmul.f32 %v4601, %v4601
  %v4651 = vmul.f32 %v4602, %v4602
  %v4652 = vmul.f32 %v4603, %v4603
  %v4653 = vmul.f32 %v4604, %v4604
  %v4654 = vmul.f32 %v4605, %v4605
  %v4655 = vmul.f32 %v4606, %v4606
  %v4656 = vsel %vm4356, %v4607, 0.0
  %v4657 = vsel %vm4357, %v4608, 0.0
  %v4658 = vsel %vm4358, %v4609, 0.0
  %v4659 = vsel %vm4359, %v4610, 0.0
  %v4660 = vsel %vm4360, %v4611, 0.0
  %v4661 = vsel %vm4361, %v4612, 0.0
  %v4662 = vsel %vm4362, %v4613, 0.0
  %v4663 = vsel %vm4363, %v4614, 0.0
  %v4664 = vsel %vm4364, %v4615, 0.0
  %v4665 = vsel %vm4365, %v4616, 0.0
  %v4666 = vsel %vm4366, %v4617, 0.0
  %v4667 = vsel %vm4367, %v4618, 0.0
  %v4668 = vsel %vm4368, %v4619, 0.0
  %v4669 = vsel %vm4369, %v4620, 0.0
  %v4670 = vsel %vm4370, %v4621, 0.0
  %v4671 = vsel %vm4371, %v4622, 0.0
  %v4672 = vsel %vm4372, %v4623, 0.0
  %v4673 = vsel %vm4373, %v4624, 0.0
  %v4674 = vsel %vm4374, %v4625, 0.0
  %v4675 = vsel %vm4375, %v4626, 0.0
  %v4676 = vsel %vm4376, %v4627, 0.0
  %v4677 = vsel %vm4377, %v4628, 0.0
  %v4678 = vsel %vm4378, %v4629, 0.0
  %v4679 = vsel %vm4379, %v4630, 0.0
  %v4680 = vsel %vm4380, %v4631, 0.0
  %v4681 = vsel %vm4381, %v4632, 0.0
  %v4682 = vsel %vm4382, %v4633, 0.0
  %v4683 = vsel %vm4383, %v4634, 0.0
  %v4684 = vsel %vm4384, %v4635, 0.0
  %v4685 = vsel %vm4385, %v4636, 0.0
  %v4686 = vsel %vm4386, %v4637, 0.0
  %v4687 = vsel %vm4387, %v4638, 0.0
  %v4688 = vsel %vm4388, %v4639, 0.0
  %v4689 = vsel %vm4389, %v4640, 0.0
  %v4690 = vsel %vm4390, %v4641, 0.0
  %v4691 = vsel %vm4391, %v4642, 0.0
  %v4692 = vsel %vm4392, %v4643, 0.0
  %v4693 = vsel %vm4393, %v4644, 0.0
  %v4694 = vsel %vm4394, %v4645, 0.0
  %v4695 = vsel %vm4395, %v4646, 0.0
  %v4696 = vsel %vm4396, %v4647, 0.0
  %v4697 = vsel %vm4397, %v4648, 0.0
  %v4698 = vsel %vm4398, %v4649, 0.0
  %v4699 = vsel %vm4399, %v4650, 0.0
  %v4700 = vsel %vm4400, %v4651, 0.0
  %v4701 = vsel %vm4401, %v4652, 0.0
  %v4702 = vsel %vm4402, %v4653, 0.0
  %v4703 = vsel %vm4403, %v4654, 0.0
  %v4704 = vsel %vm4404, %v4655, 0.0
  %v4705 = vsel %vm52, %v4656, 0.0
  %v4706 = vsel %vm52, %v4657, 0.0
  %v4707 = vadd.f32 %v4705, %v4706
  %v4708 = vsel %vm52, %v4658, 0.0
  %v4709 = vadd.f32 %v4707, %v4708
  %v4710 = vsel %vm52, %v4659, 0.0
  %v4711 = vadd.f32 %v4709, %v4710
  %v4712 = vsel %vm52, %v4660, 0.0
  %v4713 = vadd.f32 %v4711, %v4712
  %v4714 = vsel %vm52, %v4661, 0.0
  %v4715 = vadd.f32 %v4713, %v4714
  %v4716 = vsel %vm52, %v4662, 0.0
  %v4717 = vadd.f32 %v4715, %v4716
  %v4718 = vsel %vm52, %v4663, 0.0
  %v4719 = vadd.f32 %v4717, %v4718
  %v4720 = vsel %vm52, %v4664, 0.0
  %v4721 = vadd.f32 %v4719, %v4720
  %v4722 = vsel %vm52, %v4665, 0.0
  %v4723 = vadd.f32 %v4721, %v4722
  %v4724 = vsel %vm52, %v4666, 0.0
  %v4725 = vadd.f32 %v4723, %v4724
  %v4726 = vsel %vm52, %v4667, 0.0
  %v4727 = vadd.f32 %v4725, %v4726
  %v4728 = vsel %vm52, %v4668, 0.0
  %v4729 = vadd.f32 %v4727, %v4728
  %v4730 = vsel %vm52, %v4669, 0.0
  %v4731 = vadd.f32 %v4729, %v4730
  %v4732 = vsel %vm52, %v4670, 0.0
  %v4733 = vadd.f32 %v4731, %v4732
  %v4734 = vsel %vm52, %v4671, 0.0
  %v4735 = vadd.f32 %v4733, %v4734
  %v4736 = vsel %vm52, %v4672, 0.0
  %v4737 = vadd.f32 %v4735, %v4736
  %v4738 = vsel %vm52, %v4673, 0.0
  %v4739 = vadd.f32 %v4737, %v4738
  %v4740 = vsel %vm52, %v4674, 0.0
  %v4741 = vadd.f32 %v4739, %v4740
  %v4742 = vsel %vm52, %v4675, 0.0
  %v4743 = vadd.f32 %v4741, %v4742
  %v4744 = vsel %vm52, %v4676, 0.0
  %v4745 = vadd.f32 %v4743, %v4744
  %v4746 = vsel %vm52, %v4677, 0.0
  %v4747 = vadd.f32 %v4745, %v4746
  %v4748 = vsel %vm52, %v4678, 0.0
  %v4749 = vadd.f32 %v4747, %v4748
  %v4750 = vsel %vm52, %v4679, 0.0
  %v4751 = vadd.f32 %v4749, %v4750
  %v4752 = vsel %vm52, %v4680, 0.0
  %v4753 = vadd.f32 %v4751, %v4752
  %v4754 = vsel %vm52, %v4681, 0.0
  %v4755 = vadd.f32 %v4753, %v4754
  %v4756 = vsel %vm52, %v4682, 0.0
  %v4757 = vadd.f32 %v4755, %v4756
  %v4758 = vsel %vm52, %v4683, 0.0
  %v4759 = vadd.f32 %v4757, %v4758
  %v4760 = vsel %vm52, %v4684, 0.0
  %v4761 = vadd.f32 %v4759, %v4760
  %v4762 = vsel %vm52, %v4685, 0.0
  %v4763 = vadd.f32 %v4761, %v4762
  %v4764 = vsel %vm52, %v4686, 0.0
  %v4765 = vadd.f32 %v4763, %v4764
  %v4766 = vsel %vm52, %v4687, 0.0
  %v4767 = vadd.f32 %v4765, %v4766
  %v4768 = vsel %vm52, %v4688, 0.0
  %v4769 = vadd.f32 %v4767, %v4768
  %v4770 = vsel %vm52, %v4689, 0.0
  %v4771 = vadd.f32 %v4769, %v4770
  %v4772 = vsel %vm52, %v4690, 0.0
  %v4773 = vadd.f32 %v4771, %v4772
  %v4774 = vsel %vm52, %v4691, 0.0
  %v4775 = vadd.f32 %v4773, %v4774
  %v4776 = vsel %vm52, %v4692, 0.0
  %v4777 = vadd.f32 %v4775, %v4776
  %v4778 = vsel %vm52, %v4693, 0.0
  %v4779 = vadd.f32 %v4777, %v4778
  %v4780 = vsel %vm52, %v4694, 0.0
  %v4781 = vadd.f32 %v4779, %v4780
  %v4782 = vsel %vm52, %v4695, 0.0
  %v4783 = vadd.f32 %v4781, %v4782
  %v4784 = vsel %vm52, %v4696, 0.0
  %v4785 = vadd.f32 %v4783, %v4784
  %v4786 = vsel %vm52, %v4697, 0.0
  %v4787 = vadd.f32 %v4785, %v4786
  %v4788 = vsel %vm52, %v4698, 0.0
  %v4789 = vadd.f32 %v4787, %v4788
  %v4790 = vsel %vm52, %v4699, 0.0
  %v4791 = vadd.f32 %v4789, %v4790
  %v4792 = vsel %vm52, %v4700, 0.0
  %v4793 = vadd.f32 %v4791, %v4792
  %v4794 = vsel %vm52, %v4701, 0.0
  %v4795 = vadd.f32 %v4793, %v4794
  %v4796 = vsel %vm52, %v4702, 0.0
  %v4797 = vadd.f32 %v4795, %v4796
  %v4798 = vsel %vm52, %v4703, 0.0
  %v4799 = vadd.f32 %v4797, %v4798
  %v4800 = vsel %vm52, %v4704, 0.0
  %v4801 = vadd.f32 %v4799, %v4800
  %v4802 = vrot.slane %v4801, 4
  %v4803 = vadd.f32 %v4801, %v4802
  %v4804 = vrot.slane %v4803, 2
  %v4805 = vadd.f32 %v4803, %v4804
  %v4806 = vrot.slane %v4805, 1
  %v4807 = vadd.f32 %v4805, %v4806
  %v4808 = vmul.f32 %v4807, 0.0034722222
  %v4809 = vadd.f32 %v4808, 1e-05
  %v4810 = vrsqrt.pop %v4809
  %v4811 = vmul.f32 %v4810, %v4809
  %v4812 = vmul.f32 %v4811, %v4810
  %v4813 = vmul.f32 0.5, %v4812
  %v4814 = vsub.f32 1.5, %v4813
  %v4815 = vmul.f32 %v4810, %v4814
  %vm4816 = vweird.f32 %v4809
  %vm4817 = vweird.f32 %v4810
  %vm4818 = vmor %vm4816, %vm4817
  %v4819 = vsel %vm4818, %v4810, %v4815
  %v4820 = vmul.f32 %v4558, %v4819
  %v4821 = vmul.f32 %v4559, %v4819
  %v4822 = vmul.f32 %v4560, %v4819
  %v4823 = vmul.f32 %v4561, %v4819
  %v4824 = vmul.f32 %v4562, %v4819
  %v4825 = vmul.f32 %v4563, %v4819
  %v4826 = vmul.f32 %v4564, %v4819
  %v4827 = vmul.f32 %v4565, %v4819
  %v4828 = vmul.f32 %v4566, %v4819
  %v4829 = vmul.f32 %v4567, %v4819
  %v4830 = vmul.f32 %v4568, %v4819
  %v4831 = vmul.f32 %v4569, %v4819
  %v4832 = vmul.f32 %v4570, %v4819
  %v4833 = vmul.f32 %v4571, %v4819
  %v4834 = vmul.f32 %v4572, %v4819
  %v4835 = vmul.f32 %v4573, %v4819
  %v4836 = vmul.f32 %v4574, %v4819
  %v4837 = vmul.f32 %v4575, %v4819
  %v4838 = vmul.f32 %v4576, %v4819
  %v4839 = vmul.f32 %v4577, %v4819
  %v4840 = vmul.f32 %v4578, %v4819
  %v4841 = vmul.f32 %v4579, %v4819
  %v4842 = vmul.f32 %v4580, %v4819
  %v4843 = vmul.f32 %v4581, %v4819
  %v4844 = vmul.f32 %v4582, %v4819
  %v4845 = vmul.f32 %v4583, %v4819
  %v4846 = vmul.f32 %v4584, %v4819
  %v4847 = vmul.f32 %v4585, %v4819
  %v4848 = vmul.f32 %v4586, %v4819
  %v4849 = vmul.f32 %v4587, %v4819
  %v4850 = vmul.f32 %v4588, %v4819
  %v4851 = vmul.f32 %v4589, %v4819
  %v4852 = vmul.f32 %v4590, %v4819
  %v4853 = vmul.f32 %v4591, %v4819
  %v4854 = vmul.f32 %v4592, %v4819
  %v4855 = vmul.f32 %v4593, %v4819
  %v4856 = vmul.f32 %v4594, %v4819
  %v4857 = vmul.f32 %v4595, %v4819
  %v4858 = vmul.f32 %v4596, %v4819
  %v4859 = vmul.f32 %v4597, %v4819
  %v4860 = vmul.f32 %v4598, %v4819
  %v4861 = vmul.f32 %v4599, %v4819
  %v4862 = vmul.f32 %v4600, %v4819
  %v4863 = vmul.f32 %v4601, %v4819
  %v4864 = vmul.f32 %v4602, %v4819
  %v4865 = vmul.f32 %v4603, %v4819
  %v4866 = vmul.f32 %v4604, %v4819
  %v4867 = vmul.f32 %v4605, %v4819
  %v4868 = vmul.f32 %v4606, %v4819
  %v4869 = vld [vmem:[%s5] sm:$0x1]
  %v4871 = vperm.slane %v4869, 0
  %v4873 = vmul.f32 %v4820, %v4871
  %v4874 = vmul.f32 %v4821, %v4871
  %v4875 = vmul.f32 %v4822, %v4871
  %v4876 = vmul.f32 %v4823, %v4871
  %v4877 = vmul.f32 %v4824, %v4871
  %v4878 = vmul.f32 %v4825, %v4871
  %v4879 = vmul.f32 %v4826, %v4871
  %v4880 = vmul.f32 %v4827, %v4871
  %v4881 = vmul.f32 %v4828, %v4871
  %v4882 = vmul.f32 %v4829, %v4871
  %v4883 = vmul.f32 %v4830, %v4871
  %v4884 = vmul.f32 %v4831, %v4871
  %v4885 = vmul.f32 %v4832, %v4871
  %v4886 = vmul.f32 %v4833, %v4871
  %v4887 = vmul.f32 %v4834, %v4871
  %v4888 = vmul.f32 %v4835, %v4871
  %v4889 = vmul.f32 %v4836, %v4871
  %v4890 = vmul.f32 %v4837, %v4871
  %v4891 = vmul.f32 %v4838, %v4871
  %v4892 = vmul.f32 %v4839, %v4871
  %v4893 = vmul.f32 %v4840, %v4871
  %v4894 = vmul.f32 %v4841, %v4871
  %v4895 = vmul.f32 %v4842, %v4871
  %v4896 = vmul.f32 %v4843, %v4871
  %v4897 = vmul.f32 %v4844, %v4871
  %v4898 = vmul.f32 %v4845, %v4871
  %v4899 = vmul.f32 %v4846, %v4871
  %v4900 = vmul.f32 %v4847, %v4871
  %v4901 = vmul.f32 %v4848, %v4871
  %v4902 = vmul.f32 %v4849, %v4871
  %v4903 = vmul.f32 %v4850, %v4871
  %v4904 = vmul.f32 %v4851, %v4871
  %v4905 = vmul.f32 %v4852, %v4871
  %v4906 = vmul.f32 %v4853, %v4871
  %v4907 = vmul.f32 %v4854, %v4871
  %v4908 = vmul.f32 %v4855, %v4871
  %v4909 = vmul.f32 %v4856, %v4871
  %v4910 = vmul.f32 %v4857, %v4871
  %v4911 = vmul.f32 %v4858, %v4871
  %v4912 = vmul.f32 %v4859, %v4871
  %v4913 = vmul.f32 %v4860, %v4871
  %v4914 = vmul.f32 %v4861, %v4871
  %v4915 = vmul.f32 %v4862, %v4871
  %v4916 = vmul.f32 %v4863, %v4871
  %v4917 = vmul.f32 %v4864, %v4871
  %v4918 = vmul.f32 %v4865, %v4871
  %v4919 = vmul.f32 %v4866, %v4871
  %v4920 = vmul.f32 %v4867, %v4871
  %v4921 = vmul.f32 %v4868, %v4871
  %v4922 = vld [vmem:[%s6] sm:$0x1]
  %v4924 = vperm.slane %v4922, 0
  %v4926 = vadd.f32 %v4873, %v4924
  %v4927 = vadd.f32 %v4874, %v4924
  %v4928 = vadd.f32 %v4875, %v4924
  %v4929 = vadd.f32 %v4876, %v4924
  %v4930 = vadd.f32 %v4877, %v4924
  %v4931 = vadd.f32 %v4878, %v4924
  %v4932 = vadd.f32 %v4879, %v4924
  %v4933 = vadd.f32 %v4880, %v4924
  %v4934 = vadd.f32 %v4881, %v4924
  %v4935 = vadd.f32 %v4882, %v4924
  %v4936 = vadd.f32 %v4883, %v4924
  %v4937 = vadd.f32 %v4884, %v4924
  %v4938 = vadd.f32 %v4885, %v4924
  %v4939 = vadd.f32 %v4886, %v4924
  %v4940 = vadd.f32 %v4887, %v4924
  %v4941 = vadd.f32 %v4888, %v4924
  %v4942 = vadd.f32 %v4889, %v4924
  %v4943 = vadd.f32 %v4890, %v4924
  %v4944 = vadd.f32 %v4891, %v4924
  %v4945 = vadd.f32 %v4892, %v4924
  %v4946 = vadd.f32 %v4893, %v4924
  %v4947 = vadd.f32 %v4894, %v4924
  %v4948 = vadd.f32 %v4895, %v4924
  %v4949 = vadd.f32 %v4896, %v4924
  %v4950 = vadd.f32 %v4897, %v4924
  %v4951 = vadd.f32 %v4898, %v4924
  %v4952 = vadd.f32 %v4899, %v4924
  %v4953 = vadd.f32 %v4900, %v4924
  %v4954 = vadd.f32 %v4901, %v4924
  %v4955 = vadd.f32 %v4902, %v4924
  %v4956 = vadd.f32 %v4903, %v4924
  %v4957 = vadd.f32 %v4904, %v4924
  %v4958 = vadd.f32 %v4905, %v4924
  %v4959 = vadd.f32 %v4906, %v4924
  %v4960 = vadd.f32 %v4907, %v4924
  %v4961 = vadd.f32 %v4908, %v4924
  %v4962 = vadd.f32 %v4909, %v4924
  %v4963 = vadd.f32 %v4910, %v4924
  %v4964 = vadd.f32 %v4911, %v4924
  %v4965 = vadd.f32 %v4912, %v4924
  %v4966 = vadd.f32 %v4913, %v4924
  %v4967 = vadd.f32 %v4914, %v4924
  %v4968 = vadd.f32 %v4915, %v4924
  %v4969 = vadd.f32 %v4916, %v4924
  %v4970 = vadd.f32 %v4917, %v4924
  %v4971 = vadd.f32 %v4918, %v4924
  %v4972 = vadd.f32 %v4919, %v4924
  %v4973 = vadd.f32 %v4920, %v4924
  %v4974 = vadd.f32 %v4921, %v4924
  %v4975 = vmax.f32 %v4926, 0.0
  %v4976 = vmax.f32 %v4927, 0.0
  %v4977 = vmax.f32 %v4928, 0.0
  %v4978 = vmax.f32 %v4929, 0.0
  %v4979 = vmax.f32 %v4930, 0.0
  %v4980 = vmax.f32 %v4931, 0.0
  %v4981 = vmax.f32 %v4932, 0.0
  %v4982 = vmax.f32 %v4933, 0.0
  %v4983 = vmax.f32 %v4934, 0.0
  %v4984 = vmax.f32 %v4935, 0.0
  %v4985 = vmax.f32 %v4936, 0.0
  %v4986 = vmax.f32 %v4937, 0.0
  %v4987 = vmax.f32 %v4938, 0.0
  %v4988 = vmax.f32 %v4939, 0.0
  %v4989 = vmax.f32 %v4940, 0.0
  %v4990 = vmax.f32 %v4941, 0.0
  %v4991 = vmax.f32 %v4942, 0.0
  %v4992 = vmax.f32 %v4943, 0.0
  %v4993 = vmax.f32 %v4944, 0.0
  %v4994 = vmax.f32 %v4945, 0.0
  %v4995 = vmax.f32 %v4946, 0.0
  %v4996 = vmax.f32 %v4947, 0.0
  %v4997 = vmax.f32 %v4948, 0.0
  %v4998 = vmax.f32 %v4949, 0.0
  %v4999 = vmax.f32 %v4950, 0.0
  %v5000 = vmax.f32 %v4951, 0.0
  %v5001 = vmax.f32 %v4952, 0.0
  %v5002 = vmax.f32 %v4953, 0.0
  %v5003 = vmax.f32 %v4954, 0.0
  %v5004 = vmax.f32 %v4955, 0.0
  %v5005 = vmax.f32 %v4956, 0.0
  %v5006 = vmax.f32 %v4957, 0.0
  %v5007 = vmax.f32 %v4958, 0.0
  %v5008 = vmax.f32 %v4959, 0.0
  %v5009 = vmax.f32 %v4960, 0.0
  %v5010 = vmax.f32 %v4961, 0.0
  %v5011 = vmax.f32 %v4962, 0.0
  %v5012 = vmax.f32 %v4963, 0.0
  %v5013 = vmax.f32 %v4964, 0.0
  %v5014 = vmax.f32 %v4965, 0.0
  %v5015 = vmax.f32 %v4966, 0.0
  %v5016 = vmax.f32 %v4967, 0.0
  %v5017 = vmax.f32 %v4968, 0.0
  %v5018 = vmax.f32 %v4969, 0.0
  %v5019 = vmax.f32 %v4970, 0.0
  %v5020 = vmax.f32 %v4971, 0.0
  %v5021 = vmax.f32 %v4972, 0.0
  %v5022 = vmax.f32 %v4973, 0.0
  %v5023 = vmax.f32 %v4974, 0.0
  %5024 = vst.msk [vmem:[#allocation2] sm:$0xff] %vm52, %v4975
  %5025 = vst.msk [vmem:[#allocation2 + $0x8] sm:$0xff] %vm52, %v4976
  %5026 = vst.msk [vmem:[#allocation2 + $0x10] sm:$0xff] %vm52, %v4977
  %5027 = vst.msk [vmem:[#allocation2 + $0x18] sm:$0xff] %vm52, %v4978
  %5028 = vst.msk [vmem:[#allocation2 + $0x20] sm:$0xff] %vm52, %v4979
  %5029 = vst.msk [vmem:[#allocation2 + $0x28] sm:$0xff] %vm52, %v4980
  %5030 = vst.msk [vmem:[#allocation2 + $0x30] sm:$0xff] %vm52, %v4981
  %5031 = vst.msk [vmem:[#allocation2 + $0x38] sm:$0xff] %vm52, %v4982
  %5032 = vst.msk [vmem:[#allocation2 + $0x40] sm:$0xff] %vm52, %v4983
  %5033 = vst.msk [vmem:[#allocation2 + $0x48] sm:$0xff] %vm52, %v4984
  %5034 = vst.msk [vmem:[#allocation2 + $0x50] sm:$0xff] %vm52, %v4985
  %5035 = vst.msk [vmem:[#allocation2 + $0x58] sm:$0xff] %vm52, %v4986
  %5036 = vst.msk [vmem:[#allocation2 + $0x60] sm:$0xff] %vm52, %v4987
  %5037 = vst.msk [vmem:[#allocation2 + $0x68] sm:$0xff] %vm52, %v4988
  %5038 = vst.msk [vmem:[#allocation2 + $0x70] sm:$0xff] %vm52, %v4989
  %5039 = vst.msk [vmem:[#allocation2 + $0x78] sm:$0xff] %vm52, %v4990
  %5040 = vst.msk [vmem:[#allocation2 + $0x80] sm:$0xff] %vm52, %v4991
  %5041 = vst.msk [vmem:[#allocation2 + $0x88] sm:$0xff] %vm52, %v4992
  %5042 = vst.msk [vmem:[#allocation2 + $0x90] sm:$0xff] %vm52, %v4993
  %5043 = vst.msk [vmem:[#allocation2 + $0x98] sm:$0xff] %vm52, %v4994
  %5044 = vst.msk [vmem:[#allocation2 + $0xa0] sm:$0xff] %vm52, %v4995
  %5045 = vst.msk [vmem:[#allocation2 + $0xa8] sm:$0xff] %vm52, %v4996
  %5046 = vst.msk [vmem:[#allocation2 + $0xb0] sm:$0xff] %vm52, %v4997
  %5047 = vst.msk [vmem:[#allocation2 + $0xb8] sm:$0xff] %vm52, %v4998
  %5048 = vst.msk [vmem:[#allocation2 + $0xc0] sm:$0xff] %vm52, %v4999
  %5049 = vst.msk [vmem:[#allocation2 + $0xc8] sm:$0xff] %vm52, %v5000
  %5050 = vst.msk [vmem:[#allocation2 + $0xd0] sm:$0xff] %vm52, %v5001
  %5051 = vst.msk [vmem:[#allocation2 + $0xd8] sm:$0xff] %vm52, %v5002
  %5052 = vst.msk [vmem:[#allocation2 + $0xe0] sm:$0xff] %vm52, %v5003
  %5053 = vst.msk [vmem:[#allocation2 + $0xe8] sm:$0xff] %vm52, %v5004
  %5054 = vst.msk [vmem:[#allocation2 + $0xf0] sm:$0xff] %vm52, %v5005
  %5055 = vst.msk [vmem:[#allocation2 + $0xf8] sm:$0xff] %vm52, %v5006
  %5056 = vst.msk [vmem:[#allocation2 + $0x100] sm:$0xff] %vm52, %v5007
  %5057 = vst.msk [vmem:[#allocation2 + $0x108] sm:$0xff] %vm52, %v5008
  %5058 = vst.msk [vmem:[#allocation2 + $0x110] sm:$0xff] %vm52, %v5009
  %5059 = vst.msk [vmem:[#allocation2 + $0x118] sm:$0xff] %vm52, %v5010
  %5060 = vst.msk [vmem:[#allocation2 + $0x120] sm:$0xff] %vm52, %v5011
  %5061 = vst.msk [vmem:[#allocation2 + $0x128] sm:$0xff] %vm52, %v5012
  %5062 = vst.msk [vmem:[#allocation2 + $0x130] sm:$0xff] %vm52, %v5013
  %5063 = vst.msk [vmem:[#allocation2 + $0x138] sm:$0xff] %vm52, %v5014
  %5064 = vst.msk [vmem:[#allocation2 + $0x140] sm:$0xff] %vm52, %v5015
  %5065 = vst.msk [vmem:[#allocation2 + $0x148] sm:$0xff] %vm52, %v5016
  %5066 = vst.msk [vmem:[#allocation2 + $0x150] sm:$0xff] %vm52, %v5017
  %5067 = vst.msk [vmem:[#allocation2 + $0x158] sm:$0xff] %vm52, %v5018
  %5068 = vst.msk [vmem:[#allocation2 + $0x160] sm:$0xff] %vm52, %v5019
  %5069 = vst.msk [vmem:[#allocation2 + $0x168] sm:$0xff] %vm52, %v5020
  %5070 = vst.msk [vmem:[#allocation2 + $0x170] sm:$0xff] %vm52, %v5021
  %5071 = vst.msk [vmem:[#allocation2 + $0x178] sm:$0xff] %vm52, %v5022
  %5072 = vst.msk [vmem:[#allocation2 + $0x180] sm:$0xff] %vm52, %v5023
  %v5073 = vld [vmem:[#allocation2] sm:$0xff]
  %v5074 = vld [vmem:[#allocation2 + $0x8] sm:$0xff]
  %v5075 = vld [vmem:[#allocation2 + $0x10] sm:$0xff]
  %v5076 = vld [vmem:[#allocation2 + $0x18] sm:$0xff]
  %v5077 = vld [vmem:[#allocation2 + $0x20] sm:$0xff]
  %v5078 = vld [vmem:[#allocation2 + $0x28] sm:$0xff]
  %v5079 = vld [vmem:[#allocation2 + $0x30] sm:$0xff]
  %v5080 = vld [vmem:[#allocation2 + $0x38] sm:$0xff]
  %v5081 = vld [vmem:[#allocation2 + $0x40] sm:$0xff]
  %v5082 = vld [vmem:[#allocation2 + $0x48] sm:$0xff]
  %v5083 = vld [vmem:[#allocation2 + $0x50] sm:$0xff]
  %v5084 = vld [vmem:[#allocation2 + $0x58] sm:$0xff]
  %v5085 = vld [vmem:[#allocation2 + $0x60] sm:$0xff]
  %v5086 = vld [vmem:[#allocation2 + $0x68] sm:$0xff]
  %v5087 = vld [vmem:[#allocation2 + $0x70] sm:$0xff]
  %v5088 = vld [vmem:[#allocation2 + $0x78] sm:$0xff]
  %v5089 = vld [vmem:[#allocation2 + $0x80] sm:$0xff]
  %v5090 = vld [vmem:[#allocation2 + $0x88] sm:$0xff]
  %v5091 = vld [vmem:[#allocation2 + $0x90] sm:$0xff]
  %v5092 = vld [vmem:[#allocation2 + $0x98] sm:$0xff]
  %v5093 = vld [vmem:[#allocation2 + $0xa0] sm:$0xff]
  %v5094 = vld [vmem:[#allocation2 + $0xa8] sm:$0xff]
  %v5095 = vld [vmem:[#allocation2 + $0xb0] sm:$0xff]
  %v5096 = vld [vmem:[#allocation2 + $0xb8] sm:$0xff]
  %v5097 = vld [vmem:[#allocation2 + $0xc0] sm:$0xff]
  %v5098 = vld [vmem:[#allocation2 + $0xc8] sm:$0xff]
  %v5099 = vld [vmem:[#allocation2 + $0xd0] sm:$0xff]
  %v5100 = vld [vmem:[#allocation2 + $0xd8] sm:$0xff]
  %v5101 = vld [vmem:[#allocation2 + $0xe0] sm:$0xff]
  %v5102 = vld [vmem:[#allocation2 + $0xe8] sm:$0xff]
  %v5103 = vld [vmem:[#allocation2 + $0xf0] sm:$0xff]
  %v5104 = vld [vmem:[#allocation2 + $0xf8] sm:$0xff]
  %v5105 = vld [vmem:[#allocation2 + $0x100] sm:$0xff]
  %v5106 = vld [vmem:[#allocation2 + $0x108] sm:$0xff]
  %v5107 = vld [vmem:[#allocation2 + $0x110] sm:$0xff]
  %v5108 = vld [vmem:[#allocation2 + $0x118] sm:$0xff]
  %v5109 = vld [vmem:[#allocation2 + $0x120] sm:$0xff]
  %v5110 = vld [vmem:[#allocation2 + $0x128] sm:$0xff]
  %v5111 = vld [vmem:[#allocation2 + $0x130] sm:$0xff]
  %v5112 = vld [vmem:[#allocation2 + $0x138] sm:$0xff]
  %v5113 = vld [vmem:[#allocation2 + $0x140] sm:$0xff]
  %v5114 = vld [vmem:[#allocation2 + $0x148] sm:$0xff]
  %v5115 = vld [vmem:[#allocation2 + $0x150] sm:$0xff]
  %v5116 = vld [vmem:[#allocation2 + $0x158] sm:$0xff]
  %v5117 = vld [vmem:[#allocation2 + $0x160] sm:$0xff]
  %v5118 = vld [vmem:[#allocation2 + $0x168] sm:$0xff]
  %v5119 = vld [vmem:[#allocation2 + $0x170] sm:$0xff]
  %v5120 = vld [vmem:[#allocation2 + $0x178] sm:$0xff]
  %v5121 = vld [vmem:[#allocation2 + $0x180] sm:$0xff]
  %v5122 = vld [vmem:[#allocation2 + $0x2] sm:$0xff]
  %v5123 = vld [vmem:[#allocation2 + $0xa] sm:$0xff]
  %v5124 = vld [vmem:[#allocation2 + $0x12] sm:$0xff]
  %v5125 = vld [vmem:[#allocation2 + $0x1a] sm:$0xff]
  %v5126 = vld [vmem:[#allocation2 + $0x22] sm:$0xff]
  %v5127 = vld [vmem:[#allocation2 + $0x2a] sm:$0xff]
  %v5128 = vld [vmem:[#allocation2 + $0x32] sm:$0xff]
  %v5129 = vld [vmem:[#allocation2 + $0x3a] sm:$0xff]
  %v5130 = vld [vmem:[#allocation2 + $0x42] sm:$0xff]
  %v5131 = vld [vmem:[#allocation2 + $0x4a] sm:$0xff]
  %v5132 = vld [vmem:[#allocation2 + $0x52] sm:$0xff]
  %v5133 = vld [vmem:[#allocation2 + $0x5a] sm:$0xff]
  %v5134 = vld [vmem:[#allocation2 + $0x62] sm:$0xff]
  %v5135 = vld [vmem:[#allocation2 + $0x6a] sm:$0xff]
  %v5136 = vld [vmem:[#allocation2 + $0x72] sm:$0xff]
  %v5137 = vld [vmem:[#allocation2 + $0x7a] sm:$0xff]
  %v5138 = vld [vmem:[#allocation2 + $0x82] sm:$0xff]
  %v5139 = vld [vmem:[#allocation2 + $0x8a] sm:$0xff]
  %v5140 = vld [vmem:[#allocation2 + $0x92] sm:$0xff]
  %v5141 = vld [vmem:[#allocation2 + $0x9a] sm:$0xff]
  %v5142 = vld [vmem:[#allocation2 + $0xa2] sm:$0xff]
  %v5143 = vld [vmem:[#allocation2 + $0xaa] sm:$0xff]
  %v5144 = vld [vmem:[#allocation2 + $0xb2] sm:$0xff]
  %v5145 = vld [vmem:[#allocation2 + $0xba] sm:$0xff]
  %v5146 = vld [vmem:[#allocation2 + $0xc2] sm:$0xff]
  %v5147 = vld [vmem:[#allocation2 + $0xca] sm:$0xff]
  %v5148 = vld [vmem:[#allocation2 + $0xd2] sm:$0xff]
  %v5149 = vld [vmem:[#allocation2 + $0xda] sm:$0xff]
  %v5150 = vld [vmem:[#allocation2 + $0xe2] sm:$0xff]
  %v5151 = vld [vmem:[#allocation2 + $0xea] sm:$0xff]
  %v5152 = vld [vmem:[#allocation2 + $0xf2] sm:$0xff]
  %v5153 = vld [vmem:[#allocation2 + $0xfa] sm:$0xff]
  %v5154 = vld [vmem:[#allocation2 + $0x102] sm:$0xff]
  %v5155 = vld [vmem:[#allocation2 + $0x10a] sm:$0xff]
  %v5156 = vld [vmem:[#allocation2 + $0x112] sm:$0xff]
  %v5157 = vld [vmem:[#allocation2 + $0x11a] sm:$0xff]
  %v5158 = vld [vmem:[#allocation2 + $0x122] sm:$0xff]
  %v5159 = vld [vmem:[#allocation2 + $0x12a] sm:$0xff]
  %v5160 = vld [vmem:[#allocation2 + $0x132] sm:$0xff]
  %v5161 = vld [vmem:[#allocation2 + $0x13a] sm:$0xff]
  %v5162 = vld [vmem:[#allocation2 + $0x142] sm:$0xff]
  %v5163 = vld [vmem:[#allocation2 + $0x14a] sm:$0xff]
  %v5164 = vld [vmem:[#allocation2 + $0x152] sm:$0xff]
  %v5165 = vld [vmem:[#allocation2 + $0x15a] sm:$0xff]
  %v5166 = vld [vmem:[#allocation2 + $0x162] sm:$0xff]
  %v5167 = vld [vmem:[#allocation2 + $0x16a] sm:$0xff]
  %v5168 = vld [vmem:[#allocation2 + $0x172] sm:$0xff]
  %v5169 = vld [vmem:[#allocation2 + $0x17a] sm:$0xff]
  %v5170 = vld [vmem:[#allocation2 + $0x182] sm:$0xff]
  %v5171 = vmax.f32 %v5073, %v5122
  %v5172 = vmax.f32 %v5074, %v5123
  %v5173 = vmax.f32 %v5075, %v5124
  %v5174 = vmax.f32 %v5076, %v5125
  %v5175 = vmax.f32 %v5077, %v5126
  %v5176 = vmax.f32 %v5078, %v5127
  %v5177 = vmax.f32 %v5079, %v5128
  %v5178 = vmax.f32 %v5080, %v5129
  %v5179 = vmax.f32 %v5081, %v5130
  %v5180 = vmax.f32 %v5082, %v5131
  %v5181 = vmax.f32 %v5083, %v5132
  %v5182 = vmax.f32 %v5084, %v5133
  %v5183 = vmax.f32 %v5085, %v5134
  %v5184 = vmax.f32 %v5086, %v5135
  %v5185 = vmax.f32 %v5087, %v5136
  %v5186 = vmax.f32 %v5088, %v5137
  %v5187 = vmax.f32 %v5089, %v5138
  %v5188 = vmax.f32 %v5090, %v5139
  %v5189 = vmax.f32 %v5091, %v5140
  %v5190 = vmax.f32 %v5092, %v5141
  %v5191 = vmax.f32 %v5093, %v5142
  %v5192 = vmax.f32 %v5094, %v5143
  %v5193 = vmax.f32 %v5095, %v5144
  %v5194 = vmax.f32 %v5096, %v5145
  %v5195 = vmax.f32 %v5097, %v5146
  %v5196 = vmax.f32 %v5098, %v5147
  %v5197 = vmax.f32 %v5099, %v5148
  %v5198 = vmax.f32 %v5100, %v5149
  %v5199 = vmax.f32 %v5101, %v5150
  %v5200 = vmax.f32 %v5102, %v5151
  %v5201 = vmax.f32 %v5103, %v5152
  %v5202 = vmax.f32 %v5104, %v5153
  %v5203 = vmax.f32 %v5105, %v5154
  %v5204 = vmax.f32 %v5106, %v5155
  %v5205 = vmax.f32 %v5107, %v5156
  %v5206 = vmax.f32 %v5108, %v5157
  %v5207 = vmax.f32 %v5109, %v5158
  %v5208 = vmax.f32 %v5110, %v5159
  %v5209 = vmax.f32 %v5111, %v5160
  %v5210 = vmax.f32 %v5112, %v5161
  %v5211 = vmax.f32 %v5113, %v5162
  %v5212 = vmax.f32 %v5114, %v5163
  %v5213 = vmax.f32 %v5115, %v5164
  %v5214 = vmax.f32 %v5116, %v5165
  %v5215 = vmax.f32 %v5117, %v5166
  %v5216 = vmax.f32 %v5118, %v5167
  %v5217 = vmax.f32 %v5119, %v5168
  %v5218 = vmax.f32 %v5120, %v5169
  %v5219 = vmax.f32 %v5121, %v5170
  %v5220 = vld [vmem:[#allocation2 + $0x1c] sm:$0xff]
  %v5221 = vld [vmem:[#allocation2 + $0x24] sm:$0xff]
  %v5222 = vld [vmem:[#allocation2 + $0x2c] sm:$0xff]
  %v5223 = vld [vmem:[#allocation2 + $0x34] sm:$0xff]
  %v5224 = vld [vmem:[#allocation2 + $0x3c] sm:$0xff]
  %v5225 = vld [vmem:[#allocation2 + $0x44] sm:$0xff]
  %v5226 = vld [vmem:[#allocation2 + $0x4c] sm:$0xff]
  %v5227 = vld [vmem:[#allocation2 + $0x54] sm:$0xff]
  %v5228 = vld [vmem:[#allocation2 + $0x5c] sm:$0xff]
  %v5229 = vld [vmem:[#allocation2 + $0x64] sm:$0xff]
  %v5230 = vld [vmem:[#allocation2 + $0x6c] sm:$0xff]
  %v5231 = vld [vmem:[#allocation2 + $0x74] sm:$0xff]
  %v5232 = vld [vmem:[#allocation2 + $0x7c] sm:$0xff]
  %v5233 = vld [vmem:[#allocation2 + $0x84] sm:$0xff]
  %v5234 = vld [vmem:[#allocation2 + $0x8c] sm:$0xff]
  %v5235 = vld [vmem:[#allocation2 + $0x94] sm:$0xff]
  %v5236 = vld [vmem:[#allocation2 + $0x9c] sm:$0xff]
  %v5237 = vld [vmem:[#allocation2 + $0xa4] sm:$0xff]
  %v5238 = vld [vmem:[#allocation2 + $0xac] sm:$0xff]
  %v5239 = vld [vmem:[#allocation2 + $0xb4] sm:$0xff]
  %v5240 = vld [vmem:[#allocation2 + $0xbc] sm:$0xff]
  %v5241 = vld [vmem:[#allocation2 + $0xc4] sm:$0xff]
  %v5242 = vld [vmem:[#allocation2 + $0xcc] sm:$0xff]
  %v5243 = vld [vmem:[#allocation2 + $0xd4] sm:$0xff]
  %v5244 = vld [vmem:[#allocation2 + $0xdc] sm:$0xff]
  %v5245 = vld [vmem:[#allocation2 + $0xe4] sm:$0xff]
  %v5246 = vld [vmem:[#allocation2 + $0xec] sm:$0xff]
  %v5247 = vld [vmem:[#allocation2 + $0xf4] sm:$0xff]
  %v5248 = vld [vmem:[#allocation2 + $0xfc] sm:$0xff]
  %v5249 = vld [vmem:[#allocation2 + $0x104] sm:$0xff]
  %v5250 = vld [vmem:[#allocation2 + $0x10c] sm:$0xff]
  %v5251 = vld [vmem:[#allocation2 + $0x114] sm:$0xff]
  %v5252 = vld [vmem:[#allocation2 + $0x11c] sm:$0xff]
  %v5253 = vld [vmem:[#allocation2 + $0x124] sm:$0xff]
  %v5254 = vld [vmem:[#allocation2 + $0x12c] sm:$0xff]
  %v5255 = vld [vmem:[#allocation2 + $0x134] sm:$0xff]
  %v5256 = vld [vmem:[#allocation2 + $0x13c] sm:$0xff]
  %v5257 = vld [vmem:[#allocation2 + $0x144] sm:$0xff]
  %v5258 = vld [vmem:[#allocation2 + $0x14c] sm:$0xff]
  %v5259 = vld [vmem:[#allocation2 + $0x154] sm:$0xff]
  %v5260 = vld [vmem:[#allocation2 + $0x15c] sm:$0xff]
  %v5261 = vld [vmem:[#allocation2 + $0x164] sm:$0xff]
  %v5262 = vld [vmem:[#allocation2 + $0x16c] sm:$0xff]
  %v5263 = vld [vmem:[#allocation2 + $0x174] sm:$0xff]
  %v5264 = vld [vmem:[#allocation2 + $0x17c] sm:$0xff]
  %v5265 = vld [vmem:[#allocation2 + $0x184] sm:$0xff]
  %v5266 = vld [vmem:[#allocation2 + $0x18c] sm:$0xff]
  %v5267 = vld [vmem:[#allocation2 + $0x194] sm:$0xff]
  %v5268 = vld [vmem:[#allocation2 + $0x19c] sm:$0xff]
  %v5269 = vld [vmem:[#allocation2 + $0x1e] sm:$0xff]
  %v5270 = vld [vmem:[#allocation2 + $0x26] sm:$0xff]
  %v5271 = vld [vmem:[#allocation2 + $0x2e] sm:$0xff]
  %v5272 = vld [vmem:[#allocation2 + $0x36] sm:$0xff]
  %v5273 = vld [vmem:[#allocation2 + $0x3e] sm:$0xff]
  %v5274 = vld [vmem:[#allocation2 + $0x46] sm:$0xff]
  %v5275 = vld [vmem:[#allocation2 + $0x4e] sm:$0xff]
  %v5276 = vld [vmem:[#allocation2 + $0x56] sm:$0xff]
  %v5277 = vld [vmem:[#allocation2 + $0x5e] sm:$0xff]
  %v5278 = vld [vmem:[#allocation2 + $0x66] sm:$0xff]
  %v5279 = vld [vmem:[#allocation2 + $0x6e] sm:$0xff]
  %v5280 = vld [vmem:[#allocation2 + $0x76] sm:$0xff]
  %v5281 = vld [vmem:[#allocation2 + $0x7e] sm:$0xff]
  %v5282 = vld [vmem:[#allocation2 + $0x86] sm:$0xff]
  %v5283 = vld [vmem:[#allocation2 + $0x8e] sm:$0xff]
  %v5284 = vld [vmem:[#allocation2 + $0x96] sm:$0xff]
  %v5285 = vld [vmem:[#allocation2 + $0x9e] sm:$0xff]
  %v5286 = vld [vmem:[#allocation2 + $0xa6] sm:$0xff]
  %v5287 = vld [vmem:[#allocation2 + $0xae] sm:$0xff]
  %v5288 = vld [vmem:[#allocation2 + $0xb6] sm:$0xff]
  %v5289 = vld [vmem:[#allocation2 + $0xbe] sm:$0xff]
  %v5290 = vld [vmem:[#allocation2 + $0xc6] sm:$0xff]
  %v5291 = vld [vmem:[#allocation2 + $0xce] sm:$0xff]
  %v5292 = vld [vmem:[#allocation2 + $0xd6] sm:$0xff]
  %v5293 = vld [vmem:[#allocation2 + $0xde] sm:$0xff]
  %v5294 = vld [vmem:[#allocation2 + $0xe6] sm:$0xff]
  %v5295 = vld [vmem:[#allocation2 + $0xee] sm:$0xff]
  %v5296 = vld [vmem:[#allocation2 + $0xf6] sm:$0xff]
  %v5297 = vld [vmem:[#allocation2 + $0xfe] sm:$0xff]
  %v5298 = vld [vmem:[#allocation2 + $0x106] sm:$0xff]
  %v5299 = vld [vmem:[#allocation2 + $0x10e] sm:$0xff]
  %v5300 = vld [vmem:[#allocation2 + $0x116] sm:$0xff]
  %v5301 = vld [vmem:[#allocation2 + $0x11e] sm:$0xff]
  %v5302 = vld [vmem:[#allocation2 + $0x126] sm:$0xff]
  %v5303 = vld [vmem:[#allocation2 + $0x12e] sm:$0xff]
  %v5304 = vld [vmem:[#allocation2 + $0x136] sm:$0xff]
  %v5305 = vld [vmem:[#allocation2 + $0x13e] sm:$0xff]
  %v5306 = vld [vmem:[#allocation2 + $0x146] sm:$0xff]
  %v5307 = vld [vmem:[#allocation2 + $0x14e] sm:$0xff]
  %v5308 = vld [vmem:[#allocation2 + $0x156] sm:$0xff]
  %v5309 = vld [vmem:[#allocation2 + $0x15e] sm:$0xff]
  %v5310 = vld [vmem:[#allocation2 + $0x166] sm:$0xff]
  %v5311 = vld [vmem:[#allocation2 + $0x16e] sm:$0xff]
  %v5312 = vld [vmem:[#allocation2 + $0x176] sm:$0xff]
  %v5313 = vld [vmem:[#allocation2 + $0x17e] sm:$0xff]
  %v5314 = vld [vmem:[#allocation2 + $0x186] sm:$0xff]
  %v5315 = vld [vmem:[#allocation2 + $0x18e] sm:$0xff]
  %v5316 = vld [vmem:[#allocation2 + $0x196] sm:$0xff]
  %v5317 = vld [vmem:[#allocation2 + $0x19e] sm:$0xff]
  %v5318 = vmax.f32 %v5220, %v5269
  %v5319 = vmax.f32 %v5221, %v5270
  %v5320 = vmax.f32 %v5222, %v5271
  %v5321 = vmax.f32 %v5223, %v5272
  %v5322 = vmax.f32 %v5224, %v5273
  %v5323 = vmax.f32 %v5225, %v5274
  %v5324 = vmax.f32 %v5226, %v5275
  %v5325 = vmax.f32 %v5227, %v5276
  %v5326 = vmax.f32 %v5228, %v5277
  %v5327 = vmax.f32 %v5229, %v5278
  %v5328 = vmax.f32 %v5230, %v5279
  %v5329 = vmax.f32 %v5231, %v5280
  %v5330 = vmax.f32 %v5232, %v5281
  %v5331 = vmax.f32 %v5233, %v5282
  %v5332 = vmax.f32 %v5234, %v5283
  %v5333 = vmax.f32 %v5235, %v5284
  %v5334 = vmax.f32 %v5236, %v5285
  %v5335 = vmax.f32 %v5237, %v5286
  %v5336 = vmax.f32 %v5238, %v5287
  %v5337 = vmax.f32 %v5239, %v5288
  %v5338 = vmax.f32 %v5240, %v5289
  %v5339 = vmax.f32 %v5241, %v5290
  %v5340 = vmax.f32 %v5242, %v5291
  %v5341 = vmax.f32 %v5243, %v5292
  %v5342 = vmax.f32 %v5244, %v5293
  %v5343 = vmax.f32 %v5245, %v5294
  %v5344 = vmax.f32 %v5246, %v5295
  %v5345 = vmax.f32 %v5247, %v5296
  %v5346 = vmax.f32 %v5248, %v5297
  %v5347 = vmax.f32 %v5249, %v5298
  %v5348 = vmax.f32 %v5250, %v5299
  %v5349 = vmax.f32 %v5251, %v5300
  %v5350 = vmax.f32 %v5252, %v5301
  %v5351 = vmax.f32 %v5253, %v5302
  %v5352 = vmax.f32 %v5254, %v5303
  %v5353 = vmax.f32 %v5255, %v5304
  %v5354 = vmax.f32 %v5256, %v5305
  %v5355 = vmax.f32 %v5257, %v5306
  %v5356 = vmax.f32 %v5258, %v5307
  %v5357 = vmax.f32 %v5259, %v5308
  %v5358 = vmax.f32 %v5260, %v5309
  %v5359 = vmax.f32 %v5261, %v5310
  %v5360 = vmax.f32 %v5262, %v5311
  %v5361 = vmax.f32 %v5263, %v5312
  %v5362 = vmax.f32 %v5264, %v5313
  %v5363 = vmax.f32 %v5265, %v5314
  %v5364 = vmax.f32 %v5266, %v5315
  %v5365 = vmax.f32 %v5267, %v5316
  %v5366 = vmax.f32 %v5268, %v5317
  %v5367 = vmax.f32 %v5171, %v5318
  %v5368 = vmax.f32 %v5172, %v5319
  %v5369 = vmax.f32 %v5173, %v5320
  %v5370 = vmax.f32 %v5174, %v5321
  %v5371 = vmax.f32 %v5175, %v5322
  %v5372 = vmax.f32 %v5176, %v5323
  %v5373 = vmax.f32 %v5177, %v5324
  %v5374 = vmax.f32 %v5178, %v5325
  %v5375 = vmax.f32 %v5179, %v5326
  %v5376 = vmax.f32 %v5180, %v5327
  %v5377 = vmax.f32 %v5181, %v5328
  %v5378 = vmax.f32 %v5182, %v5329
  %v5379 = vmax.f32 %v5183, %v5330
  %v5380 = vmax.f32 %v5184, %v5331
  %v5381 = vmax.f32 %v5185, %v5332
  %v5382 = vmax.f32 %v5186, %v5333
  %v5383 = vmax.f32 %v5187, %v5334
  %v5384 = vmax.f32 %v5188, %v5335
  %v5385 = vmax.f32 %v5189, %v5336
  %v5386 = vmax.f32 %v5190, %v5337
  %v5387 = vmax.f32 %v5191, %v5338
  %v5388 = vmax.f32 %v5192, %v5339
  %v5389 = vmax.f32 %v5193, %v5340
  %v5390 = vmax.f32 %v5194, %v5341
  %v5391 = vmax.f32 %v5195, %v5342
  %v5392 = vmax.f32 %v5196, %v5343
  %v5393 = vmax.f32 %v5197, %v5344
  %v5394 = vmax.f32 %v5198, %v5345
  %v5395 = vmax.f32 %v5199, %v5346
  %v5396 = vmax.f32 %v5200, %v5347
  %v5397 = vmax.f32 %v5201, %v5348
  %v5398 = vmax.f32 %v5202, %v5349
  %v5399 = vmax.f32 %v5203, %v5350
  %v5400 = vmax.f32 %v5204, %v5351
  %v5401 = vmax.f32 %v5205, %v5352
  %v5402 = vmax.f32 %v5206, %v5353
  %v5403 = vmax.f32 %v5207, %v5354
  %v5404 = vmax.f32 %v5208, %v5355
  %v5405 = vmax.f32 %v5209, %v5356
  %v5406 = vmax.f32 %v5210, %v5357
  %v5407 = vmax.f32 %v5211, %v5358
  %v5408 = vmax.f32 %v5212, %v5359
  %v5409 = vmax.f32 %v5213, %v5360
  %v5410 = vmax.f32 %v5214, %v5361
  %v5411 = vmax.f32 %v5215, %v5362
  %v5412 = vmax.f32 %v5216, %v5363
  %v5413 = vmax.f32 %v5217, %v5364
  %v5414 = vmax.f32 %v5218, %v5365
  %v5415 = vmax.f32 %v5219, %v5366
  %5416 = vst.msk [vmem:[#allocation3] sm:$0xff] %vm52, %v5367
  %5417 = vst.msk [vmem:[#allocation3 + $0x8] sm:$0xff] %vm52, %v5368
  %5418 = vst.msk [vmem:[#allocation3 + $0x10] sm:$0xff] %vm52, %v5369
  %5419 = vst.msk [vmem:[#allocation3 + $0x18] sm:$0xff] %vm52, %v5370
  %5420 = vst.msk [vmem:[#allocation3 + $0x20] sm:$0xff] %vm52, %v5371
  %5421 = vst.msk [vmem:[#allocation3 + $0x28] sm:$0xff] %vm52, %v5372
  %5422 = vst.msk [vmem:[#allocation3 + $0x30] sm:$0xff] %vm52, %v5373
  %5423 = vst.msk [vmem:[#allocation3 + $0x38] sm:$0xff] %vm52, %v5374
  %5424 = vst.msk [vmem:[#allocation3 + $0x40] sm:$0xff] %vm52, %v5375
  %5425 = vst.msk [vmem:[#allocation3 + $0x48] sm:$0xff] %vm52, %v5376
  %5426 = vst.msk [vmem:[#allocation3 + $0x50] sm:$0xff] %vm52, %v5377
  %5427 = vst.msk [vmem:[#allocation3 + $0x58] sm:$0xff] %vm52, %v5378
  %5428 = vst.msk [vmem:[#allocation3 + $0x60] sm:$0xff] %vm52, %v5379
  %5429 = vst.msk [vmem:[#allocation3 + $0x68] sm:$0xff] %vm52, %v5380
  %5430 = vst.msk [vmem:[#allocation3 + $0x70] sm:$0xff] %vm52, %v5381
  %5431 = vst.msk [vmem:[#allocation3 + $0x78] sm:$0xff] %vm52, %v5382
  %5432 = vst.msk [vmem:[#allocation3 + $0x80] sm:$0xff] %vm52, %v5383
  %5433 = vst.msk [vmem:[#allocation3 + $0x88] sm:$0xff] %vm52, %v5384
  %5434 = vst.msk [vmem:[#allocation3 + $0x90] sm:$0xff] %vm52, %v5385
  %5435 = vst.msk [vmem:[#allocation3 + $0x98] sm:$0xff] %vm52, %v5386
  %5436 = vst.msk [vmem:[#allocation3 + $0xa0] sm:$0xff] %vm52, %v5387
  %5437 = vst.msk [vmem:[#allocation3 + $0xa8] sm:$0xff] %vm52, %v5388
  %5438 = vst.msk [vmem:[#allocation3 + $0xb0] sm:$0xff] %vm52, %v5389
  %5439 = vst.msk [vmem:[#allocation3 + $0xb8] sm:$0xff] %vm52, %v5390
  %5440 = vst.msk [vmem:[#allocation3 + $0xc0] sm:$0xff] %vm52, %v5391
  %5441 = vst.msk [vmem:[#allocation3 + $0xc8] sm:$0xff] %vm52, %v5392
  %5442 = vst.msk [vmem:[#allocation3 + $0xd0] sm:$0xff] %vm52, %v5393
  %5443 = vst.msk [vmem:[#allocation3 + $0xd8] sm:$0xff] %vm52, %v5394
  %5444 = vst.msk [vmem:[#allocation3 + $0xe0] sm:$0xff] %vm52, %v5395
  %5445 = vst.msk [vmem:[#allocation3 + $0xe8] sm:$0xff] %vm52, %v5396
  %5446 = vst.msk [vmem:[#allocation3 + $0xf0] sm:$0xff] %vm52, %v5397
  %5447 = vst.msk [vmem:[#allocation3 + $0xf8] sm:$0xff] %vm52, %v5398
  %5448 = vst.msk [vmem:[#allocation3 + $0x100] sm:$0xff] %vm52, %v5399
  %5449 = vst.msk [vmem:[#allocation3 + $0x108] sm:$0xff] %vm52, %v5400
  %5450 = vst.msk [vmem:[#allocation3 + $0x110] sm:$0xff] %vm52, %v5401
  %5451 = vst.msk [vmem:[#allocation3 + $0x118] sm:$0xff] %vm52, %v5402
  %5452 = vst.msk [vmem:[#allocation3 + $0x120] sm:$0xff] %vm52, %v5403
  %5453 = vst.msk [vmem:[#allocation3 + $0x128] sm:$0xff] %vm52, %v5404
  %5454 = vst.msk [vmem:[#allocation3 + $0x130] sm:$0xff] %vm52, %v5405
  %5455 = vst.msk [vmem:[#allocation3 + $0x138] sm:$0xff] %vm52, %v5406
  %5456 = vst.msk [vmem:[#allocation3 + $0x140] sm:$0xff] %vm52, %v5407
  %5457 = vst.msk [vmem:[#allocation3 + $0x148] sm:$0xff] %vm52, %v5408
  %5458 = vst.msk [vmem:[#allocation3 + $0x150] sm:$0xff] %vm52, %v5409
  %5459 = vst.msk [vmem:[#allocation3 + $0x158] sm:$0xff] %vm52, %v5410
  %5460 = vst.msk [vmem:[#allocation3 + $0x160] sm:$0xff] %vm52, %v5411
  %5461 = vst.msk [vmem:[#allocation3 + $0x168] sm:$0xff] %vm52, %v5412
  %5462 = vst.msk [vmem:[#allocation3 + $0x170] sm:$0xff] %vm52, %v5413
  %5463 = vst.msk [vmem:[#allocation3 + $0x178] sm:$0xff] %vm52, %v5414
  %5464 = vst.msk [vmem:[#allocation3 + $0x180] sm:$0xff] %vm52, %v5415
  %v5465 = vld [vmem:[#allocation3] sm:$0xff]
  %v5466 = vld [vmem:[#allocation3 + $0x8] sm:$0xff]
  %v5467 = vld [vmem:[#allocation3 + $0x10] sm:$0xff]
  %v5468 = vld [vmem:[#allocation3 + $0x18] sm:$0xff]
  %v5469 = vld [vmem:[#allocation3 + $0x20] sm:$0xff]
  %v5470 = vld [vmem:[#allocation3 + $0x28] sm:$0xff]
  %v5471 = vld [vmem:[#allocation3 + $0x30] sm:$0xff]
  %v5472 = vld [vmem:[#allocation3 + $0x38] sm:$0xff]
  %v5473 = vld [vmem:[#allocation3 + $0x40] sm:$0xff]
  %v5474 = vld [vmem:[#allocation3 + $0x48] sm:$0xff]
  %v5475 = vld [vmem:[#allocation3 + $0x50] sm:$0xff]
  %v5476 = vld [vmem:[#allocation3 + $0x58] sm:$0xff]
  %v5477 = vld [vmem:[#allocation3 + $0x60] sm:$0xff]
  %v5478 = vld [vmem:[#allocation3 + $0x68] sm:$0xff]
  %v5479 = vld [vmem:[#allocation3 + $0x70] sm:$0xff]
  %v5480 = vld [vmem:[#allocation3 + $0x78] sm:$0xff]
  %v5481 = vld [vmem:[#allocation3 + $0x80] sm:$0xff]
  %v5482 = vld [vmem:[#allocation3 + $0x88] sm:$0xff]
  %v5483 = vld [vmem:[#allocation3 + $0x90] sm:$0xff]
  %v5484 = vld [vmem:[#allocation3 + $0x98] sm:$0xff]
  %v5485 = vld [vmem:[#allocation3 + $0xa0] sm:$0xff]
  %v5486 = vld [vmem:[#allocation3 + $0xa8] sm:$0xff]
  %v5487 = vld [vmem:[#allocation3 + $0xb0] sm:$0xff]
  %v5488 = vld [vmem:[#allocation3 + $0xb8] sm:$0xff]
  %v5489 = vld [vmem:[#allocation3 + $0xc0] sm:$0xff]
  %v5490 = vld [vmem:[#allocation3 + $0xc8] sm:$0xff]
  %v5491 = vld [vmem:[#allocation3 + $0xd0] sm:$0xff]
  %v5492 = vld [vmem:[#allocation3 + $0xd8] sm:$0xff]
  %v5493 = vld [vmem:[#allocation3 + $0xe0] sm:$0xff]
  %v5494 = vld [vmem:[#allocation3 + $0xe8] sm:$0xff]
  %v5495 = vld [vmem:[#allocation3 + $0xf0] sm:$0xff]
  %v5496 = vld [vmem:[#allocation3 + $0xf8] sm:$0xff]
  %v5497 = vld [vmem:[#allocation3 + $0x100] sm:$0xff]
  %v5498 = vld [vmem:[#allocation3 + $0x108] sm:$0xff]
  %v5499 = vld [vmem:[#allocation3 + $0x110] sm:$0xff]
  %v5500 = vld [vmem:[#allocation3 + $0x118] sm:$0xff]
  %v5501 = vld [vmem:[#allocation3 + $0x120] sm:$0xff]
  %v5502 = vld [vmem:[#allocation3 + $0x128] sm:$0xff]
  %v5503 = vld [vmem:[#allocation3 + $0x130] sm:$0xff]
  %v5504 = vld [vmem:[#allocation3 + $0x138] sm:$0xff]
  %v5505 = vld [vmem:[#allocation3 + $0x140] sm:$0xff]
  %v5506 = vld [vmem:[#allocation3 + $0x148] sm:$0xff]
  %v5507 = vld [vmem:[#allocation3 + $0x150] sm:$0xff]
  %v5508 = vld [vmem:[#allocation3 + $0x158] sm:$0xff]
  %v5509 = vld [vmem:[#allocation3 + $0x160] sm:$0xff]
  %v5510 = vld [vmem:[#allocation3 + $0x168] sm:$0xff]
  %v5511 = vld [vmem:[#allocation3 + $0x170] sm:$0xff]
  %v5512 = vld [vmem:[#allocation3 + $0x178] sm:$0xff]
  %v5513 = vld [vmem:[#allocation3 + $0x180] sm:$0xff]
  %v5514 = vld [vmem:[%s7] sm:$0xff]
  %v5515 = vld [vmem:[#allocation3 + $0x4] sm:$0xff]
  %v5516 = vld [vmem:[#allocation3 + $0xc] sm:$0xff]
  %v5517 = vld [vmem:[#allocation3 + $0x14] sm:$0xff]
  %v5518 = vld [vmem:[#allocation3 + $0x1c] sm:$0xff]
  %v5519 = vld [vmem:[#allocation3 + $0x24] sm:$0xff]
  %v5520 = vld [vmem:[#allocation3 + $0x2c] sm:$0xff]
  %v5521 = vld [vmem:[#allocation3 + $0x34] sm:$0xff]
  %v5522 = vld [vmem:[#allocation3 + $0x3c] sm:$0xff]
  %v5523 = vld [vmem:[#allocation3 + $0x44] sm:$0xff]
  %v5524 = vld [vmem:[#allocation3 + $0x4c] sm:$0xff]
  %v5525 = vld [vmem:[#allocation3 + $0x54] sm:$0xff]
  %v5526 = vld [vmem:[#allocation3 + $0x5c] sm:$0xff]
  %v5527 = vld [vmem:[#allocation3 + $0x64] sm:$0xff]
  %v5528 = vld [vmem:[#allocation3 + $0x6c] sm:$0xff]
  %v5529 = vld [vmem:[#allocation3 + $0x74] sm:$0xff]
  %v5530 = vld [vmem:[#allocation3 + $0x7c] sm:$0xff]
  %v5531 = vld [vmem:[#allocation3 + $0x84] sm:$0xff]
  %v5532 = vld [vmem:[#allocation3 + $0x8c] sm:$0xff]
  %v5533 = vld [vmem:[#allocation3 + $0x94] sm:$0xff]
  %v5534 = vld [vmem:[#allocation3 + $0x9c] sm:$0xff]
  %v5535 = vld [vmem:[#allocation3 + $0xa4] sm:$0xff]
  %v5536 = vld [vmem:[#allocation3 + $0xac] sm:$0xff]
  %v5537 = vld [vmem:[#allocation3 + $0xb4] sm:$0xff]
  %v5538 = vld [vmem:[#allocation3 + $0xbc] sm:$0xff]
  %v5539 = vld [vmem:[#allocation3 + $0xc4] sm:$0xff]
  %v5540 = vld [vmem:[#allocation3 + $0xcc] sm:$0xff]
  %v5541 = vld [vmem:[#allocation3 + $0xd4] sm:$0xff]
  %v5542 = vld [vmem:[#allocation3 + $0xdc] sm:$0xff]
  %v5543 = vld [vmem:[#allocation3 + $0xe4] sm:$0xff]
  %v5544 = vld [vmem:[#allocation3 + $0xec] sm:$0xff]
  %v5545 = vld [vmem:[#allocation3 + $0xf4] sm:$0xff]
  %v5546 = vld [vmem:[#allocation3 + $0xfc] sm:$0xff]
  %v5547 = vld [vmem:[#allocation3 + $0x104] sm:$0xff]
  %v5548 = vld [vmem:[#allocation3 + $0x10c] sm:$0xff]
  %v5549 = vld [vmem:[#allocation3 + $0x114] sm:$0xff]
  %v5550 = vld [vmem:[#allocation3 + $0x11c] sm:$0xff]
  %v5551 = vld [vmem:[#allocation3 + $0x124] sm:$0xff]
  %v5552 = vld [vmem:[#allocation3 + $0x12c] sm:$0xff]
  %v5553 = vld [vmem:[#allocation3 + $0x134] sm:$0xff]
  %v5554 = vld [vmem:[#allocation3 + $0x13c] sm:$0xff]
  %v5555 = vld [vmem:[#allocation3 + $0x144] sm:$0xff]
  %v5556 = vld [vmem:[#allocation3 + $0x14c] sm:$0xff]
  %v5557 = vld [vmem:[#allocation3 + $0x154] sm:$0xff]
  %v5558 = vld [vmem:[#allocation3 + $0x15c] sm:$0xff]
  %v5559 = vld [vmem:[#allocation3 + $0x164] sm:$0xff]
  %v5560 = vld [vmem:[#allocation3 + $0x16c] sm:$0xff]
  %v5561 = vld [vmem:[#allocation3 + $0x174] sm:$0xff]
  %v5562 = vld [vmem:[#allocation3 + $0x17c] sm:$0xff]
  %v5563 = vld [vmem:[#allocation3 + $0x184] sm:$0xff]
  %v5564 = vld [vmem:[%s7 + $0x8] sm:$0xff]
  %v5566 = vsel %vm52, %v5515, 0
  %v5569 = vsel %vm52, %v5516, 0
  %v5572 = vsel %vm52, %v5517, 0
  %v5575 = vsel %vm52, %v5518, 0
  %v5578 = vsel %vm52, %v5519, 0
  %v5581 = vsel %vm52, %v5520, 0
  %v5584 = vsel %vm52, %v5521, 0
  %v5587 = vsel %vm52, %v5522, 0
  %v5590 = vsel %vm52, %v5523, 0
  %v5593 = vsel %vm52, %v5524, 0
  %v5596 = vsel %vm52, %v5525, 0
  %v5599 = vsel %vm52, %v5526, 0
  %v5602 = vsel %vm52, %v5527, 0
  %v5605 = vsel %vm52, %v5528, 0
  %v5608 = vsel %vm52, %v5529, 0
  %v5611 = vsel %vm52, %v5530, 0
  %v5614 = vsel %vm52, %v5531, 0
  %v5617 = vsel %vm52, %v5532, 0
  %v5620 = vsel %vm52, %v5533, 0
  %v5623 = vsel %vm52, %v5534, 0
  %v5626 = vsel %vm52, %v5535, 0
  %v5629 = vsel %vm52, %v5536, 0
  %v5632 = vsel %vm52, %v5537, 0
  %v5635 = vsel %vm52, %v5538, 0
  %v5638 = vsel %vm52, %v5539, 0
  %v5641 = vsel %vm52, %v5540, 0
  %v5644 = vsel %vm52, %v5541, 0
  %v5647 = vsel %vm52, %v5542, 0
  %v5650 = vsel %vm52, %v5543, 0
  %v5653 = vsel %vm52, %v5544, 0
  %v5656 = vsel %vm52, %v5545, 0
  %v5659 = vsel %vm52, %v5546, 0
  %v5662 = vsel %vm52, %v5547, 0
  %v5665 = vsel %vm52, %v5548, 0
  %v5668 = vsel %vm52, %v5549, 0
  %v5671 = vsel %vm52, %v5550, 0
  %v5674 = vsel %vm52, %v5551, 0
  %v5677 = vsel %vm52, %v5552, 0
  %v5680 = vsel %vm52, %v5553, 0
  %v5683 = vsel %vm52, %v5554, 0
  %v5686 = vsel %vm52, %v5555, 0
  %v5689 = vsel %vm52, %v5556, 0
  %v5692 = vsel %vm52, %v5557, 0
  %v5695 = vsel %vm52, %v5558, 0
  %v5698 = vsel %vm52, %v5559, 0
  %v5701 = vsel %vm52, %v5560, 0
  %v5704 = vsel %vm52, %v5561, 0
  %v5707 = vsel %vm52, %v5562, 0
  %v5710 = vsel %vm52, %v5563, 0
  %5712 = vmatpush.msra.mxu0 0.0
  %5713 = vmatpush.msra.mxu0 0.0
  %5714 = vmatpush.msra.mxu0 0.0
  %5715 = vmatpush.msra.mxu0 0.0
  %5716 = vmatpush.msra.mxu0 0.0
  %5717 = vmatpush.msra.mxu0 0.0
  %5718 = vmatpush.msra.mxu0 0.0
  %5719 = vmatpush.msra.mxu0 0.0
  %5720 = vmatpush.msra.mxu0 0.0
  %5721 = vmatpush.msra.mxu0 0.0
  %5722 = vmatpush.msra.mxu0 0.0
  %5723 = vmatpush.msra.mxu0 0.0
  %5724 = vmatpush.msra.mxu0 0.0
  %5725 = vmatpush.msra.mxu0 0.0
  %5726 = vmatpush.msra.mxu0 0.0
  %5727 = vmatpush.msra.mxu0 %v5564
  %5728 = vmatmul.f32.gmra.mxu0 %v5566
  %v5729 = vpop.f32.mrf.mxu0
  %v5730 = vadd.f32 0.0, %v5729
  %5731 = vmatmul.f32.gmra.mxu0 %v5569
  %v5732 = vpop.f32.mrf.mxu0
  %v5733 = vadd.f32 0.0, %v5732
  %5734 = vmatmul.f32.gmra.mxu0 %v5572
  %v5735 = vpop.f32.mrf.mxu0
  %v5736 = vadd.f32 0.0, %v5735
  %5737 = vmatmul.f32.gmra.mxu0 %v5575
  %v5738 = vpop.f32.mrf.mxu0
  %v5739 = vadd.f32 0.0, %v5738
  %5740 = vmatmul.f32.gmra.mxu0 %v5578
  %v5741 = vpop.f32.mrf.mxu0
  %v5742 = vadd.f32 0.0, %v5741
  %5743 = vmatmul.f32.gmra.mxu0 %v5581
  %v5744 = vpop.f32.mrf.mxu0
  %v5745 = vadd.f32 0.0, %v5744
  %5746 = vmatmul.f32.gmra.mxu0 %v5584
  %v5747 = vpop.f32.mrf.mxu0
  %v5748 = vadd.f32 0.0, %v5747
  %5749 = vmatmul.f32.gmra.mxu0 %v5587
  %v5750 = vpop.f32.mrf.mxu0
  %v5751 = vadd.f32 0.0, %v5750
  %5752 = vmatmul.f32.gmra.mxu0 %v5590
  %v5753 = vpop.f32.mrf.mxu0
  %v5754 = vadd.f32 0.0, %v5753
  %5755 = vmatmul.f32.gmra.mxu0 %v5593
  %v5756 = vpop.f32.mrf.mxu0
  %v5757 = vadd.f32 0.0, %v5756
  %5758 = vmatmul.f32.gmra.mxu0 %v5596
  %v5759 = vpop.f32.mrf.mxu0
  %v5760 = vadd.f32 0.0, %v5759
  %5761 = vmatmul.f32.gmra.mxu0 %v5599
  %v5762 = vpop.f32.mrf.mxu0
  %v5763 = vadd.f32 0.0, %v5762
  %5764 = vmatmul.f32.gmra.mxu0 %v5602
  %v5765 = vpop.f32.mrf.mxu0
  %v5766 = vadd.f32 0.0, %v5765
  %5767 = vmatmul.f32.gmra.mxu0 %v5605
  %v5768 = vpop.f32.mrf.mxu0
  %v5769 = vadd.f32 0.0, %v5768
  %5770 = vmatmul.f32.gmra.mxu0 %v5608
  %v5771 = vpop.f32.mrf.mxu0
  %v5772 = vadd.f32 0.0, %v5771
  %5773 = vmatmul.f32.gmra.mxu0 %v5611
  %v5774 = vpop.f32.mrf.mxu0
  %v5775 = vadd.f32 0.0, %v5774
  %5776 = vmatmul.f32.gmra.mxu0 %v5614
  %v5777 = vpop.f32.mrf.mxu0
  %v5778 = vadd.f32 0.0, %v5777
  %5779 = vmatmul.f32.gmra.mxu0 %v5617
  %v5780 = vpop.f32.mrf.mxu0
  %v5781 = vadd.f32 0.0, %v5780
  %5782 = vmatmul.f32.gmra.mxu0 %v5620
  %v5783 = vpop.f32.mrf.mxu0
  %v5784 = vadd.f32 0.0, %v5783
  %5785 = vmatmul.f32.gmra.mxu0 %v5623
  %v5786 = vpop.f32.mrf.mxu0
  %v5787 = vadd.f32 0.0, %v5786
  %5788 = vmatmul.f32.gmra.mxu0 %v5626
  %v5789 = vpop.f32.mrf.mxu0
  %v5790 = vadd.f32 0.0, %v5789
  %5791 = vmatmul.f32.gmra.mxu0 %v5629
  %v5792 = vpop.f32.mrf.mxu0
  %v5793 = vadd.f32 0.0, %v5792
  %5794 = vmatmul.f32.gmra.mxu0 %v5632
  %v5795 = vpop.f32.mrf.mxu0
  %v5796 = vadd.f32 0.0, %v5795
  %5797 = vmatmul.f32.gmra.mxu0 %v5635
  %v5798 = vpop.f32.mrf.mxu0
  %v5799 = vadd.f32 0.0, %v5798
  %5800 = vmatmul.f32.gmra.mxu0 %v5638
  %v5801 = vpop.f32.mrf.mxu0
  %v5802 = vadd.f32 0.0, %v5801
  %5803 = vmatmul.f32.gmra.mxu0 %v5641
  %v5804 = vpop.f32.mrf.mxu0
  %v5805 = vadd.f32 0.0, %v5804
  %5806 = vmatmul.f32.gmra.mxu0 %v5644
  %v5807 = vpop.f32.mrf.mxu0
  %v5808 = vadd.f32 0.0, %v5807
  %5809 = vmatmul.f32.gmra.mxu0 %v5647
  %v5810 = vpop.f32.mrf.mxu0
  %v5811 = vadd.f32 0.0, %v5810
  %5812 = vmatmul.f32.gmra.mxu0 %v5650
  %v5813 = vpop.f32.mrf.mxu0
  %v5814 = vadd.f32 0.0, %v5813
  %5815 = vmatmul.f32.gmra.mxu0 %v5653
  %v5816 = vpop.f32.mrf.mxu0
  %v5817 = vadd.f32 0.0, %v5816
  %5818 = vmatmul.f32.gmra.mxu0 %v5656
  %v5819 = vpop.f32.mrf.mxu0
  %v5820 = vadd.f32 0.0, %v5819
  %5821 = vmatmul.f32.gmra.mxu0 %v5659
  %v5822 = vpop.f32.mrf.mxu0
  %v5823 = vadd.f32 0.0, %v5822
  %5824 = vmatmul.f32.gmra.mxu0 %v5662
  %v5825 = vpop.f32.mrf.mxu0
  %v5826 = vadd.f32 0.0, %v5825
  %5827 = vmatmul.f32.gmra.mxu0 %v5665
  %v5828 = vpop.f32.mrf.mxu0
  %v5829 = vadd.f32 0.0, %v5828
  %5830 = vmatmul.f32.gmra.mxu0 %v5668
  %v5831 = vpop.f32.mrf.mxu0
  %v5832 = vadd.f32 0.0, %v5831
  %5833 = vmatmul.f32.gmra.mxu0 %v5671
  %v5834 = vpop.f32.mrf.mxu0
  %v5835 = vadd.f32 0.0, %v5834
  %5836 = vmatmul.f32.gmra.mxu0 %v5674
  %v5837 = vpop.f32.mrf.mxu0
  %v5838 = vadd.f32 0.0, %v5837
  %5839 = vmatmul.f32.gmra.mxu0 %v5677
  %v5840 = vpop.f32.mrf.mxu0
  %v5841 = vadd.f32 0.0, %v5840
  %5842 = vmatmul.f32.gmra.mxu0 %v5680
  %v5843 = vpop.f32.mrf.mxu0
  %v5844 = vadd.f32 0.0, %v5843
  %5845 = vmatmul.f32.gmra.mxu0 %v5683
  %v5846 = vpop.f32.mrf.mxu0
  %v5847 = vadd.f32 0.0, %v5846
  %5848 = vmatmul.f32.gmra.mxu0 %v5686
  %v5849 = vpop.f32.mrf.mxu0
  %v5850 = vadd.f32 0.0, %v5849
  %5851 = vmatmul.f32.gmra.mxu0 %v5689
  %v5852 = vpop.f32.mrf.mxu0
  %v5853 = vadd.f32 0.0, %v5852
  %5854 = vmatmul.f32.gmra.mxu0 %v5692
  %v5855 = vpop.f32.mrf.mxu0
  %v5856 = vadd.f32 0.0, %v5855
  %5857 = vmatmul.f32.gmra.mxu0 %v5695
  %v5858 = vpop.f32.mrf.mxu0
  %v5859 = vadd.f32 0.0, %v5858
  %5860 = vmatmul.f32.gmra.mxu0 %v5698
  %v5861 = vpop.f32.mrf.mxu0
  %v5862 = vadd.f32 0.0, %v5861
  %5863 = vmatmul.f32.gmra.mxu0 %v5701
  %v5864 = vpop.f32.mrf.mxu0
  %v5865 = vadd.f32 0.0, %v5864
  %5866 = vmatmul.f32.gmra.mxu0 %v5704
  %v5867 = vpop.f32.mrf.mxu0
  %v5868 = vadd.f32 0.0, %v5867
  %5869 = vmatmul.f32.gmra.mxu0 %v5707
  %v5870 = vpop.f32.mrf.mxu0
  %v5871 = vadd.f32 0.0, %v5870
  %5872 = vmatmul.f32.gmra.mxu0 %v5710
  %v5873 = vpop.f32.mrf.mxu0
  %v5874 = vadd.f32 0.0, %v5873
  %5875 = vdwg.mxu0
  %v5877 = vsel %vm52, %v5465, 0
  %v5880 = vsel %vm52, %v5466, 0
  %v5883 = vsel %vm52, %v5467, 0
  %v5886 = vsel %vm52, %v5468, 0
  %v5889 = vsel %vm52, %v5469, 0
  %v5892 = vsel %vm52, %v5470, 0
  %v5895 = vsel %vm52, %v5471, 0
  %v5898 = vsel %vm52, %v5472, 0
  %v5901 = vsel %vm52, %v5473, 0
  %v5904 = vsel %vm52, %v5474, 0
  %v5907 = vsel %vm52, %v5475, 0
  %v5910 = vsel %vm52, %v5476, 0
  %v5913 = vsel %vm52, %v5477, 0
  %v5916 = vsel %vm52, %v5478, 0
  %v5919 = vsel %vm52, %v5479, 0
  %v5922 = vsel %vm52, %v5480, 0
  %v5925 = vsel %vm52, %v5481, 0
  %v5928 = vsel %vm52, %v5482, 0
  %v5931 = vsel %vm52, %v5483, 0
  %v5934 = vsel %vm52, %v5484, 0
  %v5937 = vsel %vm52, %v5485, 0
  %v5940 = vsel %vm52, %v5486, 0
  %v5943 = vsel %vm52, %v5487, 0
  %v5946 = vsel %vm52, %v5488, 0
  %v5949 = vsel %vm52, %v5489, 0
  %v5952 = vsel %vm52, %v5490, 0
  %v5955 = vsel %vm52, %v5491, 0
  %v5958 = vsel %vm52, %v5492, 0
  %v5961 = vsel %vm52, %v5493, 0
  %v5964 = vsel %vm52, %v5494, 0
  %v5967 = vsel %vm52, %v5495, 0
  %v5970 = vsel %vm52, %v5496, 0
  %v5973 = vsel %vm52, %v5497, 0
  %v5976 = vsel %vm52, %v5498, 0
  %v5979 = vsel %vm52, %v5499, 0
  %v5982 = vsel %vm52, %v5500, 0
  %v5985 = vsel %vm52, %v5501, 0
  %v5988 = vsel %vm52, %v5502, 0
  %v5991 = vsel %vm52, %v5503, 0
  %v5994 = vsel %vm52, %v5504, 0
  %v5997 = vsel %vm52, %v5505, 0
  %v6000 = vsel %vm52, %v5506, 0
  %v6003 = vsel %vm52, %v5507, 0
  %v6006 = vsel %vm52, %v5508, 0
  %v6009 = vsel %vm52, %v5509, 0
  %v6012 = vsel %vm52, %v5510, 0
  %v6015 = vsel %vm52, %v5511, 0
  %v6018 = vsel %vm52, %v5512, 0
  %v6021 = vsel %vm52, %v5513, 0
  %6023 = vmatpush.msra.mxu0 0.0
  %6024 = vmatpush.msra.mxu0 0.0
  %6025 = vmatpush.msra.mxu0 0.0
  %6026 = vmatpush.msra.mxu0 0.0
  %6027 = vmatpush.msra.mxu0 0.0
  %6028 = vmatpush.msra.mxu0 0.0
  %6029 = vmatpush.msra.mxu0 0.0
  %6030 = vmatpush.msra.mxu0 0.0
  %6031 = vmatpush.msra.mxu0 0.0
  %6032 = vmatpush.msra.mxu0 0.0
  %6033 = vmatpush.msra.mxu0 0.0
  %6034 = vmatpush.msra.mxu0 0.0
  %6035 = vmatpush.msra.mxu0 0.0
  %6036 = vmatpush.msra.mxu0 0.0
  %6037 = vmatpush.msra.mxu0 0.0
  %6038 = vmatpush.msra.mxu0 %v5514
  %6039 = vmatmul.f32.gmra.mxu0 %v5877
  %v6040 = vpop.f32.mrf.mxu0
  %v6041 = vadd.f32 %v5730, %v6040
  %6042 = vmatmul.f32.gmra.mxu0 %v5880
  %v6043 = vpop.f32.mrf.mxu0
  %v6044 = vadd.f32 %v5733, %v6043
  %6045 = vmatmul.f32.gmra.mxu0 %v5883
  %v6046 = vpop.f32.mrf.mxu0
  %v6047 = vadd.f32 %v5736, %v6046
  %6048 = vmatmul.f32.gmra.mxu0 %v5886
  %v6049 = vpop.f32.mrf.mxu0
  %v6050 = vadd.f32 %v5739, %v6049
  %6051 = vmatmul.f32.gmra.mxu0 %v5889
  %v6052 = vpop.f32.mrf.mxu0
  %v6053 = vadd.f32 %v5742, %v6052
  %6054 = vmatmul.f32.gmra.mxu0 %v5892
  %v6055 = vpop.f32.mrf.mxu0
  %v6056 = vadd.f32 %v5745, %v6055
  %6057 = vmatmul.f32.gmra.mxu0 %v5895
  %v6058 = vpop.f32.mrf.mxu0
  %v6059 = vadd.f32 %v5748, %v6058
  %6060 = vmatmul.f32.gmra.mxu0 %v5898
  %v6061 = vpop.f32.mrf.mxu0
  %v6062 = vadd.f32 %v5751, %v6061
  %6063 = vmatmul.f32.gmra.mxu0 %v5901
  %v6064 = vpop.f32.mrf.mxu0
  %v6065 = vadd.f32 %v5754, %v6064
  %6066 = vmatmul.f32.gmra.mxu0 %v5904
  %v6067 = vpop.f32.mrf.mxu0
  %v6068 = vadd.f32 %v5757, %v6067
  %6069 = vmatmul.f32.gmra.mxu0 %v5907
  %v6070 = vpop.f32.mrf.mxu0
  %v6071 = vadd.f32 %v5760, %v6070
  %6072 = vmatmul.f32.gmra.mxu0 %v5910
  %v6073 = vpop.f32.mrf.mxu0
  %v6074 = vadd.f32 %v5763, %v6073
  %6075 = vmatmul.f32.gmra.mxu0 %v5913
  %v6076 = vpop.f32.mrf.mxu0
  %v6077 = vadd.f32 %v5766, %v6076
  %6078 = vmatmul.f32.gmra.mxu0 %v5916
  %v6079 = vpop.f32.mrf.mxu0
  %v6080 = vadd.f32 %v5769, %v6079
  %6081 = vmatmul.f32.gmra.mxu0 %v5919
  %v6082 = vpop.f32.mrf.mxu0
  %v6083 = vadd.f32 %v5772, %v6082
  %6084 = vmatmul.f32.gmra.mxu0 %v5922
  %v6085 = vpop.f32.mrf.mxu0
  %v6086 = vadd.f32 %v5775, %v6085
  %6087 = vmatmul.f32.gmra.mxu0 %v5925
  %v6088 = vpop.f32.mrf.mxu0
  %v6089 = vadd.f32 %v5778, %v6088
  %6090 = vmatmul.f32.gmra.mxu0 %v5928
  %v6091 = vpop.f32.mrf.mxu0
  %v6092 = vadd.f32 %v5781, %v6091
  %6093 = vmatmul.f32.gmra.mxu0 %v5931
  %v6094 = vpop.f32.mrf.mxu0
  %v6095 = vadd.f32 %v5784, %v6094
  %6096 = vmatmul.f32.gmra.mxu0 %v5934
  %v6097 = vpop.f32.mrf.mxu0
  %v6098 = vadd.f32 %v5787, %v6097
  %6099 = vmatmul.f32.gmra.mxu0 %v5937
  %v6100 = vpop.f32.mrf.mxu0
  %v6101 = vadd.f32 %v5790, %v6100
  %6102 = vmatmul.f32.gmra.mxu0 %v5940
  %v6103 = vpop.f32.mrf.mxu0
  %v6104 = vadd.f32 %v5793, %v6103
  %6105 = vmatmul.f32.gmra.mxu0 %v5943
  %v6106 = vpop.f32.mrf.mxu0
  %v6107 = vadd.f32 %v5796, %v6106
  %6108 = vmatmul.f32.gmra.mxu0 %v5946
  %v6109 = vpop.f32.mrf.mxu0
  %v6110 = vadd.f32 %v5799, %v6109
  %6111 = vmatmul.f32.gmra.mxu0 %v5949
  %v6112 = vpop.f32.mrf.mxu0
  %v6113 = vadd.f32 %v5802, %v6112
  %6114 = vmatmul.f32.gmra.mxu0 %v5952
  %v6115 = vpop.f32.mrf.mxu0
  %v6116 = vadd.f32 %v5805, %v6115
  %6117 = vmatmul.f32.gmra.mxu0 %v5955
  %v6118 = vpop.f32.mrf.mxu0
  %v6119 = vadd.f32 %v5808, %v6118
  %6120 = vmatmul.f32.gmra.mxu0 %v5958
  %v6121 = vpop.f32.mrf.mxu0
  %v6122 = vadd.f32 %v5811, %v6121
  %6123 = vmatmul.f32.gmra.mxu0 %v5961
  %v6124 = vpop.f32.mrf.mxu0
  %v6125 = vadd.f32 %v5814, %v6124
  %6126 = vmatmul.f32.gmra.mxu0 %v5964
  %v6127 = vpop.f32.mrf.mxu0
  %v6128 = vadd.f32 %v5817, %v6127
  %6129 = vmatmul.f32.gmra.mxu0 %v5967
  %v6130 = vpop.f32.mrf.mxu0
  %v6131 = vadd.f32 %v5820, %v6130
  %6132 = vmatmul.f32.gmra.mxu0 %v5970
  %v6133 = vpop.f32.mrf.mxu0
  %v6134 = vadd.f32 %v5823, %v6133
  %6135 = vmatmul.f32.gmra.mxu0 %v5973
  %v6136 = vpop.f32.mrf.mxu0
  %v6137 = vadd.f32 %v5826, %v6136
  %6138 = vmatmul.f32.gmra.mxu0 %v5976
  %v6139 = vpop.f32.mrf.mxu0
  %v6140 = vadd.f32 %v5829, %v6139
  %6141 = vmatmul.f32.gmra.mxu0 %v5979
  %v6142 = vpop.f32.mrf.mxu0
  %v6143 = vadd.f32 %v5832, %v6142
  %6144 = vmatmul.f32.gmra.mxu0 %v5982
  %v6145 = vpop.f32.mrf.mxu0
  %v6146 = vadd.f32 %v5835, %v6145
  %6147 = vmatmul.f32.gmra.mxu0 %v5985
  %v6148 = vpop.f32.mrf.mxu0
  %v6149 = vadd.f32 %v5838, %v6148
  %6150 = vmatmul.f32.gmra.mxu0 %v5988
  %v6151 = vpop.f32.mrf.mxu0
  %v6152 = vadd.f32 %v5841, %v6151
  %6153 = vmatmul.f32.gmra.mxu0 %v5991
  %v6154 = vpop.f32.mrf.mxu0
  %v6155 = vadd.f32 %v5844, %v6154
  %6156 = vmatmul.f32.gmra.mxu0 %v5994
  %v6157 = vpop.f32.mrf.mxu0
  %v6158 = vadd.f32 %v5847, %v6157
  %6159 = vmatmul.f32.gmra.mxu0 %v5997
  %v6160 = vpop.f32.mrf.mxu0
  %v6161 = vadd.f32 %v5850, %v6160
  %6162 = vmatmul.f32.gmra.mxu0 %v6000
  %v6163 = vpop.f32.mrf.mxu0
  %v6164 = vadd.f32 %v5853, %v6163
  %6165 = vmatmul.f32.gmra.mxu0 %v6003
  %v6166 = vpop.f32.mrf.mxu0
  %v6167 = vadd.f32 %v5856, %v6166
  %6168 = vmatmul.f32.gmra.mxu0 %v6006
  %v6169 = vpop.f32.mrf.mxu0
  %v6170 = vadd.f32 %v5859, %v6169
  %6171 = vmatmul.f32.gmra.mxu0 %v6009
  %v6172 = vpop.f32.mrf.mxu0
  %v6173 = vadd.f32 %v5862, %v6172
  %6174 = vmatmul.f32.gmra.mxu0 %v6012
  %v6175 = vpop.f32.mrf.mxu0
  %v6176 = vadd.f32 %v5865, %v6175
  %6177 = vmatmul.f32.gmra.mxu0 %v6015
  %v6178 = vpop.f32.mrf.mxu0
  %v6179 = vadd.f32 %v5868, %v6178
  %6180 = vmatmul.f32.gmra.mxu0 %v6018
  %v6181 = vpop.f32.mrf.mxu0
  %v6182 = vadd.f32 %v5871, %v6181
  %6183 = vmatmul.f32.gmra.mxu0 %v6021
  %v6184 = vpop.f32.mrf.mxu0
  %v6185 = vadd.f32 %v5874, %v6184
  %6186 = vdwg.mxu0
  %v6187 = vld [vmem:[#allocation3 + $0x8] sm:$0xff]
  %v6188 = vld [vmem:[#allocation3 + $0x10] sm:$0xff]
  %v6189 = vld [vmem:[#allocation3 + $0x18] sm:$0xff]
  %v6190 = vld [vmem:[#allocation3 + $0x20] sm:$0xff]
  %v6191 = vld [vmem:[#allocation3 + $0x28] sm:$0xff]
  %v6192 = vld [vmem:[#allocation3 + $0x30] sm:$0xff]
  %v6193 = vld [vmem:[#allocation3 + $0x38] sm:$0xff]
  %v6194 = vld [vmem:[#allocation3 + $0x40] sm:$0xff]
  %v6195 = vld [vmem:[#allocation3 + $0x48] sm:$0xff]
  %v6196 = vld [vmem:[#allocation3 + $0x50] sm:$0xff]
  %v6197 = vld [vmem:[#allocation3 + $0x58] sm:$0xff]
  %v6198 = vld [vmem:[#allocation3 + $0x60] sm:$0xff]
  %v6199 = vld [vmem:[#allocation3 + $0x68] sm:$0xff]
  %v6200 = vld [vmem:[#allocation3 + $0x70] sm:$0xff]
  %v6201 = vld [vmem:[#allocation3 + $0x78] sm:$0xff]
  %v6202 = vld [vmem:[#allocation3 + $0x80] sm:$0xff]
  %v6203 = vld [vmem:[#allocation3 + $0x88] sm:$0xff]
  %v6204 = vld [vmem:[#allocation3 + $0x90] sm:$0xff]
  %v6205 = vld [vmem:[#allocation3 + $0x98] sm:$0xff]
  %v6206 = vld [vmem:[#allocation3 + $0xa0] sm:$0xff]
  %v6207 = vld [vmem:[#allocation3 + $0xa8] sm:$0xff]
  %v6208 = vld [vmem:[#allocation3 + $0xb0] sm:$0xff]
  %v6209 = vld [vmem:[#allocation3 + $0xb8] sm:$0xff]
  %v6210 = vld [vmem:[#allocation3 + $0xc0] sm:$0xff]
  %v6211 = vld [vmem:[#allocation3 + $0xc8] sm:$0xff]
  %v6212 = vld [vmem:[#allocation3 + $0xd0] sm:$0xff]
  %v6213 = vld [vmem:[#allocation3 + $0xd8] sm:$0xff]
  %v6214 = vld [vmem:[#allocation3 + $0xe0] sm:$0xff]
  %v6215 = vld [vmem:[#allocation3 + $0xe8] sm:$0xff]
  %v6216 = vld [vmem:[#allocation3 + $0xf0] sm:$0xff]
  %v6217 = vld [vmem:[#allocation3 + $0xf8] sm:$0xff]
  %v6218 = vld [vmem:[#allocation3 + $0x100] sm:$0xff]
  %v6219 = vld [vmem:[#allocation3 + $0x108] sm:$0xff]
  %v6220 = vld [vmem:[#allocation3 + $0x110] sm:$0xff]
  %v6221 = vld [vmem:[#allocation3 + $0x118] sm:$0xff]
  %v6222 = vld [vmem:[#allocation3 + $0x120] sm:$0xff]
  %v6223 = vld [vmem:[#allocation3 + $0x128] sm:$0xff]
  %v6224 = vld [vmem:[#allocation3 + $0x130] sm:$0xff]
  %v6225 = vld [vmem:[#allocation3 + $0x138] sm:$0xff]
  %v6226 = vld [vmem:[#allocation3 + $0x140] sm:$0xff]
  %v6227 = vld [vmem:[#allocation3 + $0x148] sm:$0xff]
  %v6228 = vld [vmem:[#allocation3 + $0x150] sm:$0xff]
  %v6229 = vld [vmem:[#allocation3 + $0x158] sm:$0xff]
  %v6230 = vld [vmem:[#allocation3 + $0x160] sm:$0xff]
  %v6231 = vld [vmem:[#allocation3 + $0x168] sm:$0xff]
  %v6232 = vld [vmem:[#allocation3 + $0x170] sm:$0xff]
  %v6233 = vld [vmem:[#allocation3 + $0x178] sm:$0xff]
  %v6234 = vld [vmem:[#allocation3 + $0x180] sm:$0xff]
  %v6235 = vld [vmem:[#allocation3 + $0x188] sm:$0xff]
  %v6236 = vld [vmem:[%s7 + $0x10] sm:$0xff]
  %v6238 = vsel %vm52, %v6187, 0
  %v6241 = vsel %vm52, %v6188, 0
  %v6244 = vsel %vm52, %v6189, 0
  %v6247 = vsel %vm52, %v6190, 0
  %v6250 = vsel %vm52, %v6191, 0
  %v6253 = vsel %vm52, %v6192, 0
  %v6256 = vsel %vm52, %v6193, 0
  %v6259 = vsel %vm52, %v6194, 0
  %v6262 = vsel %vm52, %v6195, 0
  %v6265 = vsel %vm52, %v6196, 0
  %v6268 = vsel %vm52, %v6197, 0
  %v6271 = vsel %vm52, %v6198, 0
  %v6274 = vsel %vm52, %v6199, 0
  %v6277 = vsel %vm52, %v6200, 0
  %v6280 = vsel %vm52, %v6201, 0
  %v6283 = vsel %vm52, %v6202, 0
  %v6286 = vsel %vm52, %v6203, 0
  %v6289 = vsel %vm52, %v6204, 0
  %v6292 = vsel %vm52, %v6205, 0
  %v6295 = vsel %vm52, %v6206, 0
  %v6298 = vsel %vm52, %v6207, 0
  %v6301 = vsel %vm52, %v6208, 0
  %v6304 = vsel %vm52, %v6209, 0
  %v6307 = vsel %vm52, %v6210, 0
  %v6310 = vsel %vm52, %v6211, 0
  %v6313 = vsel %vm52, %v6212, 0
  %v6316 = vsel %vm52, %v6213, 0
  %v6319 = vsel %vm52, %v6214, 0
  %v6322 = vsel %vm52, %v6215, 0
  %v6325 = vsel %vm52, %v6216, 0
  %v6328 = vsel %vm52, %v6217, 0
  %v6331 = vsel %vm52, %v6218, 0
  %v6334 = vsel %vm52, %v6219, 0
  %v6337 = vsel %vm52, %v6220, 0
  %v6340 = vsel %vm52, %v6221, 0
  %v6343 = vsel %vm52, %v6222, 0
  %v6346 = vsel %vm52, %v6223, 0
  %v6349 = vsel %vm52, %v6224, 0
  %v6352 = vsel %vm52, %v6225, 0
  %v6355 = vsel %vm52, %v6226, 0
  %v6358 = vsel %vm52, %v6227, 0
  %v6361 = vsel %vm52, %v6228, 0
  %v6364 = vsel %vm52, %v6229, 0
  %v6367 = vsel %vm52, %v6230, 0
  %v6370 = vsel %vm52, %v6231, 0
  %v6373 = vsel %vm52, %v6232, 0
  %v6376 = vsel %vm52, %v6233, 0
  %v6379 = vsel %vm52, %v6234, 0
  %v6382 = vsel %vm52, %v6235, 0
  %6384 = vmatpush.msra.mxu0 0.0
  %6385 = vmatpush.msra.mxu0 0.0
  %6386 = vmatpush.msra.mxu0 0.0
  %6387 = vmatpush.msra.mxu0 0.0
  %6388 = vmatpush.msra.mxu0 0.0
  %6389 = vmatpush.msra.mxu0 0.0
  %6390 = vmatpush.msra.mxu0 0.0
  %6391 = vmatpush.msra.mxu0 0.0
  %6392 = vmatpush.msra.mxu0 0.0
  %6393 = vmatpush.msra.mxu0 0.0
  %6394 = vmatpush.msra.mxu0 0.0
  %6395 = vmatpush.msra.mxu0 0.0
  %6396 = vmatpush.msra.mxu0 0.0
  %6397 = vmatpush.msra.mxu0 0.0
  %6398 = vmatpush.msra.mxu0 0.0
  %6399 = vmatpush.msra.mxu0 %v6236
  %6400 = vmatmul.f32.gmra.mxu0 %v6238
  %v6401 = vpop.f32.mrf.mxu0
  %v6402 = vadd.f32 0.0, %v6401
  %6403 = vmatmul.f32.gmra.mxu0 %v6241
  %v6404 = vpop.f32.mrf.mxu0
  %v6405 = vadd.f32 0.0, %v6404
  %6406 = vmatmul.f32.gmra.mxu0 %v6244
  %v6407 = vpop.f32.mrf.mxu0
  %v6408 = vadd.f32 0.0, %v6407
  %6409 = vmatmul.f32.gmra.mxu0 %v6247
  %v6410 = vpop.f32.mrf.mxu0
  %v6411 = vadd.f32 0.0, %v6410
  %6412 = vmatmul.f32.gmra.mxu0 %v6250
  %v6413 = vpop.f32.mrf.mxu0
  %v6414 = vadd.f32 0.0, %v6413
  %6415 = vmatmul.f32.gmra.mxu0 %v6253
  %v6416 = vpop.f32.mrf.mxu0
  %v6417 = vadd.f32 0.0, %v6416
  %6418 = vmatmul.f32.gmra.mxu0 %v6256
  %v6419 = vpop.f32.mrf.mxu0
  %v6420 = vadd.f32 0.0, %v6419
  %6421 = vmatmul.f32.gmra.mxu0 %v6259
  %v6422 = vpop.f32.mrf.mxu0
  %v6423 = vadd.f32 0.0, %v6422
  %6424 = vmatmul.f32.gmra.mxu0 %v6262
  %v6425 = vpop.f32.mrf.mxu0
  %v6426 = vadd.f32 0.0, %v6425
  %6427 = vmatmul.f32.gmra.mxu0 %v6265
  %v6428 = vpop.f32.mrf.mxu0
  %v6429 = vadd.f32 0.0, %v6428
  %6430 = vmatmul.f32.gmra.mxu0 %v6268
  %v6431 = vpop.f32.mrf.mxu0
  %v6432 = vadd.f32 0.0, %v6431
  %6433 = vmatmul.f32.gmra.mxu0 %v6271
  %v6434 = vpop.f32.mrf.mxu0
  %v6435 = vadd.f32 0.0, %v6434
  %6436 = vmatmul.f32.gmra.mxu0 %v6274
  %v6437 = vpop.f32.mrf.mxu0
  %v6438 = vadd.f32 0.0, %v6437
  %6439 = vmatmul.f32.gmra.mxu0 %v6277
  %v6440 = vpop.f32.mrf.mxu0
  %v6441 = vadd.f32 0.0, %v6440
  %6442 = vmatmul.f32.gmra.mxu0 %v6280
  %v6443 = vpop.f32.mrf.mxu0
  %v6444 = vadd.f32 0.0, %v6443
  %6445 = vmatmul.f32.gmra.mxu0 %v6283
  %v6446 = vpop.f32.mrf.mxu0
  %v6447 = vadd.f32 0.0, %v6446
  %6448 = vmatmul.f32.gmra.mxu0 %v6286
  %v6449 = vpop.f32.mrf.mxu0
  %v6450 = vadd.f32 0.0, %v6449
  %6451 = vmatmul.f32.gmra.mxu0 %v6289
  %v6452 = vpop.f32.mrf.mxu0
  %v6453 = vadd.f32 0.0, %v6452
  %6454 = vmatmul.f32.gmra.mxu0 %v6292
  %v6455 = vpop.f32.mrf.mxu0
  %v6456 = vadd.f32 0.0, %v6455
  %6457 = vmatmul.f32.gmra.mxu0 %v6295
  %v6458 = vpop.f32.mrf.mxu0
  %v6459 = vadd.f32 0.0, %v6458
  %6460 = vmatmul.f32.gmra.mxu0 %v6298
  %v6461 = vpop.f32.mrf.mxu0
  %v6462 = vadd.f32 0.0, %v6461
  %6463 = vmatmul.f32.gmra.mxu0 %v6301
  %v6464 = vpop.f32.mrf.mxu0
  %v6465 = vadd.f32 0.0, %v6464
  %6466 = vmatmul.f32.gmra.mxu0 %v6304
  %v6467 = vpop.f32.mrf.mxu0
  %v6468 = vadd.f32 0.0, %v6467
  %6469 = vmatmul.f32.gmra.mxu0 %v6307
  %v6470 = vpop.f32.mrf.mxu0
  %v6471 = vadd.f32 0.0, %v6470
  %6472 = vmatmul.f32.gmra.mxu0 %v6310
  %v6473 = vpop.f32.mrf.mxu0
  %v6474 = vadd.f32 0.0, %v6473
  %6475 = vmatmul.f32.gmra.mxu0 %v6313
  %v6476 = vpop.f32.mrf.mxu0
  %v6477 = vadd.f32 0.0, %v6476
  %6478 = vmatmul.f32.gmra.mxu0 %v6316
  %v6479 = vpop.f32.mrf.mxu0
  %v6480 = vadd.f32 0.0, %v6479
  %6481 = vmatmul.f32.gmra.mxu0 %v6319
  %v6482 = vpop.f32.mrf.mxu0
  %v6483 = vadd.f32 0.0, %v6482
  %6484 = vmatmul.f32.gmra.mxu0 %v6322
  %v6485 = vpop.f32.mrf.mxu0
  %v6486 = vadd.f32 0.0, %v6485
  %6487 = vmatmul.f32.gmra.mxu0 %v6325
  %v6488 = vpop.f32.mrf.mxu0
  %v6489 = vadd.f32 0.0, %v6488
  %6490 = vmatmul.f32.gmra.mxu0 %v6328
  %v6491 = vpop.f32.mrf.mxu0
  %v6492 = vadd.f32 0.0, %v6491
  %6493 = vmatmul.f32.gmra.mxu0 %v6331
  %v6494 = vpop.f32.mrf.mxu0
  %v6495 = vadd.f32 0.0, %v6494
  %6496 = vmatmul.f32.gmra.mxu0 %v6334
  %v6497 = vpop.f32.mrf.mxu0
  %v6498 = vadd.f32 0.0, %v6497
  %6499 = vmatmul.f32.gmra.mxu0 %v6337
  %v6500 = vpop.f32.mrf.mxu0
  %v6501 = vadd.f32 0.0, %v6500
  %6502 = vmatmul.f32.gmra.mxu0 %v6340
  %v6503 = vpop.f32.mrf.mxu0
  %v6504 = vadd.f32 0.0, %v6503
  %6505 = vmatmul.f32.gmra.mxu0 %v6343
  %v6506 = vpop.f32.mrf.mxu0
  %v6507 = vadd.f32 0.0, %v6506
  %6508 = vmatmul.f32.gmra.mxu0 %v6346
  %v6509 = vpop.f32.mrf.mxu0
  %v6510 = vadd.f32 0.0, %v6509
  %6511 = vmatmul.f32.gmra.mxu0 %v6349
  %v6512 = vpop.f32.mrf.mxu0
  %v6513 = vadd.f32 0.0, %v6512
  %6514 = vmatmul.f32.gmra.mxu0 %v6352
  %v6515 = vpop.f32.mrf.mxu0
  %v6516 = vadd.f32 0.0, %v6515
  %6517 = vmatmul.f32.gmra.mxu0 %v6355
  %v6518 = vpop.f32.mrf.mxu0
  %v6519 = vadd.f32 0.0, %v6518
  %6520 = vmatmul.f32.gmra.mxu0 %v6358
  %v6521 = vpop.f32.mrf.mxu0
  %v6522 = vadd.f32 0.0, %v6521
  %6523 = vmatmul.f32.gmra.mxu0 %v6361
  %v6524 = vpop.f32.mrf.mxu0
  %v6525 = vadd.f32 0.0, %v6524
  %6526 = vmatmul.f32.gmra.mxu0 %v6364
  %v6527 = vpop.f32.mrf.mxu0
  %v6528 = vadd.f32 0.0, %v6527
  %6529 = vmatmul.f32.gmra.mxu0 %v6367
  %v6530 = vpop.f32.mrf.mxu0
  %v6531 = vadd.f32 0.0, %v6530
  %6532 = vmatmul.f32.gmra.mxu0 %v6370
  %v6533 = vpop.f32.mrf.mxu0
  %v6534 = vadd.f32 0.0, %v6533
  %6535 = vmatmul.f32.gmra.mxu0 %v6373
  %v6536 = vpop.f32.mrf.mxu0
  %v6537 = vadd.f32 0.0, %v6536
  %6538 = vmatmul.f32.gmra.mxu0 %v6376
  %v6539 = vpop.f32.mrf.mxu0
  %v6540 = vadd.f32 0.0, %v6539
  %6541 = vmatmul.f32.gmra.mxu0 %v6379
  %v6542 = vpop.f32.mrf.mxu0
  %v6543 = vadd.f32 0.0, %v6542
  %6544 = vmatmul.f32.gmra.mxu0 %v6382
  %v6545 = vpop.f32.mrf.mxu0
  %v6546 = vadd.f32 0.0, %v6545
  %6547 = vdwg.mxu0
  %v6548 = vadd.f32 %v6041, %v6402
  %v6549 = vadd.f32 %v6044, %v6405
  %v6550 = vadd.f32 %v6047, %v6408
  %v6551 = vadd.f32 %v6050, %v6411
  %v6552 = vadd.f32 %v6053, %v6414
  %v6553 = vadd.f32 %v6056, %v6417
  %v6554 = vadd.f32 %v6059, %v6420
  %v6555 = vadd.f32 %v6062, %v6423
  %v6556 = vadd.f32 %v6065, %v6426
  %v6557 = vadd.f32 %v6068, %v6429
  %v6558 = vadd.f32 %v6071, %v6432
  %v6559 = vadd.f32 %v6074, %v6435
  %v6560 = vadd.f32 %v6077, %v6438
  %v6561 = vadd.f32 %v6080, %v6441
  %v6562 = vadd.f32 %v6083, %v6444
  %v6563 = vadd.f32 %v6086, %v6447
  %v6564 = vadd.f32 %v6089, %v6450
  %v6565 = vadd.f32 %v6092, %v6453
  %v6566 = vadd.f32 %v6095, %v6456
  %v6567 = vadd.f32 %v6098, %v6459
  %v6568 = vadd.f32 %v6101, %v6462
  %v6569 = vadd.f32 %v6104, %v6465
  %v6570 = vadd.f32 %v6107, %v6468
  %v6571 = vadd.f32 %v6110, %v6471
  %v6572 = vadd.f32 %v6113, %v6474
  %v6573 = vadd.f32 %v6116, %v6477
  %v6574 = vadd.f32 %v6119, %v6480
  %v6575 = vadd.f32 %v6122, %v6483
  %v6576 = vadd.f32 %v6125, %v6486
  %v6577 = vadd.f32 %v6128, %v6489
  %v6578 = vadd.f32 %v6131, %v6492
  %v6579 = vadd.f32 %v6134, %v6495
  %v6580 = vadd.f32 %v6137, %v6498
  %v6581 = vadd.f32 %v6140, %v6501
  %v6582 = vadd.f32 %v6143, %v6504
  %v6583 = vadd.f32 %v6146, %v6507
  %v6584 = vadd.f32 %v6149, %v6510
  %v6585 = vadd.f32 %v6152, %v6513
  %v6586 = vadd.f32 %v6155, %v6516
  %v6587 = vadd.f32 %v6158, %v6519
  %v6588 = vadd.f32 %v6161, %v6522
  %v6589 = vadd.f32 %v6164, %v6525
  %v6590 = vadd.f32 %v6167, %v6528
  %v6591 = vadd.f32 %v6170, %v6531
  %v6592 = vadd.f32 %v6173, %v6534
  %v6593 = vadd.f32 %v6176, %v6537
  %v6594 = vadd.f32 %v6179, %v6540
  %v6595 = vadd.f32 %v6182, %v6543
  %v6596 = vadd.f32 %v6185, %v6546
  %v6597 = vld [vmem:[#allocation3 + $0x38] sm:$0xff]
  %v6598 = vld [vmem:[#allocation3 + $0x40] sm:$0xff]
  %v6599 = vld [vmem:[#allocation3 + $0x48] sm:$0xff]
  %v6600 = vld [vmem:[#allocation3 + $0x50] sm:$0xff]
  %v6601 = vld [vmem:[#allocation3 + $0x58] sm:$0xff]
  %v6602 = vld [vmem:[#allocation3 + $0x60] sm:$0xff]
  %v6603 = vld [vmem:[#allocation3 + $0x68] sm:$0xff]
  %v6604 = vld [vmem:[#allocation3 + $0x70] sm:$0xff]
  %v6605 = vld [vmem:[#allocation3 + $0x78] sm:$0xff]
  %v6606 = vld [vmem:[#allocation3 + $0x80] sm:$0xff]
  %v6607 = vld [vmem:[#allocation3 + $0x88] sm:$0xff]
  %v6608 = vld [vmem:[#allocation3 + $0x90] sm:$0xff]
  %v6609 = vld [vmem:[#allocation3 + $0x98] sm:$0xff]
  %v6610 = vld [vmem:[#allocation3 + $0xa0] sm:$0xff]
  %v6611 = vld [vmem:[#allocation3 + $0xa8] sm:$0xff]
  %v6612 = vld [vmem:[#allocation3 + $0xb0] sm:$0xff]
  %v6613 = vld [vmem:[#allocation3 + $0xb8] sm:$0xff]
  %v6614 = vld [vmem:[#allocation3 + $0xc0] sm:$0xff]
  %v6615 = vld [vmem:[#allocation3 + $0xc8] sm:$0xff]
  %v6616 = vld [vmem:[#allocation3 + $0xd0] sm:$0xff]
  %v6617 = vld [vmem:[#allocation3 + $0xd8] sm:$0xff]
  %v6618 = vld [vmem:[#allocation3 + $0xe0] sm:$0xff]
  %v6619 = vld [vmem:[#allocation3 + $0xe8] sm:$0xff]
  %v6620 = vld [vmem:[#allocation3 + $0xf0] sm:$0xff]
  %v6621 = vld [vmem:[#allocation3 + $0xf8] sm:$0xff]
  %v6622 = vld [vmem:[#allocation3 + $0x100] sm:$0xff]
  %v6623 = vld [vmem:[#allocation3 + $0x108] sm:$0xff]
  %v6624 = vld [vmem:[#allocation3 + $0x110] sm:$0xff]
  %v6625 = vld [vmem:[#allocation3 + $0x118] sm:$0xff]
  %v6626 = vld [vmem:[#allocation3 + $0x120] sm:$0xff]
  %v6627 = vld [vmem:[#allocation3 + $0x128] sm:$0xff]
  %v6628 = vld [vmem:[#allocation3 + $0x130] sm:$0xff]
  %v6629 = vld [vmem:[#allocation3 + $0x138] sm:$0xff]
  %v6630 = vld [vmem:[#allocation3 + $0x140] sm:$0xff]
  %v6631 = vld [vmem:[#allocation3 + $0x148] sm:$0xff]
  %v6632 = vld [vmem:[#allocation3 + $0x150] sm:$0xff]
  %v6633 = vld [vmem:[#allocation3 + $0x158] sm:$0xff]
  %v6634 = vld [vmem:[#allocation3 + $0x160] sm:$0xff]
  %v6635 = vld [vmem:[#allocation3 + $0x168] sm:$0xff]
  %v6636 = vld [vmem:[#allocation3 + $0x170] sm:$0xff]
  %v6637 = vld [vmem:[#allocation3 + $0x178] sm:$0xff]
  %v6638 = vld [vmem:[#allocation3 + $0x180] sm:$0xff]
  %v6639 = vld [vmem:[#allocation3 + $0x188] sm:$0xff]
  %v6640 = vld [vmem:[#allocation3 + $0x190] sm:$0xff]
  %v6641 = vld [vmem:[#allocation3 + $0x198] sm:$0xff]
  %v6642 = vld [vmem:[#allocation3 + $0x1a0] sm:$0xff]
  %v6643 = vld [vmem:[#allocation3 + $0x1a8] sm:$0xff]
  %v6644 = vld [vmem:[#allocation3 + $0x1b0] sm:$0xff]
  %v6645 = vld [vmem:[#allocation3 + $0x1b8] sm:$0xff]
  %v6646 = vld [vmem:[%s7 + $0x18] sm:$0xff]
  %v6648 = vsel %vm52, %v6597, 0
  %v6651 = vsel %vm52, %v6598, 0
  %v6654 = vsel %vm52, %v6599, 0
  %v6657 = vsel %vm52, %v6600, 0
  %v6660 = vsel %vm52, %v6601, 0
  %v6663 = vsel %vm52, %v6602, 0
  %v6666 = vsel %vm52, %v6603, 0
  %v6669 = vsel %vm52, %v6604, 0
  %v6672 = vsel %vm52, %v6605, 0
  %v6675 = vsel %vm52, %v6606, 0
  %v6678 = vsel %vm52, %v6607, 0
  %v6681 = vsel %vm52, %v6608, 0
  %v6684 = vsel %vm52, %v6609, 0
  %v6687 = vsel %vm52, %v6610, 0
  %v6690 = vsel %vm52, %v6611, 0
  %v6693 = vsel %vm52, %v6612, 0
  %v6696 = vsel %vm52, %v6613, 0
  %v6699 = vsel %vm52, %v6614, 0
  %v6702 = vsel %vm52, %v6615, 0
  %v6705 = vsel %vm52, %v6616, 0
  %v6708 = vsel %vm52, %v6617, 0
  %v6711 = vsel %vm52, %v6618, 0
  %v6714 = vsel %vm52, %v6619, 0
  %v6717 = vsel %vm52, %v6620, 0
  %v6720 = vsel %vm52, %v6621, 0
  %v6723 = vsel %vm52, %v6622, 0
  %v6726 = vsel %vm52, %v6623, 0
  %v6729 = vsel %vm52, %v6624, 0
  %v6732 = vsel %vm52, %v6625, 0
  %v6735 = vsel %vm52, %v6626, 0
  %v6738 = vsel %vm52, %v6627, 0
  %v6741 = vsel %vm52, %v6628, 0
  %v6744 = vsel %vm52, %v6629, 0
  %v6747 = vsel %vm52, %v6630, 0
  %v6750 = vsel %vm52, %v6631, 0
  %v6753 = vsel %vm52, %v6632, 0
  %v6756 = vsel %vm52, %v6633, 0
  %v6759 = vsel %vm52, %v6634, 0
  %v6762 = vsel %vm52, %v6635, 0
  %v6765 = vsel %vm52, %v6636, 0
  %v6768 = vsel %vm52, %v6637, 0
  %v6771 = vsel %vm52, %v6638, 0
  %v6774 = vsel %vm52, %v6639, 0
  %v6777 = vsel %vm52, %v6640, 0
  %v6780 = vsel %vm52, %v6641, 0
  %v6783 = vsel %vm52, %v6642, 0
  %v6786 = vsel %vm52, %v6643, 0
  %v6789 = vsel %vm52, %v6644, 0
  %v6792 = vsel %vm52, %v6645, 0
  %6794 = vmatpush.msra.mxu0 0.0
  %6795 = vmatpush.msra.mxu0 0.0
  %6796 = vmatpush.msra.mxu0 0.0
  %6797 = vmatpush.msra.mxu0 0.0
  %6798 = vmatpush.msra.mxu0 0.0
  %6799 = vmatpush.msra.mxu0 0.0
  %6800 = vmatpush.msra.mxu0 0.0
  %6801 = vmatpush.msra.mxu0 0.0
  %6802 = vmatpush.msra.mxu0 0.0
  %6803 = vmatpush.msra.mxu0 0.0
  %6804 = vmatpush.msra.mxu0 0.0
  %6805 = vmatpush.msra.mxu0 0.0
  %6806 = vmatpush.msra.mxu0 0.0
  %6807 = vmatpush.msra.mxu0 0.0
  %6808 = vmatpush.msra.mxu0 0.0
  %6809 = vmatpush.msra.mxu0 %v6646
  %6810 = vmatmul.f32.gmra.mxu0 %v6648
  %v6811 = vpop.f32.mrf.mxu0
  %v6812 = vadd.f32 0.0, %v6811
  %6813 = vmatmul.f32.gmra.mxu0 %v6651
  %v6814 = vpop.f32.mrf.mxu0
  %v6815 = vadd.f32 0.0, %v6814
  %6816 = vmatmul.f32.gmra.mxu0 %v6654
  %v6817 = vpop.f32.mrf.mxu0
  %v6818 = vadd.f32 0.0, %v6817
  %6819 = vmatmul.f32.gmra.mxu0 %v6657
  %v6820 = vpop.f32.mrf.mxu0
  %v6821 = vadd.f32 0.0, %v6820
  %6822 = vmatmul.f32.gmra.mxu0 %v6660
  %v6823 = vpop.f32.mrf.mxu0
  %v6824 = vadd.f32 0.0, %v6823
  %6825 = vmatmul.f32.gmra.mxu0 %v6663
  %v6826 = vpop.f32.mrf.mxu0
  %v6827 = vadd.f32 0.0, %v6826
  %6828 = vmatmul.f32.gmra.mxu0 %v6666
  %v6829 = vpop.f32.mrf.mxu0
  %v6830 = vadd.f32 0.0, %v6829
  %6831 = vmatmul.f32.gmra.mxu0 %v6669
  %v6832 = vpop.f32.mrf.mxu0
  %v6833 = vadd.f32 0.0, %v6832
  %6834 = vmatmul.f32.gmra.mxu0 %v6672
  %v6835 = vpop.f32.mrf.mxu0
  %v6836 = vadd.f32 0.0, %v6835
  %6837 = vmatmul.f32.gmra.mxu0 %v6675
  %v6838 = vpop.f32.mrf.mxu0
  %v6839 = vadd.f32 0.0, %v6838
  %6840 = vmatmul.f32.gmra.mxu0 %v6678
  %v6841 = vpop.f32.mrf.mxu0
  %v6842 = vadd.f32 0.0, %v6841
  %6843 = vmatmul.f32.gmra.mxu0 %v6681
  %v6844 = vpop.f32.mrf.mxu0
  %v6845 = vadd.f32 0.0, %v6844
  %6846 = vmatmul.f32.gmra.mxu0 %v6684
  %v6847 = vpop.f32.mrf.mxu0
  %v6848 = vadd.f32 0.0, %v6847
  %6849 = vmatmul.f32.gmra.mxu0 %v6687
  %v6850 = vpop.f32.mrf.mxu0
  %v6851 = vadd.f32 0.0, %v6850
  %6852 = vmatmul.f32.gmra.mxu0 %v6690
  %v6853 = vpop.f32.mrf.mxu0
  %v6854 = vadd.f32 0.0, %v6853
  %6855 = vmatmul.f32.gmra.mxu0 %v6693
  %v6856 = vpop.f32.mrf.mxu0
  %v6857 = vadd.f32 0.0, %v6856
  %6858 = vmatmul.f32.gmra.mxu0 %v6696
  %v6859 = vpop.f32.mrf.mxu0
  %v6860 = vadd.f32 0.0, %v6859
  %6861 = vmatmul.f32.gmra.mxu0 %v6699
  %v6862 = vpop.f32.mrf.mxu0
  %v6863 = vadd.f32 0.0, %v6862
  %6864 = vmatmul.f32.gmra.mxu0 %v6702
  %v6865 = vpop.f32.mrf.mxu0
  %v6866 = vadd.f32 0.0, %v6865
  %6867 = vmatmul.f32.gmra.mxu0 %v6705
  %v6868 = vpop.f32.mrf.mxu0
  %v6869 = vadd.f32 0.0, %v6868
  %6870 = vmatmul.f32.gmra.mxu0 %v6708
  %v6871 = vpop.f32.mrf.mxu0
  %v6872 = vadd.f32 0.0, %v6871
  %6873 = vmatmul.f32.gmra.mxu0 %v6711
  %v6874 = vpop.f32.mrf.mxu0
  %v6875 = vadd.f32 0.0, %v6874
  %6876 = vmatmul.f32.gmra.mxu0 %v6714
  %v6877 = vpop.f32.mrf.mxu0
  %v6878 = vadd.f32 0.0, %v6877
  %6879 = vmatmul.f32.gmra.mxu0 %v6717
  %v6880 = vpop.f32.mrf.mxu0
  %v6881 = vadd.f32 0.0, %v6880
  %6882 = vmatmul.f32.gmra.mxu0 %v6720
  %v6883 = vpop.f32.mrf.mxu0
  %v6884 = vadd.f32 0.0, %v6883
  %6885 = vmatmul.f32.gmra.mxu0 %v6723
  %v6886 = vpop.f32.mrf.mxu0
  %v6887 = vadd.f32 0.0, %v6886
  %6888 = vmatmul.f32.gmra.mxu0 %v6726
  %v6889 = vpop.f32.mrf.mxu0
  %v6890 = vadd.f32 0.0, %v6889
  %6891 = vmatmul.f32.gmra.mxu0 %v6729
  %v6892 = vpop.f32.mrf.mxu0
  %v6893 = vadd.f32 0.0, %v6892
  %6894 = vmatmul.f32.gmra.mxu0 %v6732
  %v6895 = vpop.f32.mrf.mxu0
  %v6896 = vadd.f32 0.0, %v6895
  %6897 = vmatmul.f32.gmra.mxu0 %v6735
  %v6898 = vpop.f32.mrf.mxu0
  %v6899 = vadd.f32 0.0, %v6898
  %6900 = vmatmul.f32.gmra.mxu0 %v6738
  %v6901 = vpop.f32.mrf.mxu0
  %v6902 = vadd.f32 0.0, %v6901
  %6903 = vmatmul.f32.gmra.mxu0 %v6741
  %v6904 = vpop.f32.mrf.mxu0
  %v6905 = vadd.f32 0.0, %v6904
  %6906 = vmatmul.f32.gmra.mxu0 %v6744
  %v6907 = vpop.f32.mrf.mxu0
  %v6908 = vadd.f32 0.0, %v6907
  %6909 = vmatmul.f32.gmra.mxu0 %v6747
  %v6910 = vpop.f32.mrf.mxu0
  %v6911 = vadd.f32 0.0, %v6910
  %6912 = vmatmul.f32.gmra.mxu0 %v6750
  %v6913 = vpop.f32.mrf.mxu0
  %v6914 = vadd.f32 0.0, %v6913
  %6915 = vmatmul.f32.gmra.mxu0 %v6753
  %v6916 = vpop.f32.mrf.mxu0
  %v6917 = vadd.f32 0.0, %v6916
  %6918 = vmatmul.f32.gmra.mxu0 %v6756
  %v6919 = vpop.f32.mrf.mxu0
  %v6920 = vadd.f32 0.0, %v6919
  %6921 = vmatmul.f32.gmra.mxu0 %v6759
  %v6922 = vpop.f32.mrf.mxu0
  %v6923 = vadd.f32 0.0, %v6922
  %6924 = vmatmul.f32.gmra.mxu0 %v6762
  %v6925 = vpop.f32.mrf.mxu0
  %v6926 = vadd.f32 0.0, %v6925
  %6927 = vmatmul.f32.gmra.mxu0 %v6765
  %v6928 = vpop.f32.mrf.mxu0
  %v6929 = vadd.f32 0.0, %v6928
  %6930 = vmatmul.f32.gmra.mxu0 %v6768
  %v6931 = vpop.f32.mrf.mxu0
  %v6932 = vadd.f32 0.0, %v6931
  %6933 = vmatmul.f32.gmra.mxu0 %v6771
  %v6934 = vpop.f32.mrf.mxu0
  %v6935 = vadd.f32 0.0, %v6934
  %6936 = vmatmul.f32.gmra.mxu0 %v6774
  %v6937 = vpop.f32.mrf.mxu0
  %v6938 = vadd.f32 0.0, %v6937
  %6939 = vmatmul.f32.gmra.mxu0 %v6777
  %v6940 = vpop.f32.mrf.mxu0
  %v6941 = vadd.f32 0.0, %v6940
  %6942 = vmatmul.f32.gmra.mxu0 %v6780
  %v6943 = vpop.f32.mrf.mxu0
  %v6944 = vadd.f32 0.0, %v6943
  %6945 = vmatmul.f32.gmra.mxu0 %v6783
  %v6946 = vpop.f32.mrf.mxu0
  %v6947 = vadd.f32 0.0, %v6946
  %6948 = vmatmul.f32.gmra.mxu0 %v6786
  %v6949 = vpop.f32.mrf.mxu0
  %v6950 = vadd.f32 0.0, %v6949
  %6951 = vmatmul.f32.gmra.mxu0 %v6789
  %v6952 = vpop.f32.mrf.mxu0
  %v6953 = vadd.f32 0.0, %v6952
  %6954 = vmatmul.f32.gmra.mxu0 %v6792
  %v6955 = vpop.f32.mrf.mxu0
  %v6956 = vadd.f32 0.0, %v6955
  %6957 = vdwg.mxu0
  %v6958 = vadd.f32 %v6548, %v6812
  %v6959 = vadd.f32 %v6549, %v6815
  %v6960 = vadd.f32 %v6550, %v6818
  %v6961 = vadd.f32 %v6551, %v6821
  %v6962 = vadd.f32 %v6552, %v6824
  %v6963 = vadd.f32 %v6553, %v6827
  %v6964 = vadd.f32 %v6554, %v6830
  %v6965 = vadd.f32 %v6555, %v6833
  %v6966 = vadd.f32 %v6556, %v6836
  %v6967 = vadd.f32 %v6557, %v6839
  %v6968 = vadd.f32 %v6558, %v6842
  %v6969 = vadd.f32 %v6559, %v6845
  %v6970 = vadd.f32 %v6560, %v6848
  %v6971 = vadd.f32 %v6561, %v6851
  %v6972 = vadd.f32 %v6562, %v6854
  %v6973 = vadd.f32 %v6563, %v6857
  %v6974 = vadd.f32 %v6564, %v6860
  %v6975 = vadd.f32 %v6565, %v6863
  %v6976 = vadd.f32 %v6566, %v6866
  %v6977 = vadd.f32 %v6567, %v6869
  %v6978 = vadd.f32 %v6568, %v6872
  %v6979 = vadd.f32 %v6569, %v6875
  %v6980 = vadd.f32 %v6570, %v6878
  %v6981 = vadd.f32 %v6571, %v6881
  %v6982 = vadd.f32 %v6572, %v6884
  %v6983 = vadd.f32 %v6573, %v6887
  %v6984 = vadd.f32 %v6574, %v6890
  %v6985 = vadd.f32 %v6575, %v6893
  %v6986 = vadd.f32 %v6576, %v6896
  %v6987 = vadd.f32 %v6577, %v6899
  %v6988 = vadd.f32 %v6578, %v6902
  %v6989 = vadd.f32 %v6579, %v6905
  %v6990 = vadd.f32 %v6580, %v6908
  %v6991 = vadd.f32 %v6581, %v6911
  %v6992 = vadd.f32 %v6582, %v6914
  %v6993 = vadd.f32 %v6583, %v6917
  %v6994 = vadd.f32 %v6584, %v6920
  %v6995 = vadd.f32 %v6585, %v6923
  %v6996 = vadd.f32 %v6586, %v6926
  %v6997 = vadd.f32 %v6587, %v6929
  %v6998 = vadd.f32 %v6588, %v6932
  %v6999 = vadd.f32 %v6589, %v6935
  %v7000 = vadd.f32 %v6590, %v6938
  %v7001 = vadd.f32 %v6591, %v6941
  %v7002 = vadd.f32 %v6592, %v6944
  %v7003 = vadd.f32 %v6593, %v6947
  %v7004 = vadd.f32 %v6594, %v6950
  %v7005 = vadd.f32 %v6595, %v6953
  %v7006 = vadd.f32 %v6596, %v6956
  %v7007 = vld [vmem:[#allocation3 + $0x3c] sm:$0xff]
  %v7008 = vld [vmem:[#allocation3 + $0x44] sm:$0xff]
  %v7009 = vld [vmem:[#allocation3 + $0x4c] sm:$0xff]
  %v7010 = vld [vmem:[#allocation3 + $0x54] sm:$0xff]
  %v7011 = vld [vmem:[#allocation3 + $0x5c] sm:$0xff]
  %v7012 = vld [vmem:[#allocation3 + $0x64] sm:$0xff]
  %v7013 = vld [vmem:[#allocation3 + $0x6c] sm:$0xff]
  %v7014 = vld [vmem:[#allocation3 + $0x74] sm:$0xff]
  %v7015 = vld [vmem:[#allocation3 + $0x7c] sm:$0xff]
  %v7016 = vld [vmem:[#allocation3 + $0x84] sm:$0xff]
  %v7017 = vld [vmem:[#allocation3 + $0x8c] sm:$0xff]
  %v7018 = vld [vmem:[#allocation3 + $0x94] sm:$0xff]
  %v7019 = vld [vmem:[#allocation3 + $0x9c] sm:$0xff]
  %v7020 = vld [vmem:[#allocation3 + $0xa4] sm:$0xff]
  %v7021 = vld [vmem:[#allocation3 + $0xac] sm:$0xff]
  %v7022 = vld [vmem:[#allocation3 + $0xb4] sm:$0xff]
  %v7023 = vld [vmem:[#allocation3 + $0xbc] sm:$0xff]
  %v7024 = vld [vmem:[#allocation3 + $0xc4] sm:$0xff]
  %v7025 = vld [vmem:[#allocation3 + $0xcc] sm:$0xff]
  %v7026 = vld [vmem:[#allocation3 + $0xd4] sm:$0xff]
  %v7027 = vld [vmem:[#allocation3 + $0xdc] sm:$0xff]
  %v7028 = vld [vmem:[#allocation3 + $0xe4] sm:$0xff]
  %v7029 = vld [vmem:[#allocation3 + $0xec] sm:$0xff]
  %v7030 = vld [vmem:[#allocation3 + $0xf4] sm:$0xff]
  %v7031 = vld [vmem:[#allocation3 + $0xfc] sm:$0xff]
  %v7032 = vld [vmem:[#allocation3 + $0x104] sm:$0xff]
  %v7033 = vld [vmem:[#allocation3 + $0x10c] sm:$0xff]
  %v7034 = vld [vmem:[#allocation3 + $0x114] sm:$0xff]
  %v7035 = vld [vmem:[#allocation3 + $0x11c] sm:$0xff]
  %v7036 = vld [vmem:[#allocation3 + $0x124] sm:$0xff]
  %v7037 = vld [vmem:[#allocation3 + $0x12c] sm:$0xff]
  %v7038 = vld [vmem:[#allocation3 + $0x134] sm:$0xff]
  %v7039 = vld [vmem:[#allocation3 + $0x13c] sm:$0xff]
  %v7040 = vld [vmem:[#allocation3 + $0x144] sm:$0xff]
  %v7041 = vld [vmem:[#allocation3 + $0x14c] sm:$0xff]
  %v7042 = vld [vmem:[#allocation3 + $0x154] sm:$0xff]
  %v7043 = vld [vmem:[#allocation3 + $0x15c] sm:$0xff]
  %v7044 = vld [vmem:[#allocation3 + $0x164] sm:$0xff]
  %v7045 = vld [vmem:[#allocation3 + $0x16c] sm:$0xff]
  %v7046 = vld [vmem:[#allocation3 + $0x174] sm:$0xff]
  %v7047 = vld [vmem:[#allocation3 + $0x17c] sm:$0xff]
  %v7048 = vld [vmem:[#allocation3 + $0x184] sm:$0xff]
  %v7049 = vld [vmem:[#allocation3 + $0x18c] sm:$0xff]
  %v7050 = vld [vmem:[#allocation3 + $0x194] sm:$0xff]
  %v7051 = vld [vmem:[#allocation3 + $0x19c] sm:$0xff]
  %v7052 = vld [vmem:[#allocation3 + $0x1a4] sm:$0xff]
  %v7053 = vld [vmem:[#allocation3 + $0x1ac] sm:$0xff]
  %v7054 = vld [vmem:[#allocation3 + $0x1b4] sm:$0xff]
  %v7055 = vld [vmem:[#allocation3 + $0x1bc] sm:$0xff]
  %v7056 = vld [vmem:[%s7 + $0x20] sm:$0xff]
  %v7058 = vsel %vm52, %v7007, 0
  %v7061 = vsel %vm52, %v7008, 0
  %v7064 = vsel %vm52, %v7009, 0
  %v7067 = vsel %vm52, %v7010, 0
  %v7070 = vsel %vm52, %v7011, 0
  %v7073 = vsel %vm52, %v7012, 0
  %v7076 = vsel %vm52, %v7013, 0
  %v7079 = vsel %vm52, %v7014, 0
  %v7082 = vsel %vm52, %v7015, 0
  %v7085 = vsel %vm52, %v7016, 0
  %v7088 = vsel %vm52, %v7017, 0
  %v7091 = vsel %vm52, %v7018, 0
  %v7094 = vsel %vm52, %v7019, 0
  %v7097 = vsel %vm52, %v7020, 0
  %v7100 = vsel %vm52, %v7021, 0
  %v7103 = vsel %vm52, %v7022, 0
  %v7106 = vsel %vm52, %v7023, 0
  %v7109 = vsel %vm52, %v7024, 0
  %v7112 = vsel %vm52, %v7025, 0
  %v7115 = vsel %vm52, %v7026, 0
  %v7118 = vsel %vm52, %v7027, 0
  %v7121 = vsel %vm52, %v7028, 0
  %v7124 = vsel %vm52, %v7029, 0
  %v7127 = vsel %vm52, %v7030, 0
  %v7130 = vsel %vm52, %v7031, 0
  %v7133 = vsel %vm52, %v7032, 0
  %v7136 = vsel %vm52, %v7033, 0
  %v7139 = vsel %vm52, %v7034, 0
  %v7142 = vsel %vm52, %v7035, 0
  %v7145 = vsel %vm52, %v7036, 0
  %v7148 = vsel %vm52, %v7037, 0
  %v7151 = vsel %vm52, %v7038, 0
  %v7154 = vsel %vm52, %v7039, 0
  %v7157 = vsel %vm52, %v7040, 0
  %v7160 = vsel %vm52, %v7041, 0
  %v7163 = vsel %vm52, %v7042, 0
  %v7166 = vsel %vm52, %v7043, 0
  %v7169 = vsel %vm52, %v7044, 0
  %v7172 = vsel %vm52, %v7045, 0
  %v7175 = vsel %vm52, %v7046, 0
  %v7178 = vsel %vm52, %v7047, 0
  %v7181 = vsel %vm52, %v7048, 0
  %v7184 = vsel %vm52, %v7049, 0
  %v7187 = vsel %vm52, %v7050, 0
  %v7190 = vsel %vm52, %v7051, 0
  %v7193 = vsel %vm52, %v7052, 0
  %v7196 = vsel %vm52, %v7053, 0
  %v7199 = vsel %vm52, %v7054, 0
  %v7202 = vsel %vm52, %v7055, 0
  %7204 = vmatpush.msra.mxu0 0.0
  %7205 = vmatpush.msra.mxu0 0.0
  %7206 = vmatpush.msra.mxu0 0.0
  %7207 = vmatpush.msra.mxu0 0.0
  %7208 = vmatpush.msra.mxu0 0.0
  %7209 = vmatpush.msra.mxu0 0.0
  %7210 = vmatpush.msra.mxu0 0.0
  %7211 = vmatpush.msra.mxu0 0.0
  %7212 = vmatpush.msra.mxu0 0.0
  %7213 = vmatpush.msra.mxu0 0.0
  %7214 = vmatpush.msra.mxu0 0.0
  %7215 = vmatpush.msra.mxu0 0.0
  %7216 = vmatpush.msra.mxu0 0.0
  %7217 = vmatpush.msra.mxu0 0.0
  %7218 = vmatpush.msra.mxu0 0.0
  %7219 = vmatpush.msra.mxu0 %v7056
  %7220 = vmatmul.f32.gmra.mxu0 %v7058
  %v7221 = vpop.f32.mrf.mxu0
  %v7222 = vadd.f32 0.0, %v7221
  %7223 = vmatmul.f32.gmra.mxu0 %v7061
  %v7224 = vpop.f32.mrf.mxu0
  %v7225 = vadd.f32 0.0, %v7224
  %7226 = vmatmul.f32.gmra.mxu0 %v7064
  %v7227 = vpop.f32.mrf.mxu0
  %v7228 = vadd.f32 0.0, %v7227
  %7229 = vmatmul.f32.gmra.mxu0 %v7067
  %v7230 = vpop.f32.mrf.mxu0
  %v7231 = vadd.f32 0.0, %v7230
  %7232 = vmatmul.f32.gmra.mxu0 %v7070
  %v7233 = vpop.f32.mrf.mxu0
  %v7234 = vadd.f32 0.0, %v7233
  %7235 = vmatmul.f32.gmra.mxu0 %v7073
  %v7236 = vpop.f32.mrf.mxu0
  %v7237 = vadd.f32 0.0, %v7236
  %7238 = vmatmul.f32.gmra.mxu0 %v7076
  %v7239 = vpop.f32.mrf.mxu0
  %v7240 = vadd.f32 0.0, %v7239
  %7241 = vmatmul.f32.gmra.mxu0 %v7079
  %v7242 = vpop.f32.mrf.mxu0
  %v7243 = vadd.f32 0.0, %v7242
  %7244 = vmatmul.f32.gmra.mxu0 %v7082
  %v7245 = vpop.f32.mrf.mxu0
  %v7246 = vadd.f32 0.0, %v7245
  %7247 = vmatmul.f32.gmra.mxu0 %v7085
  %v7248 = vpop.f32.mrf.mxu0
  %v7249 = vadd.f32 0.0, %v7248
  %7250 = vmatmul.f32.gmra.mxu0 %v7088
  %v7251 = vpop.f32.mrf.mxu0
  %v7252 = vadd.f32 0.0, %v7251
  %7253 = vmatmul.f32.gmra.mxu0 %v7091
  %v7254 = vpop.f32.mrf.mxu0
  %v7255 = vadd.f32 0.0, %v7254
  %7256 = vmatmul.f32.gmra.mxu0 %v7094
  %v7257 = vpop.f32.mrf.mxu0
  %v7258 = vadd.f32 0.0, %v7257
  %7259 = vmatmul.f32.gmra.mxu0 %v7097
  %v7260 = vpop.f32.mrf.mxu0
  %v7261 = vadd.f32 0.0, %v7260
  %7262 = vmatmul.f32.gmra.mxu0 %v7100
  %v7263 = vpop.f32.mrf.mxu0
  %v7264 = vadd.f32 0.0, %v7263
  %7265 = vmatmul.f32.gmra.mxu0 %v7103
  %v7266 = vpop.f32.mrf.mxu0
  %v7267 = vadd.f32 0.0, %v7266
  %7268 = vmatmul.f32.gmra.mxu0 %v7106
  %v7269 = vpop.f32.mrf.mxu0
  %v7270 = vadd.f32 0.0, %v7269
  %7271 = vmatmul.f32.gmra.mxu0 %v7109
  %v7272 = vpop.f32.mrf.mxu0
  %v7273 = vadd.f32 0.0, %v7272
  %7274 = vmatmul.f32.gmra.mxu0 %v7112
  %v7275 = vpop.f32.mrf.mxu0
  %v7276 = vadd.f32 0.0, %v7275
  %7277 = vmatmul.f32.gmra.mxu0 %v7115
  %v7278 = vpop.f32.mrf.mxu0
  %v7279 = vadd.f32 0.0, %v7278
  %7280 = vmatmul.f32.gmra.mxu0 %v7118
  %v7281 = vpop.f32.mrf.mxu0
  %v7282 = vadd.f32 0.0, %v7281
  %7283 = vmatmul.f32.gmra.mxu0 %v7121
  %v7284 = vpop.f32.mrf.mxu0
  %v7285 = vadd.f32 0.0, %v7284
  %7286 = vmatmul.f32.gmra.mxu0 %v7124
  %v7287 = vpop.f32.mrf.mxu0
  %v7288 = vadd.f32 0.0, %v7287
  %7289 = vmatmul.f32.gmra.mxu0 %v7127
  %v7290 = vpop.f32.mrf.mxu0
  %v7291 = vadd.f32 0.0, %v7290
  %7292 = vmatmul.f32.gmra.mxu0 %v7130
  %v7293 = vpop.f32.mrf.mxu0
  %v7294 = vadd.f32 0.0, %v7293
  %7295 = vmatmul.f32.gmra.mxu0 %v7133
  %v7296 = vpop.f32.mrf.mxu0
  %v7297 = vadd.f32 0.0, %v7296
  %7298 = vmatmul.f32.gmra.mxu0 %v7136
  %v7299 = vpop.f32.mrf.mxu0
  %v7300 = vadd.f32 0.0, %v7299
  %7301 = vmatmul.f32.gmra.mxu0 %v7139
  %v7302 = vpop.f32.mrf.mxu0
  %v7303 = vadd.f32 0.0, %v7302
  %7304 = vmatmul.f32.gmra.mxu0 %v7142
  %v7305 = vpop.f32.mrf.mxu0
  %v7306 = vadd.f32 0.0, %v7305
  %7307 = vmatmul.f32.gmra.mxu0 %v7145
  %v7308 = vpop.f32.mrf.mxu0
  %v7309 = vadd.f32 0.0, %v7308
  %7310 = vmatmul.f32.gmra.mxu0 %v7148
  %v7311 = vpop.f32.mrf.mxu0
  %v7312 = vadd.f32 0.0, %v7311
  %7313 = vmatmul.f32.gmra.mxu0 %v7151
  %v7314 = vpop.f32.mrf.mxu0
  %v7315 = vadd.f32 0.0, %v7314
  %7316 = vmatmul.f32.gmra.mxu0 %v7154
  %v7317 = vpop.f32.mrf.mxu0
  %v7318 = vadd.f32 0.0, %v7317
  %7319 = vmatmul.f32.gmra.mxu0 %v7157
  %v7320 = vpop.f32.mrf.mxu0
  %v7321 = vadd.f32 0.0, %v7320
  %7322 = vmatmul.f32.gmra.mxu0 %v7160
  %v7323 = vpop.f32.mrf.mxu0
  %v7324 = vadd.f32 0.0, %v7323
  %7325 = vmatmul.f32.gmra.mxu0 %v7163
  %v7326 = vpop.f32.mrf.mxu0
  %v7327 = vadd.f32 0.0, %v7326
  %7328 = vmatmul.f32.gmra.mxu0 %v7166
  %v7329 = vpop.f32.mrf.mxu0
  %v7330 = vadd.f32 0.0, %v7329
  %7331 = vmatmul.f32.gmra.mxu0 %v7169
  %v7332 = vpop.f32.mrf.mxu0
  %v7333 = vadd.f32 0.0, %v7332
  %7334 = vmatmul.f32.gmra.mxu0 %v7172
  %v7335 = vpop.f32.mrf.mxu0
  %v7336 = vadd.f32 0.0, %v7335
  %7337 = vmatmul.f32.gmra.mxu0 %v7175
  %v7338 = vpop.f32.mrf.mxu0
  %v7339 = vadd.f32 0.0, %v7338
  %7340 = vmatmul.f32.gmra.mxu0 %v7178
  %v7341 = vpop.f32.mrf.mxu0
  %v7342 = vadd.f32 0.0, %v7341
  %7343 = vmatmul.f32.gmra.mxu0 %v7181
  %v7344 = vpop.f32.mrf.mxu0
  %v7345 = vadd.f32 0.0, %v7344
  %7346 = vmatmul.f32.gmra.mxu0 %v7184
  %v7347 = vpop.f32.mrf.mxu0
  %v7348 = vadd.f32 0.0, %v7347
  %7349 = vmatmul.f32.gmra.mxu0 %v7187
  %v7350 = vpop.f32.mrf.mxu0
  %v7351 = vadd.f32 0.0, %v7350
  %7352 = vmatmul.f32.gmra.mxu0 %v7190
  %v7353 = vpop.f32.mrf.mxu0
  %v7354 = vadd.f32 0.0, %v7353
  %7355 = vmatmul.f32.gmra.mxu0 %v7193
  %v7356 = vpop.f32.mrf.mxu0
  %v7357 = vadd.f32 0.0, %v7356
  %7358 = vmatmul.f32.gmra.mxu0 %v7196
  %v7359 = vpop.f32.mrf.mxu0
  %v7360 = vadd.f32 0.0, %v7359
  %7361 = vmatmul.f32.gmra.mxu0 %v7199
  %v7362 = vpop.f32.mrf.mxu0
  %v7363 = vadd.f32 0.0, %v7362
  %7364 = vmatmul.f32.gmra.mxu0 %v7202
  %v7365 = vpop.f32.mrf.mxu0
  %v7366 = vadd.f32 0.0, %v7365
  %7367 = vdwg.mxu0
  %v7368 = vadd.f32 %v6958, %v7222
  %v7369 = vadd.f32 %v6959, %v7225
  %v7370 = vadd.f32 %v6960, %v7228
  %v7371 = vadd.f32 %v6961, %v7231
  %v7372 = vadd.f32 %v6962, %v7234
  %v7373 = vadd.f32 %v6963, %v7237
  %v7374 = vadd.f32 %v6964, %v7240
  %v7375 = vadd.f32 %v6965, %v7243
  %v7376 = vadd.f32 %v6966, %v7246
  %v7377 = vadd.f32 %v6967, %v7249
  %v7378 = vadd.f32 %v6968, %v7252
  %v7379 = vadd.f32 %v6969, %v7255
  %v7380 = vadd.f32 %v6970, %v7258
  %v7381 = vadd.f32 %v6971, %v7261
  %v7382 = vadd.f32 %v6972, %v7264
  %v7383 = vadd.f32 %v6973, %v7267
  %v7384 = vadd.f32 %v6974, %v7270
  %v7385 = vadd.f32 %v6975, %v7273
  %v7386 = vadd.f32 %v6976, %v7276
  %v7387 = vadd.f32 %v6977, %v7279
  %v7388 = vadd.f32 %v6978, %v7282
  %v7389 = vadd.f32 %v6979, %v7285
  %v7390 = vadd.f32 %v6980, %v7288
  %v7391 = vadd.f32 %v6981, %v7291
  %v7392 = vadd.f32 %v6982, %v7294
  %v7393 = vadd.f32 %v6983, %v7297
  %v7394 = vadd.f32 %v6984, %v7300
  %v7395 = vadd.f32 %v6985, %v7303
  %v7396 = vadd.f32 %v6986, %v7306
  %v7397 = vadd.f32 %v6987, %v7309
  %v7398 = vadd.f32 %v6988, %v7312
  %v7399 = vadd.f32 %v6989, %v7315
  %v7400 = vadd.f32 %v6990, %v7318
  %v7401 = vadd.f32 %v6991, %v7321
  %v7402 = vadd.f32 %v6992, %v7324
  %v7403 = vadd.f32 %v6993, %v7327
  %v7404 = vadd.f32 %v6994, %v7330
  %v7405 = vadd.f32 %v6995, %v7333
  %v7406 = vadd.f32 %v6996, %v7336
  %v7407 = vadd.f32 %v6997, %v7339
  %v7408 = vadd.f32 %v6998, %v7342
  %v7409 = vadd.f32 %v6999, %v7345
  %v7410 = vadd.f32 %v7000, %v7348
  %v7411 = vadd.f32 %v7001, %v7351
  %v7412 = vadd.f32 %v7002, %v7354
  %v7413 = vadd.f32 %v7003, %v7357
  %v7414 = vadd.f32 %v7004, %v7360
  %v7415 = vadd.f32 %v7005, %v7363
  %v7416 = vadd.f32 %v7006, %v7366
  %v7417 = vld [vmem:[#allocation3 + $0x40] sm:$0xff]
  %v7418 = vld [vmem:[#allocation3 + $0x48] sm:$0xff]
  %v7419 = vld [vmem:[#allocation3 + $0x50] sm:$0xff]
  %v7420 = vld [vmem:[#allocation3 + $0x58] sm:$0xff]
  %v7421 = vld [vmem:[#allocation3 + $0x60] sm:$0xff]
  %v7422 = vld [vmem:[#allocation3 + $0x68] sm:$0xff]
  %v7423 = vld [vmem:[#allocation3 + $0x70] sm:$0xff]
  %v7424 = vld [vmem:[#allocation3 + $0x78] sm:$0xff]
  %v7425 = vld [vmem:[#allocation3 + $0x80] sm:$0xff]
  %v7426 = vld [vmem:[#allocation3 + $0x88] sm:$0xff]
  %v7427 = vld [vmem:[#allocation3 + $0x90] sm:$0xff]
  %v7428 = vld [vmem:[#allocation3 + $0x98] sm:$0xff]
  %v7429 = vld [vmem:[#allocation3 + $0xa0] sm:$0xff]
  %v7430 = vld [vmem:[#allocation3 + $0xa8] sm:$0xff]
  %v7431 = vld [vmem:[#allocation3 + $0xb0] sm:$0xff]
  %v7432 = vld [vmem:[#allocation3 + $0xb8] sm:$0xff]
  %v7433 = vld [vmem:[#allocation3 + $0xc0] sm:$0xff]
  %v7434 = vld [vmem:[#allocation3 + $0xc8] sm:$0xff]
  %v7435 = vld [vmem:[#allocation3 + $0xd0] sm:$0xff]
  %v7436 = vld [vmem:[#allocation3 + $0xd8] sm:$0xff]
  %v7437 = vld [vmem:[#allocation3 + $0xe0] sm:$0xff]
  %v7438 = vld [vmem:[#allocation3 + $0xe8] sm:$0xff]
  %v7439 = vld [vmem:[#allocation3 + $0xf0] sm:$0xff]
  %v7440 = vld [vmem:[#allocation3 + $0xf8] sm:$0xff]
  %v7441 = vld [vmem:[#allocation3 + $0x100] sm:$0xff]
  %v7442 = vld [vmem:[#allocation3 + $0x108] sm:$0xff]
  %v7443 = vld [vmem:[#allocation3 + $0x110] sm:$0xff]
  %v7444 = vld [vmem:[#allocation3 + $0x118] sm:$0xff]
  %v7445 = vld [vmem:[#allocation3 + $0x120] sm:$0xff]
  %v7446 = vld [vmem:[#allocation3 + $0x128] sm:$0xff]
  %v7447 = vld [vmem:[#allocation3 + $0x130] sm:$0xff]
  %v7448 = vld [vmem:[#allocation3 + $0x138] sm:$0xff]
  %v7449 = vld [vmem:[#allocation3 + $0x140] sm:$0xff]
  %v7450 = vld [vmem:[#allocation3 + $0x148] sm:$0xff]
  %v7451 = vld [vmem:[#allocation3 + $0x150] sm:$0xff]
  %v7452 = vld [vmem:[#allocation3 + $0x158] sm:$0xff]
  %v7453 = vld [vmem:[#allocation3 + $0x160] sm:$0xff]
  %v7454 = vld [vmem:[#allocation3 + $0x168] sm:$0xff]
  %v7455 = vld [vmem:[#allocation3 + $0x170] sm:$0xff]
  %v7456 = vld [vmem:[#allocation3 + $0x178] sm:$0xff]
  %v7457 = vld [vmem:[#allocation3 + $0x180] sm:$0xff]
  %v7458 = vld [vmem:[#allocation3 + $0x188] sm:$0xff]
  %v7459 = vld [vmem:[#allocation3 + $0x190] sm:$0xff]
  %v7460 = vld [vmem:[#allocation3 + $0x198] sm:$0xff]
  %v7461 = vld [vmem:[#allocation3 + $0x1a0] sm:$0xff]
  %v7462 = vld [vmem:[#allocation3 + $0x1a8] sm:$0xff]
  %v7463 = vld [vmem:[#allocation3 + $0x1b0] sm:$0xff]
  %v7464 = vld [vmem:[#allocation3 + $0x1b8] sm:$0xff]
  %v7465 = vld [vmem:[#allocation3 + $0x1c0] sm:$0xff]
  %v7466 = vld [vmem:[%s7 + $0x28] sm:$0xff]
  %v7468 = vsel %vm52, %v7417, 0
  %v7471 = vsel %vm52, %v7418, 0
  %v7474 = vsel %vm52, %v7419, 0
  %v7477 = vsel %vm52, %v7420, 0
  %v7480 = vsel %vm52, %v7421, 0
  %v7483 = vsel %vm52, %v7422, 0
  %v7486 = vsel %vm52, %v7423, 0
  %v7489 = vsel %vm52, %v7424, 0
  %v7492 = vsel %vm52, %v7425, 0
  %v7495 = vsel %vm52, %v7426, 0
  %v7498 = vsel %vm52, %v7427, 0
  %v7501 = vsel %vm52, %v7428, 0
  %v7504 = vsel %vm52, %v7429, 0
  %v7507 = vsel %vm52, %v7430, 0
  %v7510 = vsel %vm52, %v7431, 0
  %v7513 = vsel %vm52, %v7432, 0
  %v7516 = vsel %vm52, %v7433, 0
  %v7519 = vsel %vm52, %v7434, 0
  %v7522 = vsel %vm52, %v7435, 0
  %v7525 = vsel %vm52, %v7436, 0
  %v7528 = vsel %vm52, %v7437, 0
  %v7531 = vsel %vm52, %v7438, 0
  %v7534 = vsel %vm52, %v7439, 0
  %v7537 = vsel %vm52, %v7440, 0
  %v7540 = vsel %vm52, %v7441, 0
  %v7543 = vsel %vm52, %v7442, 0
  %v7546 = vsel %vm52, %v7443, 0
  %v7549 = vsel %vm52, %v7444, 0
  %v7552 = vsel %vm52, %v7445, 0
  %v7555 = vsel %vm52, %v7446, 0
  %v7558 = vsel %vm52, %v7447, 0
  %v7561 = vsel %vm52, %v7448, 0
  %v7564 = vsel %vm52, %v7449, 0
  %v7567 = vsel %vm52, %v7450, 0
  %v7570 = vsel %vm52, %v7451, 0
  %v7573 = vsel %vm52, %v7452, 0
  %v7576 = vsel %vm52, %v7453, 0
  %v7579 = vsel %vm52, %v7454, 0
  %v7582 = vsel %vm52, %v7455, 0
  %v7585 = vsel %vm52, %v7456, 0
  %v7588 = vsel %vm52, %v7457, 0
  %v7591 = vsel %vm52, %v7458, 0
  %v7594 = vsel %vm52, %v7459, 0
  %v7597 = vsel %vm52, %v7460, 0
  %v7600 = vsel %vm52, %v7461, 0
  %v7603 = vsel %vm52, %v7462, 0
  %v7606 = vsel %vm52, %v7463, 0
  %v7609 = vsel %vm52, %v7464, 0
  %v7612 = vsel %vm52, %v7465, 0
  %7614 = vmatpush.msra.mxu0 0.0
  %7615 = vmatpush.msra.mxu0 0.0
  %7616 = vmatpush.msra.mxu0 0.0
  %7617 = vmatpush.msra.mxu0 0.0
  %7618 = vmatpush.msra.mxu0 0.0
  %7619 = vmatpush.msra.mxu0 0.0
  %7620 = vmatpush.msra.mxu0 0.0
  %7621 = vmatpush.msra.mxu0 0.0
  %7622 = vmatpush.msra.mxu0 0.0
  %7623 = vmatpush.msra.mxu0 0.0
  %7624 = vmatpush.msra.mxu0 0.0
  %7625 = vmatpush.msra.mxu0 0.0
  %7626 = vmatpush.msra.mxu0 0.0
  %7627 = vmatpush.msra.mxu0 0.0
  %7628 = vmatpush.msra.mxu0 0.0
  %7629 = vmatpush.msra.mxu0 %v7466
  %7630 = vmatmul.f32.gmra.mxu0 %v7468
  %v7631 = vpop.f32.mrf.mxu0
  %v7632 = vadd.f32 0.0, %v7631
  %7633 = vmatmul.f32.gmra.mxu0 %v7471
  %v7634 = vpop.f32.mrf.mxu0
  %v7635 = vadd.f32 0.0, %v7634
  %7636 = vmatmul.f32.gmra.mxu0 %v7474
  %v7637 = vpop.f32.mrf.mxu0
  %v7638 = vadd.f32 0.0, %v7637
  %7639 = vmatmul.f32.gmra.mxu0 %v7477
  %v7640 = vpop.f32.mrf.mxu0
  %v7641 = vadd.f32 0.0, %v7640
  %7642 = vmatmul.f32.gmra.mxu0 %v7480
  %v7643 = vpop.f32.mrf.mxu0
  %v7644 = vadd.f32 0.0, %v7643
  %7645 = vmatmul.f32.gmra.mxu0 %v7483
  %v7646 = vpop.f32.mrf.mxu0
  %v7647 = vadd.f32 0.0, %v7646
  %7648 = vmatmul.f32.gmra.mxu0 %v7486
  %v7649 = vpop.f32.mrf.mxu0
  %v7650 = vadd.f32 0.0, %v7649
  %7651 = vmatmul.f32.gmra.mxu0 %v7489
  %v7652 = vpop.f32.mrf.mxu0
  %v7653 = vadd.f32 0.0, %v7652
  %7654 = vmatmul.f32.gmra.mxu0 %v7492
  %v7655 = vpop.f32.mrf.mxu0
  %v7656 = vadd.f32 0.0, %v7655
  %7657 = vmatmul.f32.gmra.mxu0 %v7495
  %v7658 = vpop.f32.mrf.mxu0
  %v7659 = vadd.f32 0.0, %v7658
  %7660 = vmatmul.f32.gmra.mxu0 %v7498
  %v7661 = vpop.f32.mrf.mxu0
  %v7662 = vadd.f32 0.0, %v7661
  %7663 = vmatmul.f32.gmra.mxu0 %v7501
  %v7664 = vpop.f32.mrf.mxu0
  %v7665 = vadd.f32 0.0, %v7664
  %7666 = vmatmul.f32.gmra.mxu0 %v7504
  %v7667 = vpop.f32.mrf.mxu0
  %v7668 = vadd.f32 0.0, %v7667
  %7669 = vmatmul.f32.gmra.mxu0 %v7507
  %v7670 = vpop.f32.mrf.mxu0
  %v7671 = vadd.f32 0.0, %v7670
  %7672 = vmatmul.f32.gmra.mxu0 %v7510
  %v7673 = vpop.f32.mrf.mxu0
  %v7674 = vadd.f32 0.0, %v7673
  %7675 = vmatmul.f32.gmra.mxu0 %v7513
  %v7676 = vpop.f32.mrf.mxu0
  %v7677 = vadd.f32 0.0, %v7676
  %7678 = vmatmul.f32.gmra.mxu0 %v7516
  %v7679 = vpop.f32.mrf.mxu0
  %v7680 = vadd.f32 0.0, %v7679
  %7681 = vmatmul.f32.gmra.mxu0 %v7519
  %v7682 = vpop.f32.mrf.mxu0
  %v7683 = vadd.f32 0.0, %v7682
  %7684 = vmatmul.f32.gmra.mxu0 %v7522
  %v7685 = vpop.f32.mrf.mxu0
  %v7686 = vadd.f32 0.0, %v7685
  %7687 = vmatmul.f32.gmra.mxu0 %v7525
  %v7688 = vpop.f32.mrf.mxu0
  %v7689 = vadd.f32 0.0, %v7688
  %7690 = vmatmul.f32.gmra.mxu0 %v7528
  %v7691 = vpop.f32.mrf.mxu0
  %v7692 = vadd.f32 0.0, %v7691
  %7693 = vmatmul.f32.gmra.mxu0 %v7531
  %v7694 = vpop.f32.mrf.mxu0
  %v7695 = vadd.f32 0.0, %v7694
  %7696 = vmatmul.f32.gmra.mxu0 %v7534
  %v7697 = vpop.f32.mrf.mxu0
  %v7698 = vadd.f32 0.0, %v7697
  %7699 = vmatmul.f32.gmra.mxu0 %v7537
  %v7700 = vpop.f32.mrf.mxu0
  %v7701 = vadd.f32 0.0, %v7700
  %7702 = vmatmul.f32.gmra.mxu0 %v7540
  %v7703 = vpop.f32.mrf.mxu0
  %v7704 = vadd.f32 0.0, %v7703
  %7705 = vmatmul.f32.gmra.mxu0 %v7543
  %v7706 = vpop.f32.mrf.mxu0
  %v7707 = vadd.f32 0.0, %v7706
  %7708 = vmatmul.f32.gmra.mxu0 %v7546
  %v7709 = vpop.f32.mrf.mxu0
  %v7710 = vadd.f32 0.0, %v7709
  %7711 = vmatmul.f32.gmra.mxu0 %v7549
  %v7712 = vpop.f32.mrf.mxu0
  %v7713 = vadd.f32 0.0, %v7712
  %7714 = vmatmul.f32.gmra.mxu0 %v7552
  %v7715 = vpop.f32.mrf.mxu0
  %v7716 = vadd.f32 0.0, %v7715
  %7717 = vmatmul.f32.gmra.mxu0 %v7555
  %v7718 = vpop.f32.mrf.mxu0
  %v7719 = vadd.f32 0.0, %v7718
  %7720 = vmatmul.f32.gmra.mxu0 %v7558
  %v7721 = vpop.f32.mrf.mxu0
  %v7722 = vadd.f32 0.0, %v7721
  %7723 = vmatmul.f32.gmra.mxu0 %v7561
  %v7724 = vpop.f32.mrf.mxu0
  %v7725 = vadd.f32 0.0, %v7724
  %7726 = vmatmul.f32.gmra.mxu0 %v7564
  %v7727 = vpop.f32.mrf.mxu0
  %v7728 = vadd.f32 0.0, %v7727
  %7729 = vmatmul.f32.gmra.mxu0 %v7567
  %v7730 = vpop.f32.mrf.mxu0
  %v7731 = vadd.f32 0.0, %v7730
  %7732 = vmatmul.f32.gmra.mxu0 %v7570
  %v7733 = vpop.f32.mrf.mxu0
  %v7734 = vadd.f32 0.0, %v7733
  %7735 = vmatmul.f32.gmra.mxu0 %v7573
  %v7736 = vpop.f32.mrf.mxu0
  %v7737 = vadd.f32 0.0, %v7736
  %7738 = vmatmul.f32.gmra.mxu0 %v7576
  %v7739 = vpop.f32.mrf.mxu0
  %v7740 = vadd.f32 0.0, %v7739
  %7741 = vmatmul.f32.gmra.mxu0 %v7579
  %v7742 = vpop.f32.mrf.mxu0
  %v7743 = vadd.f32 0.0, %v7742
  %7744 = vmatmul.f32.gmra.mxu0 %v7582
  %v7745 = vpop.f32.mrf.mxu0
  %v7746 = vadd.f32 0.0, %v7745
  %7747 = vmatmul.f32.gmra.mxu0 %v7585
  %v7748 = vpop.f32.mrf.mxu0
  %v7749 = vadd.f32 0.0, %v7748
  %7750 = vmatmul.f32.gmra.mxu0 %v7588
  %v7751 = vpop.f32.mrf.mxu0
  %v7752 = vadd.f32 0.0, %v7751
  %7753 = vmatmul.f32.gmra.mxu0 %v7591
  %v7754 = vpop.f32.mrf.mxu0
  %v7755 = vadd.f32 0.0, %v7754
  %7756 = vmatmul.f32.gmra.mxu0 %v7594
  %v7757 = vpop.f32.mrf.mxu0
  %v7758 = vadd.f32 0.0, %v7757
  %7759 = vmatmul.f32.gmra.mxu0 %v7597
  %v7760 = vpop.f32.mrf.mxu0
  %v7761 = vadd.f32 0.0, %v7760
  %7762 = vmatmul.f32.gmra.mxu0 %v7600
  %v7763 = vpop.f32.mrf.mxu0
  %v7764 = vadd.f32 0.0, %v7763
  %7765 = vmatmul.f32.gmra.mxu0 %v7603
  %v7766 = vpop.f32.mrf.mxu0
  %v7767 = vadd.f32 0.0, %v7766
  %7768 = vmatmul.f32.gmra.mxu0 %v7606
  %v7769 = vpop.f32.mrf.mxu0
  %v7770 = vadd.f32 0.0, %v7769
  %7771 = vmatmul.f32.gmra.mxu0 %v7609
  %v7772 = vpop.f32.mrf.mxu0
  %v7773 = vadd.f32 0.0, %v7772
  %7774 = vmatmul.f32.gmra.mxu0 %v7612
  %v7775 = vpop.f32.mrf.mxu0
  %v7776 = vadd.f32 0.0, %v7775
  %7777 = vdwg.mxu0
  %v7778 = vadd.f32 %v7368, %v7632
  %v7779 = vadd.f32 %v7369, %v7635
  %v7780 = vadd.f32 %v7370, %v7638
  %v7781 = vadd.f32 %v7371, %v7641
  %v7782 = vadd.f32 %v7372, %v7644
  %v7783 = vadd.f32 %v7373, %v7647
  %v7784 = vadd.f32 %v7374, %v7650
  %v7785 = vadd.f32 %v7375, %v7653
  %v7786 = vadd.f32 %v7376, %v7656
  %v7787 = vadd.f32 %v7377, %v7659
  %v7788 = vadd.f32 %v7378, %v7662
  %v7789 = vadd.f32 %v7379, %v7665
  %v7790 = vadd.f32 %v7380, %v7668
  %v7791 = vadd.f32 %v7381, %v7671
  %v7792 = vadd.f32 %v7382, %v7674
  %v7793 = vadd.f32 %v7383, %v7677
  %v7794 = vadd.f32 %v7384, %v7680
  %v7795 = vadd.f32 %v7385, %v7683
  %v7796 = vadd.f32 %v7386, %v7686
  %v7797 = vadd.f32 %v7387, %v7689
  %v7798 = vadd.f32 %v7388, %v7692
  %v7799 = vadd.f32 %v7389, %v7695
  %v7800 = vadd.f32 %v7390, %v7698
  %v7801 = vadd.f32 %v7391, %v7701
  %v7802 = vadd.f32 %v7392, %v7704
  %v7803 = vadd.f32 %v7393, %v7707
  %v7804 = vadd.f32 %v7394, %v7710
  %v7805 = vadd.f32 %v7395, %v7713
  %v7806 = vadd.f32 %v7396, %v7716
  %v7807 = vadd.f32 %v7397, %v7719
  %v7808 = vadd.f32 %v7398, %v7722
  %v7809 = vadd.f32 %v7399, %v7725
  %v7810 = vadd.f32 %v7400, %v7728
  %v7811 = vadd.f32 %v7401, %v7731
  %v7812 = vadd.f32 %v7402, %v7734
  %v7813 = vadd.f32 %v7403, %v7737
  %v7814 = vadd.f32 %v7404, %v7740
  %v7815 = vadd.f32 %v7405, %v7743
  %v7816 = vadd.f32 %v7406, %v7746
  %v7817 = vadd.f32 %v7407, %v7749
  %v7818 = vadd.f32 %v7408, %v7752
  %v7819 = vadd.f32 %v7409, %v7755
  %v7820 = vadd.f32 %v7410, %v7758
  %v7821 = vadd.f32 %v7411, %v7761
  %v7822 = vadd.f32 %v7412, %v7764
  %v7823 = vadd.f32 %v7413, %v7767
  %v7824 = vadd.f32 %v7414, %v7770
  %v7825 = vadd.f32 %v7415, %v7773
  %v7826 = vadd.f32 %v7416, %v7776
  %v7827 = vld [vmem:[#allocation3 + $0x70] sm:$0xff]
  %v7828 = vld [vmem:[#allocation3 + $0x78] sm:$0xff]
  %v7829 = vld [vmem:[#allocation3 + $0x80] sm:$0xff]
  %v7830 = vld [vmem:[#allocation3 + $0x88] sm:$0xff]
  %v7831 = vld [vmem:[#allocation3 + $0x90] sm:$0xff]
  %v7832 = vld [vmem:[#allocation3 + $0x98] sm:$0xff]
  %v7833 = vld [vmem:[#allocation3 + $0xa0] sm:$0xff]
  %v7834 = vld [vmem:[#allocation3 + $0xa8] sm:$0xff]
  %v7835 = vld [vmem:[#allocation3 + $0xb0] sm:$0xff]
  %v7836 = vld [vmem:[#allocation3 + $0xb8] sm:$0xff]
  %v7837 = vld [vmem:[#allocation3 + $0xc0] sm:$0xff]
  %v7838 = vld [vmem:[#allocation3 + $0xc8] sm:$0xff]
  %v7839 = vld [vmem:[#allocation3 + $0xd0] sm:$0xff]
  %v7840 = vld [vmem:[#allocation3 + $0xd8] sm:$0xff]
  %v7841 = vld [vmem:[#allocation3 + $0xe0] sm:$0xff]
  %v7842 = vld [vmem:[#allocation3 + $0xe8] sm:$0xff]
  %v7843 = vld [vmem:[#allocation3 + $0xf0] sm:$0xff]
  %v7844 = vld [vmem:[#allocation3 + $0xf8] sm:$0xff]
  %v7845 = vld [vmem:[#allocation3 + $0x100] sm:$0xff]
  %v7846 = vld [vmem:[#allocation3 + $0x108] sm:$0xff]
  %v7847 = vld [vmem:[#allocation3 + $0x110] sm:$0xff]
  %v7848 = vld [vmem:[#allocation3 + $0x118] sm:$0xff]
  %v7849 = vld [vmem:[#allocation3 + $0x120] sm:$0xff]
  %v7850 = vld [vmem:[#allocation3 + $0x128] sm:$0xff]
  %v7851 = vld [vmem:[#allocation3 + $0x130] sm:$0xff]
  %v7852 = vld [vmem:[#allocation3 + $0x138] sm:$0xff]
  %v7853 = vld [vmem:[#allocation3 + $0x140] sm:$0xff]
  %v7854 = vld [vmem:[#allocation3 + $0x148] sm:$0xff]
  %v7855 = vld [vmem:[#allocation3 + $0x150] sm:$0xff]
  %v7856 = vld [vmem:[#allocation3 + $0x158] sm:$0xff]
  %v7857 = vld [vmem:[#allocation3 + $0x160] sm:$0xff]
  %v7858 = vld [vmem:[#allocation3 + $0x168] sm:$0xff]
  %v7859 = vld [vmem:[#allocation3 + $0x170] sm:$0xff]
  %v7860 = vld [vmem:[#allocation3 + $0x178] sm:$0xff]
  %v7861 = vld [vmem:[#allocation3 + $0x180] sm:$0xff]
  %v7862 = vld [vmem:[#allocation3 + $0x188] sm:$0xff]
  %v7863 = vld [vmem:[#allocation3 + $0x190] sm:$0xff]
  %v7864 = vld [vmem:[#allocation3 + $0x198] sm:$0xff]
  %v7865 = vld [vmem:[#allocation3 + $0x1a0] sm:$0xff]
  %v7866 = vld [vmem:[#allocation3 + $0x1a8] sm:$0xff]
  %v7867 = vld [vmem:[#allocation3 + $0x1b0] sm:$0xff]
  %v7868 = vld [vmem:[#allocation3 + $0x1b8] sm:$0xff]
  %v7869 = vld [vmem:[#allocation3 + $0x1c0] sm:$0xff]
  %v7870 = vld [vmem:[#allocation3 + $0x1c8] sm:$0xff]
  %v7871 = vld [vmem:[#allocation3 + $0x1d0] sm:$0xff]
  %v7872 = vld [vmem:[#allocation3 + $0x1d8] sm:$0xff]
  %v7873 = vld [vmem:[#allocation3 + $0x1e0] sm:$0xff]
  %v7874 = vld [vmem:[#allocation3 + $0x1e8] sm:$0xff]
  %v7875 = vld [vmem:[#allocation3 + $0x1f0] sm:$0xff]
  %v7876 = vld [vmem:[%s7 + $0x30] sm:$0xff]
  %v7878 = vsel %vm52, %v7827, 0
  %v7881 = vsel %vm52, %v7828, 0
  %v7884 = vsel %vm52, %v7829, 0
  %v7887 = vsel %vm52, %v7830, 0
  %v7890 = vsel %vm52, %v7831, 0
  %v7893 = vsel %vm52, %v7832, 0
  %v7896 = vsel %vm52, %v7833, 0
  %v7899 = vsel %vm52, %v7834, 0
  %v7902 = vsel %vm52, %v7835, 0
  %v7905 = vsel %vm52, %v7836, 0
  %v7908 = vsel %vm52, %v7837, 0
  %v7911 = vsel %vm52, %v7838, 0
  %v7914 = vsel %vm52, %v7839, 0
  %v7917 = vsel %vm52, %v7840, 0
  %v7920 = vsel %vm52, %v7841, 0
  %v7923 = vsel %vm52, %v7842, 0
  %v7926 = vsel %vm52, %v7843, 0
  %v7929 = vsel %vm52, %v7844, 0
  %v7932 = vsel %vm52, %v7845, 0
  %v7935 = vsel %vm52, %v7846, 0
  %v7938 = vsel %vm52, %v7847, 0
  %v7941 = vsel %vm52, %v7848, 0
  %v7944 = vsel %vm52, %v7849, 0
  %v7947 = vsel %vm52, %v7850, 0
  %v7950 = vsel %vm52, %v7851, 0
  %v7953 = vsel %vm52, %v7852, 0
  %v7956 = vsel %vm52, %v7853, 0
  %v7959 = vsel %vm52, %v7854, 0
  %v7962 = vsel %vm52, %v7855, 0
  %v7965 = vsel %vm52, %v7856, 0
  %v7968 = vsel %vm52, %v7857, 0
  %v7971 = vsel %vm52, %v7858, 0
  %v7974 = vsel %vm52, %v7859, 0
  %v7977 = vsel %vm52, %v7860, 0
  %v7980 = vsel %vm52, %v7861, 0
  %v7983 = vsel %vm52, %v7862, 0
  %v7986 = vsel %vm52, %v7863, 0
  %v7989 = vsel %vm52, %v7864, 0
  %v7992 = vsel %vm52, %v7865, 0
  %v7995 = vsel %vm52, %v7866, 0
  %v7998 = vsel %vm52, %v7867, 0
  %v8001 = vsel %vm52, %v7868, 0
  %v8004 = vsel %vm52, %v7869, 0
  %v8007 = vsel %vm52, %v7870, 0
  %v8010 = vsel %vm52, %v7871, 0
  %v8013 = vsel %vm52, %v7872, 0
  %v8016 = vsel %vm52, %v7873, 0
  %v8019 = vsel %vm52, %v7874, 0
  %v8022 = vsel %vm52, %v7875, 0
  %8024 = vmatpush.msra.mxu0 0.0
  %8025 = vmatpush.msra.mxu0 0.0
  %8026 = vmatpush.msra.mxu0 0.0
  %8027 = vmatpush.msra.mxu0 0.0
  %8028 = vmatpush.msra.mxu0 0.0
  %8029 = vmatpush.msra.mxu0 0.0
  %8030 = vmatpush.msra.mxu0 0.0
  %8031 = vmatpush.msra.mxu0 0.0
  %8032 = vmatpush.msra.mxu0 0.0
  %8033 = vmatpush.msra.mxu0 0.0
  %8034 = vmatpush.msra.mxu0 0.0
  %8035 = vmatpush.msra.mxu0 0.0
  %8036 = vmatpush.msra.mxu0 0.0
  %8037 = vmatpush.msra.mxu0 0.0
  %8038 = vmatpush.msra.mxu0 0.0
  %8039 = vmatpush.msra.mxu0 %v7876
  %8040 = vmatmul.f32.gmra.mxu0 %v7878
  %v8041 = vpop.f32.mrf.mxu0
  %v8042 = vadd.f32 0.0, %v8041
  %8043 = vmatmul.f32.gmra.mxu0 %v7881
  %v8044 = vpop.f32.mrf.mxu0
  %v8045 = vadd.f32 0.0, %v8044
  %8046 = vmatmul.f32.gmra.mxu0 %v7884
  %v8047 = vpop.f32.mrf.mxu0
  %v8048 = vadd.f32 0.0, %v8047
  %8049 = vmatmul.f32.gmra.mxu0 %v7887
  %v8050 = vpop.f32.mrf.mxu0
  %v8051 = vadd.f32 0.0, %v8050
  %8052 = vmatmul.f32.gmra.mxu0 %v7890
  %v8053 = vpop.f32.mrf.mxu0
  %v8054 = vadd.f32 0.0, %v8053
  %8055 = vmatmul.f32.gmra.mxu0 %v7893
  %v8056 = vpop.f32.mrf.mxu0
  %v8057 = vadd.f32 0.0, %v8056
  %8058 = vmatmul.f32.gmra.mxu0 %v7896
  %v8059 = vpop.f32.mrf.mxu0
  %v8060 = vadd.f32 0.0, %v8059
  %8061 = vmatmul.f32.gmra.mxu0 %v7899
  %v8062 = vpop.f32.mrf.mxu0
  %v8063 = vadd.f32 0.0, %v8062
  %8064 = vmatmul.f32.gmra.mxu0 %v7902
  %v8065 = vpop.f32.mrf.mxu0
  %v8066 = vadd.f32 0.0, %v8065
  %8067 = vmatmul.f32.gmra.mxu0 %v7905
  %v8068 = vpop.f32.mrf.mxu0
  %v8069 = vadd.f32 0.0, %v8068
  %8070 = vmatmul.f32.gmra.mxu0 %v7908
  %v8071 = vpop.f32.mrf.mxu0
  %v8072 = vadd.f32 0.0, %v8071
  %8073 = vmatmul.f32.gmra.mxu0 %v7911
  %v8074 = vpop.f32.mrf.mxu0
  %v8075 = vadd.f32 0.0, %v8074
  %8076 = vmatmul.f32.gmra.mxu0 %v7914
  %v8077 = vpop.f32.mrf.mxu0
  %v8078 = vadd.f32 0.0, %v8077
  %8079 = vmatmul.f32.gmra.mxu0 %v7917
  %v8080 = vpop.f32.mrf.mxu0
  %v8081 = vadd.f32 0.0, %v8080
  %8082 = vmatmul.f32.gmra.mxu0 %v7920
  %v8083 = vpop.f32.mrf.mxu0
  %v8084 = vadd.f32 0.0, %v8083
  %8085 = vmatmul.f32.gmra.mxu0 %v7923
  %v8086 = vpop.f32.mrf.mxu0
  %v8087 = vadd.f32 0.0, %v8086
  %8088 = vmatmul.f32.gmra.mxu0 %v7926
  %v8089 = vpop.f32.mrf.mxu0
  %v8090 = vadd.f32 0.0, %v8089
  %8091 = vmatmul.f32.gmra.mxu0 %v7929
  %v8092 = vpop.f32.mrf.mxu0
  %v8093 = vadd.f32 0.0, %v8092
  %8094 = vmatmul.f32.gmra.mxu0 %v7932
  %v8095 = vpop.f32.mrf.mxu0
  %v8096 = vadd.f32 0.0, %v8095
  %8097 = vmatmul.f32.gmra.mxu0 %v7935
  %v8098 = vpop.f32.mrf.mxu0
  %v8099 = vadd.f32 0.0, %v8098
  %8100 = vmatmul.f32.gmra.mxu0 %v7938
  %v8101 = vpop.f32.mrf.mxu0
  %v8102 = vadd.f32 0.0, %v8101
  %8103 = vmatmul.f32.gmra.mxu0 %v7941
  %v8104 = vpop.f32.mrf.mxu0
  %v8105 = vadd.f32 0.0, %v8104
  %8106 = vmatmul.f32.gmra.mxu0 %v7944
  %v8107 = vpop.f32.mrf.mxu0
  %v8108 = vadd.f32 0.0, %v8107
  %8109 = vmatmul.f32.gmra.mxu0 %v7947
  %v8110 = vpop.f32.mrf.mxu0
  %v8111 = vadd.f32 0.0, %v8110
  %8112 = vmatmul.f32.gmra.mxu0 %v7950
  %v8113 = vpop.f32.mrf.mxu0
  %v8114 = vadd.f32 0.0, %v8113
  %8115 = vmatmul.f32.gmra.mxu0 %v7953
  %v8116 = vpop.f32.mrf.mxu0
  %v8117 = vadd.f32 0.0, %v8116
  %8118 = vmatmul.f32.gmra.mxu0 %v7956
  %v8119 = vpop.f32.mrf.mxu0
  %v8120 = vadd.f32 0.0, %v8119
  %8121 = vmatmul.f32.gmra.mxu0 %v7959
  %v8122 = vpop.f32.mrf.mxu0
  %v8123 = vadd.f32 0.0, %v8122
  %8124 = vmatmul.f32.gmra.mxu0 %v7962
  %v8125 = vpop.f32.mrf.mxu0
  %v8126 = vadd.f32 0.0, %v8125
  %8127 = vmatmul.f32.gmra.mxu0 %v7965
  %v8128 = vpop.f32.mrf.mxu0
  %v8129 = vadd.f32 0.0, %v8128
  %8130 = vmatmul.f32.gmra.mxu0 %v7968
  %v8131 = vpop.f32.mrf.mxu0
  %v8132 = vadd.f32 0.0, %v8131
  %8133 = vmatmul.f32.gmra.mxu0 %v7971
  %v8134 = vpop.f32.mrf.mxu0
  %v8135 = vadd.f32 0.0, %v8134
  %8136 = vmatmul.f32.gmra.mxu0 %v7974
  %v8137 = vpop.f32.mrf.mxu0
  %v8138 = vadd.f32 0.0, %v8137
  %8139 = vmatmul.f32.gmra.mxu0 %v7977
  %v8140 = vpop.f32.mrf.mxu0
  %v8141 = vadd.f32 0.0, %v8140
  %8142 = vmatmul.f32.gmra.mxu0 %v7980
  %v8143 = vpop.f32.mrf.mxu0
  %v8144 = vadd.f32 0.0, %v8143
  %8145 = vmatmul.f32.gmra.mxu0 %v7983
  %v8146 = vpop.f32.mrf.mxu0
  %v8147 = vadd.f32 0.0, %v8146
  %8148 = vmatmul.f32.gmra.mxu0 %v7986
  %v8149 = vpop.f32.mrf.mxu0
  %v8150 = vadd.f32 0.0, %v8149
  %8151 = vmatmul.f32.gmra.mxu0 %v7989
  %v8152 = vpop.f32.mrf.mxu0
  %v8153 = vadd.f32 0.0, %v8152
  %8154 = vmatmul.f32.gmra.mxu0 %v7992
  %v8155 = vpop.f32.mrf.mxu0
  %v8156 = vadd.f32 0.0, %v8155
  %8157 = vmatmul.f32.gmra.mxu0 %v7995
  %v8158 = vpop.f32.mrf.mxu0
  %v8159 = vadd.f32 0.0, %v8158
  %8160 = vmatmul.f32.gmra.mxu0 %v7998
  %v8161 = vpop.f32.mrf.mxu0
  %v8162 = vadd.f32 0.0, %v8161
  %8163 = vmatmul.f32.gmra.mxu0 %v8001
  %v8164 = vpop.f32.mrf.mxu0
  %v8165 = vadd.f32 0.0, %v8164
  %8166 = vmatmul.f32.gmra.mxu0 %v8004
  %v8167 = vpop.f32.mrf.mxu0
  %v8168 = vadd.f32 0.0, %v8167
  %8169 = vmatmul.f32.gmra.mxu0 %v8007
  %v8170 = vpop.f32.mrf.mxu0
  %v8171 = vadd.f32 0.0, %v8170
  %8172 = vmatmul.f32.gmra.mxu0 %v8010
  %v8173 = vpop.f32.mrf.mxu0
  %v8174 = vadd.f32 0.0, %v8173
  %8175 = vmatmul.f32.gmra.mxu0 %v8013
  %v8176 = vpop.f32.mrf.mxu0
  %v8177 = vadd.f32 0.0, %v8176
  %8178 = vmatmul.f32.gmra.mxu0 %v8016
  %v8179 = vpop.f32.mrf.mxu0
  %v8180 = vadd.f32 0.0, %v8179
  %8181 = vmatmul.f32.gmra.mxu0 %v8019
  %v8182 = vpop.f32.mrf.mxu0
  %v8183 = vadd.f32 0.0, %v8182
  %8184 = vmatmul.f32.gmra.mxu0 %v8022
  %v8185 = vpop.f32.mrf.mxu0
  %v8186 = vadd.f32 0.0, %v8185
  %8187 = vdwg.mxu0
  %v8188 = vadd.f32 %v7778, %v8042
  %v8189 = vadd.f32 %v7779, %v8045
  %v8190 = vadd.f32 %v7780, %v8048
  %v8191 = vadd.f32 %v7781, %v8051
  %v8192 = vadd.f32 %v7782, %v8054
  %v8193 = vadd.f32 %v7783, %v8057
  %v8194 = vadd.f32 %v7784, %v8060
  %v8195 = vadd.f32 %v7785, %v8063
  %v8196 = vadd.f32 %v7786, %v8066
  %v8197 = vadd.f32 %v7787, %v8069
  %v8198 = vadd.f32 %v7788, %v8072
  %v8199 = vadd.f32 %v7789, %v8075
  %v8200 = vadd.f32 %v7790, %v8078
  %v8201 = vadd.f32 %v7791, %v8081
  %v8202 = vadd.f32 %v7792, %v8084
  %v8203 = vadd.f32 %v7793, %v8087
  %v8204 = vadd.f32 %v7794, %v8090
  %v8205 = vadd.f32 %v7795, %v8093
  %v8206 = vadd.f32 %v7796, %v8096
  %v8207 = vadd.f32 %v7797, %v8099
  %v8208 = vadd.f32 %v7798, %v8102
  %v8209 = vadd.f32 %v7799, %v8105
  %v8210 = vadd.f32 %v7800, %v8108
  %v8211 = vadd.f32 %v7801, %v8111
  %v8212 = vadd.f32 %v7802, %v8114
  %v8213 = vadd.f32 %v7803, %v8117
  %v8214 = vadd.f32 %v7804, %v8120
  %v8215 = vadd.f32 %v7805, %v8123
  %v8216 = vadd.f32 %v7806, %v8126
  %v8217 = vadd.f32 %v7807, %v8129
  %v8218 = vadd.f32 %v7808, %v8132
  %v8219 = vadd.f32 %v7809, %v8135
  %v8220 = vadd.f32 %v7810, %v8138
  %v8221 = vadd.f32 %v7811, %v8141
  %v8222 = vadd.f32 %v7812, %v8144
  %v8223 = vadd.f32 %v7813, %v8147
  %v8224 = vadd.f32 %v7814, %v8150
  %v8225 = vadd.f32 %v7815, %v8153
  %v8226 = vadd.f32 %v7816, %v8156
  %v8227 = vadd.f32 %v7817, %v8159
  %v8228 = vadd.f32 %v7818, %v8162
  %v8229 = vadd.f32 %v7819, %v8165
  %v8230 = vadd.f32 %v7820, %v8168
  %v8231 = vadd.f32 %v7821, %v8171
  %v8232 = vadd.f32 %v7822, %v8174
  %v8233 = vadd.f32 %v7823, %v8177
  %v8234 = vadd.f32 %v7824, %v8180
  %v8235 = vadd.f32 %v7825, %v8183
  %v8236 = vadd.f32 %v7826, %v8186
  %v8237 = vld [vmem:[#allocation3 + $0x74] sm:$0xff]
  %v8238 = vld [vmem:[#allocation3 + $0x7c] sm:$0xff]
  %v8239 = vld [vmem:[#allocation3 + $0x84] sm:$0xff]
  %v8240 = vld [vmem:[#allocation3 + $0x8c] sm:$0xff]
  %v8241 = vld [vmem:[#allocation3 + $0x94] sm:$0xff]
  %v8242 = vld [vmem:[#allocation3 + $0x9c] sm:$0xff]
  %v8243 = vld [vmem:[#allocation3 + $0xa4] sm:$0xff]
  %v8244 = vld [vmem:[#allocation3 + $0xac] sm:$0xff]
  %v8245 = vld [vmem:[#allocation3 + $0xb4] sm:$0xff]
  %v8246 = vld [vmem:[#allocation3 + $0xbc] sm:$0xff]
  %v8247 = vld [vmem:[#allocation3 + $0xc4] sm:$0xff]
  %v8248 = vld [vmem:[#allocation3 + $0xcc] sm:$0xff]
  %v8249 = vld [vmem:[#allocation3 + $0xd4] sm:$0xff]
  %v8250 = vld [vmem:[#allocation3 + $0xdc] sm:$0xff]
  %v8251 = vld [vmem:[#allocation3 + $0xe4] sm:$0xff]
  %v8252 = vld [vmem:[#allocation3 + $0xec] sm:$0xff]
  %v8253 = vld [vmem:[#allocation3 + $0xf4] sm:$0xff]
  %v8254 = vld [vmem:[#allocation3 + $0xfc] sm:$0xff]
  %v8255 = vld [vmem:[#allocation3 + $0x104] sm:$0xff]
  %v8256 = vld [vmem:[#allocation3 + $0x10c] sm:$0xff]
  %v8257 = vld [vmem:[#allocation3 + $0x114] sm:$0xff]
  %v8258 = vld [vmem:[#allocation3 + $0x11c] sm:$0xff]
  %v8259 = vld [vmem:[#allocation3 + $0x124] sm:$0xff]
  %v8260 = vld [vmem:[#allocation3 + $0x12c] sm:$0xff]
  %v8261 = vld [vmem:[#allocation3 + $0x134] sm:$0xff]
  %v8262 = vld [vmem:[#allocation3 + $0x13c] sm:$0xff]
  %v8263 = vld [vmem:[#allocation3 + $0x144] sm:$0xff]
  %v8264 = vld [vmem:[#allocation3 + $0x14c] sm:$0xff]
  %v8265 = vld [vmem:[#allocation3 + $0x154] sm:$0xff]
  %v8266 = vld [vmem:[#allocation3 + $0x15c] sm:$0xff]
  %v8267 = vld [vmem:[#allocation3 + $0x164] sm:$0xff]
  %v8268 = vld [vmem:[#allocation3 + $0x16c] sm:$0xff]
  %v8269 = vld [vmem:[#allocation3 + $0x174] sm:$0xff]
  %v8270 = vld [vmem:[#allocation3 + $0x17c] sm:$0xff]
  %v8271 = vld [vmem:[#allocation3 + $0x184] sm:$0xff]
  %v8272 = vld [vmem:[#allocation3 + $0x18c] sm:$0xff]
  %v8273 = vld [vmem:[#allocation3 + $0x194] sm:$0xff]
  %v8274 = vld [vmem:[#allocation3 + $0x19c] sm:$0xff]
  %v8275 = vld [vmem:[#allocation3 + $0x1a4] sm:$0xff]
  %v8276 = vld [vmem:[#allocation3 + $0x1ac] sm:$0xff]
  %v8277 = vld [vmem:[#allocation3 + $0x1b4] sm:$0xff]
  %v8278 = vld [vmem:[#allocation3 + $0x1bc] sm:$0xff]
  %v8279 = vld [vmem:[#allocation3 + $0x1c4] sm:$0xff]
  %v8280 = vld [vmem:[#allocation3 + $0x1cc] sm:$0xff]
  %v8281 = vld [vmem:[#allocation3 + $0x1d4] sm:$0xff]
  %v8282 = vld [vmem:[#allocation3 + $0x1dc] sm:$0xff]
  %v8283 = vld [vmem:[#allocation3 + $0x1e4] sm:$0xff]
  %v8284 = vld [vmem:[#allocation3 + $0x1ec] sm:$0xff]
  %v8285 = vld [vmem:[#allocation3 + $0x1f4] sm:$0xff]
  %v8286 = vld [vmem:[%s7 + $0x38] sm:$0xff]
  %v8288 = vsel %vm52, %v8237, 0
  %v8291 = vsel %vm52, %v8238, 0
  %v8294 = vsel %vm52, %v8239, 0
  %v8297 = vsel %vm52, %v8240, 0
  %v8300 = vsel %vm52, %v8241, 0
  %v8303 = vsel %vm52, %v8242, 0
  %v8306 = vsel %vm52, %v8243, 0
  %v8309 = vsel %vm52, %v8244, 0
  %v8312 = vsel %vm52, %v8245, 0
  %v8315 = vsel %vm52, %v8246, 0
  %v8318 = vsel %vm52, %v8247, 0
  %v8321 = vsel %vm52, %v8248, 0
  %v8324 = vsel %vm52, %v8249, 0
  %v8327 = vsel %vm52, %v8250, 0
  %v8330 = vsel %vm52, %v8251, 0
  %v8333 = vsel %vm52, %v8252, 0
  %v8336 = vsel %vm52, %v8253, 0
  %v8339 = vsel %vm52, %v8254, 0
  %v8342 = vsel %vm52, %v8255, 0
  %v8345 = vsel %vm52, %v8256, 0
  %v8348 = vsel %vm52, %v8257, 0
  %v8351 = vsel %vm52, %v8258, 0
  %v8354 = vsel %vm52, %v8259, 0
  %v8357 = vsel %vm52, %v8260, 0
  %v8360 = vsel %vm52, %v8261, 0
  %v8363 = vsel %vm52, %v8262, 0
  %v8366 = vsel %vm52, %v8263, 0
  %v8369 = vsel %vm52, %v8264, 0
  %v8372 = vsel %vm52, %v8265, 0
  %v8375 = vsel %vm52, %v8266, 0
  %v8378 = vsel %vm52, %v8267, 0
  %v8381 = vsel %vm52, %v8268, 0
  %v8384 = vsel %vm52, %v8269, 0
  %v8387 = vsel %vm52, %v8270, 0
  %v8390 = vsel %vm52, %v8271, 0
  %v8393 = vsel %vm52, %v8272, 0
  %v8396 = vsel %vm52, %v8273, 0
  %v8399 = vsel %vm52, %v8274, 0
  %v8402 = vsel %vm52, %v8275, 0
  %v8405 = vsel %vm52, %v8276, 0
  %v8408 = vsel %vm52, %v8277, 0
  %v8411 = vsel %vm52, %v8278, 0
  %v8414 = vsel %vm52, %v8279, 0
  %v8417 = vsel %vm52, %v8280, 0
  %v8420 = vsel %vm52, %v8281, 0
  %v8423 = vsel %vm52, %v8282, 0
  %v8426 = vsel %vm52, %v8283, 0
  %v8429 = vsel %vm52, %v8284, 0
  %v8432 = vsel %vm52, %v8285, 0
  %8434 = vmatpush.msra.mxu0 0.0
  %8435 = vmatpush.msra.mxu0 0.0
  %8436 = vmatpush.msra.mxu0 0.0
  %8437 = vmatpush.msra.mxu0 0.0
  %8438 = vmatpush.msra.mxu0 0.0
  %8439 = vmatpush.msra.mxu0 0.0
  %8440 = vmatpush.msra.mxu0 0.0
  %8441 = vmatpush.msra.mxu0 0.0
  %8442 = vmatpush.msra.mxu0 0.0
  %8443 = vmatpush.msra.mxu0 0.0
  %8444 = vmatpush.msra.mxu0 0.0
  %8445 = vmatpush.msra.mxu0 0.0
  %8446 = vmatpush.msra.mxu0 0.0
  %8447 = vmatpush.msra.mxu0 0.0
  %8448 = vmatpush.msra.mxu0 0.0
  %8449 = vmatpush.msra.mxu0 %v8286
  %8450 = vmatmul.f32.gmra.mxu0 %v8288
  %v8451 = vpop.f32.mrf.mxu0
  %v8452 = vadd.f32 0.0, %v8451
  %8453 = vmatmul.f32.gmra.mxu0 %v8291
  %v8454 = vpop.f32.mrf.mxu0
  %v8455 = vadd.f32 0.0, %v8454
  %8456 = vmatmul.f32.gmra.mxu0 %v8294
  %v8457 = vpop.f32.mrf.mxu0
  %v8458 = vadd.f32 0.0, %v8457
  %8459 = vmatmul.f32.gmra.mxu0 %v8297
  %v8460 = vpop.f32.mrf.mxu0
  %v8461 = vadd.f32 0.0, %v8460
  %8462 = vmatmul.f32.gmra.mxu0 %v8300
  %v8463 = vpop.f32.mrf.mxu0
  %v8464 = vadd.f32 0.0, %v8463
  %8465 = vmatmul.f32.gmra.mxu0 %v8303
  %v8466 = vpop.f32.mrf.mxu0
  %v8467 = vadd.f32 0.0, %v8466
  %8468 = vmatmul.f32.gmra.mxu0 %v8306
  %v8469 = vpop.f32.mrf.mxu0
  %v8470 = vadd.f32 0.0, %v8469
  %8471 = vmatmul.f32.gmra.mxu0 %v8309
  %v8472 = vpop.f32.mrf.mxu0
  %v8473 = vadd.f32 0.0, %v8472
  %8474 = vmatmul.f32.gmra.mxu0 %v8312
  %v8475 = vpop.f32.mrf.mxu0
  %v8476 = vadd.f32 0.0, %v8475
  %8477 = vmatmul.f32.gmra.mxu0 %v8315
  %v8478 = vpop.f32.mrf.mxu0
  %v8479 = vadd.f32 0.0, %v8478
  %8480 = vmatmul.f32.gmra.mxu0 %v8318
  %v8481 = vpop.f32.mrf.mxu0
  %v8482 = vadd.f32 0.0, %v8481
  %8483 = vmatmul.f32.gmra.mxu0 %v8321
  %v8484 = vpop.f32.mrf.mxu0
  %v8485 = vadd.f32 0.0, %v8484
  %8486 = vmatmul.f32.gmra.mxu0 %v8324
  %v8487 = vpop.f32.mrf.mxu0
  %v8488 = vadd.f32 0.0, %v8487
  %8489 = vmatmul.f32.gmra.mxu0 %v8327
  %v8490 = vpop.f32.mrf.mxu0
  %v8491 = vadd.f32 0.0, %v8490
  %8492 = vmatmul.f32.gmra.mxu0 %v8330
  %v8493 = vpop.f32.mrf.mxu0
  %v8494 = vadd.f32 0.0, %v8493
  %8495 = vmatmul.f32.gmra.mxu0 %v8333
  %v8496 = vpop.f32.mrf.mxu0
  %v8497 = vadd.f32 0.0, %v8496
  %8498 = vmatmul.f32.gmra.mxu0 %v8336
  %v8499 = vpop.f32.mrf.mxu0
  %v8500 = vadd.f32 0.0, %v8499
  %8501 = vmatmul.f32.gmra.mxu0 %v8339
  %v8502 = vpop.f32.mrf.mxu0
  %v8503 = vadd.f32 0.0, %v8502
  %8504 = vmatmul.f32.gmra.mxu0 %v8342
  %v8505 = vpop.f32.mrf.mxu0
  %v8506 = vadd.f32 0.0, %v8505
  %8507 = vmatmul.f32.gmra.mxu0 %v8345
  %v8508 = vpop.f32.mrf.mxu0
  %v8509 = vadd.f32 0.0, %v8508
  %8510 = vmatmul.f32.gmra.mxu0 %v8348
  %v8511 = vpop.f32.mrf.mxu0
  %v8512 = vadd.f32 0.0, %v8511
  %8513 = vmatmul.f32.gmra.mxu0 %v8351
  %v8514 = vpop.f32.mrf.mxu0
  %v8515 = vadd.f32 0.0, %v8514
  %8516 = vmatmul.f32.gmra.mxu0 %v8354
  %v8517 = vpop.f32.mrf.mxu0
  %v8518 = vadd.f32 0.0, %v8517
  %8519 = vmatmul.f32.gmra.mxu0 %v8357
  %v8520 = vpop.f32.mrf.mxu0
  %v8521 = vadd.f32 0.0, %v8520
  %8522 = vmatmul.f32.gmra.mxu0 %v8360
  %v8523 = vpop.f32.mrf.mxu0
  %v8524 = vadd.f32 0.0, %v8523
  %8525 = vmatmul.f32.gmra.mxu0 %v8363
  %v8526 = vpop.f32.mrf.mxu0
  %v8527 = vadd.f32 0.0, %v8526
  %8528 = vmatmul.f32.gmra.mxu0 %v8366
  %v8529 = vpop.f32.mrf.mxu0
  %v8530 = vadd.f32 0.0, %v8529
  %8531 = vmatmul.f32.gmra.mxu0 %v8369
  %v8532 = vpop.f32.mrf.mxu0
  %v8533 = vadd.f32 0.0, %v8532
  %8534 = vmatmul.f32.gmra.mxu0 %v8372
  %v8535 = vpop.f32.mrf.mxu0
  %v8536 = vadd.f32 0.0, %v8535
  %8537 = vmatmul.f32.gmra.mxu0 %v8375
  %v8538 = vpop.f32.mrf.mxu0
  %v8539 = vadd.f32 0.0, %v8538
  %8540 = vmatmul.f32.gmra.mxu0 %v8378
  %v8541 = vpop.f32.mrf.mxu0
  %v8542 = vadd.f32 0.0, %v8541
  %8543 = vmatmul.f32.gmra.mxu0 %v8381
  %v8544 = vpop.f32.mrf.mxu0
  %v8545 = vadd.f32 0.0, %v8544
  %8546 = vmatmul.f32.gmra.mxu0 %v8384
  %v8547 = vpop.f32.mrf.mxu0
  %v8548 = vadd.f32 0.0, %v8547
  %8549 = vmatmul.f32.gmra.mxu0 %v8387
  %v8550 = vpop.f32.mrf.mxu0
  %v8551 = vadd.f32 0.0, %v8550
  %8552 = vmatmul.f32.gmra.mxu0 %v8390
  %v8553 = vpop.f32.mrf.mxu0
  %v8554 = vadd.f32 0.0, %v8553
  %8555 = vmatmul.f32.gmra.mxu0 %v8393
  %v8556 = vpop.f32.mrf.mxu0
  %v8557 = vadd.f32 0.0, %v8556
  %8558 = vmatmul.f32.gmra.mxu0 %v8396
  %v8559 = vpop.f32.mrf.mxu0
  %v8560 = vadd.f32 0.0, %v8559
  %8561 = vmatmul.f32.gmra.mxu0 %v8399
  %v8562 = vpop.f32.mrf.mxu0
  %v8563 = vadd.f32 0.0, %v8562
  %8564 = vmatmul.f32.gmra.mxu0 %v8402
  %v8565 = vpop.f32.mrf.mxu0
  %v8566 = vadd.f32 0.0, %v8565
  %8567 = vmatmul.f32.gmra.mxu0 %v8405
  %v8568 = vpop.f32.mrf.mxu0
  %v8569 = vadd.f32 0.0, %v8568
  %8570 = vmatmul.f32.gmra.mxu0 %v8408
  %v8571 = vpop.f32.mrf.mxu0
  %v8572 = vadd.f32 0.0, %v8571
  %8573 = vmatmul.f32.gmra.mxu0 %v8411
  %v8574 = vpop.f32.mrf.mxu0
  %v8575 = vadd.f32 0.0, %v8574
  %8576 = vmatmul.f32.gmra.mxu0 %v8414
  %v8577 = vpop.f32.mrf.mxu0
  %v8578 = vadd.f32 0.0, %v8577
  %8579 = vmatmul.f32.gmra.mxu0 %v8417
  %v8580 = vpop.f32.mrf.mxu0
  %v8581 = vadd.f32 0.0, %v8580
  %8582 = vmatmul.f32.gmra.mxu0 %v8420
  %v8583 = vpop.f32.mrf.mxu0
  %v8584 = vadd.f32 0.0, %v8583
  %8585 = vmatmul.f32.gmra.mxu0 %v8423
  %v8586 = vpop.f32.mrf.mxu0
  %v8587 = vadd.f32 0.0, %v8586
  %8588 = vmatmul.f32.gmra.mxu0 %v8426
  %v8589 = vpop.f32.mrf.mxu0
  %v8590 = vadd.f32 0.0, %v8589
  %8591 = vmatmul.f32.gmra.mxu0 %v8429
  %v8592 = vpop.f32.mrf.mxu0
  %v8593 = vadd.f32 0.0, %v8592
  %8594 = vmatmul.f32.gmra.mxu0 %v8432
  %v8595 = vpop.f32.mrf.mxu0
  %v8596 = vadd.f32 0.0, %v8595
  %8597 = vdwg.mxu0
  %v8598 = vadd.f32 %v8188, %v8452
  %v8599 = vadd.f32 %v8189, %v8455
  %v8600 = vadd.f32 %v8190, %v8458
  %v8601 = vadd.f32 %v8191, %v8461
  %v8602 = vadd.f32 %v8192, %v8464
  %v8603 = vadd.f32 %v8193, %v8467
  %v8604 = vadd.f32 %v8194, %v8470
  %v8605 = vadd.f32 %v8195, %v8473
  %v8606 = vadd.f32 %v8196, %v8476
  %v8607 = vadd.f32 %v8197, %v8479
  %v8608 = vadd.f32 %v8198, %v8482
  %v8609 = vadd.f32 %v8199, %v8485
  %v8610 = vadd.f32 %v8200, %v8488
  %v8611 = vadd.f32 %v8201, %v8491
  %v8612 = vadd.f32 %v8202, %v8494
  %v8613 = vadd.f32 %v8203, %v8497
  %v8614 = vadd.f32 %v8204, %v8500
  %v8615 = vadd.f32 %v8205, %v8503
  %v8616 = vadd.f32 %v8206, %v8506
  %v8617 = vadd.f32 %v8207, %v8509
  %v8618 = vadd.f32 %v8208, %v8512
  %v8619 = vadd.f32 %v8209, %v8515
  %v8620 = vadd.f32 %v8210, %v8518
  %v8621 = vadd.f32 %v8211, %v8521
  %v8622 = vadd.f32 %v8212, %v8524
  %v8623 = vadd.f32 %v8213, %v8527
  %v8624 = vadd.f32 %v8214, %v8530
  %v8625 = vadd.f32 %v8215, %v8533
  %v8626 = vadd.f32 %v8216, %v8536
  %v8627 = vadd.f32 %v8217, %v8539
  %v8628 = vadd.f32 %v8218, %v8542
  %v8629 = vadd.f32 %v8219, %v8545
  %v8630 = vadd.f32 %v8220, %v8548
  %v8631 = vadd.f32 %v8221, %v8551
  %v8632 = vadd.f32 %v8222, %v8554
  %v8633 = vadd.f32 %v8223, %v8557
  %v8634 = vadd.f32 %v8224, %v8560
  %v8635 = vadd.f32 %v8225, %v8563
  %v8636 = vadd.f32 %v8226, %v8566
  %v8637 = vadd.f32 %v8227, %v8569
  %v8638 = vadd.f32 %v8228, %v8572
  %v8639 = vadd.f32 %v8229, %v8575
  %v8640 = vadd.f32 %v8230, %v8578
  %v8641 = vadd.f32 %v8231, %v8581
  %v8642 = vadd.f32 %v8232, %v8584
  %v8643 = vadd.f32 %v8233, %v8587
  %v8644 = vadd.f32 %v8234, %v8590
  %v8645 = vadd.f32 %v8235, %v8593
  %v8646 = vadd.f32 %v8236, %v8596
  %v8647 = vld [vmem:[#allocation3 + $0x78] sm:$0xff]
  %v8648 = vld [vmem:[#allocation3 + $0x80] sm:$0xff]
  %v8649 = vld [vmem:[#allocation3 + $0x88] sm:$0xff]
  %v8650 = vld [vmem:[#allocation3 + $0x90] sm:$0xff]
  %v8651 = vld [vmem:[#allocation3 + $0x98] sm:$0xff]
  %v8652 = vld [vmem:[#allocation3 + $0xa0] sm:$0xff]
  %v8653 = vld [vmem:[#allocation3 + $0xa8] sm:$0xff]
  %v8654 = vld [vmem:[#allocation3 + $0xb0] sm:$0xff]
  %v8655 = vld [vmem:[#allocation3 + $0xb8] sm:$0xff]
  %v8656 = vld [vmem:[#allocation3 + $0xc0] sm:$0xff]
  %v8657 = vld [vmem:[#allocation3 + $0xc8] sm:$0xff]
  %v8658 = vld [vmem:[#allocation3 + $0xd0] sm:$0xff]
  %v8659 = vld [vmem:[#allocation3 + $0xd8] sm:$0xff]
  %v8660 = vld [vmem:[#allocation3 + $0xe0] sm:$0xff]
  %v8661 = vld [vmem:[#allocation3 + $0xe8] sm:$0xff]
  %v8662 = vld [vmem:[#allocation3 + $0xf0] sm:$0xff]
  %v8663 = vld [vmem:[#allocation3 + $0xf8] sm:$0xff]
  %v8664 = vld [vmem:[#allocation3 + $0x100] sm:$0xff]
  %v8665 = vld [vmem:[#allocation3 + $0x108] sm:$0xff]
  %v8666 = vld [vmem:[#allocation3 + $0x110] sm:$0xff]
  %v8667 = vld [vmem:[#allocation3 + $0x118] sm:$0xff]
  %v8668 = vld [vmem:[#allocation3 + $0x120] sm:$0xff]
  %v8669 = vld [vmem:[#allocation3 + $0x128] sm:$0xff]
  %v8670 = vld [vmem:[#allocation3 + $0x130] sm:$0xff]
  %v8671 = vld [vmem:[#allocation3 + $0x138] sm:$0xff]
  %v8672 = vld [vmem:[#allocation3 + $0x140] sm:$0xff]
  %v8673 = vld [vmem:[#allocation3 + $0x148] sm:$0xff]
  %v8674 = vld [vmem:[#allocation3 + $0x150] sm:$0xff]
  %v8675 = vld [vmem:[#allocation3 + $0x158] sm:$0xff]
  %v8676 = vld [vmem:[#allocation3 + $0x160] sm:$0xff]
  %v8677 = vld [vmem:[#allocation3 + $0x168] sm:$0xff]
  %v8678 = vld [vmem:[#allocation3 + $0x170] sm:$0xff]
  %v8679 = vld [vmem:[#allocation3 + $0x178] sm:$0xff]
  %v8680 = vld [vmem:[#allocation3 + $0x180] sm:$0xff]
  %v8681 = vld [vmem:[#allocation3 + $0x188] sm:$0xff]
  %v8682 = vld [vmem:[#allocation3 + $0x190] sm:$0xff]
  %v8683 = vld [vmem:[#allocation3 + $0x198] sm:$0xff]
  %v8684 = vld [vmem:[#allocation3 + $0x1a0] sm:$0xff]
  %v8685 = vld [vmem:[#allocation3 + $0x1a8] sm:$0xff]
  %v8686 = vld [vmem:[#allocation3 + $0x1b0] sm:$0xff]
  %v8687 = vld [vmem:[#allocation3 + $0x1b8] sm:$0xff]
  %v8688 = vld [vmem:[#allocation3 + $0x1c0] sm:$0xff]
  %v8689 = vld [vmem:[#allocation3 + $0x1c8] sm:$0xff]
  %v8690 = vld [vmem:[#allocation3 + $0x1d0] sm:$0xff]
  %v8691 = vld [vmem:[#allocation3 + $0x1d8] sm:$0xff]
  %v8692 = vld [vmem:[#allocation3 + $0x1e0] sm:$0xff]
  %v8693 = vld [vmem:[#allocation3 + $0x1e8] sm:$0xff]
  %v8694 = vld [vmem:[#allocation3 + $0x1f0] sm:$0xff]
  %v8695 = vld [vmem:[#allocation3 + $0x1f8] sm:$0xff]
  %v8696 = vld [vmem:[%s7 + $0x40] sm:$0xff]
  %v8698 = vsel %vm52, %v8647, 0
  %v8701 = vsel %vm52, %v8648, 0
  %v8704 = vsel %vm52, %v8649, 0
  %v8707 = vsel %vm52, %v8650, 0
  %v8710 = vsel %vm52, %v8651, 0
  %v8713 = vsel %vm52, %v8652, 0
  %v8716 = vsel %vm52, %v8653, 0
  %v8719 = vsel %vm52, %v8654, 0
  %v8722 = vsel %vm52, %v8655, 0
  %v8725 = vsel %vm52, %v8656, 0
  %v8728 = vsel %vm52, %v8657, 0
  %v8731 = vsel %vm52, %v8658, 0
  %v8734 = vsel %vm52, %v8659, 0
  %v8737 = vsel %vm52, %v8660, 0
  %v8740 = vsel %vm52, %v8661, 0
  %v8743 = vsel %vm52, %v8662, 0
  %v8746 = vsel %vm52, %v8663, 0
  %v8749 = vsel %vm52, %v8664, 0
  %v8752 = vsel %vm52, %v8665, 0
  %v8755 = vsel %vm52, %v8666, 0
  %v8758 = vsel %vm52, %v8667, 0
  %v8761 = vsel %vm52, %v8668, 0
  %v8764 = vsel %vm52, %v8669, 0
  %v8767 = vsel %vm52, %v8670, 0
  %v8770 = vsel %vm52, %v8671, 0
  %v8773 = vsel %vm52, %v8672, 0
  %v8776 = vsel %vm52, %v8673, 0
  %v8779 = vsel %vm52, %v8674, 0
  %v8782 = vsel %vm52, %v8675, 0
  %v8785 = vsel %vm52, %v8676, 0
  %v8788 = vsel %vm52, %v8677, 0
  %v8791 = vsel %vm52, %v8678, 0
  %v8794 = vsel %vm52, %v8679, 0
  %v8797 = vsel %vm52, %v8680, 0
  %v8800 = vsel %vm52, %v8681, 0
  %v8803 = vsel %vm52, %v8682, 0
  %v8806 = vsel %vm52, %v8683, 0
  %v8809 = vsel %vm52, %v8684, 0
  %v8812 = vsel %vm52, %v8685, 0
  %v8815 = vsel %vm52, %v8686, 0
  %v8818 = vsel %vm52, %v8687, 0
  %v8821 = vsel %vm52, %v8688, 0
  %v8824 = vsel %vm52, %v8689, 0
  %v8827 = vsel %vm52, %v8690, 0
  %v8830 = vsel %vm52, %v8691, 0
  %v8833 = vsel %vm52, %v8692, 0
  %v8836 = vsel %vm52, %v8693, 0
  %v8839 = vsel %vm52, %v8694, 0
  %v8842 = vsel %vm52, %v8695, 0
  %8844 = vmatpush.msra.mxu0 0.0
  %8845 = vmatpush.msra.mxu0 0.0
  %8846 = vmatpush.msra.mxu0 0.0
  %8847 = vmatpush.msra.mxu0 0.0
  %8848 = vmatpush.msra.mxu0 0.0
  %8849 = vmatpush.msra.mxu0 0.0
  %8850 = vmatpush.msra.mxu0 0.0
  %8851 = vmatpush.msra.mxu0 0.0
  %8852 = vmatpush.msra.mxu0 0.0
  %8853 = vmatpush.msra.mxu0 0.0
  %8854 = vmatpush.msra.mxu0 0.0
  %8855 = vmatpush.msra.mxu0 0.0
  %8856 = vmatpush.msra.mxu0 0.0
  %8857 = vmatpush.msra.mxu0 0.0
  %8858 = vmatpush.msra.mxu0 0.0
  %8859 = vmatpush.msra.mxu0 %v8696
  %8860 = vmatmul.f32.gmra.mxu0 %v8698
  %v8861 = vpop.f32.mrf.mxu0
  %v8862 = vadd.f32 0.0, %v8861
  %8863 = vmatmul.f32.gmra.mxu0 %v8701
  %v8864 = vpop.f32.mrf.mxu0
  %v8865 = vadd.f32 0.0, %v8864
  %8866 = vmatmul.f32.gmra.mxu0 %v8704
  %v8867 = vpop.f32.mrf.mxu0
  %v8868 = vadd.f32 0.0, %v8867
  %8869 = vmatmul.f32.gmra.mxu0 %v8707
  %v8870 = vpop.f32.mrf.mxu0
  %v8871 = vadd.f32 0.0, %v8870
  %8872 = vmatmul.f32.gmra.mxu0 %v8710
  %v8873 = vpop.f32.mrf.mxu0
  %v8874 = vadd.f32 0.0, %v8873
  %8875 = vmatmul.f32.gmra.mxu0 %v8713
  %v8876 = vpop.f32.mrf.mxu0
  %v8877 = vadd.f32 0.0, %v8876
  %8878 = vmatmul.f32.gmra.mxu0 %v8716
  %v8879 = vpop.f32.mrf.mxu0
  %v8880 = vadd.f32 0.0, %v8879
  %8881 = vmatmul.f32.gmra.mxu0 %v8719
  %v8882 = vpop.f32.mrf.mxu0
  %v8883 = vadd.f32 0.0, %v8882
  %8884 = vmatmul.f32.gmra.mxu0 %v8722
  %v8885 = vpop.f32.mrf.mxu0
  %v8886 = vadd.f32 0.0, %v8885
  %8887 = vmatmul.f32.gmra.mxu0 %v8725
  %v8888 = vpop.f32.mrf.mxu0
  %v8889 = vadd.f32 0.0, %v8888
  %8890 = vmatmul.f32.gmra.mxu0 %v8728
  %v8891 = vpop.f32.mrf.mxu0
  %v8892 = vadd.f32 0.0, %v8891
  %8893 = vmatmul.f32.gmra.mxu0 %v8731
  %v8894 = vpop.f32.mrf.mxu0
  %v8895 = vadd.f32 0.0, %v8894
  %8896 = vmatmul.f32.gmra.mxu0 %v8734
  %v8897 = vpop.f32.mrf.mxu0
  %v8898 = vadd.f32 0.0, %v8897
  %8899 = vmatmul.f32.gmra.mxu0 %v8737
  %v8900 = vpop.f32.mrf.mxu0
  %v8901 = vadd.f32 0.0, %v8900
  %8902 = vmatmul.f32.gmra.mxu0 %v8740
  %v8903 = vpop.f32.mrf.mxu0
  %v8904 = vadd.f32 0.0, %v8903
  %8905 = vmatmul.f32.gmra.mxu0 %v8743
  %v8906 = vpop.f32.mrf.mxu0
  %v8907 = vadd.f32 0.0, %v8906
  %8908 = vmatmul.f32.gmra.mxu0 %v8746
  %v8909 = vpop.f32.mrf.mxu0
  %v8910 = vadd.f32 0.0, %v8909
  %8911 = vmatmul.f32.gmra.mxu0 %v8749
  %v8912 = vpop.f32.mrf.mxu0
  %v8913 = vadd.f32 0.0, %v8912
  %8914 = vmatmul.f32.gmra.mxu0 %v8752
  %v8915 = vpop.f32.mrf.mxu0
  %v8916 = vadd.f32 0.0, %v8915
  %8917 = vmatmul.f32.gmra.mxu0 %v8755
  %v8918 = vpop.f32.mrf.mxu0
  %v8919 = vadd.f32 0.0, %v8918
  %8920 = vmatmul.f32.gmra.mxu0 %v8758
  %v8921 = vpop.f32.mrf.mxu0
  %v8922 = vadd.f32 0.0, %v8921
  %8923 = vmatmul.f32.gmra.mxu0 %v8761
  %v8924 = vpop.f32.mrf.mxu0
  %v8925 = vadd.f32 0.0, %v8924
  %8926 = vmatmul.f32.gmra.mxu0 %v8764
  %v8927 = vpop.f32.mrf.mxu0
  %v8928 = vadd.f32 0.0, %v8927
  %8929 = vmatmul.f32.gmra.mxu0 %v8767
  %v8930 = vpop.f32.mrf.mxu0
  %v8931 = vadd.f32 0.0, %v8930
  %8932 = vmatmul.f32.gmra.mxu0 %v8770
  %v8933 = vpop.f32.mrf.mxu0
  %v8934 = vadd.f32 0.0, %v8933
  %8935 = vmatmul.f32.gmra.mxu0 %v8773
  %v8936 = vpop.f32.mrf.mxu0
  %v8937 = vadd.f32 0.0, %v8936
  %8938 = vmatmul.f32.gmra.mxu0 %v8776
  %v8939 = vpop.f32.mrf.mxu0
  %v8940 = vadd.f32 0.0, %v8939
  %8941 = vmatmul.f32.gmra.mxu0 %v8779
  %v8942 = vpop.f32.mrf.mxu0
  %v8943 = vadd.f32 0.0, %v8942
  %8944 = vmatmul.f32.gmra.mxu0 %v8782
  %v8945 = vpop.f32.mrf.mxu0
  %v8946 = vadd.f32 0.0, %v8945
  %8947 = vmatmul.f32.gmra.mxu0 %v8785
  %v8948 = vpop.f32.mrf.mxu0
  %v8949 = vadd.f32 0.0, %v8948
  %8950 = vmatmul.f32.gmra.mxu0 %v8788
  %v8951 = vpop.f32.mrf.mxu0
  %v8952 = vadd.f32 0.0, %v8951
  %8953 = vmatmul.f32.gmra.mxu0 %v8791
  %v8954 = vpop.f32.mrf.mxu0
  %v8955 = vadd.f32 0.0, %v8954
  %8956 = vmatmul.f32.gmra.mxu0 %v8794
  %v8957 = vpop.f32.mrf.mxu0
  %v8958 = vadd.f32 0.0, %v8957
  %8959 = vmatmul.f32.gmra.mxu0 %v8797
  %v8960 = vpop.f32.mrf.mxu0
  %v8961 = vadd.f32 0.0, %v8960
  %8962 = vmatmul.f32.gmra.mxu0 %v8800
  %v8963 = vpop.f32.mrf.mxu0
  %v8964 = vadd.f32 0.0, %v8963
  %8965 = vmatmul.f32.gmra.mxu0 %v8803
  %v8966 = vpop.f32.mrf.mxu0
  %v8967 = vadd.f32 0.0, %v8966
  %8968 = vmatmul.f32.gmra.mxu0 %v8806
  %v8969 = vpop.f32.mrf.mxu0
  %v8970 = vadd.f32 0.0, %v8969
  %8971 = vmatmul.f32.gmra.mxu0 %v8809
  %v8972 = vpop.f32.mrf.mxu0
  %v8973 = vadd.f32 0.0, %v8972
  %8974 = vmatmul.f32.gmra.mxu0 %v8812
  %v8975 = vpop.f32.mrf.mxu0
  %v8976 = vadd.f32 0.0, %v8975
  %8977 = vmatmul.f32.gmra.mxu0 %v8815
  %v8978 = vpop.f32.mrf.mxu0
  %v8979 = vadd.f32 0.0, %v8978
  %8980 = vmatmul.f32.gmra.mxu0 %v8818
  %v8981 = vpop.f32.mrf.mxu0
  %v8982 = vadd.f32 0.0, %v8981
  %8983 = vmatmul.f32.gmra.mxu0 %v8821
  %v8984 = vpop.f32.mrf.mxu0
  %v8985 = vadd.f32 0.0, %v8984
  %8986 = vmatmul.f32.gmra.mxu0 %v8824
  %v8987 = vpop.f32.mrf.mxu0
  %v8988 = vadd.f32 0.0, %v8987
  %8989 = vmatmul.f32.gmra.mxu0 %v8827
  %v8990 = vpop.f32.mrf.mxu0
  %v8991 = vadd.f32 0.0, %v8990
  %8992 = vmatmul.f32.gmra.mxu0 %v8830
  %v8993 = vpop.f32.mrf.mxu0
  %v8994 = vadd.f32 0.0, %v8993
  %8995 = vmatmul.f32.gmra.mxu0 %v8833
  %v8996 = vpop.f32.mrf.mxu0
  %v8997 = vadd.f32 0.0, %v8996
  %8998 = vmatmul.f32.gmra.mxu0 %v8836
  %v8999 = vpop.f32.mrf.mxu0
  %v9000 = vadd.f32 0.0, %v8999
  %9001 = vmatmul.f32.gmra.mxu0 %v8839
  %v9002 = vpop.f32.mrf.mxu0
  %v9003 = vadd.f32 0.0, %v9002
  %9004 = vmatmul.f32.gmra.mxu0 %v8842
  %v9005 = vpop.f32.mrf.mxu0
  %v9006 = vadd.f32 0.0, %v9005
  %9007 = vdwg.mxu0
  %v9008 = vadd.f32 %v8598, %v8862
  %v9009 = vadd.f32 %v8599, %v8865
  %v9010 = vadd.f32 %v8600, %v8868
  %v9011 = vadd.f32 %v8601, %v8871
  %v9012 = vadd.f32 %v8602, %v8874
  %v9013 = vadd.f32 %v8603, %v8877
  %v9014 = vadd.f32 %v8604, %v8880
  %v9015 = vadd.f32 %v8605, %v8883
  %v9016 = vadd.f32 %v8606, %v8886
  %v9017 = vadd.f32 %v8607, %v8889
  %v9018 = vadd.f32 %v8608, %v8892
  %v9019 = vadd.f32 %v8609, %v8895
  %v9020 = vadd.f32 %v8610, %v8898
  %v9021 = vadd.f32 %v8611, %v8901
  %v9022 = vadd.f32 %v8612, %v8904
  %v9023 = vadd.f32 %v8613, %v8907
  %v9024 = vadd.f32 %v8614, %v8910
  %v9025 = vadd.f32 %v8615, %v8913
  %v9026 = vadd.f32 %v8616, %v8916
  %v9027 = vadd.f32 %v8617, %v8919
  %v9028 = vadd.f32 %v8618, %v8922
  %v9029 = vadd.f32 %v8619, %v8925
  %v9030 = vadd.f32 %v8620, %v8928
  %v9031 = vadd.f32 %v8621, %v8931
  %v9032 = vadd.f32 %v8622, %v8934
  %v9033 = vadd.f32 %v8623, %v8937
  %v9034 = vadd.f32 %v8624, %v8940
  %v9035 = vadd.f32 %v8625, %v8943
  %v9036 = vadd.f32 %v8626, %v8946
  %v9037 = vadd.f32 %v8627, %v8949
  %v9038 = vadd.f32 %v8628, %v8952
  %v9039 = vadd.f32 %v8629, %v8955
  %v9040 = vadd.f32 %v8630, %v8958
  %v9041 = vadd.f32 %v8631, %v8961
  %v9042 = vadd.f32 %v8632, %v8964
  %v9043 = vadd.f32 %v8633, %v8967
  %v9044 = vadd.f32 %v8634, %v8970
  %v9045 = vadd.f32 %v8635, %v8973
  %v9046 = vadd.f32 %v8636, %v8976
  %v9047 = vadd.f32 %v8637, %v8979
  %v9048 = vadd.f32 %v8638, %v8982
  %v9049 = vadd.f32 %v8639, %v8985
  %v9050 = vadd.f32 %v8640, %v8988
  %v9051 = vadd.f32 %v8641, %v8991
  %v9052 = vadd.f32 %v8642, %v8994
  %v9053 = vadd.f32 %v8643, %v8997
  %v9054 = vadd.f32 %v8644, %v9000
  %v9055 = vadd.f32 %v8645, %v9003
  %v9056 = vadd.f32 %v8646, %v9006
  %v9057 = vld [vmem:[%s8] sm:$0x1]
  %v9059 = vperm.slane %v9057, 0
  %v9061 = vadd.f32 %v9008, %v9059
  %v9062 = vadd.f32 %v9009, %v9059
  %v9063 = vadd.f32 %v9010, %v9059
  %v9064 = vadd.f32 %v9011, %v9059
  %v9065 = vadd.f32 %v9012, %v9059
  %v9066 = vadd.f32 %v9013, %v9059
  %v9067 = vadd.f32 %v9014, %v9059
  %v9068 = vadd.f32 %v9015, %v9059
  %v9069 = vadd.f32 %v9016, %v9059
  %v9070 = vadd.f32 %v9017, %v9059
  %v9071 = vadd.f32 %v9018, %v9059
  %v9072 = vadd.f32 %v9019, %v9059
  %v9073 = vadd.f32 %v9020, %v9059
  %v9074 = vadd.f32 %v9021, %v9059
  %v9075 = vadd.f32 %v9022, %v9059
  %v9076 = vadd.f32 %v9023, %v9059
  %v9077 = vadd.f32 %v9024, %v9059
  %v9078 = vadd.f32 %v9025, %v9059
  %v9079 = vadd.f32 %v9026, %v9059
  %v9080 = vadd.f32 %v9027, %v9059
  %v9081 = vadd.f32 %v9028, %v9059
  %v9082 = vadd.f32 %v9029, %v9059
  %v9083 = vadd.f32 %v9030, %v9059
  %v9084 = vadd.f32 %v9031, %v9059
  %v9085 = vadd.f32 %v9032, %v9059
  %v9086 = vadd.f32 %v9033, %v9059
  %v9087 = vadd.f32 %v9034, %v9059
  %v9088 = vadd.f32 %v9035, %v9059
  %v9089 = vadd.f32 %v9036, %v9059
  %v9090 = vadd.f32 %v9037, %v9059
  %v9091 = vadd.f32 %v9038, %v9059
  %v9092 = vadd.f32 %v9039, %v9059
  %v9093 = vadd.f32 %v9040, %v9059
  %v9094 = vadd.f32 %v9041, %v9059
  %v9095 = vadd.f32 %v9042, %v9059
  %v9096 = vadd.f32 %v9043, %v9059
  %v9097 = vadd.f32 %v9044, %v9059
  %v9098 = vadd.f32 %v9045, %v9059
  %v9099 = vadd.f32 %v9046, %v9059
  %v9100 = vadd.f32 %v9047, %v9059
  %v9101 = vadd.f32 %v9048, %v9059
  %v9102 = vadd.f32 %v9049, %v9059
  %v9103 = vadd.f32 %v9050, %v9059
  %v9104 = vadd.f32 %v9051, %v9059
  %v9105 = vadd.f32 %v9052, %v9059
  %v9106 = vadd.f32 %v9053, %v9059
  %v9107 = vadd.f32 %v9054, %v9059
  %v9108 = vadd.f32 %v9055, %v9059
  %v9109 = vadd.f32 %v9056, %v9059
  %v9110 = vsel %vm456, 1, 0
  %v9111 = vsel %vm457, 1, 0
  %v9112 = vsel %vm458, 1, 0
  %v9113 = vsel %vm459, 1, 0
  %v9114 = vsel %vm460, 1, 0
  %v9115 = vsel %vm461, 1, 0
  %v9116 = vsel %vm462, 1, 0
  %v9117 = vsel %vm463, 1, 0
  %v9118 = vsel %vm464, 1, 0
  %v9119 = vsel %vm465, 1, 0
  %v9120 = vsel %vm466, 1, 0
  %v9121 = vsel %vm467, 1, 0
  %v9122 = vsel %vm468, 1, 0
  %v9123 = vsel %vm469, 1, 0
  %v9124 = vsel %vm470, 1, 0
  %v9125 = vsel %vm471, 1, 0
  %v9126 = vsel %vm472, 1, 0
  %v9127 = vsel %vm473, 1, 0
  %v9128 = vsel %vm474, 1, 0
  %v9129 = vsel %vm475, 1, 0
  %v9130 = vsel %vm476, 1, 0
  %v9131 = vsel %vm477, 1, 0
  %v9132 = vsel %vm478, 1, 0
  %v9133 = vsel %vm479, 1, 0
  %v9134 = vsel %vm480, 1, 0
  %v9135 = vsel %vm481, 1, 0
  %v9136 = vsel %vm482, 1, 0
  %v9137 = vsel %vm483, 1, 0
  %v9138 = vsel %vm484, 1, 0
  %v9139 = vsel %vm485, 1, 0
  %v9140 = vsel %vm486, 1, 0
  %v9141 = vsel %vm487, 1, 0
  %v9142 = vsel %vm488, 1, 0
  %v9143 = vsel %vm489, 1, 0
  %v9144 = vsel %vm490, 1, 0
  %v9145 = vsel %vm491, 1, 0
  %v9146 = vsel %vm492, 1, 0
  %v9147 = vsel %vm493, 1, 0
  %v9148 = vsel %vm494, 1, 0
  %v9149 = vsel %vm495, 1, 0
  %v9150 = vsel %vm496, 1, 0
  %v9151 = vsel %vm497, 1, 0
  %v9152 = vsel %vm498, 1, 0
  %v9153 = vsel %vm499, 1, 0
  %v9154 = vsel %vm500, 1, 0
  %v9155 = vsel %vm501, 1, 0
  %v9156 = vsel %vm502, 1, 0
  %v9157 = vsel %vm503, 1, 0
  %v9158 = vsel %vm504, 1, 0
  %9159 = vset.pattern.permute.xlu0 0
  %9160 = vperm.xlu0 %9159, %v9110
  %v9161 = vpop.permute.xlu0 %9160
  %9162 = vset.pattern.permute.xlu0 0
  %9163 = vperm.xlu0 %9162, %v9111
  %v9164 = vpop.permute.xlu0 %9163
  %9165 = vset.pattern.permute.xlu0 0
  %9166 = vperm.xlu0 %9165, %v9112
  %v9167 = vpop.permute.xlu0 %9166
  %9168 = vset.pattern.permute.xlu0 0
  %9169 = vperm.xlu0 %9168, %v9113
  %v9170 = vpop.permute.xlu0 %9169
  %9171 = vset.pattern.permute.xlu0 0
  %9172 = vperm.xlu0 %9171, %v9114
  %v9173 = vpop.permute.xlu0 %9172
  %9174 = vset.pattern.permute.xlu0 0
  %9175 = vperm.xlu0 %9174, %v9115
  %v9176 = vpop.permute.xlu0 %9175
  %9177 = vset.pattern.permute.xlu0 0
  %9178 = vperm.xlu0 %9177, %v9116
  %v9179 = vpop.permute.xlu0 %9178
  %9180 = vset.pattern.permute.xlu0 0
  %9181 = vperm.xlu0 %9180, %v9117
  %v9182 = vpop.permute.xlu0 %9181
  %9183 = vset.pattern.permute.xlu0 0
  %9184 = vperm.xlu0 %9183, %v9118
  %v9185 = vpop.permute.xlu0 %9184
  %9186 = vset.pattern.permute.xlu0 0
  %9187 = vperm.xlu0 %9186, %v9119
  %v9188 = vpop.permute.xlu0 %9187
  %9189 = vset.pattern.permute.xlu0 0
  %9190 = vperm.xlu0 %9189, %v9120
  %v9191 = vpop.permute.xlu0 %9190
  %9192 = vset.pattern.permute.xlu0 0
  %9193 = vperm.xlu0 %9192, %v9121
  %v9194 = vpop.permute.xlu0 %9193
  %9195 = vset.pattern.permute.xlu0 0
  %9196 = vperm.xlu0 %9195, %v9122
  %v9197 = vpop.permute.xlu0 %9196
  %9198 = vset.pattern.permute.xlu0 0
  %9199 = vperm.xlu0 %9198, %v9123
  %v9200 = vpop.permute.xlu0 %9199
  %9201 = vset.pattern.permute.xlu0 0
  %9202 = vperm.xlu0 %9201, %v9124
  %v9203 = vpop.permute.xlu0 %9202
  %9204 = vset.pattern.permute.xlu0 0
  %9205 = vperm.xlu0 %9204, %v9125
  %v9206 = vpop.permute.xlu0 %9205
  %9207 = vset.pattern.permute.xlu0 0
  %9208 = vperm.xlu0 %9207, %v9126
  %v9209 = vpop.permute.xlu0 %9208
  %9210 = vset.pattern.permute.xlu0 0
  %9211 = vperm.xlu0 %9210, %v9127
  %v9212 = vpop.permute.xlu0 %9211
  %9213 = vset.pattern.permute.xlu0 0
  %9214 = vperm.xlu0 %9213, %v9128
  %v9215 = vpop.permute.xlu0 %9214
  %9216 = vset.pattern.permute.xlu0 0
  %9217 = vperm.xlu0 %9216, %v9129
  %v9218 = vpop.permute.xlu0 %9217
  %9219 = vset.pattern.permute.xlu0 0
  %9220 = vperm.xlu0 %9219, %v9130
  %v9221 = vpop.permute.xlu0 %9220
  %9222 = vset.pattern.permute.xlu0 0
  %9223 = vperm.xlu0 %9222, %v9131
  %v9224 = vpop.permute.xlu0 %9223
  %9225 = vset.pattern.permute.xlu0 0
  %9226 = vperm.xlu0 %9225, %v9132
  %v9227 = vpop.permute.xlu0 %9226
  %9228 = vset.pattern.permute.xlu0 0
  %9229 = vperm.xlu0 %9228, %v9133
  %v9230 = vpop.permute.xlu0 %9229
  %9231 = vset.pattern.permute.xlu0 0
  %9232 = vperm.xlu0 %9231, %v9134
  %v9233 = vpop.permute.xlu0 %9232
  %9234 = vset.pattern.permute.xlu0 0
  %9235 = vperm.xlu0 %9234, %v9135
  %v9236 = vpop.permute.xlu0 %9235
  %9237 = vset.pattern.permute.xlu0 0
  %9238 = vperm.xlu0 %9237, %v9136
  %v9239 = vpop.permute.xlu0 %9238
  %9240 = vset.pattern.permute.xlu0 0
  %9241 = vperm.xlu0 %9240, %v9137
  %v9242 = vpop.permute.xlu0 %9241
  %9243 = vset.pattern.permute.xlu0 0
  %9244 = vperm.xlu0 %9243, %v9138
  %v9245 = vpop.permute.xlu0 %9244
  %9246 = vset.pattern.permute.xlu0 0
  %9247 = vperm.xlu0 %9246, %v9139
  %v9248 = vpop.permute.xlu0 %9247
  %9249 = vset.pattern.permute.xlu0 0
  %9250 = vperm.xlu0 %9249, %v9140
  %v9251 = vpop.permute.xlu0 %9250
  %9252 = vset.pattern.permute.xlu0 0
  %9253 = vperm.xlu0 %9252, %v9141
  %v9254 = vpop.permute.xlu0 %9253
  %9255 = vset.pattern.permute.xlu0 0
  %9256 = vperm.xlu0 %9255, %v9142
  %v9257 = vpop.permute.xlu0 %9256
  %9258 = vset.pattern.permute.xlu0 0
  %9259 = vperm.xlu0 %9258, %v9143
  %v9260 = vpop.permute.xlu0 %9259
  %9261 = vset.pattern.permute.xlu0 0
  %9262 = vperm.xlu0 %9261, %v9144
  %v9263 = vpop.permute.xlu0 %9262
  %9264 = vset.pattern.permute.xlu0 0
  %9265 = vperm.xlu0 %9264, %v9145
  %v9266 = vpop.permute.xlu0 %9265
  %9267 = vset.pattern.permute.xlu0 0
  %9268 = vperm.xlu0 %9267, %v9146
  %v9269 = vpop.permute.xlu0 %9268
  %9270 = vset.pattern.permute.xlu0 0
  %9271 = vperm.xlu0 %9270, %v9147
  %v9272 = vpop.permute.xlu0 %9271
  %9273 = vset.pattern.permute.xlu0 0
  %9274 = vperm.xlu0 %9273, %v9148
  %v9275 = vpop.permute.xlu0 %9274
  %9276 = vset.pattern.permute.xlu0 0
  %9277 = vperm.xlu0 %9276, %v9149
  %v9278 = vpop.permute.xlu0 %9277
  %9279 = vset.pattern.permute.xlu0 0
  %9280 = vperm.xlu0 %9279, %v9150
  %v9281 = vpop.permute.xlu0 %9280
  %9282 = vset.pattern.permute.xlu0 0
  %9283 = vperm.xlu0 %9282, %v9151
  %v9284 = vpop.permute.xlu0 %9283
  %9285 = vset.pattern.permute.xlu0 0
  %9286 = vperm.xlu0 %9285, %v9152
  %v9287 = vpop.permute.xlu0 %9286
  %9288 = vset.pattern.permute.xlu0 0
  %9289 = vperm.xlu0 %9288, %v9153
  %v9290 = vpop.permute.xlu0 %9289
  %9291 = vset.pattern.permute.xlu0 0
  %9292 = vperm.xlu0 %9291, %v9154
  %v9293 = vpop.permute.xlu0 %9292
  %9294 = vset.pattern.permute.xlu0 0
  %9295 = vperm.xlu0 %9294, %v9155
  %v9296 = vpop.permute.xlu0 %9295
  %9297 = vset.pattern.permute.xlu0 0
  %9298 = vperm.xlu0 %9297, %v9156
  %v9299 = vpop.permute.xlu0 %9298
  %9300 = vset.pattern.permute.xlu0 0
  %9301 = vperm.xlu0 %9300, %v9157
  %v9302 = vpop.permute.xlu0 %9301
  %9303 = vset.pattern.permute.xlu0 0
  %9304 = vperm.xlu0 %9303, %v9158
  %v9305 = vpop.permute.xlu0 %9304
  %vm9306 = vcmp.eq.s32.totalorder %v9161, 1
  %vm9307 = vcmp.eq.s32.totalorder %v9164, 1
  %vm9308 = vcmp.eq.s32.totalorder %v9167, 1
  %vm9309 = vcmp.eq.s32.totalorder %v9170, 1
  %vm9310 = vcmp.eq.s32.totalorder %v9173, 1
  %vm9311 = vcmp.eq.s32.totalorder %v9176, 1
  %vm9312 = vcmp.eq.s32.totalorder %v9179, 1
  %vm9313 = vcmp.eq.s32.totalorder %v9182, 1
  %vm9314 = vcmp.eq.s32.totalorder %v9185, 1
  %vm9315 = vcmp.eq.s32.totalorder %v9188, 1
  %vm9316 = vcmp.eq.s32.totalorder %v9191, 1
  %vm9317 = vcmp.eq.s32.totalorder %v9194, 1
  %vm9318 = vcmp.eq.s32.totalorder %v9197, 1
  %vm9319 = vcmp.eq.s32.totalorder %v9200, 1
  %vm9320 = vcmp.eq.s32.totalorder %v9203, 1
  %vm9321 = vcmp.eq.s32.totalorder %v9206, 1
  %vm9322 = vcmp.eq.s32.totalorder %v9209, 1
  %vm9323 = vcmp.eq.s32.totalorder %v9212, 1
  %vm9324 = vcmp.eq.s32.totalorder %v9215, 1
  %vm9325 = vcmp.eq.s32.totalorder %v9218, 1
  %vm9326 = vcmp.eq.s32.totalorder %v9221, 1
  %vm9327 = vcmp.eq.s32.totalorder %v9224, 1
  %vm9328 = vcmp.eq.s32.totalorder %v9227, 1
  %vm9329 = vcmp.eq.s32.totalorder %v9230, 1
  %vm9330 = vcmp.eq.s32.totalorder %v9233, 1
  %vm9331 = vcmp.eq.s32.totalorder %v9236, 1
  %vm9332 = vcmp.eq.s32.totalorder %v9239, 1
  %vm9333 = vcmp.eq.s32.totalorder %v9242, 1
  %vm9334 = vcmp.eq.s32.totalorder %v9245, 1
  %vm9335 = vcmp.eq.s32.totalorder %v9248, 1
  %vm9336 = vcmp.eq.s32.totalorder %v9251, 1
  %vm9337 = vcmp.eq.s32.totalorder %v9254, 1
  %vm9338 = vcmp.eq.s32.totalorder %v9257, 1
  %vm9339 = vcmp.eq.s32.totalorder %v9260, 1
  %vm9340 = vcmp.eq.s32.totalorder %v9263, 1
  %vm9341 = vcmp.eq.s32.totalorder %v9266, 1
  %vm9342 = vcmp.eq.s32.totalorder %v9269, 1
  %vm9343 = vcmp.eq.s32.totalorder %v9272, 1
  %vm9344 = vcmp.eq.s32.totalorder %v9275, 1
  %vm9345 = vcmp.eq.s32.totalorder %v9278, 1
  %vm9346 = vcmp.eq.s32.totalorder %v9281, 1
  %vm9347 = vcmp.eq.s32.totalorder %v9284, 1
  %vm9348 = vcmp.eq.s32.totalorder %v9287, 1
  %vm9349 = vcmp.eq.s32.totalorder %v9290, 1
  %vm9350 = vcmp.eq.s32.totalorder %v9293, 1
  %vm9351 = vcmp.eq.s32.totalorder %v9296, 1
  %vm9352 = vcmp.eq.s32.totalorder %v9299, 1
  %vm9353 = vcmp.eq.s32.totalorder %v9302, 1
  %vm9354 = vcmp.eq.s32.totalorder %v9305, 1
  %v9355 = vsel %vm9306, %v9061, 0.0
  %v9356 = vsel %vm9307, %v9062, 0.0
  %v9357 = vsel %vm9308, %v9063, 0.0
  %v9358 = vsel %vm9309, %v9064, 0.0
  %v9359 = vsel %vm9310, %v9065, 0.0
  %v9360 = vsel %vm9311, %v9066, 0.0
  %v9361 = vsel %vm9312, %v9067, 0.0
  %v9362 = vsel %vm9313, %v9068, 0.0
  %v9363 = vsel %vm9314, %v9069, 0.0
  %v9364 = vsel %vm9315, %v9070, 0.0
  %v9365 = vsel %vm9316, %v9071, 0.0
  %v9366 = vsel %vm9317, %v9072, 0.0
  %v9367 = vsel %vm9318, %v9073, 0.0
  %v9368 = vsel %vm9319, %v9074, 0.0
  %v9369 = vsel %vm9320, %v9075, 0.0
  %v9370 = vsel %vm9321, %v9076, 0.0
  %v9371 = vsel %vm9322, %v9077, 0.0
  %v9372 = vsel %vm9323, %v9078, 0.0
  %v9373 = vsel %vm9324, %v9079, 0.0
  %v9374 = vsel %vm9325, %v9080, 0.0
  %v9375 = vsel %vm9326, %v9081, 0.0
  %v9376 = vsel %vm9327, %v9082, 0.0
  %v9377 = vsel %vm9328, %v9083, 0.0
  %v9378 = vsel %vm9329, %v9084, 0.0
  %v9379 = vsel %vm9330, %v9085, 0.0
  %v9380 = vsel %vm9331, %v9086, 0.0
  %v9381 = vsel %vm9332, %v9087, 0.0
  %v9382 = vsel %vm9333, %v9088, 0.0
  %v9383 = vsel %vm9334, %v9089, 0.0
  %v9384 = vsel %vm9335, %v9090, 0.0
  %v9385 = vsel %vm9336, %v9091, 0.0
  %v9386 = vsel %vm9337, %v9092, 0.0
  %v9387 = vsel %vm9338, %v9093, 0.0
  %v9388 = vsel %vm9339, %v9094, 0.0
  %v9389 = vsel %vm9340, %v9095, 0.0
  %v9390 = vsel %vm9341, %v9096, 0.0
  %v9391 = vsel %vm9342, %v9097, 0.0
  %v9392 = vsel %vm9343, %v9098, 0.0
  %v9393 = vsel %vm9344, %v9099, 0.0
  %v9394 = vsel %vm9345, %v9100, 0.0
  %v9395 = vsel %vm9346, %v9101, 0.0
  %v9396 = vsel %vm9347, %v9102, 0.0
  %v9397 = vsel %vm9348, %v9103, 0.0
  %v9398 = vsel %vm9349, %v9104, 0.0
  %v9399 = vsel %vm9350, %v9105, 0.0
  %v9400 = vsel %vm9351, %v9106, 0.0
  %v9401 = vsel %vm9352, %v9107, 0.0
  %v9402 = vsel %vm9353, %v9108, 0.0
  %v9403 = vsel %vm9354, %v9109, 0.0
  %v9404 = vsel %vm52, %v9355, 0.0
  %v9405 = vsel %vm52, %v9356, 0.0
  %v9406 = vadd.f32 %v9404, %v9405
  %v9407 = vsel %vm52, %v9357, 0.0
  %v9408 = vadd.f32 %v9406, %v9407
  %v9409 = vsel %vm52, %v9358, 0.0
  %v9410 = vadd.f32 %v9408, %v9409
  %v9411 = vsel %vm52, %v9359, 0.0
  %v9412 = vadd.f32 %v9410, %v9411
  %v9413 = vsel %vm52, %v9360, 0.0
  %v9414 = vadd.f32 %v9412, %v9413
  %v9415 = vsel %vm52, %v9361, 0.0
  %v9416 = vadd.f32 %v9414, %v9415
  %v9417 = vsel %vm52, %v9362, 0.0
  %v9418 = vadd.f32 %v9416, %v9417
  %v9419 = vsel %vm52, %v9363, 0.0
  %v9420 = vadd.f32 %v9418, %v9419
  %v9421 = vsel %vm52, %v9364, 0.0
  %v9422 = vadd.f32 %v9420, %v9421
  %v9423 = vsel %vm52, %v9365, 0.0
  %v9424 = vadd.f32 %v9422, %v9423
  %v9425 = vsel %vm52, %v9366, 0.0
  %v9426 = vadd.f32 %v9424, %v9425
  %v9427 = vsel %vm52, %v9367, 0.0
  %v9428 = vadd.f32 %v9426, %v9427
  %v9429 = vsel %vm52, %v9368, 0.0
  %v9430 = vadd.f32 %v9428, %v9429
  %v9431 = vsel %vm52, %v9369, 0.0
  %v9432 = vadd.f32 %v9430, %v9431
  %v9433 = vsel %vm52, %v9370, 0.0
  %v9434 = vadd.f32 %v9432, %v9433
  %v9435 = vsel %vm52, %v9371, 0.0
  %v9436 = vadd.f32 %v9434, %v9435
  %v9437 = vsel %vm52, %v9372, 0.0
  %v9438 = vadd.f32 %v9436, %v9437
  %v9439 = vsel %vm52, %v9373, 0.0
  %v9440 = vadd.f32 %v9438, %v9439
  %v9441 = vsel %vm52, %v9374, 0.0
  %v9442 = vadd.f32 %v9440, %v9441
  %v9443 = vsel %vm52, %v9375, 0.0
  %v9444 = vadd.f32 %v9442, %v9443
  %v9445 = vsel %vm52, %v9376, 0.0
  %v9446 = vadd.f32 %v9444, %v9445
  %v9447 = vsel %vm52, %v9377, 0.0
  %v9448 = vadd.f32 %v9446, %v9447
  %v9449 = vsel %vm52, %v9378, 0.0
  %v9450 = vadd.f32 %v9448, %v9449
  %v9451 = vsel %vm52, %v9379, 0.0
  %v9452 = vadd.f32 %v9450, %v9451
  %v9453 = vsel %vm52, %v9380, 0.0
  %v9454 = vadd.f32 %v9452, %v9453
  %v9455 = vsel %vm52, %v9381, 0.0
  %v9456 = vadd.f32 %v9454, %v9455
  %v9457 = vsel %vm52, %v9382, 0.0
  %v9458 = vadd.f32 %v9456, %v9457
  %v9459 = vsel %vm52, %v9383, 0.0
  %v9460 = vadd.f32 %v9458, %v9459
  %v9461 = vsel %vm52, %v9384, 0.0
  %v9462 = vadd.f32 %v9460, %v9461
  %v9463 = vsel %vm52, %v9385, 0.0
  %v9464 = vadd.f32 %v9462, %v9463
  %v9465 = vsel %vm52, %v9386, 0.0
  %v9466 = vadd.f32 %v9464, %v9465
  %v9467 = vsel %vm52, %v9387, 0.0
  %v9468 = vadd.f32 %v9466, %v9467
  %v9469 = vsel %vm52, %v9388, 0.0
  %v9470 = vadd.f32 %v9468, %v9469
  %v9471 = vsel %vm52, %v9389, 0.0
  %v9472 = vadd.f32 %v9470, %v9471
  %v9473 = vsel %vm52, %v9390, 0.0
  %v9474 = vadd.f32 %v9472, %v9473
  %v9475 = vsel %vm52, %v9391, 0.0
  %v9476 = vadd.f32 %v9474, %v9475
  %v9477 = vsel %vm52, %v9392, 0.0
  %v9478 = vadd.f32 %v9476, %v9477
  %v9479 = vsel %vm52, %v9393, 0.0
  %v9480 = vadd.f32 %v9478, %v9479
  %v9481 = vsel %vm52, %v9394, 0.0
  %v9482 = vadd.f32 %v9480, %v9481
  %v9483 = vsel %vm52, %v9395, 0.0
  %v9484 = vadd.f32 %v9482, %v9483
  %v9485 = vsel %vm52, %v9396, 0.0
  %v9486 = vadd.f32 %v9484, %v9485
  %v9487 = vsel %vm52, %v9397, 0.0
  %v9488 = vadd.f32 %v9486, %v9487
  %v9489 = vsel %vm52, %v9398, 0.0
  %v9490 = vadd.f32 %v9488, %v9489
  %v9491 = vsel %vm52, %v9399, 0.0
  %v9492 = vadd.f32 %v9490, %v9491
  %v9493 = vsel %vm52, %v9400, 0.0
  %v9494 = vadd.f32 %v9492, %v9493
  %v9495 = vsel %vm52, %v9401, 0.0
  %v9496 = vadd.f32 %v9494, %v9495
  %v9497 = vsel %vm52, %v9402, 0.0
  %v9498 = vadd.f32 %v9496, %v9497
  %v9499 = vsel %vm52, %v9403, 0.0
  %v9500 = vadd.f32 %v9498, %v9499
  %v9501 = vrot.slane %v9500, 4
  %v9502 = vadd.f32 %v9500, %v9501
  %v9503 = vrot.slane %v9502, 2
  %v9504 = vadd.f32 %v9502, %v9503
  %v9505 = vrot.slane %v9504, 1
  %v9506 = vadd.f32 %v9504, %v9505
  %v9507 = vmul.f32 %v9506, 0.03125
  %v9508 = vsub.f32 %v9061, %v9507
  %v9509 = vsub.f32 %v9062, %v9507
  %v9510 = vsub.f32 %v9063, %v9507
  %v9511 = vsub.f32 %v9064, %v9507
  %v9512 = vsub.f32 %v9065, %v9507
  %v9513 = vsub.f32 %v9066, %v9507
  %v9514 = vsub.f32 %v9067, %v9507
  %v9515 = vsub.f32 %v9068, %v9507
  %v9516 = vsub.f32 %v9069, %v9507
  %v9517 = vsub.f32 %v9070, %v9507
  %v9518 = vsub.f32 %v9071, %v9507
  %v9519 = vsub.f32 %v9072, %v9507
  %v9520 = vsub.f32 %v9073, %v9507
  %v9521 = vsub.f32 %v9074, %v9507
  %v9522 = vsub.f32 %v9075, %v9507
  %v9523 = vsub.f32 %v9076, %v9507
  %v9524 = vsub.f32 %v9077, %v9507
  %v9525 = vsub.f32 %v9078, %v9507
  %v9526 = vsub.f32 %v9079, %v9507
  %v9527 = vsub.f32 %v9080, %v9507
  %v9528 = vsub.f32 %v9081, %v9507
  %v9529 = vsub.f32 %v9082, %v9507
  %v9530 = vsub.f32 %v9083, %v9507
  %v9531 = vsub.f32 %v9084, %v9507
  %v9532 = vsub.f32 %v9085, %v9507
  %v9533 = vsub.f32 %v9086, %v9507
  %v9534 = vsub.f32 %v9087, %v9507
  %v9535 = vsub.f32 %v9088, %v9507
  %v9536 = vsub.f32 %v9089, %v9507
  %v9537 = vsub.f32 %v9090, %v9507
  %v9538 = vsub.f32 %v9091, %v9507
  %v9539 = vsub.f32 %v9092, %v9507
  %v9540 = vsub.f32 %v9093, %v9507
  %v9541 = vsub.f32 %v9094, %v9507
  %v9542 = vsub.f32 %v9095, %v9507
  %v9543 = vsub.f32 %v9096, %v9507
  %v9544 = vsub.f32 %v9097, %v9507
  %v9545 = vsub.f32 %v9098, %v9507
  %v9546 = vsub.f32 %v9099, %v9507
  %v9547 = vsub.f32 %v9100, %v9507
  %v9548 = vsub.f32 %v9101, %v9507
  %v9549 = vsub.f32 %v9102, %v9507
  %v9550 = vsub.f32 %v9103, %v9507
  %v9551 = vsub.f32 %v9104, %v9507
  %v9552 = vsub.f32 %v9105, %v9507
  %v9553 = vsub.f32 %v9106, %v9507
  %v9554 = vsub.f32 %v9107, %v9507
  %v9555 = vsub.f32 %v9108, %v9507
  %v9556 = vsub.f32 %v9109, %v9507
  %v9557 = vmul.f32 %v9508, %v9508
  %v9558 = vmul.f32 %v9509, %v9509
  %v9559 = vmul.f32 %v9510, %v9510
  %v9560 = vmul.f32 %v9511, %v9511
  %v9561 = vmul.f32 %v9512, %v9512
  %v9562 = vmul.f32 %v9513, %v9513
  %v9563 = vmul.f32 %v9514, %v9514
  %v9564 = vmul.f32 %v9515, %v9515
  %v9565 = vmul.f32 %v9516, %v9516
  %v9566 = vmul.f32 %v9517, %v9517
  %v9567 = vmul.f32 %v9518, %v9518
  %v9568 = vmul.f32 %v9519, %v9519
  %v9569 = vmul.f32 %v9520, %v9520
  %v9570 = vmul.f32 %v9521, %v9521
  %v9571 = vmul.f32 %v9522, %v9522
  %v9572 = vmul.f32 %v9523, %v9523
  %v9573 = vmul.f32 %v9524, %v9524
  %v9574 = vmul.f32 %v9525, %v9525
  %v9575 = vmul.f32 %v9526, %v9526
  %v9576 = vmul.f32 %v9527, %v9527
  %v9577 = vmul.f32 %v9528, %v9528
  %v9578 = vmul.f32 %v9529, %v9529
  %v9579 = vmul.f32 %v9530, %v9530
  %v9580 = vmul.f32 %v9531, %v9531
  %v9581 = vmul.f32 %v9532, %v9532
  %v9582 = vmul.f32 %v9533, %v9533
  %v9583 = vmul.f32 %v9534, %v9534
  %v9584 = vmul.f32 %v9535, %v9535
  %v9585 = vmul.f32 %v9536, %v9536
  %v9586 = vmul.f32 %v9537, %v9537
  %v9587 = vmul.f32 %v9538, %v9538
  %v9588 = vmul.f32 %v9539, %v9539
  %v9589 = vmul.f32 %v9540, %v9540
  %v9590 = vmul.f32 %v9541, %v9541
  %v9591 = vmul.f32 %v9542, %v9542
  %v9592 = vmul.f32 %v9543, %v9543
  %v9593 = vmul.f32 %v9544, %v9544
  %v9594 = vmul.f32 %v9545, %v9545
  %v9595 = vmul.f32 %v9546, %v9546
  %v9596 = vmul.f32 %v9547, %v9547
  %v9597 = vmul.f32 %v9548, %v9548
  %v9598 = vmul.f32 %v9549, %v9549
  %v9599 = vmul.f32 %v9550, %v9550
  %v9600 = vmul.f32 %v9551, %v9551
  %v9601 = vmul.f32 %v9552, %v9552
  %v9602 = vmul.f32 %v9553, %v9553
  %v9603 = vmul.f32 %v9554, %v9554
  %v9604 = vmul.f32 %v9555, %v9555
  %v9605 = vmul.f32 %v9556, %v9556
  %v9606 = vsel %vm9306, %v9557, 0.0
  %v9607 = vsel %vm9307, %v9558, 0.0
  %v9608 = vsel %vm9308, %v9559, 0.0
  %v9609 = vsel %vm9309, %v9560, 0.0
  %v9610 = vsel %vm9310, %v9561, 0.0
  %v9611 = vsel %vm9311, %v9562, 0.0
  %v9612 = vsel %vm9312, %v9563, 0.0
  %v9613 = vsel %vm9313, %v9564, 0.0
  %v9614 = vsel %vm9314, %v9565, 0.0
  %v9615 = vsel %vm9315, %v9566, 0.0
  %v9616 = vsel %vm9316, %v9567, 0.0
  %v9617 = vsel %vm9317, %v9568, 0.0
  %v9618 = vsel %vm9318, %v9569, 0.0
  %v9619 = vsel %vm9319, %v9570, 0.0
  %v9620 = vsel %vm9320, %v9571, 0.0
  %v9621 = vsel %vm9321, %v9572, 0.0
  %v9622 = vsel %vm9322, %v9573, 0.0
  %v9623 = vsel %vm9323, %v9574, 0.0
  %v9624 = vsel %vm9324, %v9575, 0.0
  %v9625 = vsel %vm9325, %v9576, 0.0
  %v9626 = vsel %vm9326, %v9577, 0.0
  %v9627 = vsel %vm9327, %v9578, 0.0
  %v9628 = vsel %vm9328, %v9579, 0.0
  %v9629 = vsel %vm9329, %v9580, 0.0
  %v9630 = vsel %vm9330, %v9581, 0.0
  %v9631 = vsel %vm9331, %v9582, 0.0
  %v9632 = vsel %vm9332, %v9583, 0.0
  %v9633 = vsel %vm9333, %v9584, 0.0
  %v9634 = vsel %vm9334, %v9585, 0.0
  %v9635 = vsel %vm9335, %v9586, 0.0
  %v9636 = vsel %vm9336, %v9587, 0.0
  %v9637 = vsel %vm9337, %v9588, 0.0
  %v9638 = vsel %vm9338, %v9589, 0.0
  %v9639 = vsel %vm9339, %v9590, 0.0
  %v9640 = vsel %vm9340, %v9591, 0.0
  %v9641 = vsel %vm9341, %v9592, 0.0
  %v9642 = vsel %vm9342, %v9593, 0.0
  %v9643 = vsel %vm9343, %v9594, 0.0
  %v9644 = vsel %vm9344, %v9595, 0.0
  %v9645 = vsel %vm9345, %v9596, 0.0
  %v9646 = vsel %vm9346, %v9597, 0.0
  %v9647 = vsel %vm9347, %v9598, 0.0
  %v9648 = vsel %vm9348, %v9599, 0.0
  %v9649 = vsel %vm9349, %v9600, 0.0
  %v9650 = vsel %vm9350, %v9601, 0.0
  %v9651 = vsel %vm9351, %v9602, 0.0
  %v9652 = vsel %vm9352, %v9603, 0.0
  %v9653 = vsel %vm9353, %v9604, 0.0
  %v9654 = vsel %vm9354, %v9605, 0.0
  %v9655 = vsel %vm52, %v9606, 0.0
  %v9656 = vsel %vm52, %v9607, 0.0
  %v9657 = vadd.f32 %v9655, %v9656
  %v9658 = vsel %vm52, %v9608, 0.0
  %v9659 = vadd.f32 %v9657, %v9658
  %v9660 = vsel %vm52, %v9609, 0.0
  %v9661 = vadd.f32 %v9659, %v9660
  %v9662 = vsel %vm52, %v9610, 0.0
  %v9663 = vadd.f32 %v9661, %v9662
  %v9664 = vsel %vm52, %v9611, 0.0
  %v9665 = vadd.f32 %v9663, %v9664
  %v9666 = vsel %vm52, %v9612, 0.0
  %v9667 = vadd.f32 %v9665, %v9666
  %v9668 = vsel %vm52, %v9613, 0.0
  %v9669 = vadd.f32 %v9667, %v9668
  %v9670 = vsel %vm52, %v9614, 0.0
  %v9671 = vadd.f32 %v9669, %v9670
  %v9672 = vsel %vm52, %v9615, 0.0
  %v9673 = vadd.f32 %v9671, %v9672
  %v9674 = vsel %vm52, %v9616, 0.0
  %v9675 = vadd.f32 %v9673, %v9674
  %v9676 = vsel %vm52, %v9617, 0.0
  %v9677 = vadd.f32 %v9675, %v9676
  %v9678 = vsel %vm52, %v9618, 0.0
  %v9679 = vadd.f32 %v9677, %v9678
  %v9680 = vsel %vm52, %v9619, 0.0
  %v9681 = vadd.f32 %v9679, %v9680
  %v9682 = vsel %vm52, %v9620, 0.0
  %v9683 = vadd.f32 %v9681, %v9682
  %v9684 = vsel %vm52, %v9621, 0.0
  %v9685 = vadd.f32 %v9683, %v9684
  %v9686 = vsel %vm52, %v9622, 0.0
  %v9687 = vadd.f32 %v9685, %v9686
  %v9688 = vsel %vm52, %v9623, 0.0
  %v9689 = vadd.f32 %v9687, %v9688
  %v9690 = vsel %vm52, %v9624, 0.0
  %v9691 = vadd.f32 %v9689, %v9690
  %v9692 = vsel %vm52, %v9625, 0.0
  %v9693 = vadd.f32 %v9691, %v9692
  %v9694 = vsel %vm52, %v9626, 0.0
  %v9695 = vadd.f32 %v9693, %v9694
  %v9696 = vsel %vm52, %v9627, 0.0
  %v9697 = vadd.f32 %v9695, %v9696
  %v9698 = vsel %vm52, %v9628, 0.0
  %v9699 = vadd.f32 %v9697, %v9698
  %v9700 = vsel %vm52, %v9629, 0.0
  %v9701 = vadd.f32 %v9699, %v9700
  %v9702 = vsel %vm52, %v9630, 0.0
  %v9703 = vadd.f32 %v9701, %v9702
  %v9704 = vsel %vm52, %v9631, 0.0
  %v9705 = vadd.f32 %v9703, %v9704
  %v9706 = vsel %vm52, %v9632, 0.0
  %v9707 = vadd.f32 %v9705, %v9706
  %v9708 = vsel %vm52, %v9633, 0.0
  %v9709 = vadd.f32 %v9707, %v9708
  %v9710 = vsel %vm52, %v9634, 0.0
  %v9711 = vadd.f32 %v9709, %v9710
  %v9712 = vsel %vm52, %v9635, 0.0
  %v9713 = vadd.f32 %v9711, %v9712
  %v9714 = vsel %vm52, %v9636, 0.0
  %v9715 = vadd.f32 %v9713, %v9714
  %v9716 = vsel %vm52, %v9637, 0.0
  %v9717 = vadd.f32 %v9715, %v9716
  %v9718 = vsel %vm52, %v9638, 0.0
  %v9719 = vadd.f32 %v9717, %v9718
  %v9720 = vsel %vm52, %v9639, 0.0
  %v9721 = vadd.f32 %v9719, %v9720
  %v9722 = vsel %vm52, %v9640, 0.0
  %v9723 = vadd.f32 %v9721, %v9722
  %v9724 = vsel %vm52, %v9641, 0.0
  %v9725 = vadd.f32 %v9723, %v9724
  %v9726 = vsel %vm52, %v9642, 0.0
  %v9727 = vadd.f32 %v9725, %v9726
  %v9728 = vsel %vm52, %v9643, 0.0
  %v9729 = vadd.f32 %v9727, %v9728
  %v9730 = vsel %vm52, %v9644, 0.0
  %v9731 = vadd.f32 %v9729, %v9730
  %v9732 = vsel %vm52, %v9645, 0.0
  %v9733 = vadd.f32 %v9731, %v9732
  %v9734 = vsel %vm52, %v9646, 0.0
  %v9735 = vadd.f32 %v9733, %v9734
  %v9736 = vsel %vm52, %v9647, 0.0
  %v9737 = vadd.f32 %v9735, %v9736
  %v9738 = vsel %vm52, %v9648, 0.0
  %v9739 = vadd.f32 %v9737, %v9738
  %v9740 = vsel %vm52, %v9649, 0.0
  %v9741 = vadd.f32 %v9739, %v9740
  %v9742 = vsel %vm52, %v9650, 0.0
  %v9743 = vadd.f32 %v9741, %v9742
  %v9744 = vsel %vm52, %v9651, 0.0
  %v9745 = vadd.f32 %v9743, %v9744
  %v9746 = vsel %vm52, %v9652, 0.0
  %v9747 = vadd.f32 %v9745, %v9746
  %v9748 = vsel %vm52, %v9653, 0.0
  %v9749 = vadd.f32 %v9747, %v9748
  %v9750 = vsel %vm52, %v9654, 0.0
  %v9751 = vadd.f32 %v9749, %v9750
  %v9752 = vrot.slane %v9751, 4
  %v9753 = vadd.f32 %v9751, %v9752
  %v9754 = vrot.slane %v9753, 2
  %v9755 = vadd.f32 %v9753, %v9754
  %v9756 = vrot.slane %v9755, 1
  %v9757 = vadd.f32 %v9755, %v9756
  %v9758 = vmul.f32 %v9757, 0.03125
  %v9759 = vadd.f32 %v9758, 1e-05
  %v9760 = vrsqrt.pop %v9759
  %v9761 = vmul.f32 %v9760, %v9759
  %v9762 = vmul.f32 %v9761, %v9760
  %v9763 = vmul.f32 0.5, %v9762
  %v9764 = vsub.f32 1.5, %v9763
  %v9765 = vmul.f32 %v9760, %v9764
  %vm9766 = vweird.f32 %v9759
  %vm9767 = vweird.f32 %v9760
  %vm9768 = vmor %vm9766, %vm9767
  %v9769 = vsel %vm9768, %v9760, %v9765
  %v9770 = vmul.f32 %v9508, %v9769
  %v9771 = vmul.f32 %v9509, %v9769
  %v9772 = vmul.f32 %v9510, %v9769
  %v9773 = vmul.f32 %v9511, %v9769
  %v9774 = vmul.f32 %v9512, %v9769
  %v9775 = vmul.f32 %v9513, %v9769
  %v9776 = vmul.f32 %v9514, %v9769
  %v9777 = vmul.f32 %v9515, %v9769
  %v9778 = vmul.f32 %v9516, %v9769
  %v9779 = vmul.f32 %v9517, %v9769
  %v9780 = vmul.f32 %v9518, %v9769
  %v9781 = vmul.f32 %v9519, %v9769
  %v9782 = vmul.f32 %v9520, %v9769
  %v9783 = vmul.f32 %v9521, %v9769
  %v9784 = vmul.f32 %v9522, %v9769
  %v9785 = vmul.f32 %v9523, %v9769
  %v9786 = vmul.f32 %v9524, %v9769
  %v9787 = vmul.f32 %v9525, %v9769
  %v9788 = vmul.f32 %v9526, %v9769
  %v9789 = vmul.f32 %v9527, %v9769
  %v9790 = vmul.f32 %v9528, %v9769
  %v9791 = vmul.f32 %v9529, %v9769
  %v9792 = vmul.f32 %v9530, %v9769
  %v9793 = vmul.f32 %v9531, %v9769
  %v9794 = vmul.f32 %v9532, %v9769
  %v9795 = vmul.f32 %v9533, %v9769
  %v9796 = vmul.f32 %v9534, %v9769
  %v9797 = vmul.f32 %v9535, %v9769
  %v9798 = vmul.f32 %v9536, %v9769
  %v9799 = vmul.f32 %v9537, %v9769
  %v9800 = vmul.f32 %v9538, %v9769
  %v9801 = vmul.f32 %v9539, %v9769
  %v9802 = vmul.f32 %v9540, %v9769
  %v9803 = vmul.f32 %v9541, %v9769
  %v9804 = vmul.f32 %v9542, %v9769
  %v9805 = vmul.f32 %v9543, %v9769
  %v9806 = vmul.f32 %v9544, %v9769
  %v9807 = vmul.f32 %v9545, %v9769
  %v9808 = vmul.f32 %v9546, %v9769
  %v9809 = vmul.f32 %v9547, %v9769
  %v9810 = vmul.f32 %v9548, %v9769
  %v9811 = vmul.f32 %v9549, %v9769
  %v9812 = vmul.f32 %v9550, %v9769
  %v9813 = vmul.f32 %v9551, %v9769
  %v9814 = vmul.f32 %v9552, %v9769
  %v9815 = vmul.f32 %v9553, %v9769
  %v9816 = vmul.f32 %v9554, %v9769
  %v9817 = vmul.f32 %v9555, %v9769
  %v9818 = vmul.f32 %v9556, %v9769
  %v9819 = vld [vmem:[%s9] sm:$0x1]
  %v9821 = vperm.slane %v9819, 0
  %v9823 = vmul.f32 %v9770, %v9821
  %v9824 = vmul.f32 %v9771, %v9821
  %v9825 = vmul.f32 %v9772, %v9821
  %v9826 = vmul.f32 %v9773, %v9821
  %v9827 = vmul.f32 %v9774, %v9821
  %v9828 = vmul.f32 %v9775, %v9821
  %v9829 = vmul.f32 %v9776, %v9821
  %v9830 = vmul.f32 %v9777, %v9821
  %v9831 = vmul.f32 %v9778, %v9821
  %v9832 = vmul.f32 %v9779, %v9821
  %v9833 = vmul.f32 %v9780, %v9821
  %v9834 = vmul.f32 %v9781, %v9821
  %v9835 = vmul.f32 %v9782, %v9821
  %v9836 = vmul.f32 %v9783, %v9821
  %v9837 = vmul.f32 %v9784, %v9821
  %v9838 = vmul.f32 %v9785, %v9821
  %v9839 = vmul.f32 %v9786, %v9821
  %v9840 = vmul.f32 %v9787, %v9821
  %v9841 = vmul.f32 %v9788, %v9821
  %v9842 = vmul.f32 %v9789, %v9821
  %v9843 = vmul.f32 %v9790, %v9821
  %v9844 = vmul.f32 %v9791, %v9821
  %v9845 = vmul.f32 %v9792, %v9821
  %v9846 = vmul.f32 %v9793, %v9821
  %v9847 = vmul.f32 %v9794, %v9821
  %v9848 = vmul.f32 %v9795, %v9821
  %v9849 = vmul.f32 %v9796, %v9821
  %v9850 = vmul.f32 %v9797, %v9821
  %v9851 = vmul.f32 %v9798, %v9821
  %v9852 = vmul.f32 %v9799, %v9821
  %v9853 = vmul.f32 %v9800, %v9821
  %v9854 = vmul.f32 %v9801, %v9821
  %v9855 = vmul.f32 %v9802, %v9821
  %v9856 = vmul.f32 %v9803, %v9821
  %v9857 = vmul.f32 %v9804, %v9821
  %v9858 = vmul.f32 %v9805, %v9821
  %v9859 = vmul.f32 %v9806, %v9821
  %v9860 = vmul.f32 %v9807, %v9821
  %v9861 = vmul.f32 %v9808, %v9821
  %v9862 = vmul.f32 %v9809, %v9821
  %v9863 = vmul.f32 %v9810, %v9821
  %v9864 = vmul.f32 %v9811, %v9821
  %v9865 = vmul.f32 %v9812, %v9821
  %v9866 = vmul.f32 %v9813, %v9821
  %v9867 = vmul.f32 %v9814, %v9821
  %v9868 = vmul.f32 %v9815, %v9821
  %v9869 = vmul.f32 %v9816, %v9821
  %v9870 = vmul.f32 %v9817, %v9821
  %v9871 = vmul.f32 %v9818, %v9821
  %v9872 = vld [vmem:[%s10] sm:$0x1]
  %v9874 = vperm.slane %v9872, 0
  %v9876 = vadd.f32 %v9823, %v9874
  %v9877 = vadd.f32 %v9824, %v9874
  %v9878 = vadd.f32 %v9825, %v9874
  %v9879 = vadd.f32 %v9826, %v9874
  %v9880 = vadd.f32 %v9827, %v9874
  %v9881 = vadd.f32 %v9828, %v9874
  %v9882 = vadd.f32 %v9829, %v9874
  %v9883 = vadd.f32 %v9830, %v9874
  %v9884 = vadd.f32 %v9831, %v9874
  %v9885 = vadd.f32 %v9832, %v9874
  %v9886 = vadd.f32 %v9833, %v9874
  %v9887 = vadd.f32 %v9834, %v9874
  %v9888 = vadd.f32 %v9835, %v9874
  %v9889 = vadd.f32 %v9836, %v9874
  %v9890 = vadd.f32 %v9837, %v9874
  %v9891 = vadd.f32 %v9838, %v9874
  %v9892 = vadd.f32 %v9839, %v9874
  %v9893 = vadd.f32 %v9840, %v9874
  %v9894 = vadd.f32 %v9841, %v9874
  %v9895 = vadd.f32 %v9842, %v9874
  %v9896 = vadd.f32 %v9843, %v9874
  %v9897 = vadd.f32 %v9844, %v9874
  %v9898 = vadd.f32 %v9845, %v9874
  %v9899 = vadd.f32 %v9846, %v9874
  %v9900 = vadd.f32 %v9847, %v9874
  %v9901 = vadd.f32 %v9848, %v9874
  %v9902 = vadd.f32 %v9849, %v9874
  %v9903 = vadd.f32 %v9850, %v9874
  %v9904 = vadd.f32 %v9851, %v9874
  %v9905 = vadd.f32 %v9852, %v9874
  %v9906 = vadd.f32 %v9853, %v9874
  %v9907 = vadd.f32 %v9854, %v9874
  %v9908 = vadd.f32 %v9855, %v9874
  %v9909 = vadd.f32 %v9856, %v9874
  %v9910 = vadd.f32 %v9857, %v9874
  %v9911 = vadd.f32 %v9858, %v9874
  %v9912 = vadd.f32 %v9859, %v9874
  %v9913 = vadd.f32 %v9860, %v9874
  %v9914 = vadd.f32 %v9861, %v9874
  %v9915 = vadd.f32 %v9862, %v9874
  %v9916 = vadd.f32 %v9863, %v9874
  %v9917 = vadd.f32 %v9864, %v9874
  %v9918 = vadd.f32 %v9865, %v9874
  %v9919 = vadd.f32 %v9866, %v9874
  %v9920 = vadd.f32 %v9867, %v9874
  %v9921 = vadd.f32 %v9868, %v9874
  %v9922 = vadd.f32 %v9869, %v9874
  %v9923 = vadd.f32 %v9870, %v9874
  %v9924 = vadd.f32 %v9871, %v9874
  %v9925 = vmax.f32 %v9876, 0.0
  %v9926 = vmax.f32 %v9877, 0.0
  %v9927 = vmax.f32 %v9878, 0.0
  %v9928 = vmax.f32 %v9879, 0.0
  %v9929 = vmax.f32 %v9880, 0.0
  %v9930 = vmax.f32 %v9881, 0.0
  %v9931 = vmax.f32 %v9882, 0.0
  %v9932 = vmax.f32 %v9883, 0.0
  %v9933 = vmax.f32 %v9884, 0.0
  %v9934 = vmax.f32 %v9885, 0.0
  %v9935 = vmax.f32 %v9886, 0.0
  %v9936 = vmax.f32 %v9887, 0.0
  %v9937 = vmax.f32 %v9888, 0.0
  %v9938 = vmax.f32 %v9889, 0.0
  %v9939 = vmax.f32 %v9890, 0.0
  %v9940 = vmax.f32 %v9891, 0.0
  %v9941 = vmax.f32 %v9892, 0.0
  %v9942 = vmax.f32 %v9893, 0.0
  %v9943 = vmax.f32 %v9894, 0.0
  %v9944 = vmax.f32 %v9895, 0.0
  %v9945 = vmax.f32 %v9896, 0.0
  %v9946 = vmax.f32 %v9897, 0.0
  %v9947 = vmax.f32 %v9898, 0.0
  %v9948 = vmax.f32 %v9899, 0.0
  %v9949 = vmax.f32 %v9900, 0.0
  %v9950 = vmax.f32 %v9901, 0.0
  %v9951 = vmax.f32 %v9902, 0.0
  %v9952 = vmax.f32 %v9903, 0.0
  %v9953 = vmax.f32 %v9904, 0.0
  %v9954 = vmax.f32 %v9905, 0.0
  %v9955 = vmax.f32 %v9906, 0.0
  %v9956 = vmax.f32 %v9907, 0.0
  %v9957 = vmax.f32 %v9908, 0.0
  %v9958 = vmax.f32 %v9909, 0.0
  %v9959 = vmax.f32 %v9910, 0.0
  %v9960 = vmax.f32 %v9911, 0.0
  %v9961 = vmax.f32 %v9912, 0.0
  %v9962 = vmax.f32 %v9913, 0.0
  %v9963 = vmax.f32 %v9914, 0.0
  %v9964 = vmax.f32 %v9915, 0.0
  %v9965 = vmax.f32 %v9916, 0.0
  %v9966 = vmax.f32 %v9917, 0.0
  %v9967 = vmax.f32 %v9918, 0.0
  %v9968 = vmax.f32 %v9919, 0.0
  %v9969 = vmax.f32 %v9920, 0.0
  %v9970 = vmax.f32 %v9921, 0.0
  %v9971 = vmax.f32 %v9922, 0.0
  %v9972 = vmax.f32 %v9923, 0.0
  %v9973 = vmax.f32 %v9924, 0.0
  %9974 = vst.msk [vmem:[#allocation4] sm:$0xff] %vm52, %v9925
  %9975 = vst.msk [vmem:[#allocation4 + $0x8] sm:$0xff] %vm52, %v9926
  %9976 = vst.msk [vmem:[#allocation4 + $0x10] sm:$0xff] %vm52, %v9927
  %9977 = vst.msk [vmem:[#allocation4 + $0x18] sm:$0xff] %vm52, %v9928
  %9978 = vst.msk [vmem:[#allocation4 + $0x20] sm:$0xff] %vm52, %v9929
  %9979 = vst.msk [vmem:[#allocation4 + $0x28] sm:$0xff] %vm52, %v9930
  %9980 = vst.msk [vmem:[#allocation4 + $0x30] sm:$0xff] %vm52, %v9931
  %9981 = vst.msk [vmem:[#allocation4 + $0x38] sm:$0xff] %vm52, %v9932
  %9982 = vst.msk [vmem:[#allocation4 + $0x40] sm:$0xff] %vm52, %v9933
  %9983 = vst.msk [vmem:[#allocation4 + $0x48] sm:$0xff] %vm52, %v9934
  %9984 = vst.msk [vmem:[#allocation4 + $0x50] sm:$0xff] %vm52, %v9935
  %9985 = vst.msk [vmem:[#allocation4 + $0x58] sm:$0xff] %vm52, %v9936
  %9986 = vst.msk [vmem:[#allocation4 + $0x60] sm:$0xff] %vm52, %v9937
  %9987 = vst.msk [vmem:[#allocation4 + $0x68] sm:$0xff] %vm52, %v9938
  %9988 = vst.msk [vmem:[#allocation4 + $0x70] sm:$0xff] %vm52, %v9939
  %9989 = vst.msk [vmem:[#allocation4 + $0x78] sm:$0xff] %vm52, %v9940
  %9990 = vst.msk [vmem:[#allocation4 + $0x80] sm:$0xff] %vm52, %v9941
  %9991 = vst.msk [vmem:[#allocation4 + $0x88] sm:$0xff] %vm52, %v9942
  %9992 = vst.msk [vmem:[#allocation4 + $0x90] sm:$0xff] %vm52, %v9943
  %9993 = vst.msk [vmem:[#allocation4 + $0x98] sm:$0xff] %vm52, %v9944
  %9994 = vst.msk [vmem:[#allocation4 + $0xa0] sm:$0xff] %vm52, %v9945
  %9995 = vst.msk [vmem:[#allocation4 + $0xa8] sm:$0xff] %vm52, %v9946
  %9996 = vst.msk [vmem:[#allocation4 + $0xb0] sm:$0xff] %vm52, %v9947
  %9997 = vst.msk [vmem:[#allocation4 + $0xb8] sm:$0xff] %vm52, %v9948
  %9998 = vst.msk [vmem:[#allocation4 + $0xc0] sm:$0xff] %vm52, %v9949
  %9999 = vst.msk [vmem:[#allocation4 + $0xc8] sm:$0xff] %vm52, %v9950
  %10000 = vst.msk [vmem:[#allocation4 + $0xd0] sm:$0xff] %vm52, %v9951
  %10001 = vst.msk [vmem:[#allocation4 + $0xd8] sm:$0xff] %vm52, %v9952
  %10002 = vst.msk [vmem:[#allocation4 + $0xe0] sm:$0xff] %vm52, %v9953
  %10003 = vst.msk [vmem:[#allocation4 + $0xe8] sm:$0xff] %vm52, %v9954
  %10004 = vst.msk [vmem:[#allocation4 + $0xf0] sm:$0xff] %vm52, %v9955
  %10005 = vst.msk [vmem:[#allocation4 + $0xf8] sm:$0xff] %vm52, %v9956
  %10006 = vst.msk [vmem:[#allocation4 + $0x100] sm:$0xff] %vm52, %v9957
  %10007 = vst.msk [vmem:[#allocation4 + $0x108] sm:$0xff] %vm52, %v9958
  %10008 = vst.msk [vmem:[#allocation4 + $0x110] sm:$0xff] %vm52, %v9959
  %10009 = vst.msk [vmem:[#allocation4 + $0x118] sm:$0xff] %vm52, %v9960
  %10010 = vst.msk [vmem:[#allocation4 + $0x120] sm:$0xff] %vm52, %v9961
  %10011 = vst.msk [vmem:[#allocation4 + $0x128] sm:$0xff] %vm52, %v9962
  %10012 = vst.msk [vmem:[#allocation4 + $0x130] sm:$0xff] %vm52, %v9963
  %10013 = vst.msk [vmem:[#allocation4 + $0x138] sm:$0xff] %vm52, %v9964
  %10014 = vst.msk [vmem:[#allocation4 + $0x140] sm:$0xff] %vm52, %v9965
  %10015 = vst.msk [vmem:[#allocation4 + $0x148] sm:$0xff] %vm52, %v9966
  %10016 = vst.msk [vmem:[#allocation4 + $0x150] sm:$0xff] %vm52, %v9967
  %10017 = vst.msk [vmem:[#allocation4 + $0x158] sm:$0xff] %vm52, %v9968
  %10018 = vst.msk [vmem:[#allocation4 + $0x160] sm:$0xff] %vm52, %v9969
  %10019 = vst.msk [vmem:[#allocation4 + $0x168] sm:$0xff] %vm52, %v9970
  %10020 = vst.msk [vmem:[#allocation4 + $0x170] sm:$0xff] %vm52, %v9971
  %10021 = vst.msk [vmem:[#allocation4 + $0x178] sm:$0xff] %vm52, %v9972
  %10022 = vst.msk [vmem:[#allocation4 + $0x180] sm:$0xff] %vm52, %v9973
  %v10023 = vld [vmem:[#allocation4] sm:$0xff]
  %v10024 = vld [vmem:[#allocation4 + $0x8] sm:$0xff]
  %v10025 = vld [vmem:[#allocation4 + $0x10] sm:$0xff]
  %v10026 = vld [vmem:[#allocation4 + $0x18] sm:$0xff]
  %v10027 = vld [vmem:[#allocation4 + $0x20] sm:$0xff]
  %v10028 = vld [vmem:[#allocation4 + $0x28] sm:$0xff]
  %v10029 = vld [vmem:[#allocation4 + $0x30] sm:$0xff]
  %v10030 = vld [vmem:[#allocation4 + $0x38] sm:$0xff]
  %v10031 = vld [vmem:[#allocation4 + $0x40] sm:$0xff]
  %v10032 = vld [vmem:[#allocation4 + $0x48] sm:$0xff]
  %v10033 = vld [vmem:[#allocation4 + $0x50] sm:$0xff]
  %v10034 = vld [vmem:[#allocation4 + $0x58] sm:$0xff]
  %v10035 = vld [vmem:[#allocation4 + $0x60] sm:$0xff]
  %v10036 = vld [vmem:[#allocation4 + $0x68] sm:$0xff]
  %v10037 = vld [vmem:[#allocation4 + $0x70] sm:$0xff]
  %v10038 = vld [vmem:[#allocation4 + $0x78] sm:$0xff]
  %v10039 = vld [vmem:[#allocation4 + $0x80] sm:$0xff]
  %v10040 = vld [vmem:[#allocation4 + $0x88] sm:$0xff]
  %v10041 = vld [vmem:[#allocation4 + $0x90] sm:$0xff]
  %v10042 = vld [vmem:[#allocation4 + $0x98] sm:$0xff]
  %v10043 = vld [vmem:[#allocation4 + $0xa0] sm:$0xff]
  %v10044 = vld [vmem:[#allocation4 + $0xa8] sm:$0xff]
  %v10045 = vld [vmem:[#allocation4 + $0xb0] sm:$0xff]
  %v10046 = vld [vmem:[#allocation4 + $0xb8] sm:$0xff]
  %v10047 = vld [vmem:[#allocation4 + $0xc0] sm:$0xff]
  %v10048 = vld [vmem:[#allocation4 + $0xc8] sm:$0xff]
  %v10049 = vld [vmem:[#allocation4 + $0xd0] sm:$0xff]
  %v10050 = vld [vmem:[#allocation4 + $0xd8] sm:$0xff]
  %v10051 = vld [vmem:[#allocation4 + $0xe0] sm:$0xff]
  %v10052 = vld [vmem:[#allocation4 + $0xe8] sm:$0xff]
  %v10053 = vld [vmem:[#allocation4 + $0xf0] sm:$0xff]
  %v10054 = vld [vmem:[#allocation4 + $0xf8] sm:$0xff]
  %v10055 = vld [vmem:[#allocation4 + $0x100] sm:$0xff]
  %v10056 = vld [vmem:[#allocation4 + $0x108] sm:$0xff]
  %v10057 = vld [vmem:[#allocation4 + $0x110] sm:$0xff]
  %v10058 = vld [vmem:[#allocation4 + $0x118] sm:$0xff]
  %v10059 = vld [vmem:[#allocation4 + $0x120] sm:$0xff]
  %v10060 = vld [vmem:[#allocation4 + $0x128] sm:$0xff]
  %v10061 = vld [vmem:[#allocation4 + $0x130] sm:$0xff]
  %v10062 = vld [vmem:[#allocation4 + $0x138] sm:$0xff]
  %v10063 = vld [vmem:[#allocation4 + $0x140] sm:$0xff]
  %v10064 = vld [vmem:[#allocation4 + $0x148] sm:$0xff]
  %v10065 = vld [vmem:[#allocation4 + $0x150] sm:$0xff]
  %v10066 = vld [vmem:[#allocation4 + $0x158] sm:$0xff]
  %v10067 = vld [vmem:[#allocation4 + $0x160] sm:$0xff]
  %v10068 = vld [vmem:[#allocation4 + $0x168] sm:$0xff]
  %v10069 = vld [vmem:[#allocation4 + $0x170] sm:$0xff]
  %v10070 = vld [vmem:[#allocation4 + $0x178] sm:$0xff]
  %v10071 = vld [vmem:[#allocation4 + $0x180] sm:$0xff]
  %v10072 = vld [vmem:[#allocation4 + $0x4] sm:$0xff]
  %v10073 = vld [vmem:[#allocation4 + $0xc] sm:$0xff]
  %v10074 = vld [vmem:[#allocation4 + $0x14] sm:$0xff]
  %v10075 = vld [vmem:[#allocation4 + $0x1c] sm:$0xff]
  %v10076 = vld [vmem:[#allocation4 + $0x24] sm:$0xff]
  %v10077 = vld [vmem:[#allocation4 + $0x2c] sm:$0xff]
  %v10078 = vld [vmem:[#allocation4 + $0x34] sm:$0xff]
  %v10079 = vld [vmem:[#allocation4 + $0x3c] sm:$0xff]
  %v10080 = vld [vmem:[#allocation4 + $0x44] sm:$0xff]
  %v10081 = vld [vmem:[#allocation4 + $0x4c] sm:$0xff]
  %v10082 = vld [vmem:[#allocation4 + $0x54] sm:$0xff]
  %v10083 = vld [vmem:[#allocation4 + $0x5c] sm:$0xff]
  %v10084 = vld [vmem:[#allocation4 + $0x64] sm:$0xff]
  %v10085 = vld [vmem:[#allocation4 + $0x6c] sm:$0xff]
  %v10086 = vld [vmem:[#allocation4 + $0x74] sm:$0xff]
  %v10087 = vld [vmem:[#allocation4 + $0x7c] sm:$0xff]
  %v10088 = vld [vmem:[#allocation4 + $0x84] sm:$0xff]
  %v10089 = vld [vmem:[#allocation4 + $0x8c] sm:$0xff]
  %v10090 = vld [vmem:[#allocation4 + $0x94] sm:$0xff]
  %v10091 = vld [vmem:[#allocation4 + $0x9c] sm:$0xff]
  %v10092 = vld [vmem:[#allocation4 + $0xa4] sm:$0xff]
  %v10093 = vld [vmem:[#allocation4 + $0xac] sm:$0xff]
  %v10094 = vld [vmem:[#allocation4 + $0xb4] sm:$0xff]
  %v10095 = vld [vmem:[#allocation4 + $0xbc] sm:$0xff]
  %v10096 = vld [vmem:[#allocation4 + $0xc4] sm:$0xff]
  %v10097 = vld [vmem:[#allocation4 + $0xcc] sm:$0xff]
  %v10098 = vld [vmem:[#allocation4 + $0xd4] sm:$0xff]
  %v10099 = vld [vmem:[#allocation4 + $0xdc] sm:$0xff]
  %v10100 = vld [vmem:[#allocation4 + $0xe4] sm:$0xff]
  %v10101 = vld [vmem:[#allocation4 + $0xec] sm:$0xff]
  %v10102 = vld [vmem:[#allocation4 + $0xf4] sm:$0xff]
  %v10103 = vld [vmem:[#allocation4 + $0xfc] sm:$0xff]
  %v10104 = vld [vmem:[#allocation4 + $0x104] sm:$0xff]
  %v10105 = vld [vmem:[#allocation4 + $0x10c] sm:$0xff]
  %v10106 = vld [vmem:[#allocation4 + $0x114] sm:$0xff]
  %v10107 = vld [vmem:[#allocation4 + $0x11c] sm:$0xff]
  %v10108 = vld [vmem:[#allocation4 + $0x124] sm:$0xff]
  %v10109 = vld [vmem:[#allocation4 + $0x12c] sm:$0xff]
  %v10110 = vld [vmem:[#allocation4 + $0x134] sm:$0xff]
  %v10111 = vld [vmem:[#allocation4 + $0x13c] sm:$0xff]
  %v10112 = vld [vmem:[#allocation4 + $0x144] sm:$0xff]
  %v10113 = vld [vmem:[#allocation4 + $0x14c] sm:$0xff]
  %v10114 = vld [vmem:[#allocation4 + $0x154] sm:$0xff]
  %v10115 = vld [vmem:[#allocation4 + $0x15c] sm:$0xff]
  %v10116 = vld [vmem:[#allocation4 + $0x164] sm:$0xff]
  %v10117 = vld [vmem:[#allocation4 + $0x16c] sm:$0xff]
  %v10118 = vld [vmem:[#allocation4 + $0x174] sm:$0xff]
  %v10119 = vld [vmem:[#allocation4 + $0x17c] sm:$0xff]
  %v10120 = vld [vmem:[#allocation4 + $0x184] sm:$0xff]
  %v10121 = vmax.f32 %v10023, %v10072
  %v10122 = vmax.f32 %v10024, %v10073
  %v10123 = vmax.f32 %v10025, %v10074
  %v10124 = vmax.f32 %v10026, %v10075
  %v10125 = vmax.f32 %v10027, %v10076
  %v10126 = vmax.f32 %v10028, %v10077
  %v10127 = vmax.f32 %v10029, %v10078
  %v10128 = vmax.f32 %v10030, %v10079
  %v10129 = vmax.f32 %v10031, %v10080
  %v10130 = vmax.f32 %v10032, %v10081
  %v10131 = vmax.f32 %v10033, %v10082
  %v10132 = vmax.f32 %v10034, %v10083
  %v10133 = vmax.f32 %v10035, %v10084
  %v10134 = vmax.f32 %v10036, %v10085
  %v10135 = vmax.f32 %v10037, %v10086
  %v10136 = vmax.f32 %v10038, %v10087
  %v10137 = vmax.f32 %v10039, %v10088
  %v10138 = vmax.f32 %v10040, %v10089
  %v10139 = vmax.f32 %v10041, %v10090
  %v10140 = vmax.f32 %v10042, %v10091
  %v10141 = vmax.f32 %v10043, %v10092
  %v10142 = vmax.f32 %v10044, %v10093
  %v10143 = vmax.f32 %v10045, %v10094
  %v10144 = vmax.f32 %v10046, %v10095
  %v10145 = vmax.f32 %v10047, %v10096
  %v10146 = vmax.f32 %v10048, %v10097
  %v10147 = vmax.f32 %v10049, %v10098
  %v10148 = vmax.f32 %v10050, %v10099
  %v10149 = vmax.f32 %v10051, %v10100
  %v10150 = vmax.f32 %v10052, %v10101
  %v10151 = vmax.f32 %v10053, %v10102
  %v10152 = vmax.f32 %v10054, %v10103
  %v10153 = vmax.f32 %v10055, %v10104
  %v10154 = vmax.f32 %v10056, %v10105
  %v10155 = vmax.f32 %v10057, %v10106
  %v10156 = vmax.f32 %v10058, %v10107
  %v10157 = vmax.f32 %v10059, %v10108
  %v10158 = vmax.f32 %v10060, %v10109
  %v10159 = vmax.f32 %v10061, %v10110
  %v10160 = vmax.f32 %v10062, %v10111
  %v10161 = vmax.f32 %v10063, %v10112
  %v10162 = vmax.f32 %v10064, %v10113
  %v10163 = vmax.f32 %v10065, %v10114
  %v10164 = vmax.f32 %v10066, %v10115
  %v10165 = vmax.f32 %v10067, %v10116
  %v10166 = vmax.f32 %v10068, %v10117
  %v10167 = vmax.f32 %v10069, %v10118
  %v10168 = vmax.f32 %v10070, %v10119
  %v10169 = vmax.f32 %v10071, %v10120
  %v10170 = vld [vmem:[#allocation4 + $0x188] sm:$0xff]
  %v10171 = vld [vmem:[#allocation4 + $0x190] sm:$0xff]
  %v10172 = vld [vmem:[#allocation4 + $0x198] sm:$0xff]
  %v10173 = vld [vmem:[#allocation4 + $0x1a0] sm:$0xff]
  %v10174 = vld [vmem:[#allocation4 + $0x1a8] sm:$0xff]
  %v10175 = vld [vmem:[#allocation4 + $0x1b0] sm:$0xff]
  %v10176 = vld [vmem:[#allocation4 + $0x1b8] sm:$0xff]
  %v10177 = vld [vmem:[#allocation4 + $0x18c] sm:$0xff]
  %v10178 = vld [vmem:[#allocation4 + $0x194] sm:$0xff]
  %v10179 = vld [vmem:[#allocation4 + $0x19c] sm:$0xff]
  %v10180 = vld [vmem:[#allocation4 + $0x1a4] sm:$0xff]
  %v10181 = vld [vmem:[#allocation4 + $0x1ac] sm:$0xff]
  %v10182 = vld [vmem:[#allocation4 + $0x1b4] sm:$0xff]
  %v10183 = vld [vmem:[#allocation4 + $0x1bc] sm:$0xff]
  %v10184 = vmax.f32 %v10170, %v10177
  %v10185 = vmax.f32 %v10171, %v10178
  %v10186 = vmax.f32 %v10172, %v10179
  %v10187 = vmax.f32 %v10173, %v10180
  %v10188 = vmax.f32 %v10174, %v10181
  %v10189 = vmax.f32 %v10175, %v10182
  %v10190 = vmax.f32 %v10176, %v10183
  %v10191 = vmax.f32 %v10121, %v10128
  %v10192 = vmax.f32 %v10122, %v10129
  %v10193 = vmax.f32 %v10123, %v10130
  %v10194 = vmax.f32 %v10124, %v10131
  %v10195 = vmax.f32 %v10125, %v10132
  %v10196 = vmax.f32 %v10126, %v10133
  %v10197 = vmax.f32 %v10127, %v10134
  %v10198 = vmax.f32 %v10128, %v10135
  %v10199 = vmax.f32 %v10129, %v10136
  %v10200 = vmax.f32 %v10130, %v10137
  %v10201 = vmax.f32 %v10131, %v10138
  %v10202 = vmax.f32 %v10132, %v10139
  %v10203 = vmax.f32 %v10133, %v10140
  %v10204 = vmax.f32 %v10134, %v10141
  %v10205 = vmax.f32 %v10135, %v10142
  %v10206 = vmax.f32 %v10136, %v10143
  %v10207 = vmax.f32 %v10137, %v10144
  %v10208 = vmax.f32 %v10138, %v10145
  %v10209 = vmax.f32 %v10139, %v10146
  %v10210 = vmax.f32 %v10140, %v10147
  %v10211 = vmax.f32 %v10141, %v10148
  %v10212 = vmax.f32 %v10142, %v10149
  %v10213 = vmax.f32 %v10143, %v10150
  %v10214 = vmax.f32 %v10144, %v10151
  %v10215 = vmax.f32 %v10145, %v10152
  %v10216 = vmax.f32 %v10146, %v10153
  %v10217 = vmax.f32 %v10147, %v10154
  %v10218 = vmax.f32 %v10148, %v10155
  %v10219 = vmax.f32 %v10149, %v10156
  %v10220 = vmax.f32 %v10150, %v10157
  %v10221 = vmax.f32 %v10151, %v10158
  %v10222 = vmax.f32 %v10152, %v10159
  %v10223 = vmax.f32 %v10153, %v10160
  %v10224 = vmax.f32 %v10154, %v10161
  %v10225 = vmax.f32 %v10155, %v10162
  %v10226 = vmax.f32 %v10156, %v10163
  %v10227 = vmax.f32 %v10157, %v10164
  %v10228 = vmax.f32 %v10158, %v10165
  %v10229 = vmax.f32 %v10159, %v10166
  %v10230 = vmax.f32 %v10160, %v10167
  %v10231 = vmax.f32 %v10161, %v10168
  %v10232 = vmax.f32 %v10162, %v10169
  %v10233 = vmax.f32 %v10163, %v10184
  %v10234 = vmax.f32 %v10164, %v10185
  %v10235 = vmax.f32 %v10165, %v10186
  %v10236 = vmax.f32 %v10166, %v10187
  %v10237 = vmax.f32 %v10167, %v10188
  %v10238 = vmax.f32 %v10168, %v10189
  %v10239 = vmax.f32 %v10169, %v10190
  %10240 = vst.msk [vmem:[#allocation5] sm:$0xff] %vm52, %v10191
  %10241 = vst.msk [vmem:[#allocation5 + $0x8] sm:$0xff] %vm52, %v10192
  %10242 = vst.msk [vmem:[#allocation5 + $0x10] sm:$0xff] %vm52, %v10193
  %10243 = vst.msk [vmem:[#allocation5 + $0x18] sm:$0xff] %vm52, %v10194
  %10244 = vst.msk [vmem:[#allocation5 + $0x20] sm:$0xff] %vm52, %v10195
  %10245 = vst.msk [vmem:[#allocation5 + $0x28] sm:$0xff] %vm52, %v10196
  %10246 = vst.msk [vmem:[#allocation5 + $0x30] sm:$0xff] %vm52, %v10197
  %10247 = vst.msk [vmem:[#allocation5 + $0x38] sm:$0xff] %vm52, %v10198
  %10248 = vst.msk [vmem:[#allocation5 + $0x40] sm:$0xff] %vm52, %v10199
  %10249 = vst.msk [vmem:[#allocation5 + $0x48] sm:$0xff] %vm52, %v10200
  %10250 = vst.msk [vmem:[#allocation5 + $0x50] sm:$0xff] %vm52, %v10201
  %10251 = vst.msk [vmem:[#allocation5 + $0x58] sm:$0xff] %vm52, %v10202
  %10252 = vst.msk [vmem:[#allocation5 + $0x60] sm:$0xff] %vm52, %v10203
  %10253 = vst.msk [vmem:[#allocation5 + $0x68] sm:$0xff] %vm52, %v10204
  %10254 = vst.msk [vmem:[#allocation5 + $0x70] sm:$0xff] %vm52, %v10205
  %10255 = vst.msk [vmem:[#allocation5 + $0x78] sm:$0xff] %vm52, %v10206
  %10256 = vst.msk [vmem:[#allocation5 + $0x80] sm:$0xff] %vm52, %v10207
  %10257 = vst.msk [vmem:[#allocation5 + $0x88] sm:$0xff] %vm52, %v10208
  %10258 = vst.msk [vmem:[#allocation5 + $0x90] sm:$0xff] %vm52, %v10209
  %10259 = vst.msk [vmem:[#allocation5 + $0x98] sm:$0xff] %vm52, %v10210
  %10260 = vst.msk [vmem:[#allocation5 + $0xa0] sm:$0xff] %vm52, %v10211
  %10261 = vst.msk [vmem:[#allocation5 + $0xa8] sm:$0xff] %vm52, %v10212
  %10262 = vst.msk [vmem:[#allocation5 + $0xb0] sm:$0xff] %vm52, %v10213
  %10263 = vst.msk [vmem:[#allocation5 + $0xb8] sm:$0xff] %vm52, %v10214
  %10264 = vst.msk [vmem:[#allocation5 + $0xc0] sm:$0xff] %vm52, %v10215
  %10265 = vst.msk [vmem:[#allocation5 + $0xc8] sm:$0xff] %vm52, %v10216
  %10266 = vst.msk [vmem:[#allocation5 + $0xd0] sm:$0xff] %vm52, %v10217
  %10267 = vst.msk [vmem:[#allocation5 + $0xd8] sm:$0xff] %vm52, %v10218
  %10268 = vst.msk [vmem:[#allocation5 + $0xe0] sm:$0xff] %vm52, %v10219
  %10269 = vst.msk [vmem:[#allocation5 + $0xe8] sm:$0xff] %vm52, %v10220
  %10270 = vst.msk [vmem:[#allocation5 + $0xf0] sm:$0xff] %vm52, %v10221
  %10271 = vst.msk [vmem:[#allocation5 + $0xf8] sm:$0xff] %vm52, %v10222
  %10272 = vst.msk [vmem:[#allocation5 + $0x100] sm:$0xff] %vm52, %v10223
  %10273 = vst.msk [vmem:[#allocation5 + $0x108] sm:$0xff] %vm52, %v10224
  %10274 = vst.msk [vmem:[#allocation5 + $0x110] sm:$0xff] %vm52, %v10225
  %10275 = vst.msk [vmem:[#allocation5 + $0x118] sm:$0xff] %vm52, %v10226
  %10276 = vst.msk [vmem:[#allocation5 + $0x120] sm:$0xff] %vm52, %v10227
  %10277 = vst.msk [vmem:[#allocation5 + $0x128] sm:$0xff] %vm52, %v10228
  %10278 = vst.msk [vmem:[#allocation5 + $0x130] sm:$0xff] %vm52, %v10229
  %10279 = vst.msk [vmem:[#allocation5 + $0x138] sm:$0xff] %vm52, %v10230
  %10280 = vst.msk [vmem:[#allocation5 + $0x140] sm:$0xff] %vm52, %v10231
  %10281 = vst.msk [vmem:[#allocation5 + $0x148] sm:$0xff] %vm52, %v10232
  %10282 = vst.msk [vmem:[#allocation5 + $0x150] sm:$0xff] %vm52, %v10233
  %10283 = vst.msk [vmem:[#allocation5 + $0x158] sm:$0xff] %vm52, %v10234
  %10284 = vst.msk [vmem:[#allocation5 + $0x160] sm:$0xff] %vm52, %v10235
  %10285 = vst.msk [vmem:[#allocation5 + $0x168] sm:$0xff] %vm52, %v10236
  %10286 = vst.msk [vmem:[#allocation5 + $0x170] sm:$0xff] %vm52, %v10237
  %10287 = vst.msk [vmem:[#allocation5 + $0x178] sm:$0xff] %vm52, %v10238
  %10288 = vst.msk [vmem:[#allocation5 + $0x180] sm:$0xff] %vm52, %v10239
  %v10289 = vld [vmem:[#allocation5] sm:$0x3]
  %v10290 = vld [vmem:[%s11] sm:$0xff]
  %v10291 = vld [vmem:[#allocation5 + $0x8] sm:$0x3]
  %v10292 = vld [vmem:[%s11 + $0x8] sm:$0xff]
  %v10294 = vsel %vm52, %v10291, 0
  %10296 = vmatpush.msra.mxu0 0.0
  %10297 = vmatpush.msra.mxu0 0.0
  %10298 = vmatpush.msra.mxu0 0.0
  %10299 = vmatpush.msra.mxu0 0.0
  %10300 = vmatpush.msra.mxu0 0.0
  %10301 = vmatpush.msra.mxu0 0.0
  %10302 = vmatpush.msra.mxu0 0.0
  %10303 = vmatpush.msra.mxu0 0.0
  %10304 = vmatpush.msra.mxu0 0.0
  %10305 = vmatpush.msra.mxu0 0.0
  %10306 = vmatpush.msra.mxu0 0.0
  %10307 = vmatpush.msra.mxu0 0.0
  %10308 = vmatpush.msra.mxu0 0.0
  %10309 = vmatpush.msra.mxu0 0.0
  %10310 = vmatpush.msra.mxu0 0.0
  %10311 = vmatpush.msra.mxu0 %v10292
  %10312 = vmatmul.f32.gmra.mxu0 %v10294
  %v10313 = vpop.f32.mrf.mxu0
  %v10314 = vadd.f32 0.0, %v10313
  %10315 = vdwg.mxu0
  %v10317 = vsel %vm52, %v10289, 0
  %10319 = vmatpush.msra.mxu0 0.0
  %10320 = vmatpush.msra.mxu0 0.0
  %10321 = vmatpush.msra.mxu0 0.0
  %10322 = vmatpush.msra.mxu0 0.0
  %10323 = vmatpush.msra.mxu0 0.0
  %10324 = vmatpush.msra.mxu0 0.0
  %10325 = vmatpush.msra.mxu0 0.0
  %10326 = vmatpush.msra.mxu0 0.0
  %10327 = vmatpush.msra.mxu0 0.0
  %10328 = vmatpush.msra.mxu0 0.0
  %10329 = vmatpush.msra.mxu0 0.0
  %10330 = vmatpush.msra.mxu0 0.0
  %10331 = vmatpush.msra.mxu0 0.0
  %10332 = vmatpush.msra.mxu0 0.0
  %10333 = vmatpush.msra.mxu0 0.0
  %10334 = vmatpush.msra.mxu0 %v10290
  %10335 = vmatmul.f32.gmra.mxu0 %v10317
  %v10336 = vpop.f32.mrf.mxu0
  %v10337 = vadd.f32 %v10314, %v10336
  %10338 = vdwg.mxu0
  %v10339 = vld [vmem:[#allocation5 + $0x70] sm:$0x3]
  %v10340 = vld [vmem:[%s11 + $0x10] sm:$0xff]
  %v10342 = vsel %vm52, %v10339, 0
  %10344 = vmatpush.msra.mxu0 0.0
  %10345 = vmatpush.msra.mxu0 0.0
  %10346 = vmatpush.msra.mxu0 0.0
  %10347 = vmatpush.msra.mxu0 0.0
  %10348 = vmatpush.msra.mxu0 0.0
  %10349 = vmatpush.msra.mxu0 0.0
  %10350 = vmatpush.msra.mxu0 0.0
  %10351 = vmatpush.msra.mxu0 0.0
  %10352 = vmatpush.msra.mxu0 0.0
  %10353 = vmatpush.msra.mxu0 0.0
  %10354 = vmatpush.msra.mxu0 0.0
  %10355 = vmatpush.msra.mxu0 0.0
  %10356 = vmatpush.msra.mxu0 0.0
  %10357 = vmatpush.msra.mxu0 0.0
  %10358 = vmatpush.msra.mxu0 0.0
  %10359 = vmatpush.msra.mxu0 %v10340
  %10360 = vmatmul.f32.gmra.mxu0 %v10342
  %v10361 = vpop.f32.mrf.mxu0
  %v10362 = vadd.f32 0.0, %v10361
  %10363 = vdwg.mxu0
  %v10364 = vadd.f32 %v10337, %v10362
  %v10365 = vld [vmem:[#allocation5 + $0x78] sm:$0x3]
  %v10366 = vld [vmem:[%s11 + $0x18] sm:$0xff]
  %v10368 = vsel %vm52, %v10365, 0
  %10370 = vmatpush.msra.mxu0 0.0
  %10371 = vmatpush.msra.mxu0 0.0
  %10372 = vmatpush.msra.mxu0 0.0
  %10373 = vmatpush.msra.mxu0 0.0
  %10374 = vmatpush.msra.mxu0 0.0
  %10375 = vmatpush.msra.mxu0 0.0
  %10376 = vmatpush.msra.mxu0 0.0
  %10377 = vmatpush.msra.mxu0 0.0
  %10378 = vmatpush.msra.mxu0 0.0
  %10379 = vmatpush.msra.mxu0 0.0
  %10380 = vmatpush.msra.mxu0 0.0
  %10381 = vmatpush.msra.mxu0 0.0
  %10382 = vmatpush.msra.mxu0 0.0
  %10383 = vmatpush.msra.mxu0 0.0
  %10384 = vmatpush.msra.mxu0 0.0
  %10385 = vmatpush.msra.mxu0 %v10366
  %10386 = vmatmul.f32.gmra.mxu0 %v10368
  %v10387 = vpop.f32.mrf.mxu0
  %v10388 = vadd.f32 0.0, %v10387
  %10389 = vdwg.mxu0
  %v10390 = vadd.f32 %v10364, %v10388
  %v10391 = vld [vmem:[%s12] sm:$0x1]
  %v10393 = vperm.slane %v10391, 0
  %v10395 = vadd.f32 %v10390, %v10393
  %v10396 = vmax.f32 %v10395, 0.0
  %v10397 = vld [vmem:[%s13] sm:$0xff]
  %v10398 = vld [vmem:[#allocation6] sm:$0x1]
  %v10400 = vperm.slane %v10398, 0
  %v10403 = vsel %vm52, %v10396, 0
  %10405 = vmatpush.msra.mxu0 0.0
  %10406 = vmatpush.msra.mxu0 0.0
  %10407 = vmatpush.msra.mxu0 0.0
  %10408 = vmatpush.msra.mxu0 0.0
  %10409 = vmatpush.msra.mxu0 0.0
  %10410 = vmatpush.msra.mxu0 0.0
  %10411 = vmatpush.msra.mxu0 0.0
  %10412 = vmatpush.msra.mxu0 0.0
  %10413 = vmatpush.msra.mxu0 0.0
  %10414 = vmatpush.msra.mxu0 0.0
  %10415 = vmatpush.msra.mxu0 0.0
  %10416 = vmatpush.msra.mxu0 0.0
  %10417 = vmatpush.msra.mxu0 0.0
  %10418 = vmatpush.msra.mxu0 0.0
  %10419 = vmatpush.msra.mxu0 0.0
  %10420 = vmatpush.msra.mxu0 %v10397
  %10421 = vmatmul.f32.gmra.mxu0 %v10403
  %v10422 = vpop.f32.mrf.mxu0
  %v10423 = vadd.f32 %v10400, %v10422
  %10424 = vdwg.mxu0
  %vm10425 = vcmask 1024
  %10426 = vst.msk [vmem:[%s15] sm:$0x3] %vm10425, %v10423
  // Predicated region
  $region62: #{relation_layer_forward.1} parent=0 // pred_check
    _
  $region63: #{relation_layer_forward.1} parent=0 // pred_check_branch
    %10428 = sbr.rel (0) target = $region65
  $region64: #{relation_layer_forward.1} parent=0 // pred_region
    _
  $region65: #{relation_layer_forward.1} parent=0 // pred_fallthru
    _
  // Predicated region
  $region66: #{relation_layer_forward.1} parent=0 // pred_check
    _
  $region67: #{relation_layer_forward.1} parent=0 // pred_check_branch
    %10430 = sbr.rel (0) target = $region69
  $region68: #{relation_layer_forward.1} parent=0 // pred_region
    _
  $region69: #{relation_layer_forward.1} parent=0 // pred_fallthru
    _

</llo_original>
